<compile_context>
chip_gen: v6e
topology: v6e:2x2x1
jax: 0.10.0
libtpu: 0.0.40
codegen_flags: <defaults>
</compile_context>

<pallas_src>
import functools

import jax
import jax.numpy as jnp
import numpy as np
from jax.experimental import pallas as pl
from jax.experimental.pallas import tpu as pltpu


def unit_gcn_kernel(x_vc_ref, x_cv_ref, xdiag_ref, a1t_ref, a0diag_ref,
                    wse1_ref, wse2_ref, w0_ref, wr_ref, bias_ref, y_ref,
                    *, approx_sigmoid=True):
    x = x_vc_ref[...]        # (b, Vp, Vp)  x[n, v, c]  vertex-major, zero padded past V/C
    xT = x_cv_ref[...]       # (b, Vp, Vp)  xT[n, c, v] channel-major view of the same data
    b, Vp, _ = x.shape

    # ---- SE gate: sum over channels (1/C folded into wse1) -> FC -> ReLU -> FC -> sigmoid
    pooled = jnp.sum(x, axis=2)                                       # (b, Vp)
    h = jnp.maximum(
        jnp.dot(pooled, wse1_ref[...], preferred_element_type=jnp.float32), 0.0)
    z = jnp.dot(h, wse2_ref[...], preferred_element_type=jnp.float32)
    if approx_sigmoid:
        scale = pl.reciprocal(1.0 + jnp.exp(-z), approx=True)         # sigmoid(z), (b, Vp)
    else:
        scale = jax.nn.sigmoid(z)

    # ---- graph terms (channel-major view comes from HBM -> no in-kernel XLU transposes)
    sT = xT * scale[:, None, :]                     # sT[n,w,v] = x[n,v,w] * scale[n,v]
    xxxT = sT * a1t_ref[...][None, :, :]            # (xs_se * A1)^T per frame, (b, Vp, Vp)
    colsum = jnp.sum(sT, axis=2)                    # sum_v xs_se[n,v,i]        -> (b, Vp)
    d = a0diag_ref[...] * (colsum - xdiag_ref[...] * scale)           # (b, Vp)

    xa0 = x * d[:, :, None]                         # (b,Vp,Vp) == (x_cv @ diag(d))^T
    xa1 = jnp.einsum('bwv,bvc->bwc', xxxT, x,       # (x_cv @ xxx)^T, standard MXU form
                     preferred_element_type=jnp.float32)

    # ---- folded 1x1 convs (+BN, +summed biases) as two big-M MXU matmuls on the flat
    #      (b*Vp, Vp) view; Vp % 8 == 0 makes the flatten a layout-preserving shape cast.
    xa0f = xa0.reshape(b * Vp, Vp)
    xa1f = xa1.reshape(b * Vp, Vp)
    y = (jnp.dot(xa0f, w0_ref[...], preferred_element_type=jnp.float32)
         + jnp.dot(xa1f, wr_ref[...], preferred_element_type=jnp.float32)
         + bias_ref[...])
    y_ref[...] = jnp.maximum(y, 0.0).astype(y_ref.dtype)


def unit_gcn_forward(x, params, *, block_nt=None, approx_sigmoid=True,
                     vmem_limit_bytes=None):
    """x: (N, C, T, V) float32 (PyTorch NCHW). Returns (y, mask) with y: (N, OC, T, V)."""
    N, C, T, V = x.shape
    NT = N * T
    assert C == V, "module semantics require in_channels == V"

    if block_nt is None:
        # Largest block that still yields >= 4 grid steps: amortizes per-step overhead
        # while keeping the DMA pipeline busy on 1-TC (v5e/v6e) and 2-TC (v7x) chips.
        block_nt = NT
        for cand in (128, 64, 32, 16, 8, 4, 2, 1):
            if NT % cand == 0 and NT // cand >= 4:
                block_nt = cand
                break
    assert NT % block_nt == 0

    A = params['A']                                  # (num_A, V, V)
    W = params['w_conv']                             # (num_A, OC, C)
    OC = W.shape[1]
    Vh = params['w_se1'].shape[0]
    Vp = ((V + 7) // 8) * 8                          # pad vertex/channel dims to sublane tile

    # ---------------- glue: layout conversion + zero padding + parameter folding --------
    x_vc = jnp.transpose(x, (0, 2, 3, 1)).reshape(NT, V, C)           # (NT, V, C)
    x_vc_p = jnp.pad(x_vc, ((0, 0), (0, Vp - V), (0, Vp - C)))        # (NT, Vp, Vp)
    x_cv_p = jnp.transpose(x_vc_p, (0, 2, 1))                         # (NT, Vp, Vp)
    x_diag_p = jnp.pad(jnp.diagonal(x_vc, axis1=1, axis2=2),
                       ((0, 0), (0, Vp - V)))                         # (NT, Vp)

    a1t_p = jnp.pad(A[1].T, ((0, Vp - V), (0, Vp - V)))               # (Vp, Vp)
    a0diag_p = jnp.pad(jnp.diagonal(A[0]), (0, Vp - V))[None, :]      # (1, Vp)
    wse1_p = jnp.pad(params['w_se1'].T / C, ((0, Vp - V), (0, 0)))    # (Vp, Vh), 1/C folded
    wse2_p = jnp.pad(params['w_se2'].T, ((0, 0), (0, Vp - V)))        # (Vh, Vp)

    eps = 1e-5
    bn_scale = params['bn_gamma'] / jnp.sqrt(params['bn_var'] + eps)  # (OC,)
    bn_bias = params['bn_beta'] - params['bn_mean'] * bn_scale        # (OC,)
    # branch folding: every i>=1 branch reuses the same xa1 -> sum their weights once.
    w0_p = jnp.pad((W[0] * bn_scale[:, None]).T,
                   ((0, Vp - C), (0, 0)))                             # (Vp, OC)
    wr_p = jnp.pad((jnp.sum(W[1:], axis=0) * bn_scale[:, None]).T,
                   ((0, Vp - C), (0, 0)))                             # (Vp, OC)
    b_fused = (jnp.sum(params['b_conv'], axis=0) * bn_scale + bn_bias)[None, :]  # (1, OC)

    grid = (NT // block_nt,)
    kernel = functools.partial(unit_gcn_kernel, approx_sigmoid=approx_sigmoid)
    y_flat = pl.pallas_call(
        kernel,
        out_shape=jax.ShapeDtypeStruct((NT * Vp, OC), jnp.float32),
        grid=grid,
        in_specs=[
            pl.BlockSpec((block_nt, Vp, Vp), lambda i: (i, 0, 0)),    # x, vertex-major
            pl.BlockSpec((block_nt, Vp, Vp), lambda i: (i, 0, 0)),    # x, channel-major
            pl.BlockSpec((block_nt, Vp), lambda i: (i, 0)),           # per-frame diag of x
            pl.BlockSpec((Vp, Vp), lambda i: (0, 0)),                 # A[1]^T
            pl.BlockSpec((1, Vp), lambda i: (0, 0)),                  # diag(A[0])
            pl.BlockSpec((Vp, Vh), lambda i: (0, 0)),                 # SE fc1 (incl. 1/C)
            pl.BlockSpec((Vh, Vp), lambda i: (0, 0)),                 # SE fc2
            pl.BlockSpec((Vp, OC), lambda i: (0, 0)),                 # folded conv W[0]
            pl.BlockSpec((Vp, OC), lambda i: (0, 0)),                 # folded sum W[i>=1]
            pl.BlockSpec((1, OC), lambda i: (0, 0)),                  # folded bias (+BN)
        ],
        out_specs=pl.BlockSpec((block_nt * Vp, OC), lambda i: (i, 0)),
        compiler_params=pltpu.CompilerParams(
            dimension_semantics=("parallel",),
            vmem_limit_bytes=vmem_limit_bytes),
    )(x_vc_p, x_cv_p, x_diag_p, a1t_p, a0diag_p, wse1_p, wse2_p, w0_p, wr_p, b_fused)

    y = (y_flat.reshape(NT, Vp, OC)[:, :V, :]        # strip the Vp padding rows
         .reshape(N, T, V, OC).transpose(0, 3, 1, 2))                 # (N, OC, T, V)
    # mask is a learnable parameter that the original forward returns but never applies.
    return y, params['mask']


def unit_gcn_reference(x, params):
    """Pure-JAX transcription of the PyTorch forward (for correctness checking)."""
    N, C, T, V = x.shape
    NT = N * T
    A = params['A']
    xs = jnp.transpose(x, (0, 2, 3, 1)).reshape(NT, V, C)
    pooled = xs.mean(axis=2)
    h = jnp.maximum(pooled @ params['w_se1'].T, 0.0)
    s = jax.nn.sigmoid(h @ params['w_se2'].T)
    xs_se = xs * s[:, :, None]                                 # (NT, V, V)
    xxx = xs_se * A[1][None]
    a0diag = jnp.diagonal(A[0])
    d = a0diag[None, :] * (xs_se.sum(axis=1) - jnp.diagonal(xs_se, axis1=1, axis2=2))
    x2 = jnp.transpose(x, (0, 2, 1, 3)).reshape(NT, C, V)
    xa0 = x2 * d[:, None, :]
    xa1 = jnp.einsum('ncv,nvw->ncw', x2, xxx)
    W, bcv = params['w_conv'], params['b_conv']
    y = jnp.einsum('oc,ncv->nov', W[0], xa0) + bcv[0][None, :, None]
    for i in range(1, A.shape[0]):
        y = y + jnp.einsum('oc,ncv->nov', W[i], xa1) + bcv[i][None, :, None]
    OC = W.shape[1]
    y = y.reshape(N, T, OC, V).transpose(0, 2, 1, 3)           # (N, OC, T, V)
    eps = 1e-5
    scale = params['bn_gamma'] / jnp.sqrt(params['bn_var'] + eps)
    bias = params['bn_beta'] - params['bn_mean'] * scale
    y = y * scale[None, :, None, None] + bias[None, :, None, None]
    return jnp.maximum(y, 0.0), params['mask']


if __name__ == "__main__":
    # Shapes consistent with the module: V = 25 (SELayer(25, 2)), C = V = 25.
    N, T, V, OC, num_A = 2, 64, 25, 64, 3
    C = V
    Vh = V // 2
    key = jax.random.PRNGKey(0)
    ks = jax.random.split(key, 10)
    x = jax.random.normal(ks[0], (N, C, T, V), jnp.float32)
    params = dict(
        A=jax.random.uniform(ks[1], (num_A, V, V), jnp.float32, 0.0, 0.5),
        w_se1=0.2 * jax.random.normal(ks[2], (Vh, V), jnp.float32),   # Linear(V, V//2).weight
        w_se2=0.2 * jax.random.normal(ks[3], (V, Vh), jnp.float32),   # Linear(V//2, V).weight
        w_conv=(1.0 / jnp.sqrt(C)) * jax.random.normal(ks[4], (num_A, OC, C), jnp.float32),
        b_conv=0.1 * jax.random.normal(ks[5], (num_A, OC), jnp.float32),
        bn_gamma=1.0 + 0.1 * jax.random.normal(ks[6], (OC,), jnp.float32),
        bn_beta=0.1 * jax.random.normal(ks[7], (OC,), jnp.float32),
        bn_mean=0.1 * jax.random.normal(ks[8], (OC,), jnp.float32),
        bn_var=jax.random.uniform(ks[9], (OC,), jnp.float32, 0.5, 1.5),
        mask=jnp.ones((V, V), jnp.float32),                           # nn.Parameter(torch.ones(V, V))
    )

    # NT = 128 -> default block_nt = 32 -> grid = 4 (>= 2 pipelined steps per core on v7x,
    # 4 pipelined steps on single-TC v5e/v6e).
    y, mask = unit_gcn_forward(x, params)
    y = jax.block_until_ready(y)

    y_ref, _ = unit_gcn_reference(x, params)
    np.testing.assert_allclose(np.asarray(y), np.asarray(jax.block_until_ready(y_ref)),
                               rtol=2e-2, atol=2e-2)
    print("KERNEL_OK")
</pallas_src>

<mosaic_0001>
module attributes {stable_mosaic.version = 11 : i64} {
  func.func @unit_gcn_kernel(%arg0: i32, %arg1: memref<32x32x32xf32, #tpu.memory_space<vmem>>, %arg2: memref<32x32x32xf32, #tpu.memory_space<vmem>>, %arg3: memref<32x32xf32, #tpu.memory_space<vmem>>, %arg4: memref<32x32xf32, #tpu.memory_space<vmem>>, %arg5: memref<1x32xf32, #tpu.memory_space<vmem>>, %arg6: memref<32x12xf32, #tpu.memory_space<vmem>>, %arg7: memref<12x32xf32, #tpu.memory_space<vmem>>, %arg8: memref<32x64xf32, #tpu.memory_space<vmem>>, %arg9: memref<32x64xf32, #tpu.memory_space<vmem>>, %arg10: memref<1x64xf32, #tpu.memory_space<vmem>>, %arg11: memref<1024x64xf32, #tpu.memory_space<vmem>>) attributes {dimension_semantics = [#tpu.dimension_semantics<parallel>], iteration_bounds = array<i64: 4>, scalar_prefetch = 0 : i64, scratch_operands = 0 : i64, tpu.core_type = #tpu.core_type<tc>, window_params = [{transform_indices = @transform_0, window_bounds = array<i64: 32, 32, 32>}, {transform_indices = @transform_1, window_bounds = array<i64: 32, 32, 32>}, {transform_indices = @transform_2, window_bounds = array<i64: 32, 32>}, {pipeline_mode = #tpu.pipeline_mode<synchronous>, transform_indices = @transform_3, window_bounds = array<i64: 32, 32>}, {pipeline_mode = #tpu.pipeline_mode<synchronous>, transform_indices = @transform_4, window_bounds = array<i64: 1, 32>}, {pipeline_mode = #tpu.pipeline_mode<synchronous>, transform_indices = @transform_5, window_bounds = array<i64: 32, 12>}, {pipeline_mode = #tpu.pipeline_mode<synchronous>, transform_indices = @transform_6, window_bounds = array<i64: 12, 32>}, {pipeline_mode = #tpu.pipeline_mode<synchronous>, transform_indices = @transform_7, window_bounds = array<i64: 32, 64>}, {pipeline_mode = #tpu.pipeline_mode<synchronous>, transform_indices = @transform_8, window_bounds = array<i64: 32, 64>}, {pipeline_mode = #tpu.pipeline_mode<synchronous>, transform_indices = @transform_9, window_bounds = array<i64: 1, 64>}, {transform_indices = @transform_10, window_bounds = array<i64: 1024, 64>}]} {
    %c0 = arith.constant 0 : index
    %c0_0 = arith.constant 0 : index
    %c0_1 = arith.constant 0 : index
    %0 = vector.load %arg1[%c0, %c0_0, %c0_1] : memref<32x32x32xf32, #tpu.memory_space<vmem>>, vector<32x32x32xf32>
    %c0_2 = arith.constant 0 : index
    %c0_3 = arith.constant 0 : index
    %c0_4 = arith.constant 0 : index
    %1 = vector.load %arg2[%c0_2, %c0_3, %c0_4] : memref<32x32x32xf32, #tpu.memory_space<vmem>>, vector<32x32x32xf32>
    %cst = arith.constant dense<0.000000e+00> : vector<32x32xf32>
    %2 = vector.multi_reduction <add>, %0, %cst [2] : vector<32x32x32xf32> to vector<32x32xf32>
    %c0_5 = arith.constant 0 : index
    %c0_6 = arith.constant 0 : index
    %3 = vector.load %arg6[%c0_5, %c0_6] : memref<32x12xf32, #tpu.memory_space<vmem>>, vector<32x12xf32>
    %cst_7 = arith.constant dense<0.000000e+00> : vector<32x12xf32>
    %4 = tpu.matmul %2, %3, %cst_7 {dimension_numbers = #tpu.dot_dimension_numbers<[1], [0], [0], [1], [0, 0, 1, 1], [], []>} : vector<32x32xf32>, vector<32x12xf32>, vector<32x12xf32> -> vector<32x12xf32>
    %cst_8 = arith.constant 0.000000e+00 : f32
    %5 = vector.broadcast %cst_8 : f32 to vector<32x12xf32>
    %6 = arith.maximumf %4, %5 : vector<32x12xf32>
    %c0_9 = arith.constant 0 : index
    %c0_10 = arith.constant 0 : index
    %7 = vector.load %arg7[%c0_9, %c0_10] : memref<12x32xf32, #tpu.memory_space<vmem>>, vector<12x32xf32>
    %cst_11 = arith.constant dense<0.000000e+00> : vector<32x32xf32>
    %8 = tpu.matmul %6, %7, %cst_11 {dimension_numbers = #tpu.dot_dimension_numbers<[1], [0], [0], [1], [0, 0, 1, 1], [], []>} : vector<32x12xf32>, vector<12x32xf32>, vector<32x32xf32> -> vector<32x32xf32>
    %cst_12 = arith.constant 0.000000e+00 : f32
    %9 = vector.broadcast %cst_12 : f32 to vector<32x32xf32>
    %10 = arith.subf %9, %8 : vector<32x32xf32>
    %11 = math.exp %10 : vector<32x32xf32>
    %cst_13 = arith.constant 1.000000e+00 : f32
    %12 = vector.broadcast %cst_13 : f32 to vector<32x32xf32>
    %13 = arith.addf %12, %11 : vector<32x32xf32>
    %14 = tpu.reciprocal %13 {approx = true} : vector<32x32xf32> -> vector<32x32xf32>
    %15 = vector.shape_cast %14 : vector<32x32xf32> to vector<32x1x32xf32>
    %16 = vector.broadcast %15 : vector<32x1x32xf32> to vector<32x32x32xf32>
    %17 = arith.mulf %1, %16 : vector<32x32x32xf32>
    %c0_14 = arith.constant 0 : index
    %c0_15 = arith.constant 0 : index
    %18 = vector.load %arg4[%c0_14, %c0_15] : memref<32x32xf32, #tpu.memory_space<vmem>>, vector<32x32xf32>
    %19 = vector.shape_cast %18 : vector<32x32xf32> to vector<1x32x32xf32>
    %20 = vector.broadcast %19 : vector<1x32x32xf32> to vector<32x32x32xf32>
    %21 = arith.mulf %17, %20 : vector<32x32x32xf32>
    %cst_16 = arith.constant dense<0.000000e+00> : vector<32x32xf32>
    %22 = vector.multi_reduction <add>, %17, %cst_16 [2] : vector<32x32x32xf32> to vector<32x32xf32>
    %c0_17 = arith.constant 0 : index
    %c0_18 = arith.constant 0 : index
    %23 = vector.load %arg5[%c0_17, %c0_18] : memref<1x32xf32, #tpu.memory_space<vmem>>, vector<1x32xf32>
    %c0_19 = arith.constant 0 : index
    %c0_20 = arith.constant 0 : index
    %24 = vector.load %arg3[%c0_19, %c0_20] : memref<32x32xf32, #tpu.memory_space<vmem>>, vector<32x32xf32>
    %25 = arith.mulf %24, %14 : vector<32x32xf32>
    %26 = arith.subf %22, %25 : vector<32x32xf32>
    %27 = vector.broadcast %23 : vector<1x32xf32> to vector<32x32xf32>
    %28 = arith.mulf %27, %26 : vector<32x32xf32>
    %29 = vector.shape_cast %28 : vector<32x32xf32> to vector<32x32x1xf32>
    %30 = vector.broadcast %29 : vector<32x32x1xf32> to vector<32x32x32xf32>
    %31 = arith.mulf %0, %30 : vector<32x32x32xf32>
    "tpu.trace_start"() <{level = 10 : i32, message = "bwv,bvc->bwc"}> : () -> ()
    %cst_21 = arith.constant dense<0.000000e+00> : vector<32x32x32xf32>
    %32 = tpu.matmul %21, %0, %cst_21 {dimension_numbers = #tpu.dot_dimension_numbers<[2], [1], [1], [2], [0, 0, 0, 1, 1, 2], [0], [0]>} : vector<32x32x32xf32>, vector<32x32x32xf32>, vector<32x32x32xf32> -> vector<32x32x32xf32>
    "tpu.trace_stop"() : () -> ()
    %33 = vector.shape_cast %31 : vector<32x32x32xf32> to vector<1024x32xf32>
    %34 = vector.shape_cast %32 : vector<32x32x32xf32> to vector<1024x32xf32>
    %c0_22 = arith.constant 0 : index
    %c0_23 = arith.constant 0 : index
    %35 = vector.load %arg8[%c0_22, %c0_23] : memref<32x64xf32, #tpu.memory_space<vmem>>, vector<32x64xf32>
    %cst_24 = arith.constant dense<0.000000e+00> : vector<1024x64xf32>
    %36 = tpu.matmul %33, %35, %cst_24 {dimension_numbers = #tpu.dot_dimension_numbers<[1], [0], [0], [1], [0, 0, 1, 1], [], []>} : vector<1024x32xf32>, vector<32x64xf32>, vector<1024x64xf32> -> vector<1024x64xf32>
    %c0_25 = arith.constant 0 : index
    %c0_26 = arith.constant 0 : index
    %37 = vector.load %arg9[%c0_25, %c0_26] : memref<32x64xf32, #tpu.memory_space<vmem>>, vector<32x64xf32>
    %cst_27 = arith.constant dense<0.000000e+00> : vector<1024x64xf32>
    %38 = tpu.matmul %34, %37, %cst_27 {dimension_numbers = #tpu.dot_dimension_numbers<[1], [0], [0], [1], [0, 0, 1, 1], [], []>} : vector<1024x32xf32>, vector<32x64xf32>, vector<1024x64xf32> -> vector<1024x64xf32>
    %39 = arith.addf %36, %38 : vector<1024x64xf32>
    %c0_28 = arith.constant 0 : index
    %c0_29 = arith.constant 0 : index
    %40 = vector.load %arg10[%c0_28, %c0_29] : memref<1x64xf32, #tpu.memory_space<vmem>>, vector<1x64xf32>
    %41 = vector.broadcast %40 : vector<1x64xf32> to vector<1024x64xf32>
    %42 = arith.addf %39, %41 : vector<1024x64xf32>
    %cst_30 = arith.constant 0.000000e+00 : f32
    %43 = vector.broadcast %cst_30 : f32 to vector<1024x64xf32>
    %44 = arith.maximumf %42, %43 : vector<1024x64xf32>
    %c0_31 = arith.constant 0 : index
    %c0_32 = arith.constant 0 : index
    %45 = vector.load %arg11[%c0_31, %c0_32] : memref<1024x64xf32, #tpu.memory_space<vmem>>, vector<1024x64xf32>
    tpu.vector_store %arg11[%c0_31, %c0_32], %44 {strides = array<i32>} : memref<1024x64xf32, #tpu.memory_space<vmem>>, vector<1024x64xf32>,
    return
  }
  func.func @transform_0(%arg0: i32) -> (i32, i32, i32) {
    %c0_i32 = arith.constant 0 : i32
    %c0_i32_0 = arith.constant 0 : i32
    %c0_i32_1 = arith.constant 0 : i32
    return %arg0, %c0_i32, %c0_i32_0 : i32, i32, i32
  }
  func.func @transform_1(%arg0: i32) -> (i32, i32, i32) {
    %c0_i32 = arith.constant 0 : i32
    %c0_i32_0 = arith.constant 0 : i32
    %c0_i32_1 = arith.constant 0 : i32
    return %arg0, %c0_i32, %c0_i32_0 : i32, i32, i32
  }
  func.func @transform_2(%arg0: i32) -> (i32, i32) {
    %c0_i32 = arith.constant 0 : i32
    %c0_i32_0 = arith.constant 0 : i32
    return %arg0, %c0_i32 : i32, i32
  }
  func.func @transform_3(%arg0: i32) -> (i32, i32) {
    %c0_i32 = arith.constant 0 : i32
    %c0_i32_0 = arith.constant 0 : i32
    %c0_i32_1 = arith.constant 0 : i32
    return %c0_i32, %c0_i32_0 : i32, i32
  }
  func.func @transform_4(%arg0: i32) -> (i32, i32) {
    %c0_i32 = arith.constant 0 : i32
    %c0_i32_0 = arith.constant 0 : i32
    %c0_i32_1 = arith.constant 0 : i32
    return %c0_i32, %c0_i32_0 : i32, i32
  }
  func.func @transform_5(%arg0: i32) -> (i32, i32) {
    %c0_i32 = arith.constant 0 : i32
    %c0_i32_0 = arith.constant 0 : i32
    %c0_i32_1 = arith.constant 0 : i32
    return %c0_i32, %c0_i32_0 : i32, i32
  }
  func.func @transform_6(%arg0: i32) -> (i32, i32) {
    %c0_i32 = arith.constant 0 : i32
    %c0_i32_0 = arith.constant 0 : i32
    %c0_i32_1 = arith.constant 0 : i32
    return %c0_i32, %c0_i32_0 : i32, i32
  }
  func.func @transform_7(%arg0: i32) -> (i32, i32) {
    %c0_i32 = arith.constant 0 : i32
    %c0_i32_0 = arith.constant 0 : i32
    %c0_i32_1 = arith.constant 0 : i32
    return %c0_i32, %c0_i32_0 : i32, i32
  }
  func.func @transform_8(%arg0: i32) -> (i32, i32) {
    %c0_i32 = arith.constant 0 : i32
    %c0_i32_0 = arith.constant 0 : i32
    %c0_i32_1 = arith.constant 0 : i32
    return %c0_i32, %c0_i32_0 : i32, i32
  }
  func.func @transform_9(%arg0: i32) -> (i32, i32) {
    %c0_i32 = arith.constant 0 : i32
    %c0_i32_0 = arith.constant 0 : i32
    %c0_i32_1 = arith.constant 0 : i32
    return %c0_i32, %c0_i32_0 : i32, i32
  }
  func.func @transform_10(%arg0: i32) -> (i32, i32) {
    %c0_i32 = arith.constant 0 : i32
    %c0_i32_0 = arith.constant 0 : i32
    return %arg0, %c0_i32 : i32, i32
  }
}

</mosaic_0001>

<llo_original>
// kernel: tpu_custom_call.1
$region0: #{tpu_custom_call.1}
  #allocation0 [shape = 'u32[]', space=smem, size = 0x4, offset = 0x4, fixed_abs, tag = 'smem constant byte address 0x4 - core index']
  #allocation1 [shape = 'u32[144,128]{1,0:T(1,128)}', space=vmem, size = 0x12000, scoped, tag = 'internal scratch']
  %s0 = inlined_call_operand.vmem [shape: f32[128,32,32], index: 0, kind: input, shape index: {}]
  %s1 = inlined_call_operand.vmem [shape: f32[128,32,32], index: 1, kind: input, shape index: {}]
  %s2 = inlined_call_operand.vmem [shape: f32[128,32], index: 2, kind: input, shape index: {}]
  %s3 = inlined_call_operand.vmem [shape: f32[32,32], index: 3, kind: input, shape index: {}]
  %s4 = inlined_call_operand.vmem [shape: f32[1,32], index: 4, kind: input, shape index: {}]
  %s5 = inlined_call_operand.vmem [shape: f32[32,12], index: 5, kind: input, shape index: {}]
  %s6 = inlined_call_operand.vmem [shape: f32[12,32], index: 6, kind: input, shape index: {}]
  %s7 = inlined_call_operand.vmem [shape: f32[32,64], index: 7, kind: input, shape index: {}]
  %s8 = inlined_call_operand.vmem [shape: f32[32,64], index: 8, kind: input, shape index: {}]
  %s9 = inlined_call_operand.vmem [shape: f32[1,64], index: 9, kind: input, shape index: {}]
  %s10 = inlined_call_operand.vmem [shape: f32[4096,64], index: 10, kind: output, shape index: {}]
  %s11 = sld [smem:[#allocation0]]
  $region73: #{tpu_custom_call.1} parent=0
    _
  %s13 = ssub.s32 1, %s11
  %s14 = scalar_select 0, %s13, %s11
  loop: start=0, step=1, limit=6
  $region2: #{tpu_custom_call.1} parent=0 // loop_pre_header
    _
  $region3: #{tpu_custom_call.1} parent=0 // loop_header
    %s16 = sphi 0, %s20
    %p17 = scmp.ge.s32.totalorder %s16, 6
    %s26 = sphi 0, %s28
    %s29 = sphi 0, %s26
    %s30 = sphi 0, %s29
    %s46 = sphi 0, %s30
    %s52 = sphi 0, %s54
    %s55 = sphi 0, %s52
    %s56 = sphi 0, %s55
    %s72 = sphi 0, %s56
    %s78 = sphi 0, %s80
    %s81 = sphi 0, %s78
    %s82 = sphi 0, %s81
    %s98 = sphi 0, %s82
    %s102 = sphi 0, %s102
    %s104 = sphi 0, %s102
    %s105 = sphi 0, %s104
    %s119 = sphi 0, %s105
    %s123 = sphi 0, %s123
    %s125 = sphi 0, %s123
    %s126 = sphi 0, %s125
    %s140 = sphi 0, %s126
    %s144 = sphi 0, %s144
    %s146 = sphi 0, %s144
    %s147 = sphi 0, %s146
    %s161 = sphi 0, %s147
    %s165 = sphi 0, %s165
    %s167 = sphi 0, %s165
    %s168 = sphi 0, %s167
    %s182 = sphi 0, %s168
    %s186 = sphi 0, %s186
    %s188 = sphi 0, %s186
    %s189 = sphi 0, %s188
    %s203 = sphi 0, %s189
    %s207 = sphi 0, %s207
    %s209 = sphi 0, %s207
    %s210 = sphi 0, %s209
    %s224 = sphi 0, %s210
    %s228 = sphi 0, %s228
    %s230 = sphi 0, %s228
    %s231 = sphi 0, %s230
    %s245 = sphi 0, %s231
    %s251 = sphi 0, %s253
    %s254 = sphi 0, %s251
    %s255 = sphi 0, %s254
    %s271 = sphi 0, %s255
  $region4: #{tpu_custom_call.1} parent=0 // loop_header_branch
    %19 = sbr.rel (%p17) target = $region8
  $region5: #{tpu_custom_call.1} parent=0 // loop_body
    %s21 = ssub.s32 %s16, 1
    %s22 = ssub.s32 %s16, 2
    %s23 = sadd.s32 %s16, 1
    %s24 = ssub.s32 %s16, %s23
    %p25 = scmp.eq.s32.totalorder %s24, 0
    %s27 = sadd.s32 %s26, 1
    %s28 = scalar_select %p25, %s26, %s27
    %p31 = pneg %p25
    %p32 = scmp.eq.s32.totalorder %s16, 3
    %p33 = por %p31, %p32
    %p34 = scmp.ne.s32.totalorder %s26, %s29
    %p35 = scmp.eq.s32.totalorder %s16, 0
    %p36 = por %p34, %p35
    %p37 = scmp.ne.s32.totalorder %s26, %s29
    %p38 = scmp.eq.s32.totalorder %s21, 3
    %p39 = por %p37, %p38
    %p40 = scmp.ne.s32.totalorder %s29, %s30
    %p41 = scmp.eq.s32.totalorder %s21, 0
    %p42 = por %p40, %p41
    %p43 = scmp.ne.s32.totalorder %s29, %s30
    %p44 = scmp.eq.s32.totalorder %s22, 3
    %p45 = por %p43, %p44
    %p47 = scmp.ne.s32.totalorder %s30, %s46
    %p48 = scmp.eq.s32.totalorder %s22, 0
    %p49 = por %p47, %p48
    %s50 = ssub.s32 %s16, %s23
    %p51 = scmp.eq.s32.totalorder %s50, 0
    %s53 = sadd.s32 %s52, 1
    %s54 = scalar_select %p51, %s52, %s53
    %p57 = pneg %p51
    %p58 = scmp.eq.s32.totalorder %s16, 3
    %p59 = por %p57, %p58
    %p60 = scmp.ne.s32.totalorder %s52, %s55
    %p61 = scmp.eq.s32.totalorder %s16, 0
    %p62 = por %p60, %p61
    %p63 = scmp.ne.s32.totalorder %s52, %s55
    %p64 = scmp.eq.s32.totalorder %s21, 3
    %p65 = por %p63, %p64
    %p66 = scmp.ne.s32.totalorder %s55, %s56
    %p67 = scmp.eq.s32.totalorder %s21, 0
    %p68 = por %p66, %p67
    %p69 = scmp.ne.s32.totalorder %s55, %s56
    %p70 = scmp.eq.s32.totalorder %s22, 3
    %p71 = por %p69, %p70
    %p73 = scmp.ne.s32.totalorder %s56, %s72
    %p74 = scmp.eq.s32.totalorder %s22, 0
    %p75 = por %p73, %p74
    %s76 = ssub.s32 %s16, %s23
    %p77 = scmp.eq.s32.totalorder %s76, 0
    %s79 = sadd.s32 %s78, 1
    %s80 = scalar_select %p77, %s78, %s79
    %p83 = pneg %p77
    %p84 = scmp.eq.s32.totalorder %s16, 3
    %p85 = por %p83, %p84
    %p86 = scmp.ne.s32.totalorder %s78, %s81
    %p87 = scmp.eq.s32.totalorder %s16, 0
    %p88 = por %p86, %p87
    %p89 = scmp.ne.s32.totalorder %s78, %s81
    %p90 = scmp.eq.s32.totalorder %s21, 3
    %p91 = por %p89, %p90
    %p92 = scmp.ne.s32.totalorder %s81, %s82
    %p93 = scmp.eq.s32.totalorder %s21, 0
    %p94 = por %p92, %p93
    %p95 = scmp.ne.s32.totalorder %s81, %s82
    %p96 = scmp.eq.s32.totalorder %s22, 3
    %p97 = por %p95, %p96
    %p99 = scmp.ne.s32.totalorder %s82, %s98
    %p100 = scmp.eq.s32.totalorder %s22, 0
    %p101 = por %p99, %p100
    %s103 = sadd.s32 %s102, 1
    %p106 = scmp.eq.s32.totalorder %s16, 3
    %p107 = scmp.ne.s32.totalorder %s102, %s104
    %p108 = scmp.eq.s32.totalorder %s16, 0
    %p109 = por %p107, %p108
    %p110 = scmp.ne.s32.totalorder %s102, %s104
    %p111 = scmp.eq.s32.totalorder %s21, 3
    %p112 = por %p110, %p111
    %p113 = scmp.ne.s32.totalorder %s104, %s105
    %p114 = scmp.eq.s32.totalorder %s21, 0
    %p115 = por %p113, %p114
    %p116 = scmp.ne.s32.totalorder %s104, %s105
    %p117 = scmp.eq.s32.totalorder %s22, 3
    %p118 = por %p116, %p117
    %p120 = scmp.ne.s32.totalorder %s105, %s119
    %p121 = scmp.eq.s32.totalorder %s22, 0
    %p122 = por %p120, %p121
    %s124 = sadd.s32 %s123, 1
    %p127 = scmp.eq.s32.totalorder %s16, 3
    %p128 = scmp.ne.s32.totalorder %s123, %s125
    %p129 = scmp.eq.s32.totalorder %s16, 0
    %p130 = por %p128, %p129
    %p131 = scmp.ne.s32.totalorder %s123, %s125
    %p132 = scmp.eq.s32.totalorder %s21, 3
    %p133 = por %p131, %p132
    %p134 = scmp.ne.s32.totalorder %s125, %s126
    %p135 = scmp.eq.s32.totalorder %s21, 0
    %p136 = por %p134, %p135
    %p137 = scmp.ne.s32.totalorder %s125, %s126
    %p138 = scmp.eq.s32.totalorder %s22, 3
    %p139 = por %p137, %p138
    %p141 = scmp.ne.s32.totalorder %s126, %s140
    %p142 = scmp.eq.s32.totalorder %s22, 0
    %p143 = por %p141, %p142
    %s145 = sadd.s32 %s144, 1
    %p148 = scmp.eq.s32.totalorder %s16, 3
    %p149 = scmp.ne.s32.totalorder %s144, %s146
    %p150 = scmp.eq.s32.totalorder %s16, 0
    %p151 = por %p149, %p150
    %p152 = scmp.ne.s32.totalorder %s144, %s146
    %p153 = scmp.eq.s32.totalorder %s21, 3
    %p154 = por %p152, %p153
    %p155 = scmp.ne.s32.totalorder %s146, %s147
    %p156 = scmp.eq.s32.totalorder %s21, 0
    %p157 = por %p155, %p156
    %p158 = scmp.ne.s32.totalorder %s146, %s147
    %p159 = scmp.eq.s32.totalorder %s22, 3
    %p160 = por %p158, %p159
    %p162 = scmp.ne.s32.totalorder %s147, %s161
    %p163 = scmp.eq.s32.totalorder %s22, 0
    %p164 = por %p162, %p163
    %s166 = sadd.s32 %s165, 1
    %p169 = scmp.eq.s32.totalorder %s16, 3
    %p170 = scmp.ne.s32.totalorder %s165, %s167
    %p171 = scmp.eq.s32.totalorder %s16, 0
    %p172 = por %p170, %p171
    %p173 = scmp.ne.s32.totalorder %s165, %s167
    %p174 = scmp.eq.s32.totalorder %s21, 3
    %p175 = por %p173, %p174
    %p176 = scmp.ne.s32.totalorder %s167, %s168
    %p177 = scmp.eq.s32.totalorder %s21, 0
    %p178 = por %p176, %p177
    %p179 = scmp.ne.s32.totalorder %s167, %s168
    %p180 = scmp.eq.s32.totalorder %s22, 3
    %p181 = por %p179, %p180
    %p183 = scmp.ne.s32.totalorder %s168, %s182
    %p184 = scmp.eq.s32.totalorder %s22, 0
    %p185 = por %p183, %p184
    %s187 = sadd.s32 %s186, 1
    %p190 = scmp.eq.s32.totalorder %s16, 3
    %p191 = scmp.ne.s32.totalorder %s186, %s188
    %p192 = scmp.eq.s32.totalorder %s16, 0
    %p193 = por %p191, %p192
    %p194 = scmp.ne.s32.totalorder %s186, %s188
    %p195 = scmp.eq.s32.totalorder %s21, 3
    %p196 = por %p194, %p195
    %p197 = scmp.ne.s32.totalorder %s188, %s189
    %p198 = scmp.eq.s32.totalorder %s21, 0
    %p199 = por %p197, %p198
    %p200 = scmp.ne.s32.totalorder %s188, %s189
    %p201 = scmp.eq.s32.totalorder %s22, 3
    %p202 = por %p200, %p201
    %p204 = scmp.ne.s32.totalorder %s189, %s203
    %p205 = scmp.eq.s32.totalorder %s22, 0
    %p206 = por %p204, %p205
    %s208 = sadd.s32 %s207, 1
    %p211 = scmp.eq.s32.totalorder %s16, 3
    %p212 = scmp.ne.s32.totalorder %s207, %s209
    %p213 = scmp.eq.s32.totalorder %s16, 0
    %p214 = por %p212, %p213
    %p215 = scmp.ne.s32.totalorder %s207, %s209
    %p216 = scmp.eq.s32.totalorder %s21, 3
    %p217 = por %p215, %p216
    %p218 = scmp.ne.s32.totalorder %s209, %s210
    %p219 = scmp.eq.s32.totalorder %s21, 0
    %p220 = por %p218, %p219
    %p221 = scmp.ne.s32.totalorder %s209, %s210
    %p222 = scmp.eq.s32.totalorder %s22, 3
    %p223 = por %p221, %p222
    %p225 = scmp.ne.s32.totalorder %s210, %s224
    %p226 = scmp.eq.s32.totalorder %s22, 0
    %p227 = por %p225, %p226
    %s229 = sadd.s32 %s228, 1
    %p232 = scmp.eq.s32.totalorder %s16, 3
    %p233 = scmp.ne.s32.totalorder %s228, %s230
    %p234 = scmp.eq.s32.totalorder %s16, 0
    %p235 = por %p233, %p234
    %p236 = scmp.ne.s32.totalorder %s228, %s230
    %p237 = scmp.eq.s32.totalorder %s21, 3
    %p238 = por %p236, %p237
    %p239 = scmp.ne.s32.totalorder %s230, %s231
    %p240 = scmp.eq.s32.totalorder %s21, 0
    %p241 = por %p239, %p240
    %p242 = scmp.ne.s32.totalorder %s230, %s231
    %p243 = scmp.eq.s32.totalorder %s22, 3
    %p244 = por %p242, %p243
    %p246 = scmp.ne.s32.totalorder %s231, %s245
    %p247 = scmp.eq.s32.totalorder %s22, 0
    %p248 = por %p246, %p247
    %s249 = ssub.s32 %s16, %s23
    %p250 = scmp.eq.s32.totalorder %s249, 0
    %s252 = sadd.s32 %s251, 1
    %s253 = scalar_select %p250, %s251, %s252
    %p256 = pneg %p250
    %p257 = scmp.eq.s32.totalorder %s16, 3
    %p258 = por %p256, %p257
    %p259 = scmp.ne.s32.totalorder %s251, %s254
    %p260 = scmp.eq.s32.totalorder %s16, 0
    %p261 = por %p259, %p260
    %p262 = scmp.ne.s32.totalorder %s251, %s254
    %p263 = scmp.eq.s32.totalorder %s21, 3
    %p264 = por %p262, %p263
    %p265 = scmp.ne.s32.totalorder %s254, %s255
    %p266 = scmp.eq.s32.totalorder %s21, 0
    %p267 = por %p265, %p266
    %p268 = scmp.ne.s32.totalorder %s254, %s255
    %p269 = scmp.eq.s32.totalorder %s22, 3
    %p270 = por %p268, %p269
    %p272 = scmp.ne.s32.totalorder %s255, %s271
    %p273 = scmp.eq.s32.totalorder %s22, 0
    %p274 = por %p272, %p273
    %p275 = scmp.le.s32.totalorder 1, %s16
    %p276 = scmp.lt.s32.totalorder %s16, 5
    %p277 = pnand %p275, %p276
    %p278 = pneg %p277
    // Predicated region
    $region9: #{tpu_custom_call.1} parent=5 // pred_check
      _
    $region10: #{tpu_custom_call.1} parent=5 // pred_check_branch
      %280 = sbr.rel (%p277) target = $region12
    $region11: #{tpu_custom_call.1} parent=5 // pred_region
      %s281 = ssub.s32 %s16, 1
      // Predicated region
      $region13: #{tpu_custom_call.1} parent=11 // pred_check
        %p282 = pneg %p115
      $region14: #{tpu_custom_call.1} parent=11 // pred_check_branch
        %284 = sbr.rel (%p282) target = $region16
      $region15: #{tpu_custom_call.1} parent=11 // pred_region
        _
      $region16: #{tpu_custom_call.1} parent=11 // pred_fallthru
        _
      // Predicated region
      $region17: #{tpu_custom_call.1} parent=11 // pred_check
        %p285 = pneg %p136
      $region18: #{tpu_custom_call.1} parent=11 // pred_check_branch
        %287 = sbr.rel (%p285) target = $region20
      $region19: #{tpu_custom_call.1} parent=11 // pred_region
        _
      $region20: #{tpu_custom_call.1} parent=11 // pred_fallthru
        _
      // Predicated region
      $region21: #{tpu_custom_call.1} parent=11 // pred_check
        %p288 = pneg %p157
      $region22: #{tpu_custom_call.1} parent=11 // pred_check_branch
        %290 = sbr.rel (%p288) target = $region24
      $region23: #{tpu_custom_call.1} parent=11 // pred_region
        _
      $region24: #{tpu_custom_call.1} parent=11 // pred_fallthru
        _
      // Predicated region
      $region25: #{tpu_custom_call.1} parent=11 // pred_check
        %p291 = pneg %p178
      $region26: #{tpu_custom_call.1} parent=11 // pred_check_branch
        %293 = sbr.rel (%p291) target = $region28
      $region27: #{tpu_custom_call.1} parent=11 // pred_region
        _
      $region28: #{tpu_custom_call.1} parent=11 // pred_fallthru
        _
      // Predicated region
      $region29: #{tpu_custom_call.1} parent=11 // pred_check
        %p294 = pneg %p199
      $region30: #{tpu_custom_call.1} parent=11 // pred_check_branch
        %296 = sbr.rel (%p294) target = $region32
      $region31: #{tpu_custom_call.1} parent=11 // pred_region
        _
      $region32: #{tpu_custom_call.1} parent=11 // pred_fallthru
        _
      // Predicated region
      $region33: #{tpu_custom_call.1} parent=11 // pred_check
        %p297 = pneg %p220
      $region34: #{tpu_custom_call.1} parent=11 // pred_check_branch
        %299 = sbr.rel (%p297) target = $region36
      $region35: #{tpu_custom_call.1} parent=11 // pred_region
        _
      $region36: #{tpu_custom_call.1} parent=11 // pred_fallthru
        _
      // Predicated region
      $region37: #{tpu_custom_call.1} parent=11 // pred_check
        %p300 = pneg %p241
      $region38: #{tpu_custom_call.1} parent=11 // pred_check_branch
        %302 = sbr.rel (%p300) target = $region40
      $region39: #{tpu_custom_call.1} parent=11 // pred_region
        _
      $region40: #{tpu_custom_call.1} parent=11 // pred_fallthru
        _
    $region12: #{tpu_custom_call.1} parent=5 // pred_fallthru
      _
    %p303 = scmp.lt.s32.totalorder %s16, 4
    // Predicated region
    $region41: #{tpu_custom_call.1} parent=5 // pred_check
      %p304 = pneg %p303
    $region42: #{tpu_custom_call.1} parent=5 // pred_check_branch
      %306 = sbr.rel (%p304) target = $region44
    $region43: #{tpu_custom_call.1} parent=5 // pred_region
      // Predicated region
      $region45: #{tpu_custom_call.1} parent=43 // pred_check
        %p307 = pneg %p36
      $region46: #{tpu_custom_call.1} parent=43 // pred_check_branch
        %309 = sbr.rel (%p307) target = $region48
      $region47: #{tpu_custom_call.1} parent=43 // pred_region
        %s310 = smul.u32 32, %s16
        %p311 = scmp.lt.s32.totalorder %s310, 127
        %s312 = scalar_select %p311, %s310, 127
        %s313 = smul.addr %s312, 4
        %s314 = smul.addr %s313, 8
        %s315 = scalar_lea.vmem %s0, %s314
        %s316 = smul.u32 32, %s16
      $region48: #{tpu_custom_call.1} parent=43 // pred_fallthru
        _
      // Predicated region
      $region49: #{tpu_custom_call.1} parent=43 // pred_check
        %p317 = pneg %p62
      $region50: #{tpu_custom_call.1} parent=43 // pred_check_branch
        %319 = sbr.rel (%p317) target = $region52
      $region51: #{tpu_custom_call.1} parent=43 // pred_region
        %s320 = smul.u32 32, %s16
        %p321 = scmp.lt.s32.totalorder %s320, 127
        %s322 = scalar_select %p321, %s320, 127
        %s323 = smul.addr %s322, 4
        %s324 = smul.addr %s323, 8
        %s325 = scalar_lea.vmem %s1, %s324
        %s326 = smul.u32 32, %s16
      $region52: #{tpu_custom_call.1} parent=43 // pred_fallthru
        _
      // Predicated region
      $region53: #{tpu_custom_call.1} parent=43 // pred_check
        %p327 = pneg %p88
      $region54: #{tpu_custom_call.1} parent=43 // pred_check_branch
        %329 = sbr.rel (%p327) target = $region56
      $region55: #{tpu_custom_call.1} parent=43 // pred_region
        %s330 = smul.u32 4, %s16
        %p331 = scmp.lt.s32.totalorder %s330, 15
        %s332 = scalar_select %p331, %s330, 15
        %s333 = smul.addr %s332, 8
        %s334 = scalar_lea.vmem %s2, %s333
        %s335 = smul.u32 4, %s16
      $region56: #{tpu_custom_call.1} parent=43 // pred_fallthru
        _
    $region44: #{tpu_custom_call.1} parent=5 // pred_fallthru
      _
    %p336 = scmp.le.s32.totalorder 1, %s16
    %p337 = scmp.lt.s32.totalorder %s16, 5
    %p338 = pnand %p336, %p337
    %p339 = pneg %p338
    // Predicated region
    $region57: #{tpu_custom_call.1} parent=5 // pred_check
      _
    $region58: #{tpu_custom_call.1} parent=5 // pred_check_branch
      %341 = sbr.rel (%p338) target = $region60
    $region59: #{tpu_custom_call.1} parent=5 // pred_region
      %s342 = ssub.s32 %s16, 1
      %s343 = smul.u32 32, %s21
      %p344 = scmp.lt.s32.totalorder %s343, 127
      %s345 = scalar_select %p344, %s343, 127
      %s346 = smul.addr %s345, 4
      %s347 = smul.addr %s346, 8
      %s348 = scalar_lea.vmem %s0, %s347
      %p349 = pneg %p42
      %p350 = pneg %p39
      %s351 = smul.u32 32, %s21
      %p352 = scmp.lt.s32.totalorder %s351, 127
      %s353 = scalar_select %p352, %s351, 127
      %s354 = smul.addr %s353, 4
      %s355 = smul.addr %s354, 8
      %s356 = scalar_lea.vmem %s1, %s355
      %p357 = pneg %p68
      %p358 = pneg %p65
      %s359 = smul.u32 4, %s21
      %p360 = scmp.lt.s32.totalorder %s359, 15
      %s361 = scalar_select %p360, %s359, 15
      %s362 = smul.addr %s361, 8
      %s363 = scalar_lea.vmem %s2, %s362
      %p364 = pneg %p94
      %p365 = pneg %p91
      %p366 = pneg %p115
      %p367 = pneg %p112
      %p368 = pneg %p136
      %p369 = pneg %p133
      %p370 = pneg %p157
      %p371 = pneg %p154
      %p372 = pneg %p178
      %p373 = pneg %p175
      %p374 = pneg %p199
      %p375 = pneg %p196
      %p376 = pneg %p220
      %p377 = pneg %p217
      %p378 = pneg %p241
      %p379 = pneg %p238
      %p380 = pneg %p267
      %p381 = pneg %p264
      %s382 = smul.u32 128, %s21
      %p383 = scmp.lt.s32.totalorder %s382, 511
      %s384 = scalar_select %p383, %s382, 511
      %s385 = smul.addr %s384, 8
      %s386 = scalar_lea.vmem %s10, %s385
      %s387 = smul.u32 32, %s21
      %p388 = scmp.lt.s32.totalorder %s387, 127
      %s389 = scalar_select %p388, %s387, 127
      %s390 = smul.addr %s389, 4
      %s391 = smul.addr %s390, 8
      %s392 = scalar_lea.vmem %s0, %s391
      %s393 = smul.u32 32, %s21
      %s394 = smul.u32 32, %s21
      %p395 = scmp.lt.s32.totalorder %s394, 127
      %s396 = scalar_select %p395, %s394, 127
      %s397 = smul.addr %s396, 4
      %s398 = smul.addr %s397, 8
      %s399 = scalar_lea.vmem %s1, %s398
      %s400 = smul.u32 32, %s21
      %s401 = smul.u32 4, %s21
      %p402 = scmp.lt.s32.totalorder %s401, 15
      %s403 = scalar_select %p402, %s401, 15
      %s404 = smul.addr %s403, 8
      %s405 = scalar_lea.vmem %s2, %s404
      %s406 = smul.u32 4, %s21
      %s407 = smul.u32 128, %s21
      %p408 = scmp.lt.s32.totalorder %s407, 511
      %s409 = scalar_select %p408, %s407, 511
      %s410 = smul.addr %s409, 8
      %s411 = scalar_lea.vmem %s10, %s410
      %s412 = smul.u32 128, %s21
      %v413 = vld [vmem:[%s392] sm:$0xff]
      %v414 = vld [vmem:[%s392 + $0x8] sm:$0xff]
      %v415 = vld [vmem:[%s392 + $0x10] sm:$0xff]
      %v416 = vld [vmem:[%s392 + $0x18] sm:$0xff]
      %v417 = vld [vmem:[%s392 + $0x20] sm:$0xff]
      %v418 = vld [vmem:[%s392 + $0x28] sm:$0xff]
      %v419 = vld [vmem:[%s392 + $0x30] sm:$0xff]
      %v420 = vld [vmem:[%s392 + $0x38] sm:$0xff]
      %v421 = vld [vmem:[%s392 + $0x40] sm:$0xff]
      %v422 = vld [vmem:[%s392 + $0x48] sm:$0xff]
      %v423 = vld [vmem:[%s392 + $0x50] sm:$0xff]
      %v424 = vld [vmem:[%s392 + $0x58] sm:$0xff]
      %v425 = vld [vmem:[%s392 + $0x60] sm:$0xff]
      %v426 = vld [vmem:[%s392 + $0x68] sm:$0xff]
      %v427 = vld [vmem:[%s392 + $0x70] sm:$0xff]
      %v428 = vld [vmem:[%s392 + $0x78] sm:$0xff]
      %v429 = vld [vmem:[%s392 + $0x80] sm:$0xff]
      %v430 = vld [vmem:[%s392 + $0x88] sm:$0xff]
      %v431 = vld [vmem:[%s392 + $0x90] sm:$0xff]
      %v432 = vld [vmem:[%s392 + $0x98] sm:$0xff]
      %v433 = vld [vmem:[%s392 + $0xa0] sm:$0xff]
      %v434 = vld [vmem:[%s392 + $0xa8] sm:$0xff]
      %v435 = vld [vmem:[%s392 + $0xb0] sm:$0xff]
      %v436 = vld [vmem:[%s392 + $0xb8] sm:$0xff]
      %v437 = vld [vmem:[%s392 + $0xc0] sm:$0xff]
      %v438 = vld [vmem:[%s392 + $0xc8] sm:$0xff]
      %v439 = vld [vmem:[%s392 + $0xd0] sm:$0xff]
      %v440 = vld [vmem:[%s392 + $0xd8] sm:$0xff]
      %v441 = vld [vmem:[%s392 + $0xe0] sm:$0xff]
      %v442 = vld [vmem:[%s392 + $0xe8] sm:$0xff]
      %v443 = vld [vmem:[%s392 + $0xf0] sm:$0xff]
      %v444 = vld [vmem:[%s392 + $0xf8] sm:$0xff]
      %v445 = vld [vmem:[%s392 + $0x100] sm:$0xff]
      %v446 = vld [vmem:[%s392 + $0x108] sm:$0xff]
      %v447 = vld [vmem:[%s392 + $0x110] sm:$0xff]
      %v448 = vld [vmem:[%s392 + $0x118] sm:$0xff]
      %v449 = vld [vmem:[%s392 + $0x120] sm:$0xff]
      %v450 = vld [vmem:[%s392 + $0x128] sm:$0xff]
      %v451 = vld [vmem:[%s392 + $0x130] sm:$0xff]
      %v452 = vld [vmem:[%s392 + $0x138] sm:$0xff]
      %v453 = vld [vmem:[%s392 + $0x140] sm:$0xff]
      %v454 = vld [vmem:[%s392 + $0x148] sm:$0xff]
      %v455 = vld [vmem:[%s392 + $0x150] sm:$0xff]
      %v456 = vld [vmem:[%s392 + $0x158] sm:$0xff]
      %v457 = vld [vmem:[%s392 + $0x160] sm:$0xff]
      %v458 = vld [vmem:[%s392 + $0x168] sm:$0xff]
      %v459 = vld [vmem:[%s392 + $0x170] sm:$0xff]
      %v460 = vld [vmem:[%s392 + $0x178] sm:$0xff]
      %v461 = vld [vmem:[%s392 + $0x180] sm:$0xff]
      %v462 = vld [vmem:[%s392 + $0x188] sm:$0xff]
      %v463 = vld [vmem:[%s392 + $0x190] sm:$0xff]
      %v464 = vld [vmem:[%s392 + $0x198] sm:$0xff]
      %v465 = vld [vmem:[%s392 + $0x1a0] sm:$0xff]
      %v466 = vld [vmem:[%s392 + $0x1a8] sm:$0xff]
      %v467 = vld [vmem:[%s392 + $0x1b0] sm:$0xff]
      %v468 = vld [vmem:[%s392 + $0x1b8] sm:$0xff]
      %v469 = vld [vmem:[%s392 + $0x1c0] sm:$0xff]
      %v470 = vld [vmem:[%s392 + $0x1c8] sm:$0xff]
      %v471 = vld [vmem:[%s392 + $0x1d0] sm:$0xff]
      %v472 = vld [vmem:[%s392 + $0x1d8] sm:$0xff]
      %v473 = vld [vmem:[%s392 + $0x1e0] sm:$0xff]
      %v474 = vld [vmem:[%s392 + $0x1e8] sm:$0xff]
      %v475 = vld [vmem:[%s392 + $0x1f0] sm:$0xff]
      %v476 = vld [vmem:[%s392 + $0x1f8] sm:$0xff]
      %v477 = vld [vmem:[%s392 + $0x200] sm:$0xff]
      %v478 = vld [vmem:[%s392 + $0x208] sm:$0xff]
      %v479 = vld [vmem:[%s392 + $0x210] sm:$0xff]
      %v480 = vld [vmem:[%s392 + $0x218] sm:$0xff]
      %v481 = vld [vmem:[%s392 + $0x220] sm:$0xff]
      %v482 = vld [vmem:[%s392 + $0x228] sm:$0xff]
      %v483 = vld [vmem:[%s392 + $0x230] sm:$0xff]
      %v484 = vld [vmem:[%s392 + $0x238] sm:$0xff]
      %v485 = vld [vmem:[%s392 + $0x240] sm:$0xff]
      %v486 = vld [vmem:[%s392 + $0x248] sm:$0xff]
      %v487 = vld [vmem:[%s392 + $0x250] sm:$0xff]
      %v488 = vld [vmem:[%s392 + $0x258] sm:$0xff]
      %v489 = vld [vmem:[%s392 + $0x260] sm:$0xff]
      %v490 = vld [vmem:[%s392 + $0x268] sm:$0xff]
      %v491 = vld [vmem:[%s392 + $0x270] sm:$0xff]
      %v492 = vld [vmem:[%s392 + $0x278] sm:$0xff]
      %v493 = vld [vmem:[%s392 + $0x280] sm:$0xff]
      %v494 = vld [vmem:[%s392 + $0x288] sm:$0xff]
      %v495 = vld [vmem:[%s392 + $0x290] sm:$0xff]
      %v496 = vld [vmem:[%s392 + $0x298] sm:$0xff]
      %v497 = vld [vmem:[%s392 + $0x2a0] sm:$0xff]
      %v498 = vld [vmem:[%s392 + $0x2a8] sm:$0xff]
      %v499 = vld [vmem:[%s392 + $0x2b0] sm:$0xff]
      %v500 = vld [vmem:[%s392 + $0x2b8] sm:$0xff]
      %v501 = vld [vmem:[%s392 + $0x2c0] sm:$0xff]
      %v502 = vld [vmem:[%s392 + $0x2c8] sm:$0xff]
      %v503 = vld [vmem:[%s392 + $0x2d0] sm:$0xff]
      %v504 = vld [vmem:[%s392 + $0x2d8] sm:$0xff]
      %v505 = vld [vmem:[%s392 + $0x2e0] sm:$0xff]
      %v506 = vld [vmem:[%s392 + $0x2e8] sm:$0xff]
      %v507 = vld [vmem:[%s392 + $0x2f0] sm:$0xff]
      %v508 = vld [vmem:[%s392 + $0x2f8] sm:$0xff]
      %v509 = vld [vmem:[%s392 + $0x300] sm:$0xff]
      %v510 = vld [vmem:[%s392 + $0x308] sm:$0xff]
      %v511 = vld [vmem:[%s392 + $0x310] sm:$0xff]
      %v512 = vld [vmem:[%s392 + $0x318] sm:$0xff]
      %v513 = vld [vmem:[%s392 + $0x320] sm:$0xff]
      %v514 = vld [vmem:[%s392 + $0x328] sm:$0xff]
      %v515 = vld [vmem:[%s392 + $0x330] sm:$0xff]
      %v516 = vld [vmem:[%s392 + $0x338] sm:$0xff]
      %v517 = vld [vmem:[%s392 + $0x340] sm:$0xff]
      %v518 = vld [vmem:[%s392 + $0x348] sm:$0xff]
      %v519 = vld [vmem:[%s392 + $0x350] sm:$0xff]
      %v520 = vld [vmem:[%s392 + $0x358] sm:$0xff]
      %v521 = vld [vmem:[%s392 + $0x360] sm:$0xff]
      %v522 = vld [vmem:[%s392 + $0x368] sm:$0xff]
      %v523 = vld [vmem:[%s392 + $0x370] sm:$0xff]
      %v524 = vld [vmem:[%s392 + $0x378] sm:$0xff]
      %v525 = vld [vmem:[%s392 + $0x380] sm:$0xff]
      %v526 = vld [vmem:[%s392 + $0x388] sm:$0xff]
      %v527 = vld [vmem:[%s392 + $0x390] sm:$0xff]
      %v528 = vld [vmem:[%s392 + $0x398] sm:$0xff]
      %v529 = vld [vmem:[%s392 + $0x3a0] sm:$0xff]
      %v530 = vld [vmem:[%s392 + $0x3a8] sm:$0xff]
      %v531 = vld [vmem:[%s392 + $0x3b0] sm:$0xff]
      %v532 = vld [vmem:[%s392 + $0x3b8] sm:$0xff]
      %v533 = vld [vmem:[%s392 + $0x3c0] sm:$0xff]
      %v534 = vld [vmem:[%s392 + $0x3c8] sm:$0xff]
      %v535 = vld [vmem:[%s392 + $0x3d0] sm:$0xff]
      %v536 = vld [vmem:[%s392 + $0x3d8] sm:$0xff]
      %v537 = vld [vmem:[%s392 + $0x3e0] sm:$0xff]
      %v538 = vld [vmem:[%s392 + $0x3e8] sm:$0xff]
      %v539 = vld [vmem:[%s392 + $0x3f0] sm:$0xff]
      %v540 = vld [vmem:[%s392 + $0x3f8] sm:$0xff]
      %v541 = vld [vmem:[%s399] sm:$0xff]
      %v542 = vld [vmem:[%s399 + $0x8] sm:$0xff]
      %v543 = vld [vmem:[%s399 + $0x10] sm:$0xff]
      %v544 = vld [vmem:[%s399 + $0x18] sm:$0xff]
      %v545 = vld [vmem:[%s399 + $0x20] sm:$0xff]
      %v546 = vld [vmem:[%s399 + $0x28] sm:$0xff]
      %v547 = vld [vmem:[%s399 + $0x30] sm:$0xff]
      %v548 = vld [vmem:[%s399 + $0x38] sm:$0xff]
      %v549 = vld [vmem:[%s399 + $0x40] sm:$0xff]
      %v550 = vld [vmem:[%s399 + $0x48] sm:$0xff]
      %v551 = vld [vmem:[%s399 + $0x50] sm:$0xff]
      %v552 = vld [vmem:[%s399 + $0x58] sm:$0xff]
      %v553 = vld [vmem:[%s399 + $0x60] sm:$0xff]
      %v554 = vld [vmem:[%s399 + $0x68] sm:$0xff]
      %v555 = vld [vmem:[%s399 + $0x70] sm:$0xff]
      %v556 = vld [vmem:[%s399 + $0x78] sm:$0xff]
      %v557 = vld [vmem:[%s399 + $0x80] sm:$0xff]
      %v558 = vld [vmem:[%s399 + $0x88] sm:$0xff]
      %v559 = vld [vmem:[%s399 + $0x90] sm:$0xff]
      %v560 = vld [vmem:[%s399 + $0x98] sm:$0xff]
      %v561 = vld [vmem:[%s399 + $0xa0] sm:$0xff]
      %v562 = vld [vmem:[%s399 + $0xa8] sm:$0xff]
      %v563 = vld [vmem:[%s399 + $0xb0] sm:$0xff]
      %v564 = vld [vmem:[%s399 + $0xb8] sm:$0xff]
      %v565 = vld [vmem:[%s399 + $0xc0] sm:$0xff]
      %v566 = vld [vmem:[%s399 + $0xc8] sm:$0xff]
      %v567 = vld [vmem:[%s399 + $0xd0] sm:$0xff]
      %v568 = vld [vmem:[%s399 + $0xd8] sm:$0xff]
      %v569 = vld [vmem:[%s399 + $0xe0] sm:$0xff]
      %v570 = vld [vmem:[%s399 + $0xe8] sm:$0xff]
      %v571 = vld [vmem:[%s399 + $0xf0] sm:$0xff]
      %v572 = vld [vmem:[%s399 + $0xf8] sm:$0xff]
      %v573 = vld [vmem:[%s399 + $0x100] sm:$0xff]
      %v574 = vld [vmem:[%s399 + $0x108] sm:$0xff]
      %v575 = vld [vmem:[%s399 + $0x110] sm:$0xff]
      %v576 = vld [vmem:[%s399 + $0x118] sm:$0xff]
      %v577 = vld [vmem:[%s399 + $0x120] sm:$0xff]
      %v578 = vld [vmem:[%s399 + $0x128] sm:$0xff]
      %v579 = vld [vmem:[%s399 + $0x130] sm:$0xff]
      %v580 = vld [vmem:[%s399 + $0x138] sm:$0xff]
      %v581 = vld [vmem:[%s399 + $0x140] sm:$0xff]
      %v582 = vld [vmem:[%s399 + $0x148] sm:$0xff]
      %v583 = vld [vmem:[%s399 + $0x150] sm:$0xff]
      %v584 = vld [vmem:[%s399 + $0x158] sm:$0xff]
      %v585 = vld [vmem:[%s399 + $0x160] sm:$0xff]
      %v586 = vld [vmem:[%s399 + $0x168] sm:$0xff]
      %v587 = vld [vmem:[%s399 + $0x170] sm:$0xff]
      %v588 = vld [vmem:[%s399 + $0x178] sm:$0xff]
      %v589 = vld [vmem:[%s399 + $0x180] sm:$0xff]
      %v590 = vld [vmem:[%s399 + $0x188] sm:$0xff]
      %v591 = vld [vmem:[%s399 + $0x190] sm:$0xff]
      %v592 = vld [vmem:[%s399 + $0x198] sm:$0xff]
      %v593 = vld [vmem:[%s399 + $0x1a0] sm:$0xff]
      %v594 = vld [vmem:[%s399 + $0x1a8] sm:$0xff]
      %v595 = vld [vmem:[%s399 + $0x1b0] sm:$0xff]
      %v596 = vld [vmem:[%s399 + $0x1b8] sm:$0xff]
      %v597 = vld [vmem:[%s399 + $0x1c0] sm:$0xff]
      %v598 = vld [vmem:[%s399 + $0x1c8] sm:$0xff]
      %v599 = vld [vmem:[%s399 + $0x1d0] sm:$0xff]
      %v600 = vld [vmem:[%s399 + $0x1d8] sm:$0xff]
      %v601 = vld [vmem:[%s399 + $0x1e0] sm:$0xff]
      %v602 = vld [vmem:[%s399 + $0x1e8] sm:$0xff]
      %v603 = vld [vmem:[%s399 + $0x1f0] sm:$0xff]
      %v604 = vld [vmem:[%s399 + $0x1f8] sm:$0xff]
      %v605 = vld [vmem:[%s399 + $0x200] sm:$0xff]
      %v606 = vld [vmem:[%s399 + $0x208] sm:$0xff]
      %v607 = vld [vmem:[%s399 + $0x210] sm:$0xff]
      %v608 = vld [vmem:[%s399 + $0x218] sm:$0xff]
      %v609 = vld [vmem:[%s399 + $0x220] sm:$0xff]
      %v610 = vld [vmem:[%s399 + $0x228] sm:$0xff]
      %v611 = vld [vmem:[%s399 + $0x230] sm:$0xff]
      %v612 = vld [vmem:[%s399 + $0x238] sm:$0xff]
      %v613 = vld [vmem:[%s399 + $0x240] sm:$0xff]
      %v614 = vld [vmem:[%s399 + $0x248] sm:$0xff]
      %v615 = vld [vmem:[%s399 + $0x250] sm:$0xff]
      %v616 = vld [vmem:[%s399 + $0x258] sm:$0xff]
      %v617 = vld [vmem:[%s399 + $0x260] sm:$0xff]
      %v618 = vld [vmem:[%s399 + $0x268] sm:$0xff]
      %v619 = vld [vmem:[%s399 + $0x270] sm:$0xff]
      %v620 = vld [vmem:[%s399 + $0x278] sm:$0xff]
      %v621 = vld [vmem:[%s399 + $0x280] sm:$0xff]
      %v622 = vld [vmem:[%s399 + $0x288] sm:$0xff]
      %v623 = vld [vmem:[%s399 + $0x290] sm:$0xff]
      %v624 = vld [vmem:[%s399 + $0x298] sm:$0xff]
      %v625 = vld [vmem:[%s399 + $0x2a0] sm:$0xff]
      %v626 = vld [vmem:[%s399 + $0x2a8] sm:$0xff]
      %v627 = vld [vmem:[%s399 + $0x2b0] sm:$0xff]
      %v628 = vld [vmem:[%s399 + $0x2b8] sm:$0xff]
      %v629 = vld [vmem:[%s399 + $0x2c0] sm:$0xff]
      %v630 = vld [vmem:[%s399 + $0x2c8] sm:$0xff]
      %v631 = vld [vmem:[%s399 + $0x2d0] sm:$0xff]
      %v632 = vld [vmem:[%s399 + $0x2d8] sm:$0xff]
      %v633 = vld [vmem:[%s399 + $0x2e0] sm:$0xff]
      %v634 = vld [vmem:[%s399 + $0x2e8] sm:$0xff]
      %v635 = vld [vmem:[%s399 + $0x2f0] sm:$0xff]
      %v636 = vld [vmem:[%s399 + $0x2f8] sm:$0xff]
      %v637 = vld [vmem:[%s399 + $0x300] sm:$0xff]
      %v638 = vld [vmem:[%s399 + $0x308] sm:$0xff]
      %v639 = vld [vmem:[%s399 + $0x310] sm:$0xff]
      %v640 = vld [vmem:[%s399 + $0x318] sm:$0xff]
      %v641 = vld [vmem:[%s399 + $0x320] sm:$0xff]
      %v642 = vld [vmem:[%s399 + $0x328] sm:$0xff]
      %v643 = vld [vmem:[%s399 + $0x330] sm:$0xff]
      %v644 = vld [vmem:[%s399 + $0x338] sm:$0xff]
      %v645 = vld [vmem:[%s399 + $0x340] sm:$0xff]
      %v646 = vld [vmem:[%s399 + $0x348] sm:$0xff]
      %v647 = vld [vmem:[%s399 + $0x350] sm:$0xff]
      %v648 = vld [vmem:[%s399 + $0x358] sm:$0xff]
      %v649 = vld [vmem:[%s399 + $0x360] sm:$0xff]
      %v650 = vld [vmem:[%s399 + $0x368] sm:$0xff]
      %v651 = vld [vmem:[%s399 + $0x370] sm:$0xff]
      %v652 = vld [vmem:[%s399 + $0x378] sm:$0xff]
      %v653 = vld [vmem:[%s399 + $0x380] sm:$0xff]
      %v654 = vld [vmem:[%s399 + $0x388] sm:$0xff]
      %v655 = vld [vmem:[%s399 + $0x390] sm:$0xff]
      %v656 = vld [vmem:[%s399 + $0x398] sm:$0xff]
      %v657 = vld [vmem:[%s399 + $0x3a0] sm:$0xff]
      %v658 = vld [vmem:[%s399 + $0x3a8] sm:$0xff]
      %v659 = vld [vmem:[%s399 + $0x3b0] sm:$0xff]
      %v660 = vld [vmem:[%s399 + $0x3b8] sm:$0xff]
      %v661 = vld [vmem:[%s399 + $0x3c0] sm:$0xff]
      %v662 = vld [vmem:[%s399 + $0x3c8] sm:$0xff]
      %v663 = vld [vmem:[%s399 + $0x3d0] sm:$0xff]
      %v664 = vld [vmem:[%s399 + $0x3d8] sm:$0xff]
      %v665 = vld [vmem:[%s399 + $0x3e0] sm:$0xff]
      %v666 = vld [vmem:[%s399 + $0x3e8] sm:$0xff]
      %v667 = vld [vmem:[%s399 + $0x3f0] sm:$0xff]
      %v668 = vld [vmem:[%s399 + $0x3f8] sm:$0xff]
      %vm669 = vcmask 261120
      %v670 = vsel %vm669, %v413, 0.0
      %671 = vadd.xlane.f32.xlu0 %v670
      %v672 = vpop.xlane.xlu0 %671
      %v673 = vsel %vm669, %v414, 0.0
      %674 = vadd.xlane.f32.xlu0 %v673
      %v675 = vpop.xlane.xlu0 %674
      %v676 = vsel %vm669, %v415, 0.0
      %677 = vadd.xlane.f32.xlu0 %v676
      %v678 = vpop.xlane.xlu0 %677
      %v679 = vsel %vm669, %v416, 0.0
      %680 = vadd.xlane.f32.xlu0 %v679
      %v681 = vpop.xlane.xlu0 %680
      %v682 = vsel %vm669, %v417, 0.0
      %683 = vadd.xlane.f32.xlu0 %v682
      %v684 = vpop.xlane.xlu0 %683
      %v685 = vsel %vm669, %v418, 0.0
      %686 = vadd.xlane.f32.xlu0 %v685
      %v687 = vpop.xlane.xlu0 %686
      %v688 = vsel %vm669, %v419, 0.0
      %689 = vadd.xlane.f32.xlu0 %v688
      %v690 = vpop.xlane.xlu0 %689
      %v691 = vsel %vm669, %v420, 0.0
      %692 = vadd.xlane.f32.xlu0 %v691
      %v693 = vpop.xlane.xlu0 %692
      %v694 = vsel %vm669, %v421, 0.0
      %695 = vadd.xlane.f32.xlu0 %v694
      %v696 = vpop.xlane.xlu0 %695
      %v697 = vsel %vm669, %v422, 0.0
      %698 = vadd.xlane.f32.xlu0 %v697
      %v699 = vpop.xlane.xlu0 %698
      %v700 = vsel %vm669, %v423, 0.0
      %701 = vadd.xlane.f32.xlu0 %v700
      %v702 = vpop.xlane.xlu0 %701
      %v703 = vsel %vm669, %v424, 0.0
      %704 = vadd.xlane.f32.xlu0 %v703
      %v705 = vpop.xlane.xlu0 %704
      %v706 = vsel %vm669, %v425, 0.0
      %707 = vadd.xlane.f32.xlu0 %v706
      %v708 = vpop.xlane.xlu0 %707
      %v709 = vsel %vm669, %v426, 0.0
      %710 = vadd.xlane.f32.xlu0 %v709
      %v711 = vpop.xlane.xlu0 %710
      %v712 = vsel %vm669, %v427, 0.0
      %713 = vadd.xlane.f32.xlu0 %v712
      %v714 = vpop.xlane.xlu0 %713
      %v715 = vsel %vm669, %v428, 0.0
      %716 = vadd.xlane.f32.xlu0 %v715
      %v717 = vpop.xlane.xlu0 %716
      %v718 = vsel %vm669, %v429, 0.0
      %719 = vadd.xlane.f32.xlu0 %v718
      %v720 = vpop.xlane.xlu0 %719
      %v721 = vsel %vm669, %v430, 0.0
      %722 = vadd.xlane.f32.xlu0 %v721
      %v723 = vpop.xlane.xlu0 %722
      %v724 = vsel %vm669, %v431, 0.0
      %725 = vadd.xlane.f32.xlu0 %v724
      %v726 = vpop.xlane.xlu0 %725
      %v727 = vsel %vm669, %v432, 0.0
      %728 = vadd.xlane.f32.xlu0 %v727
      %v729 = vpop.xlane.xlu0 %728
      %v730 = vsel %vm669, %v433, 0.0
      %731 = vadd.xlane.f32.xlu0 %v730
      %v732 = vpop.xlane.xlu0 %731
      %v733 = vsel %vm669, %v434, 0.0
      %734 = vadd.xlane.f32.xlu0 %v733
      %v735 = vpop.xlane.xlu0 %734
      %v736 = vsel %vm669, %v435, 0.0
      %737 = vadd.xlane.f32.xlu0 %v736
      %v738 = vpop.xlane.xlu0 %737
      %v739 = vsel %vm669, %v436, 0.0
      %740 = vadd.xlane.f32.xlu0 %v739
      %v741 = vpop.xlane.xlu0 %740
      %v742 = vsel %vm669, %v437, 0.0
      %743 = vadd.xlane.f32.xlu0 %v742
      %v744 = vpop.xlane.xlu0 %743
      %v745 = vsel %vm669, %v438, 0.0
      %746 = vadd.xlane.f32.xlu0 %v745
      %v747 = vpop.xlane.xlu0 %746
      %v748 = vsel %vm669, %v439, 0.0
      %749 = vadd.xlane.f32.xlu0 %v748
      %v750 = vpop.xlane.xlu0 %749
      %v751 = vsel %vm669, %v440, 0.0
      %752 = vadd.xlane.f32.xlu0 %v751
      %v753 = vpop.xlane.xlu0 %752
      %v754 = vsel %vm669, %v441, 0.0
      %755 = vadd.xlane.f32.xlu0 %v754
      %v756 = vpop.xlane.xlu0 %755
      %v757 = vsel %vm669, %v442, 0.0
      %758 = vadd.xlane.f32.xlu0 %v757
      %v759 = vpop.xlane.xlu0 %758
      %v760 = vsel %vm669, %v443, 0.0
      %761 = vadd.xlane.f32.xlu0 %v760
      %v762 = vpop.xlane.xlu0 %761
      %v763 = vsel %vm669, %v444, 0.0
      %764 = vadd.xlane.f32.xlu0 %v763
      %v765 = vpop.xlane.xlu0 %764
      %v766 = vsel %vm669, %v445, 0.0
      %767 = vadd.xlane.f32.xlu0 %v766
      %v768 = vpop.xlane.xlu0 %767
      %v769 = vsel %vm669, %v446, 0.0
      %770 = vadd.xlane.f32.xlu0 %v769
      %v771 = vpop.xlane.xlu0 %770
      %v772 = vsel %vm669, %v447, 0.0
      %773 = vadd.xlane.f32.xlu0 %v772
      %v774 = vpop.xlane.xlu0 %773
      %v775 = vsel %vm669, %v448, 0.0
      %776 = vadd.xlane.f32.xlu0 %v775
      %v777 = vpop.xlane.xlu0 %776
      %v778 = vsel %vm669, %v449, 0.0
      %779 = vadd.xlane.f32.xlu0 %v778
      %v780 = vpop.xlane.xlu0 %779
      %v781 = vsel %vm669, %v450, 0.0
      %782 = vadd.xlane.f32.xlu0 %v781
      %v783 = vpop.xlane.xlu0 %782
      %v784 = vsel %vm669, %v451, 0.0
      %785 = vadd.xlane.f32.xlu0 %v784
      %v786 = vpop.xlane.xlu0 %785
      %v787 = vsel %vm669, %v452, 0.0
      %788 = vadd.xlane.f32.xlu0 %v787
      %v789 = vpop.xlane.xlu0 %788
      %v790 = vsel %vm669, %v453, 0.0
      %791 = vadd.xlane.f32.xlu0 %v790
      %v792 = vpop.xlane.xlu0 %791
      %v793 = vsel %vm669, %v454, 0.0
      %794 = vadd.xlane.f32.xlu0 %v793
      %v795 = vpop.xlane.xlu0 %794
      %v796 = vsel %vm669, %v455, 0.0
      %797 = vadd.xlane.f32.xlu0 %v796
      %v798 = vpop.xlane.xlu0 %797
      %v799 = vsel %vm669, %v456, 0.0
      %800 = vadd.xlane.f32.xlu0 %v799
      %v801 = vpop.xlane.xlu0 %800
      %v802 = vsel %vm669, %v457, 0.0
      %803 = vadd.xlane.f32.xlu0 %v802
      %v804 = vpop.xlane.xlu0 %803
      %v805 = vsel %vm669, %v458, 0.0
      %806 = vadd.xlane.f32.xlu0 %v805
      %v807 = vpop.xlane.xlu0 %806
      %v808 = vsel %vm669, %v459, 0.0
      %809 = vadd.xlane.f32.xlu0 %v808
      %v810 = vpop.xlane.xlu0 %809
      %v811 = vsel %vm669, %v460, 0.0
      %812 = vadd.xlane.f32.xlu0 %v811
      %v813 = vpop.xlane.xlu0 %812
      %v814 = vsel %vm669, %v461, 0.0
      %815 = vadd.xlane.f32.xlu0 %v814
      %v816 = vpop.xlane.xlu0 %815
      %v817 = vsel %vm669, %v462, 0.0
      %818 = vadd.xlane.f32.xlu0 %v817
      %v819 = vpop.xlane.xlu0 %818
      %v820 = vsel %vm669, %v463, 0.0
      %821 = vadd.xlane.f32.xlu0 %v820
      %v822 = vpop.xlane.xlu0 %821
      %v823 = vsel %vm669, %v464, 0.0
      %824 = vadd.xlane.f32.xlu0 %v823
      %v825 = vpop.xlane.xlu0 %824
      %v826 = vsel %vm669, %v465, 0.0
      %827 = vadd.xlane.f32.xlu0 %v826
      %v828 = vpop.xlane.xlu0 %827
      %v829 = vsel %vm669, %v466, 0.0
      %830 = vadd.xlane.f32.xlu0 %v829
      %v831 = vpop.xlane.xlu0 %830
      %v832 = vsel %vm669, %v467, 0.0
      %833 = vadd.xlane.f32.xlu0 %v832
      %v834 = vpop.xlane.xlu0 %833
      %v835 = vsel %vm669, %v468, 0.0
      %836 = vadd.xlane.f32.xlu0 %v835
      %v837 = vpop.xlane.xlu0 %836
      %v838 = vsel %vm669, %v469, 0.0
      %839 = vadd.xlane.f32.xlu0 %v838
      %v840 = vpop.xlane.xlu0 %839
      %v841 = vsel %vm669, %v470, 0.0
      %842 = vadd.xlane.f32.xlu0 %v841
      %v843 = vpop.xlane.xlu0 %842
      %v844 = vsel %vm669, %v471, 0.0
      %845 = vadd.xlane.f32.xlu0 %v844
      %v846 = vpop.xlane.xlu0 %845
      %v847 = vsel %vm669, %v472, 0.0
      %848 = vadd.xlane.f32.xlu0 %v847
      %v849 = vpop.xlane.xlu0 %848
      %v850 = vsel %vm669, %v473, 0.0
      %851 = vadd.xlane.f32.xlu0 %v850
      %v852 = vpop.xlane.xlu0 %851
      %v853 = vsel %vm669, %v474, 0.0
      %854 = vadd.xlane.f32.xlu0 %v853
      %v855 = vpop.xlane.xlu0 %854
      %v856 = vsel %vm669, %v475, 0.0
      %857 = vadd.xlane.f32.xlu0 %v856
      %v858 = vpop.xlane.xlu0 %857
      %v859 = vsel %vm669, %v476, 0.0
      %860 = vadd.xlane.f32.xlu0 %v859
      %v861 = vpop.xlane.xlu0 %860
      %v862 = vsel %vm669, %v477, 0.0
      %863 = vadd.xlane.f32.xlu0 %v862
      %v864 = vpop.xlane.xlu0 %863
      %v865 = vsel %vm669, %v478, 0.0
      %866 = vadd.xlane.f32.xlu0 %v865
      %v867 = vpop.xlane.xlu0 %866
      %v868 = vsel %vm669, %v479, 0.0
      %869 = vadd.xlane.f32.xlu0 %v868
      %v870 = vpop.xlane.xlu0 %869
      %v871 = vsel %vm669, %v480, 0.0
      %872 = vadd.xlane.f32.xlu0 %v871
      %v873 = vpop.xlane.xlu0 %872
      %v874 = vsel %vm669, %v481, 0.0
      %875 = vadd.xlane.f32.xlu0 %v874
      %v876 = vpop.xlane.xlu0 %875
      %v877 = vsel %vm669, %v482, 0.0
      %878 = vadd.xlane.f32.xlu0 %v877
      %v879 = vpop.xlane.xlu0 %878
      %v880 = vsel %vm669, %v483, 0.0
      %881 = vadd.xlane.f32.xlu0 %v880
      %v882 = vpop.xlane.xlu0 %881
      %v883 = vsel %vm669, %v484, 0.0
      %884 = vadd.xlane.f32.xlu0 %v883
      %v885 = vpop.xlane.xlu0 %884
      %v886 = vsel %vm669, %v485, 0.0
      %887 = vadd.xlane.f32.xlu0 %v886
      %v888 = vpop.xlane.xlu0 %887
      %v889 = vsel %vm669, %v486, 0.0
      %890 = vadd.xlane.f32.xlu0 %v889
      %v891 = vpop.xlane.xlu0 %890
      %v892 = vsel %vm669, %v487, 0.0
      %893 = vadd.xlane.f32.xlu0 %v892
      %v894 = vpop.xlane.xlu0 %893
      %v895 = vsel %vm669, %v488, 0.0
      %896 = vadd.xlane.f32.xlu0 %v895
      %v897 = vpop.xlane.xlu0 %896
      %v898 = vsel %vm669, %v489, 0.0
      %899 = vadd.xlane.f32.xlu0 %v898
      %v900 = vpop.xlane.xlu0 %899
      %v901 = vsel %vm669, %v490, 0.0
      %902 = vadd.xlane.f32.xlu0 %v901
      %v903 = vpop.xlane.xlu0 %902
      %v904 = vsel %vm669, %v491, 0.0
      %905 = vadd.xlane.f32.xlu0 %v904
      %v906 = vpop.xlane.xlu0 %905
      %v907 = vsel %vm669, %v492, 0.0
      %908 = vadd.xlane.f32.xlu0 %v907
      %v909 = vpop.xlane.xlu0 %908
      %v910 = vsel %vm669, %v493, 0.0
      %911 = vadd.xlane.f32.xlu0 %v910
      %v912 = vpop.xlane.xlu0 %911
      %v913 = vsel %vm669, %v494, 0.0
      %914 = vadd.xlane.f32.xlu0 %v913
      %v915 = vpop.xlane.xlu0 %914
      %v916 = vsel %vm669, %v495, 0.0
      %917 = vadd.xlane.f32.xlu0 %v916
      %v918 = vpop.xlane.xlu0 %917
      %v919 = vsel %vm669, %v496, 0.0
      %920 = vadd.xlane.f32.xlu0 %v919
      %v921 = vpop.xlane.xlu0 %920
      %v922 = vsel %vm669, %v497, 0.0
      %923 = vadd.xlane.f32.xlu0 %v922
      %v924 = vpop.xlane.xlu0 %923
      %v925 = vsel %vm669, %v498, 0.0
      %926 = vadd.xlane.f32.xlu0 %v925
      %v927 = vpop.xlane.xlu0 %926
      %v928 = vsel %vm669, %v499, 0.0
      %929 = vadd.xlane.f32.xlu0 %v928
      %v930 = vpop.xlane.xlu0 %929
      %v931 = vsel %vm669, %v500, 0.0
      %932 = vadd.xlane.f32.xlu0 %v931
      %v933 = vpop.xlane.xlu0 %932
      %v934 = vsel %vm669, %v501, 0.0
      %935 = vadd.xlane.f32.xlu0 %v934
      %v936 = vpop.xlane.xlu0 %935
      %v937 = vsel %vm669, %v502, 0.0
      %938 = vadd.xlane.f32.xlu0 %v937
      %v939 = vpop.xlane.xlu0 %938
      %v940 = vsel %vm669, %v503, 0.0
      %941 = vadd.xlane.f32.xlu0 %v940
      %v942 = vpop.xlane.xlu0 %941
      %v943 = vsel %vm669, %v504, 0.0
      %944 = vadd.xlane.f32.xlu0 %v943
      %v945 = vpop.xlane.xlu0 %944
      %v946 = vsel %vm669, %v505, 0.0
      %947 = vadd.xlane.f32.xlu0 %v946
      %v948 = vpop.xlane.xlu0 %947
      %v949 = vsel %vm669, %v506, 0.0
      %950 = vadd.xlane.f32.xlu0 %v949
      %v951 = vpop.xlane.xlu0 %950
      %v952 = vsel %vm669, %v507, 0.0
      %953 = vadd.xlane.f32.xlu0 %v952
      %v954 = vpop.xlane.xlu0 %953
      %v955 = vsel %vm669, %v508, 0.0
      %956 = vadd.xlane.f32.xlu0 %v955
      %v957 = vpop.xlane.xlu0 %956
      %v958 = vsel %vm669, %v509, 0.0
      %959 = vadd.xlane.f32.xlu0 %v958
      %v960 = vpop.xlane.xlu0 %959
      %v961 = vsel %vm669, %v510, 0.0
      %962 = vadd.xlane.f32.xlu0 %v961
      %v963 = vpop.xlane.xlu0 %962
      %v964 = vsel %vm669, %v511, 0.0
      %965 = vadd.xlane.f32.xlu0 %v964
      %v966 = vpop.xlane.xlu0 %965
      %v967 = vsel %vm669, %v512, 0.0
      %968 = vadd.xlane.f32.xlu0 %v967
      %v969 = vpop.xlane.xlu0 %968
      %v970 = vsel %vm669, %v513, 0.0
      %971 = vadd.xlane.f32.xlu0 %v970
      %v972 = vpop.xlane.xlu0 %971
      %v973 = vsel %vm669, %v514, 0.0
      %974 = vadd.xlane.f32.xlu0 %v973
      %v975 = vpop.xlane.xlu0 %974
      %v976 = vsel %vm669, %v515, 0.0
      %977 = vadd.xlane.f32.xlu0 %v976
      %v978 = vpop.xlane.xlu0 %977
      %v979 = vsel %vm669, %v516, 0.0
      %980 = vadd.xlane.f32.xlu0 %v979
      %v981 = vpop.xlane.xlu0 %980
      %v982 = vsel %vm669, %v517, 0.0
      %983 = vadd.xlane.f32.xlu0 %v982
      %v984 = vpop.xlane.xlu0 %983
      %v985 = vsel %vm669, %v518, 0.0
      %986 = vadd.xlane.f32.xlu0 %v985
      %v987 = vpop.xlane.xlu0 %986
      %v988 = vsel %vm669, %v519, 0.0
      %989 = vadd.xlane.f32.xlu0 %v988
      %v990 = vpop.xlane.xlu0 %989
      %v991 = vsel %vm669, %v520, 0.0
      %992 = vadd.xlane.f32.xlu0 %v991
      %v993 = vpop.xlane.xlu0 %992
      %v994 = vsel %vm669, %v521, 0.0
      %995 = vadd.xlane.f32.xlu0 %v994
      %v996 = vpop.xlane.xlu0 %995
      %v997 = vsel %vm669, %v522, 0.0
      %998 = vadd.xlane.f32.xlu0 %v997
      %v999 = vpop.xlane.xlu0 %998
      %v1000 = vsel %vm669, %v523, 0.0
      %1001 = vadd.xlane.f32.xlu0 %v1000
      %v1002 = vpop.xlane.xlu0 %1001
      %v1003 = vsel %vm669, %v524, 0.0
      %1004 = vadd.xlane.f32.xlu0 %v1003
      %v1005 = vpop.xlane.xlu0 %1004
      %v1006 = vsel %vm669, %v525, 0.0
      %1007 = vadd.xlane.f32.xlu0 %v1006
      %v1008 = vpop.xlane.xlu0 %1007
      %v1009 = vsel %vm669, %v526, 0.0
      %1010 = vadd.xlane.f32.xlu0 %v1009
      %v1011 = vpop.xlane.xlu0 %1010
      %v1012 = vsel %vm669, %v527, 0.0
      %1013 = vadd.xlane.f32.xlu0 %v1012
      %v1014 = vpop.xlane.xlu0 %1013
      %v1015 = vsel %vm669, %v528, 0.0
      %1016 = vadd.xlane.f32.xlu0 %v1015
      %v1017 = vpop.xlane.xlu0 %1016
      %v1018 = vsel %vm669, %v529, 0.0
      %1019 = vadd.xlane.f32.xlu0 %v1018
      %v1020 = vpop.xlane.xlu0 %1019
      %v1021 = vsel %vm669, %v530, 0.0
      %1022 = vadd.xlane.f32.xlu0 %v1021
      %v1023 = vpop.xlane.xlu0 %1022
      %v1024 = vsel %vm669, %v531, 0.0
      %1025 = vadd.xlane.f32.xlu0 %v1024
      %v1026 = vpop.xlane.xlu0 %1025
      %v1027 = vsel %vm669, %v532, 0.0
      %1028 = vadd.xlane.f32.xlu0 %v1027
      %v1029 = vpop.xlane.xlu0 %1028
      %v1030 = vsel %vm669, %v533, 0.0
      %1031 = vadd.xlane.f32.xlu0 %v1030
      %v1032 = vpop.xlane.xlu0 %1031
      %v1033 = vsel %vm669, %v534, 0.0
      %1034 = vadd.xlane.f32.xlu0 %v1033
      %v1035 = vpop.xlane.xlu0 %1034
      %v1036 = vsel %vm669, %v535, 0.0
      %1037 = vadd.xlane.f32.xlu0 %v1036
      %v1038 = vpop.xlane.xlu0 %1037
      %v1039 = vsel %vm669, %v536, 0.0
      %1040 = vadd.xlane.f32.xlu0 %v1039
      %v1041 = vpop.xlane.xlu0 %1040
      %v1042 = vsel %vm669, %v537, 0.0
      %1043 = vadd.xlane.f32.xlu0 %v1042
      %v1044 = vpop.xlane.xlu0 %1043
      %v1045 = vsel %vm669, %v538, 0.0
      %1046 = vadd.xlane.f32.xlu0 %v1045
      %v1047 = vpop.xlane.xlu0 %1046
      %v1048 = vsel %vm669, %v539, 0.0
      %1049 = vadd.xlane.f32.xlu0 %v1048
      %v1050 = vpop.xlane.xlu0 %1049
      %v1051 = vsel %vm669, %v540, 0.0
      %1052 = vadd.xlane.f32.xlu0 %v1051
      %v1053 = vpop.xlane.xlu0 %1052
      %v1054 = vld [vmem:[%s5] sm:$0xff]
      %v1055 = vld [vmem:[%s5 + $0x8] sm:$0xff]
      %v1056 = vld [vmem:[%s5 + $0x10] sm:$0xff]
      %v1057 = vld [vmem:[%s5 + $0x18] sm:$0xff]
      %v1186 = vlaneseq
      %v1187 = vand.u32 %v1186, 127
      %v1188 = vlaneseq
      %v1189 = vshrl.u32 %v1188, 7
      %v1190 = vsub.s32 %v1187, %v1189
      %v1191 = vrot.slane %v672, %v1190
      %v1192 = vadd.s32 %v1187, 4294967288
      %v1193 = vlaneseq
      %v1194 = vshrl.u32 %v1193, 7
      %v1195 = vsub.s32 %v1192, %v1194
      %v1196 = vrot.slane %v675, %v1195
      %vm1197 = vcmask 130112
      %v1198 = vsel %vm1197, %v1196, %v1191
      %v1199 = vadd.s32 %v1187, 4294967280
      %v1200 = vlaneseq
      %v1201 = vshrl.u32 %v1200, 7
      %v1202 = vsub.s32 %v1199, %v1201
      %v1203 = vrot.slane %v678, %v1202
      %vm1204 = vcmask 195712
      %v1205 = vsel %vm1204, %v1203, %v1198
      %v1206 = vadd.s32 %v1187, 4294967272
      %v1207 = vlaneseq
      %v1208 = vshrl.u32 %v1207, 7
      %v1209 = vsub.s32 %v1206, %v1208
      %v1210 = vrot.slane %v681, %v1209
      %vm1211 = vcmask 261312
      %v1212 = vsel %vm1211, %v1210, %v1205
      %v1213 = vlaneseq
      %v1214 = vshrl.u32 %v1213, 7
      %v1215 = vsub.s32 %v1187, %v1214
      %v1216 = vrot.slane %v684, %v1215
      %v1217 = vlaneseq
      %v1218 = vshrl.u32 %v1217, 7
      %v1219 = vsub.s32 %v1192, %v1218
      %v1220 = vrot.slane %v687, %v1219
      %v1221 = vsel %vm1197, %v1220, %v1216
      %v1222 = vlaneseq
      %v1223 = vshrl.u32 %v1222, 7
      %v1224 = vsub.s32 %v1199, %v1223
      %v1225 = vrot.slane %v690, %v1224
      %v1226 = vsel %vm1204, %v1225, %v1221
      %v1227 = vlaneseq
      %v1228 = vshrl.u32 %v1227, 7
      %v1229 = vsub.s32 %v1206, %v1228
      %v1230 = vrot.slane %v693, %v1229
      %v1231 = vsel %vm1211, %v1230, %v1226
      %v1232 = vlaneseq
      %v1233 = vshrl.u32 %v1232, 7
      %v1234 = vsub.s32 %v1187, %v1233
      %v1235 = vrot.slane %v696, %v1234
      %v1236 = vlaneseq
      %v1237 = vshrl.u32 %v1236, 7
      %v1238 = vsub.s32 %v1192, %v1237
      %v1239 = vrot.slane %v699, %v1238
      %v1240 = vsel %vm1197, %v1239, %v1235
      %v1241 = vlaneseq
      %v1242 = vshrl.u32 %v1241, 7
      %v1243 = vsub.s32 %v1199, %v1242
      %v1244 = vrot.slane %v702, %v1243
      %v1245 = vsel %vm1204, %v1244, %v1240
      %v1246 = vlaneseq
      %v1247 = vshrl.u32 %v1246, 7
      %v1248 = vsub.s32 %v1206, %v1247
      %v1249 = vrot.slane %v705, %v1248
      %v1250 = vsel %vm1211, %v1249, %v1245
      %v1251 = vlaneseq
      %v1252 = vshrl.u32 %v1251, 7
      %v1253 = vsub.s32 %v1187, %v1252
      %v1254 = vrot.slane %v708, %v1253
      %v1255 = vlaneseq
      %v1256 = vshrl.u32 %v1255, 7
      %v1257 = vsub.s32 %v1192, %v1256
      %v1258 = vrot.slane %v711, %v1257
      %v1259 = vsel %vm1197, %v1258, %v1254
      %v1260 = vlaneseq
      %v1261 = vshrl.u32 %v1260, 7
      %v1262 = vsub.s32 %v1199, %v1261
      %v1263 = vrot.slane %v714, %v1262
      %v1264 = vsel %vm1204, %v1263, %v1259
      %v1265 = vlaneseq
      %v1266 = vshrl.u32 %v1265, 7
      %v1267 = vsub.s32 %v1206, %v1266
      %v1268 = vrot.slane %v717, %v1267
      %v1269 = vsel %vm1211, %v1268, %v1264
      %v1270 = vlaneseq
      %v1271 = vshrl.u32 %v1270, 7
      %v1272 = vsub.s32 %v1187, %v1271
      %v1273 = vrot.slane %v720, %v1272
      %v1274 = vlaneseq
      %v1275 = vshrl.u32 %v1274, 7
      %v1276 = vsub.s32 %v1192, %v1275
      %v1277 = vrot.slane %v723, %v1276
      %v1278 = vsel %vm1197, %v1277, %v1273
      %v1279 = vlaneseq
      %v1280 = vshrl.u32 %v1279, 7
      %v1281 = vsub.s32 %v1199, %v1280
      %v1282 = vrot.slane %v726, %v1281
      %v1283 = vsel %vm1204, %v1282, %v1278
      %v1284 = vlaneseq
      %v1285 = vshrl.u32 %v1284, 7
      %v1286 = vsub.s32 %v1206, %v1285
      %v1287 = vrot.slane %v729, %v1286
      %v1288 = vsel %vm1211, %v1287, %v1283
      %v1289 = vlaneseq
      %v1290 = vshrl.u32 %v1289, 7
      %v1291 = vsub.s32 %v1187, %v1290
      %v1292 = vrot.slane %v732, %v1291
      %v1293 = vlaneseq
      %v1294 = vshrl.u32 %v1293, 7
      %v1295 = vsub.s32 %v1192, %v1294
      %v1296 = vrot.slane %v735, %v1295
      %v1297 = vsel %vm1197, %v1296, %v1292
      %v1298 = vlaneseq
      %v1299 = vshrl.u32 %v1298, 7
      %v1300 = vsub.s32 %v1199, %v1299
      %v1301 = vrot.slane %v738, %v1300
      %v1302 = vsel %vm1204, %v1301, %v1297
      %v1303 = vlaneseq
      %v1304 = vshrl.u32 %v1303, 7
      %v1305 = vsub.s32 %v1206, %v1304
      %v1306 = vrot.slane %v741, %v1305
      %v1307 = vsel %vm1211, %v1306, %v1302
      %v1308 = vlaneseq
      %v1309 = vshrl.u32 %v1308, 7
      %v1310 = vsub.s32 %v1187, %v1309
      %v1311 = vrot.slane %v744, %v1310
      %v1312 = vlaneseq
      %v1313 = vshrl.u32 %v1312, 7
      %v1314 = vsub.s32 %v1192, %v1313
      %v1315 = vrot.slane %v747, %v1314
      %v1316 = vsel %vm1197, %v1315, %v1311
      %v1317 = vlaneseq
      %v1318 = vshrl.u32 %v1317, 7
      %v1319 = vsub.s32 %v1199, %v1318
      %v1320 = vrot.slane %v750, %v1319
      %v1321 = vsel %vm1204, %v1320, %v1316
      %v1322 = vlaneseq
      %v1323 = vshrl.u32 %v1322, 7
      %v1324 = vsub.s32 %v1206, %v1323
      %v1325 = vrot.slane %v753, %v1324
      %v1326 = vsel %vm1211, %v1325, %v1321
      %v1327 = vlaneseq
      %v1328 = vshrl.u32 %v1327, 7
      %v1329 = vsub.s32 %v1187, %v1328
      %v1330 = vrot.slane %v756, %v1329
      %v1331 = vlaneseq
      %v1332 = vshrl.u32 %v1331, 7
      %v1333 = vsub.s32 %v1192, %v1332
      %v1334 = vrot.slane %v759, %v1333
      %v1335 = vsel %vm1197, %v1334, %v1330
      %v1336 = vlaneseq
      %v1337 = vshrl.u32 %v1336, 7
      %v1338 = vsub.s32 %v1199, %v1337
      %v1339 = vrot.slane %v762, %v1338
      %v1340 = vsel %vm1204, %v1339, %v1335
      %v1341 = vlaneseq
      %v1342 = vshrl.u32 %v1341, 7
      %v1343 = vsub.s32 %v1206, %v1342
      %v1344 = vrot.slane %v765, %v1343
      %v1345 = vsel %vm1211, %v1344, %v1340
      %v1346 = vlaneseq
      %v1347 = vshrl.u32 %v1346, 7
      %v1348 = vsub.s32 %v1187, %v1347
      %v1349 = vrot.slane %v768, %v1348
      %v1350 = vlaneseq
      %v1351 = vshrl.u32 %v1350, 7
      %v1352 = vsub.s32 %v1192, %v1351
      %v1353 = vrot.slane %v771, %v1352
      %v1354 = vsel %vm1197, %v1353, %v1349
      %v1355 = vlaneseq
      %v1356 = vshrl.u32 %v1355, 7
      %v1357 = vsub.s32 %v1199, %v1356
      %v1358 = vrot.slane %v774, %v1357
      %v1359 = vsel %vm1204, %v1358, %v1354
      %v1360 = vlaneseq
      %v1361 = vshrl.u32 %v1360, 7
      %v1362 = vsub.s32 %v1206, %v1361
      %v1363 = vrot.slane %v777, %v1362
      %v1364 = vsel %vm1211, %v1363, %v1359
      %v1365 = vlaneseq
      %v1366 = vshrl.u32 %v1365, 7
      %v1367 = vsub.s32 %v1187, %v1366
      %v1368 = vrot.slane %v780, %v1367
      %v1369 = vlaneseq
      %v1370 = vshrl.u32 %v1369, 7
      %v1371 = vsub.s32 %v1192, %v1370
      %v1372 = vrot.slane %v783, %v1371
      %v1373 = vsel %vm1197, %v1372, %v1368
      %v1374 = vlaneseq
      %v1375 = vshrl.u32 %v1374, 7
      %v1376 = vsub.s32 %v1199, %v1375
      %v1377 = vrot.slane %v786, %v1376
      %v1378 = vsel %vm1204, %v1377, %v1373
      %v1379 = vlaneseq
      %v1380 = vshrl.u32 %v1379, 7
      %v1381 = vsub.s32 %v1206, %v1380
      %v1382 = vrot.slane %v789, %v1381
      %v1383 = vsel %vm1211, %v1382, %v1378
      %v1384 = vlaneseq
      %v1385 = vshrl.u32 %v1384, 7
      %v1386 = vsub.s32 %v1187, %v1385
      %v1387 = vrot.slane %v792, %v1386
      %v1388 = vlaneseq
      %v1389 = vshrl.u32 %v1388, 7
      %v1390 = vsub.s32 %v1192, %v1389
      %v1391 = vrot.slane %v795, %v1390
      %v1392 = vsel %vm1197, %v1391, %v1387
      %v1393 = vlaneseq
      %v1394 = vshrl.u32 %v1393, 7
      %v1395 = vsub.s32 %v1199, %v1394
      %v1396 = vrot.slane %v798, %v1395
      %v1397 = vsel %vm1204, %v1396, %v1392
      %v1398 = vlaneseq
      %v1399 = vshrl.u32 %v1398, 7
      %v1400 = vsub.s32 %v1206, %v1399
      %v1401 = vrot.slane %v801, %v1400
      %v1402 = vsel %vm1211, %v1401, %v1397
      %v1403 = vlaneseq
      %v1404 = vshrl.u32 %v1403, 7
      %v1405 = vsub.s32 %v1187, %v1404
      %v1406 = vrot.slane %v804, %v1405
      %v1407 = vlaneseq
      %v1408 = vshrl.u32 %v1407, 7
      %v1409 = vsub.s32 %v1192, %v1408
      %v1410 = vrot.slane %v807, %v1409
      %v1411 = vsel %vm1197, %v1410, %v1406
      %v1412 = vlaneseq
      %v1413 = vshrl.u32 %v1412, 7
      %v1414 = vsub.s32 %v1199, %v1413
      %v1415 = vrot.slane %v810, %v1414
      %v1416 = vsel %vm1204, %v1415, %v1411
      %v1417 = vlaneseq
      %v1418 = vshrl.u32 %v1417, 7
      %v1419 = vsub.s32 %v1206, %v1418
      %v1420 = vrot.slane %v813, %v1419
      %v1421 = vsel %vm1211, %v1420, %v1416
      %v1422 = vlaneseq
      %v1423 = vshrl.u32 %v1422, 7
      %v1424 = vsub.s32 %v1187, %v1423
      %v1425 = vrot.slane %v816, %v1424
      %v1426 = vlaneseq
      %v1427 = vshrl.u32 %v1426, 7
      %v1428 = vsub.s32 %v1192, %v1427
      %v1429 = vrot.slane %v819, %v1428
      %v1430 = vsel %vm1197, %v1429, %v1425
      %v1431 = vlaneseq
      %v1432 = vshrl.u32 %v1431, 7
      %v1433 = vsub.s32 %v1199, %v1432
      %v1434 = vrot.slane %v822, %v1433
      %v1435 = vsel %vm1204, %v1434, %v1430
      %v1436 = vlaneseq
      %v1437 = vshrl.u32 %v1436, 7
      %v1438 = vsub.s32 %v1206, %v1437
      %v1439 = vrot.slane %v825, %v1438
      %v1440 = vsel %vm1211, %v1439, %v1435
      %v1441 = vlaneseq
      %v1442 = vshrl.u32 %v1441, 7
      %v1443 = vsub.s32 %v1187, %v1442
      %v1444 = vrot.slane %v828, %v1443
      %v1445 = vlaneseq
      %v1446 = vshrl.u32 %v1445, 7
      %v1447 = vsub.s32 %v1192, %v1446
      %v1448 = vrot.slane %v831, %v1447
      %v1449 = vsel %vm1197, %v1448, %v1444
      %v1450 = vlaneseq
      %v1451 = vshrl.u32 %v1450, 7
      %v1452 = vsub.s32 %v1199, %v1451
      %v1453 = vrot.slane %v834, %v1452
      %v1454 = vsel %vm1204, %v1453, %v1449
      %v1455 = vlaneseq
      %v1456 = vshrl.u32 %v1455, 7
      %v1457 = vsub.s32 %v1206, %v1456
      %v1458 = vrot.slane %v837, %v1457
      %v1459 = vsel %vm1211, %v1458, %v1454
      %v1460 = vlaneseq
      %v1461 = vshrl.u32 %v1460, 7
      %v1462 = vsub.s32 %v1187, %v1461
      %v1463 = vrot.slane %v840, %v1462
      %v1464 = vlaneseq
      %v1465 = vshrl.u32 %v1464, 7
      %v1466 = vsub.s32 %v1192, %v1465
      %v1467 = vrot.slane %v843, %v1466
      %v1468 = vsel %vm1197, %v1467, %v1463
      %v1469 = vlaneseq
      %v1470 = vshrl.u32 %v1469, 7
      %v1471 = vsub.s32 %v1199, %v1470
      %v1472 = vrot.slane %v846, %v1471
      %v1473 = vsel %vm1204, %v1472, %v1468
      %v1474 = vlaneseq
      %v1475 = vshrl.u32 %v1474, 7
      %v1476 = vsub.s32 %v1206, %v1475
      %v1477 = vrot.slane %v849, %v1476
      %v1478 = vsel %vm1211, %v1477, %v1473
      %v1479 = vlaneseq
      %v1480 = vshrl.u32 %v1479, 7
      %v1481 = vsub.s32 %v1187, %v1480
      %v1482 = vrot.slane %v852, %v1481
      %v1483 = vlaneseq
      %v1484 = vshrl.u32 %v1483, 7
      %v1485 = vsub.s32 %v1192, %v1484
      %v1486 = vrot.slane %v855, %v1485
      %v1487 = vsel %vm1197, %v1486, %v1482
      %v1488 = vlaneseq
      %v1489 = vshrl.u32 %v1488, 7
      %v1490 = vsub.s32 %v1199, %v1489
      %v1491 = vrot.slane %v858, %v1490
      %v1492 = vsel %vm1204, %v1491, %v1487
      %v1493 = vlaneseq
      %v1494 = vshrl.u32 %v1493, 7
      %v1495 = vsub.s32 %v1206, %v1494
      %v1496 = vrot.slane %v861, %v1495
      %v1497 = vsel %vm1211, %v1496, %v1492
      %v1498 = vlaneseq
      %v1499 = vshrl.u32 %v1498, 7
      %v1500 = vsub.s32 %v1187, %v1499
      %v1501 = vrot.slane %v864, %v1500
      %v1502 = vlaneseq
      %v1503 = vshrl.u32 %v1502, 7
      %v1504 = vsub.s32 %v1192, %v1503
      %v1505 = vrot.slane %v867, %v1504
      %v1506 = vsel %vm1197, %v1505, %v1501
      %v1507 = vlaneseq
      %v1508 = vshrl.u32 %v1507, 7
      %v1509 = vsub.s32 %v1199, %v1508
      %v1510 = vrot.slane %v870, %v1509
      %v1511 = vsel %vm1204, %v1510, %v1506
      %v1512 = vlaneseq
      %v1513 = vshrl.u32 %v1512, 7
      %v1514 = vsub.s32 %v1206, %v1513
      %v1515 = vrot.slane %v873, %v1514
      %v1516 = vsel %vm1211, %v1515, %v1511
      %v1517 = vlaneseq
      %v1518 = vshrl.u32 %v1517, 7
      %v1519 = vsub.s32 %v1187, %v1518
      %v1520 = vrot.slane %v876, %v1519
      %v1521 = vlaneseq
      %v1522 = vshrl.u32 %v1521, 7
      %v1523 = vsub.s32 %v1192, %v1522
      %v1524 = vrot.slane %v879, %v1523
      %v1525 = vsel %vm1197, %v1524, %v1520
      %v1526 = vlaneseq
      %v1527 = vshrl.u32 %v1526, 7
      %v1528 = vsub.s32 %v1199, %v1527
      %v1529 = vrot.slane %v882, %v1528
      %v1530 = vsel %vm1204, %v1529, %v1525
      %v1531 = vlaneseq
      %v1532 = vshrl.u32 %v1531, 7
      %v1533 = vsub.s32 %v1206, %v1532
      %v1534 = vrot.slane %v885, %v1533
      %v1535 = vsel %vm1211, %v1534, %v1530
      %v1536 = vlaneseq
      %v1537 = vshrl.u32 %v1536, 7
      %v1538 = vsub.s32 %v1187, %v1537
      %v1539 = vrot.slane %v888, %v1538
      %v1540 = vlaneseq
      %v1541 = vshrl.u32 %v1540, 7
      %v1542 = vsub.s32 %v1192, %v1541
      %v1543 = vrot.slane %v891, %v1542
      %v1544 = vsel %vm1197, %v1543, %v1539
      %v1545 = vlaneseq
      %v1546 = vshrl.u32 %v1545, 7
      %v1547 = vsub.s32 %v1199, %v1546
      %v1548 = vrot.slane %v894, %v1547
      %v1549 = vsel %vm1204, %v1548, %v1544
      %v1550 = vlaneseq
      %v1551 = vshrl.u32 %v1550, 7
      %v1552 = vsub.s32 %v1206, %v1551
      %v1553 = vrot.slane %v897, %v1552
      %v1554 = vsel %vm1211, %v1553, %v1549
      %v1555 = vlaneseq
      %v1556 = vshrl.u32 %v1555, 7
      %v1557 = vsub.s32 %v1187, %v1556
      %v1558 = vrot.slane %v900, %v1557
      %v1559 = vlaneseq
      %v1560 = vshrl.u32 %v1559, 7
      %v1561 = vsub.s32 %v1192, %v1560
      %v1562 = vrot.slane %v903, %v1561
      %v1563 = vsel %vm1197, %v1562, %v1558
      %v1564 = vlaneseq
      %v1565 = vshrl.u32 %v1564, 7
      %v1566 = vsub.s32 %v1199, %v1565
      %v1567 = vrot.slane %v906, %v1566
      %v1568 = vsel %vm1204, %v1567, %v1563
      %v1569 = vlaneseq
      %v1570 = vshrl.u32 %v1569, 7
      %v1571 = vsub.s32 %v1206, %v1570
      %v1572 = vrot.slane %v909, %v1571
      %v1573 = vsel %vm1211, %v1572, %v1568
      %v1574 = vlaneseq
      %v1575 = vshrl.u32 %v1574, 7
      %v1576 = vsub.s32 %v1187, %v1575
      %v1577 = vrot.slane %v912, %v1576
      %v1578 = vlaneseq
      %v1579 = vshrl.u32 %v1578, 7
      %v1580 = vsub.s32 %v1192, %v1579
      %v1581 = vrot.slane %v915, %v1580
      %v1582 = vsel %vm1197, %v1581, %v1577
      %v1583 = vlaneseq
      %v1584 = vshrl.u32 %v1583, 7
      %v1585 = vsub.s32 %v1199, %v1584
      %v1586 = vrot.slane %v918, %v1585
      %v1587 = vsel %vm1204, %v1586, %v1582
      %v1588 = vlaneseq
      %v1589 = vshrl.u32 %v1588, 7
      %v1590 = vsub.s32 %v1206, %v1589
      %v1591 = vrot.slane %v921, %v1590
      %v1592 = vsel %vm1211, %v1591, %v1587
      %v1593 = vlaneseq
      %v1594 = vshrl.u32 %v1593, 7
      %v1595 = vsub.s32 %v1187, %v1594
      %v1596 = vrot.slane %v924, %v1595
      %v1597 = vlaneseq
      %v1598 = vshrl.u32 %v1597, 7
      %v1599 = vsub.s32 %v1192, %v1598
      %v1600 = vrot.slane %v927, %v1599
      %v1601 = vsel %vm1197, %v1600, %v1596
      %v1602 = vlaneseq
      %v1603 = vshrl.u32 %v1602, 7
      %v1604 = vsub.s32 %v1199, %v1603
      %v1605 = vrot.slane %v930, %v1604
      %v1606 = vsel %vm1204, %v1605, %v1601
      %v1607 = vlaneseq
      %v1608 = vshrl.u32 %v1607, 7
      %v1609 = vsub.s32 %v1206, %v1608
      %v1610 = vrot.slane %v933, %v1609
      %v1611 = vsel %vm1211, %v1610, %v1606
      %v1612 = vlaneseq
      %v1613 = vshrl.u32 %v1612, 7
      %v1614 = vsub.s32 %v1187, %v1613
      %v1615 = vrot.slane %v936, %v1614
      %v1616 = vlaneseq
      %v1617 = vshrl.u32 %v1616, 7
      %v1618 = vsub.s32 %v1192, %v1617
      %v1619 = vrot.slane %v939, %v1618
      %v1620 = vsel %vm1197, %v1619, %v1615
      %v1621 = vlaneseq
      %v1622 = vshrl.u32 %v1621, 7
      %v1623 = vsub.s32 %v1199, %v1622
      %v1624 = vrot.slane %v942, %v1623
      %v1625 = vsel %vm1204, %v1624, %v1620
      %v1626 = vlaneseq
      %v1627 = vshrl.u32 %v1626, 7
      %v1628 = vsub.s32 %v1206, %v1627
      %v1629 = vrot.slane %v945, %v1628
      %v1630 = vsel %vm1211, %v1629, %v1625
      %v1631 = vlaneseq
      %v1632 = vshrl.u32 %v1631, 7
      %v1633 = vsub.s32 %v1187, %v1632
      %v1634 = vrot.slane %v948, %v1633
      %v1635 = vlaneseq
      %v1636 = vshrl.u32 %v1635, 7
      %v1637 = vsub.s32 %v1192, %v1636
      %v1638 = vrot.slane %v951, %v1637
      %v1639 = vsel %vm1197, %v1638, %v1634
      %v1640 = vlaneseq
      %v1641 = vshrl.u32 %v1640, 7
      %v1642 = vsub.s32 %v1199, %v1641
      %v1643 = vrot.slane %v954, %v1642
      %v1644 = vsel %vm1204, %v1643, %v1639
      %v1645 = vlaneseq
      %v1646 = vshrl.u32 %v1645, 7
      %v1647 = vsub.s32 %v1206, %v1646
      %v1648 = vrot.slane %v957, %v1647
      %v1649 = vsel %vm1211, %v1648, %v1644
      %v1650 = vlaneseq
      %v1651 = vshrl.u32 %v1650, 7
      %v1652 = vsub.s32 %v1187, %v1651
      %v1653 = vrot.slane %v960, %v1652
      %v1654 = vlaneseq
      %v1655 = vshrl.u32 %v1654, 7
      %v1656 = vsub.s32 %v1192, %v1655
      %v1657 = vrot.slane %v963, %v1656
      %v1658 = vsel %vm1197, %v1657, %v1653
      %v1659 = vlaneseq
      %v1660 = vshrl.u32 %v1659, 7
      %v1661 = vsub.s32 %v1199, %v1660
      %v1662 = vrot.slane %v966, %v1661
      %v1663 = vsel %vm1204, %v1662, %v1658
      %v1664 = vlaneseq
      %v1665 = vshrl.u32 %v1664, 7
      %v1666 = vsub.s32 %v1206, %v1665
      %v1667 = vrot.slane %v969, %v1666
      %v1668 = vsel %vm1211, %v1667, %v1663
      %v1669 = vlaneseq
      %v1670 = vshrl.u32 %v1669, 7
      %v1671 = vsub.s32 %v1187, %v1670
      %v1672 = vrot.slane %v972, %v1671
      %v1673 = vlaneseq
      %v1674 = vshrl.u32 %v1673, 7
      %v1675 = vsub.s32 %v1192, %v1674
      %v1676 = vrot.slane %v975, %v1675
      %v1677 = vsel %vm1197, %v1676, %v1672
      %v1678 = vlaneseq
      %v1679 = vshrl.u32 %v1678, 7
      %v1680 = vsub.s32 %v1199, %v1679
      %v1681 = vrot.slane %v978, %v1680
      %v1682 = vsel %vm1204, %v1681, %v1677
      %v1683 = vlaneseq
      %v1684 = vshrl.u32 %v1683, 7
      %v1685 = vsub.s32 %v1206, %v1684
      %v1686 = vrot.slane %v981, %v1685
      %v1687 = vsel %vm1211, %v1686, %v1682
      %v1688 = vlaneseq
      %v1689 = vshrl.u32 %v1688, 7
      %v1690 = vsub.s32 %v1187, %v1689
      %v1691 = vrot.slane %v984, %v1690
      %v1692 = vlaneseq
      %v1693 = vshrl.u32 %v1692, 7
      %v1694 = vsub.s32 %v1192, %v1693
      %v1695 = vrot.slane %v987, %v1694
      %v1696 = vsel %vm1197, %v1695, %v1691
      %v1697 = vlaneseq
      %v1698 = vshrl.u32 %v1697, 7
      %v1699 = vsub.s32 %v1199, %v1698
      %v1700 = vrot.slane %v990, %v1699
      %v1701 = vsel %vm1204, %v1700, %v1696
      %v1702 = vlaneseq
      %v1703 = vshrl.u32 %v1702, 7
      %v1704 = vsub.s32 %v1206, %v1703
      %v1705 = vrot.slane %v993, %v1704
      %v1706 = vsel %vm1211, %v1705, %v1701
      %v1707 = vlaneseq
      %v1708 = vshrl.u32 %v1707, 7
      %v1709 = vsub.s32 %v1187, %v1708
      %v1710 = vrot.slane %v996, %v1709
      %v1711 = vlaneseq
      %v1712 = vshrl.u32 %v1711, 7
      %v1713 = vsub.s32 %v1192, %v1712
      %v1714 = vrot.slane %v999, %v1713
      %v1715 = vsel %vm1197, %v1714, %v1710
      %v1716 = vlaneseq
      %v1717 = vshrl.u32 %v1716, 7
      %v1718 = vsub.s32 %v1199, %v1717
      %v1719 = vrot.slane %v1002, %v1718
      %v1720 = vsel %vm1204, %v1719, %v1715
      %v1721 = vlaneseq
      %v1722 = vshrl.u32 %v1721, 7
      %v1723 = vsub.s32 %v1206, %v1722
      %v1724 = vrot.slane %v1005, %v1723
      %v1725 = vsel %vm1211, %v1724, %v1720
      %v1726 = vlaneseq
      %v1727 = vshrl.u32 %v1726, 7
      %v1728 = vsub.s32 %v1187, %v1727
      %v1729 = vrot.slane %v1008, %v1728
      %v1730 = vlaneseq
      %v1731 = vshrl.u32 %v1730, 7
      %v1732 = vsub.s32 %v1192, %v1731
      %v1733 = vrot.slane %v1011, %v1732
      %v1734 = vsel %vm1197, %v1733, %v1729
      %v1735 = vlaneseq
      %v1736 = vshrl.u32 %v1735, 7
      %v1737 = vsub.s32 %v1199, %v1736
      %v1738 = vrot.slane %v1014, %v1737
      %v1739 = vsel %vm1204, %v1738, %v1734
      %v1740 = vlaneseq
      %v1741 = vshrl.u32 %v1740, 7
      %v1742 = vsub.s32 %v1206, %v1741
      %v1743 = vrot.slane %v1017, %v1742
      %v1744 = vsel %vm1211, %v1743, %v1739
      %v1745 = vlaneseq
      %v1746 = vshrl.u32 %v1745, 7
      %v1747 = vsub.s32 %v1187, %v1746
      %v1748 = vrot.slane %v1020, %v1747
      %v1749 = vlaneseq
      %v1750 = vshrl.u32 %v1749, 7
      %v1751 = vsub.s32 %v1192, %v1750
      %v1752 = vrot.slane %v1023, %v1751
      %v1753 = vsel %vm1197, %v1752, %v1748
      %v1754 = vlaneseq
      %v1755 = vshrl.u32 %v1754, 7
      %v1756 = vsub.s32 %v1199, %v1755
      %v1757 = vrot.slane %v1026, %v1756
      %v1758 = vsel %vm1204, %v1757, %v1753
      %v1759 = vlaneseq
      %v1760 = vshrl.u32 %v1759, 7
      %v1761 = vsub.s32 %v1206, %v1760
      %v1762 = vrot.slane %v1029, %v1761
      %v1763 = vsel %vm1211, %v1762, %v1758
      %v1764 = vlaneseq
      %v1765 = vshrl.u32 %v1764, 7
      %v1766 = vsub.s32 %v1187, %v1765
      %v1767 = vrot.slane %v1032, %v1766
      %v1768 = vlaneseq
      %v1769 = vshrl.u32 %v1768, 7
      %v1770 = vsub.s32 %v1192, %v1769
      %v1771 = vrot.slane %v1035, %v1770
      %v1772 = vsel %vm1197, %v1771, %v1767
      %v1773 = vlaneseq
      %v1774 = vshrl.u32 %v1773, 7
      %v1775 = vsub.s32 %v1199, %v1774
      %v1776 = vrot.slane %v1038, %v1775
      %v1777 = vsel %vm1204, %v1776, %v1772
      %v1778 = vlaneseq
      %v1779 = vshrl.u32 %v1778, 7
      %v1780 = vsub.s32 %v1206, %v1779
      %v1781 = vrot.slane %v1041, %v1780
      %v1782 = vsel %vm1211, %v1781, %v1777
      %v1783 = vlaneseq
      %v1784 = vshrl.u32 %v1783, 7
      %v1785 = vsub.s32 %v1187, %v1784
      %v1786 = vrot.slane %v1044, %v1785
      %v1787 = vlaneseq
      %v1788 = vshrl.u32 %v1787, 7
      %v1789 = vsub.s32 %v1192, %v1788
      %v1790 = vrot.slane %v1047, %v1789
      %v1791 = vsel %vm1197, %v1790, %v1786
      %v1792 = vlaneseq
      %v1793 = vshrl.u32 %v1792, 7
      %v1794 = vsub.s32 %v1199, %v1793
      %v1795 = vrot.slane %v1050, %v1794
      %v1796 = vsel %vm1204, %v1795, %v1791
      %v1797 = vlaneseq
      %v1798 = vshrl.u32 %v1797, 7
      %v1799 = vsub.s32 %v1206, %v1798
      %v1800 = vrot.slane %v1053, %v1799
      %v1801 = vsel %vm1211, %v1800, %v1796
      %vm1802 = vcmask 1041409
      %v1803 = vsel %vm1802, %v1231, %v1212
      %vm1804 = vcmask 1042434
      %v1805 = vsel %vm1804, %v1250, %v1803
      %vm1806 = vcmask 1043459
      %v1807 = vsel %vm1806, %v1269, %v1805
      %vm1808 = vcmask 1044484
      %v1809 = vsel %vm1808, %v1288, %v1807
      %vm1810 = vcmask 1045509
      %v1811 = vsel %vm1810, %v1307, %v1809
      %vm1812 = vcmask 1046534
      %v1813 = vsel %vm1812, %v1326, %v1811
      %vm1814 = vcmask 1047559
      %v1815 = vsel %vm1814, %v1345, %v1813
      %v1816 = vsel %vm1802, %v1383, %v1364
      %v1817 = vsel %vm1804, %v1402, %v1816
      %v1818 = vsel %vm1806, %v1421, %v1817
      %v1819 = vsel %vm1808, %v1440, %v1818
      %v1820 = vsel %vm1810, %v1459, %v1819
      %v1821 = vsel %vm1812, %v1478, %v1820
      %v1822 = vsel %vm1814, %v1497, %v1821
      %v1823 = vsel %vm1802, %v1535, %v1516
      %v1824 = vsel %vm1804, %v1554, %v1823
      %v1825 = vsel %vm1806, %v1573, %v1824
      %v1826 = vsel %vm1808, %v1592, %v1825
      %v1827 = vsel %vm1810, %v1611, %v1826
      %v1828 = vsel %vm1812, %v1630, %v1827
      %v1829 = vsel %vm1814, %v1649, %v1828
      %v1830 = vsel %vm1802, %v1687, %v1668
      %v1831 = vsel %vm1804, %v1706, %v1830
      %v1832 = vsel %vm1806, %v1725, %v1831
      %v1833 = vsel %vm1808, %v1744, %v1832
      %v1834 = vsel %vm1810, %v1763, %v1833
      %v1835 = vsel %vm1812, %v1782, %v1834
      %v1836 = vsel %vm1814, %v1801, %v1835
      %v1837 = vsel %vm669, %v1815, 0
      %v1839 = vsel %vm669, %v1822, 0
      %v1841 = vsel %vm669, %v1829, 0
      %v1843 = vsel %vm669, %v1836, 0
      %1845 = vmatprep.subr.mxu0 0.0
      %1846 = vmatpush1.msra.mxu0 0.0
      %1847 = vmatprep.subr.mxu0 0.0
      %1848 = vmatpush1.msra.mxu0 0.0
      %1849 = vmatprep.subr.mxu0 0.0
      %1850 = vmatpush1.msra.mxu0 0.0
      %1851 = vmatprep.subr.mxu0 0.0
      %1852 = vmatpush1.msra.mxu0 0.0
      %1853 = vmatprep.subr.mxu0 0.0
      %1854 = vmatpush1.msra.mxu0 0.0
      %1855 = vmatprep.subr.mxu0 0.0
      %1856 = vmatpush1.msra.mxu0 0.0
      %1857 = vmatprep.subr.mxu0 0.0
      %1858 = vmatpush1.msra.mxu0 0.0
      %1859 = vmatprep.subr.mxu0 0.0
      %1860 = vmatpush1.msra.mxu0 0.0
      %1861 = vmatprep.subr.mxu0 0.0
      %1862 = vmatpush1.msra.mxu0 0.0
      %1863 = vmatprep.subr.mxu0 0.0
      %1864 = vmatpush1.msra.mxu0 0.0
      %1865 = vmatprep.subr.mxu0 0.0
      %1866 = vmatpush1.msra.mxu0 0.0
      %1867 = vmatprep.subr.mxu0 0.0
      %1868 = vmatpush1.msra.mxu0 0.0
      %1869 = vmatprep.subr.mxu0 0.0
      %1870 = vmatpush1.msra.mxu0 %v1057
      %1871 = vmatprep.subr.mxu0 0.0
      %1872 = vmatpush1.msra.mxu0 %v1056
      %1873 = vmatprep.subr.mxu0 0.0
      %1874 = vmatpush1.msra.mxu0 %v1055
      %1875 = vmatprep.subr.mxu0 0.0
      %1876 = vmatpush1.msra.mxu0 %v1054
      %1877 = vmatprep.subr.mxu0 0.0
      %1878 = vmatpush2.msra.mxu0 0.0
      %1879 = vmatprep.subr.mxu0 0.0
      %1880 = vmatpush2.msra.mxu0 0.0
      %1881 = vmatprep.subr.mxu0 0.0
      %1882 = vmatpush2.msra.mxu0 0.0
      %1883 = vmatprep.subr.mxu0 0.0
      %1884 = vmatpush2.msra.mxu0 0.0
      %1885 = vmatprep.subr.mxu0 0.0
      %1886 = vmatpush2.msra.mxu0 0.0
      %1887 = vmatprep.subr.mxu0 0.0
      %1888 = vmatpush2.msra.mxu0 0.0
      %1889 = vmatprep.subr.mxu0 0.0
      %1890 = vmatpush2.msra.mxu0 0.0
      %1891 = vmatprep.subr.mxu0 0.0
      %1892 = vmatpush2.msra.mxu0 0.0
      %1893 = vmatprep.subr.mxu0 0.0
      %1894 = vmatpush2.msra.mxu0 0.0
      %1895 = vmatprep.subr.mxu0 0.0
      %1896 = vmatpush2.msra.mxu0 0.0
      %1897 = vmatprep.subr.mxu0 0.0
      %1898 = vmatpush2.msra.mxu0 0.0
      %1899 = vmatprep.subr.mxu0 0.0
      %1900 = vmatpush2.msra.mxu0 0.0
      %1901 = vmatprep.subr.mxu0 0.0
      %1902 = vmatpush2.msra.mxu0 0.0
      %1903 = vmatprep.subr.mxu0 0.0
      %1904 = vmatpush2.msra.mxu0 0.0
      %1905 = vmatprep.subr.mxu0 0.0
      %1906 = vmatpush2.msra.mxu0 0.0
      %1907 = vmatprep.subr.mxu0 0.0
      %1908 = vmatpush2.msra.mxu0 0.0
      %1909 = vmatprep.mubr.f32.mxu0 0.0
      %1910 = vmatmul.mubr.f32.gmra.mxu0 %v1837
      %v1911 = vpop.f32.mrf.mxu0
      %v1912 = vadd.f32 0.0, %v1911
      %v1913 = vpop.f32.mrf.mxu0
      %1914 = vmatprep.mubr.f32.mxu0 0.0
      %1915 = vmatmul.mubr.f32.gmra.mxu0 %v1839
      %v1916 = vpop.f32.mrf.mxu0
      %v1917 = vadd.f32 0.0, %v1916
      %v1918 = vpop.f32.mrf.mxu0
      %1919 = vmatprep.mubr.f32.mxu0 0.0
      %1920 = vmatmul.mubr.f32.gmra.mxu0 %v1841
      %v1921 = vpop.f32.mrf.mxu0
      %v1922 = vadd.f32 0.0, %v1921
      %v1923 = vpop.f32.mrf.mxu0
      %1924 = vmatprep.mubr.f32.mxu0 0.0
      %1925 = vmatmul.mubr.f32.gmra.mxu0 %v1843
      %v1926 = vpop.f32.mrf.mxu0
      %v1927 = vadd.f32 0.0, %v1926
      %v1928 = vpop.f32.mrf.mxu0
      %1929 = vdwg.mxu0
      %v1930 = vmax.f32 %v1912, 0.0
      %v1931 = vmax.f32 %v1917, 0.0
      %v1932 = vmax.f32 %v1922, 0.0
      %v1933 = vmax.f32 %v1927, 0.0
      %v1934 = vld [vmem:[%s6] sm:$0xff]
      %v1935 = vld [vmem:[%s6 + $0x8] sm:$0xf]
      %vm1936 = vcmask 97280
      %v1938 = vsel %vm1936, %v1930, 0
      %v1941 = vsel %vm1936, %v1931, 0
      %v1944 = vsel %vm1936, %v1932, 0
      %v1947 = vsel %vm1936, %v1933, 0
      %vm1949 = vcmask 1043456
      %v1951 = vsel %vm1949, %v1935, 0
      %1953 = vmatprep.subr.mxu0 0.0
      %1954 = vmatpush1.msra.mxu0 0.0
      %1955 = vmatprep.subr.mxu0 0.0
      %1956 = vmatpush1.msra.mxu0 0.0
      %1957 = vmatprep.subr.mxu0 0.0
      %1958 = vmatpush1.msra.mxu0 0.0
      %1959 = vmatprep.subr.mxu0 0.0
      %1960 = vmatpush1.msra.mxu0 0.0
      %1961 = vmatprep.subr.mxu0 0.0
      %1962 = vmatpush1.msra.mxu0 0.0
      %1963 = vmatprep.subr.mxu0 0.0
      %1964 = vmatpush1.msra.mxu0 0.0
      %1965 = vmatprep.subr.mxu0 0.0
      %1966 = vmatpush1.msra.mxu0 0.0
      %1967 = vmatprep.subr.mxu0 0.0
      %1968 = vmatpush1.msra.mxu0 0.0
      %1969 = vmatprep.subr.mxu0 0.0
      %1970 = vmatpush1.msra.mxu0 0.0
      %1971 = vmatprep.subr.mxu0 0.0
      %1972 = vmatpush1.msra.mxu0 0.0
      %1973 = vmatprep.subr.mxu0 0.0
      %1974 = vmatpush1.msra.mxu0 0.0
      %1975 = vmatprep.subr.mxu0 0.0
      %1976 = vmatpush1.msra.mxu0 0.0
      %1977 = vmatprep.subr.mxu0 0.0
      %1978 = vmatpush1.msra.mxu0 0.0
      %1979 = vmatprep.subr.mxu0 0.0
      %1980 = vmatpush1.msra.mxu0 0.0
      %1981 = vmatprep.subr.mxu0 0.0
      %1982 = vmatpush1.msra.mxu0 %v1951
      %1983 = vmatprep.subr.mxu0 0.0
      %1984 = vmatpush1.msra.mxu0 %v1934
      %1985 = vmatprep.subr.mxu0 0.0
      %1986 = vmatpush2.msra.mxu0 0.0
      %1987 = vmatprep.subr.mxu0 0.0
      %1988 = vmatpush2.msra.mxu0 0.0
      %1989 = vmatprep.subr.mxu0 0.0
      %1990 = vmatpush2.msra.mxu0 0.0
      %1991 = vmatprep.subr.mxu0 0.0
      %1992 = vmatpush2.msra.mxu0 0.0
      %1993 = vmatprep.subr.mxu0 0.0
      %1994 = vmatpush2.msra.mxu0 0.0
      %1995 = vmatprep.subr.mxu0 0.0
      %1996 = vmatpush2.msra.mxu0 0.0
      %1997 = vmatprep.subr.mxu0 0.0
      %1998 = vmatpush2.msra.mxu0 0.0
      %1999 = vmatprep.subr.mxu0 0.0
      %2000 = vmatpush2.msra.mxu0 0.0
      %2001 = vmatprep.subr.mxu0 0.0
      %2002 = vmatpush2.msra.mxu0 0.0
      %2003 = vmatprep.subr.mxu0 0.0
      %2004 = vmatpush2.msra.mxu0 0.0
      %2005 = vmatprep.subr.mxu0 0.0
      %2006 = vmatpush2.msra.mxu0 0.0
      %2007 = vmatprep.subr.mxu0 0.0
      %2008 = vmatpush2.msra.mxu0 0.0
      %2009 = vmatprep.subr.mxu0 0.0
      %2010 = vmatpush2.msra.mxu0 0.0
      %2011 = vmatprep.subr.mxu0 0.0
      %2012 = vmatpush2.msra.mxu0 0.0
      %2013 = vmatprep.subr.mxu0 0.0
      %2014 = vmatpush2.msra.mxu0 0.0
      %2015 = vmatprep.subr.mxu0 0.0
      %2016 = vmatpush2.msra.mxu0 0.0
      %2017 = vmatprep.mubr.f32.mxu0 0.0
      %2018 = vmatmul.mubr.f32.gmra.mxu0 %v1938
      %v2019 = vpop.f32.mrf.mxu0
      %v2020 = vadd.f32 0.0, %v2019
      %v2021 = vpop.f32.mrf.mxu0
      %2022 = vmatprep.mubr.f32.mxu0 0.0
      %2023 = vmatmul.mubr.f32.gmra.mxu0 %v1941
      %v2024 = vpop.f32.mrf.mxu0
      %v2025 = vadd.f32 0.0, %v2024
      %v2026 = vpop.f32.mrf.mxu0
      %2027 = vmatprep.mubr.f32.mxu0 0.0
      %2028 = vmatmul.mubr.f32.gmra.mxu0 %v1944
      %v2029 = vpop.f32.mrf.mxu0
      %v2030 = vadd.f32 0.0, %v2029
      %v2031 = vpop.f32.mrf.mxu0
      %2032 = vmatprep.mubr.f32.mxu0 0.0
      %2033 = vmatmul.mubr.f32.gmra.mxu0 %v1947
      %v2034 = vpop.f32.mrf.mxu0
      %v2035 = vadd.f32 0.0, %v2034
      %v2036 = vpop.f32.mrf.mxu0
      %2037 = vdwg.mxu0
      %v2038 = vsub.f32 0.0, %v2020
      %v2039 = vsub.f32 0.0, %v2025
      %v2040 = vsub.f32 0.0, %v2030
      %v2041 = vsub.f32 0.0, %v2035
      %v2042 = vmul.f32 %v2038, 1.442695
      %v2043 = vpow.pop %v2042
      %v2044 = vmul.f32 %v2039, 1.442695
      %v2045 = vpow.pop %v2044
      %v2046 = vmul.f32 %v2040, 1.442695
      %v2047 = vpow.pop %v2046
      %v2048 = vmul.f32 %v2041, 1.442695
      %v2049 = vpow.pop %v2048
      %v2050 = vadd.f32 %v2043, 1.0
      %v2051 = vadd.f32 %v2045, 1.0
      %v2052 = vadd.f32 %v2047, 1.0
      %v2053 = vadd.f32 %v2049, 1.0
      %v2054 = vrcp.pop %v2050
      %v2055 = vrcp.pop %v2051
      %v2056 = vrcp.pop %v2052
      %v2057 = vrcp.pop %v2053
      %v2062 = vcombine.high %v2054, %v2054
      %v2064 = vunpack.c.l.s4 1966171168
      %v2065 = vunpack.c.0.s8 %v2064
      %v2066 = vlaneseq
      %v2067 = vshrl.u32 %v2066, 7
      %v2068 = vsub.s32 %v2065, %v2067
      %v2069 = vrot.slane %v2054, %v2068
      %v2071 = vunpack.c.l.s4 1966171168
      %v2072 = vunpack.c.0.s8 %v2071
      %v2073 = vlaneseq
      %v2074 = vshrl.u32 %v2073, 7
      %v2075 = vsub.s32 %v2072, %v2074
      %v2076 = vrot.slane %v2062, %v2075
      %v2077 = vcombine.high %v2069, %v2069
      %v2078 = vcombine.high %v2076, %v2076
      %v2080 = vunpack.c.l.s4 1966171168
      %v2081 = vunpack.c.0.s8 %v2080
      %v2082 = vlaneseq
      %v2083 = vshrl.u32 %v2082, 7
      %v2084 = vsub.s32 %v2081, %v2083
      %v2085 = vrot.slane %v2069, %v2084
      %v2087 = vunpack.c.l.s4 1966171168
      %v2088 = vunpack.c.0.s8 %v2087
      %v2089 = vlaneseq
      %v2090 = vshrl.u32 %v2089, 7
      %v2091 = vsub.s32 %v2088, %v2090
      %v2092 = vrot.slane %v2076, %v2091
      %v2094 = vunpack.c.l.s4 1966171168
      %v2095 = vunpack.c.0.s8 %v2094
      %v2096 = vlaneseq
      %v2097 = vshrl.u32 %v2096, 7
      %v2098 = vsub.s32 %v2095, %v2097
      %v2099 = vrot.slane %v2077, %v2098
      %v2101 = vunpack.c.l.s4 1966171168
      %v2102 = vunpack.c.0.s8 %v2101
      %v2103 = vlaneseq
      %v2104 = vshrl.u32 %v2103, 7
      %v2105 = vsub.s32 %v2102, %v2104
      %v2106 = vrot.slane %v2078, %v2105
      %v2107 = vcombine.high %v2085, %v2085
      %v2108 = vcombine.high %v2092, %v2092
      %v2109 = vcombine.high %v2099, %v2099
      %v2110 = vcombine.high %v2106, %v2106
      %v2111 = vcombine.high %v2055, %v2055
      %v2113 = vunpack.c.l.s4 1966171168
      %v2114 = vunpack.c.0.s8 %v2113
      %v2115 = vlaneseq
      %v2116 = vshrl.u32 %v2115, 7
      %v2117 = vsub.s32 %v2114, %v2116
      %v2118 = vrot.slane %v2055, %v2117
      %v2120 = vunpack.c.l.s4 1966171168
      %v2121 = vunpack.c.0.s8 %v2120
      %v2122 = vlaneseq
      %v2123 = vshrl.u32 %v2122, 7
      %v2124 = vsub.s32 %v2121, %v2123
      %v2125 = vrot.slane %v2111, %v2124
      %v2126 = vcombine.high %v2118, %v2118
      %v2127 = vcombine.high %v2125, %v2125
      %v2129 = vunpack.c.l.s4 1966171168
      %v2130 = vunpack.c.0.s8 %v2129
      %v2131 = vlaneseq
      %v2132 = vshrl.u32 %v2131, 7
      %v2133 = vsub.s32 %v2130, %v2132
      %v2134 = vrot.slane %v2118, %v2133
      %v2136 = vunpack.c.l.s4 1966171168
      %v2137 = vunpack.c.0.s8 %v2136
      %v2138 = vlaneseq
      %v2139 = vshrl.u32 %v2138, 7
      %v2140 = vsub.s32 %v2137, %v2139
      %v2141 = vrot.slane %v2125, %v2140
      %v2143 = vunpack.c.l.s4 1966171168
      %v2144 = vunpack.c.0.s8 %v2143
      %v2145 = vlaneseq
      %v2146 = vshrl.u32 %v2145, 7
      %v2147 = vsub.s32 %v2144, %v2146
      %v2148 = vrot.slane %v2126, %v2147
      %v2150 = vunpack.c.l.s4 1966171168
      %v2151 = vunpack.c.0.s8 %v2150
      %v2152 = vlaneseq
      %v2153 = vshrl.u32 %v2152, 7
      %v2154 = vsub.s32 %v2151, %v2153
      %v2155 = vrot.slane %v2127, %v2154
      %v2156 = vcombine.high %v2134, %v2134
      %v2157 = vcombine.high %v2141, %v2141
      %v2158 = vcombine.high %v2148, %v2148
      %v2159 = vcombine.high %v2155, %v2155
      %v2160 = vcombine.high %v2056, %v2056
      %v2162 = vunpack.c.l.s4 1966171168
      %v2163 = vunpack.c.0.s8 %v2162
      %v2164 = vlaneseq
      %v2165 = vshrl.u32 %v2164, 7
      %v2166 = vsub.s32 %v2163, %v2165
      %v2167 = vrot.slane %v2056, %v2166
      %v2169 = vunpack.c.l.s4 1966171168
      %v2170 = vunpack.c.0.s8 %v2169
      %v2171 = vlaneseq
      %v2172 = vshrl.u32 %v2171, 7
      %v2173 = vsub.s32 %v2170, %v2172
      %v2174 = vrot.slane %v2160, %v2173
      %v2175 = vcombine.high %v2167, %v2167
      %v2176 = vcombine.high %v2174, %v2174
      %v2178 = vunpack.c.l.s4 1966171168
      %v2179 = vunpack.c.0.s8 %v2178
      %v2180 = vlaneseq
      %v2181 = vshrl.u32 %v2180, 7
      %v2182 = vsub.s32 %v2179, %v2181
      %v2183 = vrot.slane %v2167, %v2182
      %v2185 = vunpack.c.l.s4 1966171168
      %v2186 = vunpack.c.0.s8 %v2185
      %v2187 = vlaneseq
      %v2188 = vshrl.u32 %v2187, 7
      %v2189 = vsub.s32 %v2186, %v2188
      %v2190 = vrot.slane %v2174, %v2189
      %v2192 = vunpack.c.l.s4 1966171168
      %v2193 = vunpack.c.0.s8 %v2192
      %v2194 = vlaneseq
      %v2195 = vshrl.u32 %v2194, 7
      %v2196 = vsub.s32 %v2193, %v2195
      %v2197 = vrot.slane %v2175, %v2196
      %v2199 = vunpack.c.l.s4 1966171168
      %v2200 = vunpack.c.0.s8 %v2199
      %v2201 = vlaneseq
      %v2202 = vshrl.u32 %v2201, 7
      %v2203 = vsub.s32 %v2200, %v2202
      %v2204 = vrot.slane %v2176, %v2203
      %v2205 = vcombine.high %v2183, %v2183
      %v2206 = vcombine.high %v2190, %v2190
      %v2207 = vcombine.high %v2197, %v2197
      %v2208 = vcombine.high %v2204, %v2204
      %v2209 = vcombine.high %v2057, %v2057
      %v2211 = vunpack.c.l.s4 1966171168
      %v2212 = vunpack.c.0.s8 %v2211
      %v2213 = vlaneseq
      %v2214 = vshrl.u32 %v2213, 7
      %v2215 = vsub.s32 %v2212, %v2214
      %v2216 = vrot.slane %v2057, %v2215
      %v2218 = vunpack.c.l.s4 1966171168
      %v2219 = vunpack.c.0.s8 %v2218
      %v2220 = vlaneseq
      %v2221 = vshrl.u32 %v2220, 7
      %v2222 = vsub.s32 %v2219, %v2221
      %v2223 = vrot.slane %v2209, %v2222
      %v2224 = vcombine.high %v2216, %v2216
      %v2225 = vcombine.high %v2223, %v2223
      %v2227 = vunpack.c.l.s4 1966171168
      %v2228 = vunpack.c.0.s8 %v2227
      %v2229 = vlaneseq
      %v2230 = vshrl.u32 %v2229, 7
      %v2231 = vsub.s32 %v2228, %v2230
      %v2232 = vrot.slane %v2216, %v2231
      %v2234 = vunpack.c.l.s4 1966171168
      %v2235 = vunpack.c.0.s8 %v2234
      %v2236 = vlaneseq
      %v2237 = vshrl.u32 %v2236, 7
      %v2238 = vsub.s32 %v2235, %v2237
      %v2239 = vrot.slane %v2223, %v2238
      %v2241 = vunpack.c.l.s4 1966171168
      %v2242 = vunpack.c.0.s8 %v2241
      %v2243 = vlaneseq
      %v2244 = vshrl.u32 %v2243, 7
      %v2245 = vsub.s32 %v2242, %v2244
      %v2246 = vrot.slane %v2224, %v2245
      %v2248 = vunpack.c.l.s4 1966171168
      %v2249 = vunpack.c.0.s8 %v2248
      %v2250 = vlaneseq
      %v2251 = vshrl.u32 %v2250, 7
      %v2252 = vsub.s32 %v2249, %v2251
      %v2253 = vrot.slane %v2225, %v2252
      %v2254 = vcombine.high %v2232, %v2232
      %v2255 = vcombine.high %v2239, %v2239
      %v2256 = vcombine.high %v2246, %v2246
      %v2257 = vcombine.high %v2253, %v2253
      %v2258 = vlaneseq
      %v2259 = vshrl.u32 %v2258, 7
      %v2260 = vsub.s32 0, %v2259
      %v2261 = vrot.slane %v2085, %v2260
      %v2262 = vlaneseq
      %v2263 = vshrl.u32 %v2262, 7
      %v2264 = vsub.s32 0, %v2263
      %v2265 = vrot.slane %v2099, %v2264
      %v2266 = vlaneseq
      %v2267 = vshrl.u32 %v2266, 7
      %v2268 = vsub.s32 0, %v2267
      %v2269 = vrot.slane %v2107, %v2268
      %v2270 = vlaneseq
      %v2271 = vshrl.u32 %v2270, 7
      %v2272 = vsub.s32 0, %v2271
      %v2273 = vrot.slane %v2109, %v2272
      %v2274 = vlaneseq
      %v2275 = vshrl.u32 %v2274, 7
      %v2276 = vsub.s32 0, %v2275
      %v2277 = vrot.slane %v2092, %v2276
      %v2278 = vlaneseq
      %v2279 = vshrl.u32 %v2278, 7
      %v2280 = vsub.s32 0, %v2279
      %v2281 = vrot.slane %v2106, %v2280
      %v2282 = vlaneseq
      %v2283 = vshrl.u32 %v2282, 7
      %v2284 = vsub.s32 0, %v2283
      %v2285 = vrot.slane %v2108, %v2284
      %v2286 = vlaneseq
      %v2287 = vshrl.u32 %v2286, 7
      %v2288 = vsub.s32 0, %v2287
      %v2289 = vrot.slane %v2110, %v2288
      %v2290 = vlaneseq
      %v2291 = vshrl.u32 %v2290, 7
      %v2292 = vsub.s32 0, %v2291
      %v2293 = vrot.slane %v2134, %v2292
      %v2294 = vlaneseq
      %v2295 = vshrl.u32 %v2294, 7
      %v2296 = vsub.s32 0, %v2295
      %v2297 = vrot.slane %v2148, %v2296
      %v2298 = vlaneseq
      %v2299 = vshrl.u32 %v2298, 7
      %v2300 = vsub.s32 0, %v2299
      %v2301 = vrot.slane %v2156, %v2300
      %v2302 = vlaneseq
      %v2303 = vshrl.u32 %v2302, 7
      %v2304 = vsub.s32 0, %v2303
      %v2305 = vrot.slane %v2158, %v2304
      %v2306 = vlaneseq
      %v2307 = vshrl.u32 %v2306, 7
      %v2308 = vsub.s32 0, %v2307
      %v2309 = vrot.slane %v2141, %v2308
      %v2310 = vlaneseq
      %v2311 = vshrl.u32 %v2310, 7
      %v2312 = vsub.s32 0, %v2311
      %v2313 = vrot.slane %v2155, %v2312
      %v2314 = vlaneseq
      %v2315 = vshrl.u32 %v2314, 7
      %v2316 = vsub.s32 0, %v2315
      %v2317 = vrot.slane %v2157, %v2316
      %v2318 = vlaneseq
      %v2319 = vshrl.u32 %v2318, 7
      %v2320 = vsub.s32 0, %v2319
      %v2321 = vrot.slane %v2159, %v2320
      %v2322 = vlaneseq
      %v2323 = vshrl.u32 %v2322, 7
      %v2324 = vsub.s32 0, %v2323
      %v2325 = vrot.slane %v2183, %v2324
      %v2326 = vlaneseq
      %v2327 = vshrl.u32 %v2326, 7
      %v2328 = vsub.s32 0, %v2327
      %v2329 = vrot.slane %v2197, %v2328
      %v2330 = vlaneseq
      %v2331 = vshrl.u32 %v2330, 7
      %v2332 = vsub.s32 0, %v2331
      %v2333 = vrot.slane %v2205, %v2332
      %v2334 = vlaneseq
      %v2335 = vshrl.u32 %v2334, 7
      %v2336 = vsub.s32 0, %v2335
      %v2337 = vrot.slane %v2207, %v2336
      %v2338 = vlaneseq
      %v2339 = vshrl.u32 %v2338, 7
      %v2340 = vsub.s32 0, %v2339
      %v2341 = vrot.slane %v2190, %v2340
      %v2342 = vlaneseq
      %v2343 = vshrl.u32 %v2342, 7
      %v2344 = vsub.s32 0, %v2343
      %v2345 = vrot.slane %v2204, %v2344
      %v2346 = vlaneseq
      %v2347 = vshrl.u32 %v2346, 7
      %v2348 = vsub.s32 0, %v2347
      %v2349 = vrot.slane %v2206, %v2348
      %v2350 = vlaneseq
      %v2351 = vshrl.u32 %v2350, 7
      %v2352 = vsub.s32 0, %v2351
      %v2353 = vrot.slane %v2208, %v2352
      %v2354 = vlaneseq
      %v2355 = vshrl.u32 %v2354, 7
      %v2356 = vsub.s32 0, %v2355
      %v2357 = vrot.slane %v2232, %v2356
      %v2358 = vlaneseq
      %v2359 = vshrl.u32 %v2358, 7
      %v2360 = vsub.s32 0, %v2359
      %v2361 = vrot.slane %v2246, %v2360
      %v2362 = vlaneseq
      %v2363 = vshrl.u32 %v2362, 7
      %v2364 = vsub.s32 0, %v2363
      %v2365 = vrot.slane %v2254, %v2364
      %v2366 = vlaneseq
      %v2367 = vshrl.u32 %v2366, 7
      %v2368 = vsub.s32 0, %v2367
      %v2369 = vrot.slane %v2256, %v2368
      %v2370 = vlaneseq
      %v2371 = vshrl.u32 %v2370, 7
      %v2372 = vsub.s32 0, %v2371
      %v2373 = vrot.slane %v2239, %v2372
      %v2374 = vlaneseq
      %v2375 = vshrl.u32 %v2374, 7
      %v2376 = vsub.s32 0, %v2375
      %v2377 = vrot.slane %v2253, %v2376
      %v2378 = vlaneseq
      %v2379 = vshrl.u32 %v2378, 7
      %v2380 = vsub.s32 0, %v2379
      %v2381 = vrot.slane %v2255, %v2380
      %v2382 = vlaneseq
      %v2383 = vshrl.u32 %v2382, 7
      %v2384 = vsub.s32 0, %v2383
      %v2385 = vrot.slane %v2257, %v2384
      %v2418 = vmul.f32 %v541, %v2261
      %v2419 = vmul.f32 %v542, %v2261
      %v2420 = vmul.f32 %v543, %v2261
      %v2421 = vmul.f32 %v544, %v2261
      %v2422 = vmul.f32 %v545, %v2265
      %v2423 = vmul.f32 %v546, %v2265
      %v2424 = vmul.f32 %v547, %v2265
      %v2425 = vmul.f32 %v548, %v2265
      %v2426 = vmul.f32 %v549, %v2269
      %v2427 = vmul.f32 %v550, %v2269
      %v2428 = vmul.f32 %v551, %v2269
      %v2429 = vmul.f32 %v552, %v2269
      %v2430 = vmul.f32 %v553, %v2273
      %v2431 = vmul.f32 %v554, %v2273
      %v2432 = vmul.f32 %v555, %v2273
      %v2433 = vmul.f32 %v556, %v2273
      %v2434 = vmul.f32 %v557, %v2277
      %v2435 = vmul.f32 %v558, %v2277
      %v2436 = vmul.f32 %v559, %v2277
      %v2437 = vmul.f32 %v560, %v2277
      %v2438 = vmul.f32 %v561, %v2281
      %v2439 = vmul.f32 %v562, %v2281
      %v2440 = vmul.f32 %v563, %v2281
      %v2441 = vmul.f32 %v564, %v2281
      %v2442 = vmul.f32 %v565, %v2285
      %v2443 = vmul.f32 %v566, %v2285
      %v2444 = vmul.f32 %v567, %v2285
      %v2445 = vmul.f32 %v568, %v2285
      %v2446 = vmul.f32 %v569, %v2289
      %v2447 = vmul.f32 %v570, %v2289
      %v2448 = vmul.f32 %v571, %v2289
      %v2449 = vmul.f32 %v572, %v2289
      %v2450 = vmul.f32 %v573, %v2293
      %v2451 = vmul.f32 %v574, %v2293
      %v2452 = vmul.f32 %v575, %v2293
      %v2453 = vmul.f32 %v576, %v2293
      %v2454 = vmul.f32 %v577, %v2297
      %v2455 = vmul.f32 %v578, %v2297
      %v2456 = vmul.f32 %v579, %v2297
      %v2457 = vmul.f32 %v580, %v2297
      %v2458 = vmul.f32 %v581, %v2301
      %v2459 = vmul.f32 %v582, %v2301
      %v2460 = vmul.f32 %v583, %v2301
      %v2461 = vmul.f32 %v584, %v2301
      %v2462 = vmul.f32 %v585, %v2305
      %v2463 = vmul.f32 %v586, %v2305
      %v2464 = vmul.f32 %v587, %v2305
      %v2465 = vmul.f32 %v588, %v2305
      %v2466 = vmul.f32 %v589, %v2309
      %v2467 = vmul.f32 %v590, %v2309
      %v2468 = vmul.f32 %v591, %v2309
      %v2469 = vmul.f32 %v592, %v2309
      %v2470 = vmul.f32 %v593, %v2313
      %v2471 = vmul.f32 %v594, %v2313
      %v2472 = vmul.f32 %v595, %v2313
      %v2473 = vmul.f32 %v596, %v2313
      %v2474 = vmul.f32 %v597, %v2317
      %v2475 = vmul.f32 %v598, %v2317
      %v2476 = vmul.f32 %v599, %v2317
      %v2477 = vmul.f32 %v600, %v2317
      %v2478 = vmul.f32 %v601, %v2321
      %v2479 = vmul.f32 %v602, %v2321
      %v2480 = vmul.f32 %v603, %v2321
      %v2481 = vmul.f32 %v604, %v2321
      %v2482 = vmul.f32 %v605, %v2325
      %v2483 = vmul.f32 %v606, %v2325
      %v2484 = vmul.f32 %v607, %v2325
      %v2485 = vmul.f32 %v608, %v2325
      %v2486 = vmul.f32 %v609, %v2329
      %v2487 = vmul.f32 %v610, %v2329
      %v2488 = vmul.f32 %v611, %v2329
      %v2489 = vmul.f32 %v612, %v2329
      %v2490 = vmul.f32 %v613, %v2333
      %v2491 = vmul.f32 %v614, %v2333
      %v2492 = vmul.f32 %v615, %v2333
      %v2493 = vmul.f32 %v616, %v2333
      %v2494 = vmul.f32 %v617, %v2337
      %v2495 = vmul.f32 %v618, %v2337
      %v2496 = vmul.f32 %v619, %v2337
      %v2497 = vmul.f32 %v620, %v2337
      %v2498 = vmul.f32 %v621, %v2341
      %v2499 = vmul.f32 %v622, %v2341
      %v2500 = vmul.f32 %v623, %v2341
      %v2501 = vmul.f32 %v624, %v2341
      %v2502 = vmul.f32 %v625, %v2345
      %v2503 = vmul.f32 %v626, %v2345
      %v2504 = vmul.f32 %v627, %v2345
      %v2505 = vmul.f32 %v628, %v2345
      %v2506 = vmul.f32 %v629, %v2349
      %v2507 = vmul.f32 %v630, %v2349
      %v2508 = vmul.f32 %v631, %v2349
      %v2509 = vmul.f32 %v632, %v2349
      %v2510 = vmul.f32 %v633, %v2353
      %v2511 = vmul.f32 %v634, %v2353
      %v2512 = vmul.f32 %v635, %v2353
      %v2513 = vmul.f32 %v636, %v2353
      %v2514 = vmul.f32 %v637, %v2357
      %v2515 = vmul.f32 %v638, %v2357
      %v2516 = vmul.f32 %v639, %v2357
      %v2517 = vmul.f32 %v640, %v2357
      %v2518 = vmul.f32 %v641, %v2361
      %v2519 = vmul.f32 %v642, %v2361
      %v2520 = vmul.f32 %v643, %v2361
      %v2521 = vmul.f32 %v644, %v2361
      %v2522 = vmul.f32 %v645, %v2365
      %v2523 = vmul.f32 %v646, %v2365
      %v2524 = vmul.f32 %v647, %v2365
      %v2525 = vmul.f32 %v648, %v2365
      %v2526 = vmul.f32 %v649, %v2369
      %v2527 = vmul.f32 %v650, %v2369
      %v2528 = vmul.f32 %v651, %v2369
      %v2529 = vmul.f32 %v652, %v2369
      %v2530 = vmul.f32 %v653, %v2373
      %v2531 = vmul.f32 %v654, %v2373
      %v2532 = vmul.f32 %v655, %v2373
      %v2533 = vmul.f32 %v656, %v2373
      %v2534 = vmul.f32 %v657, %v2377
      %v2535 = vmul.f32 %v658, %v2377
      %v2536 = vmul.f32 %v659, %v2377
      %v2537 = vmul.f32 %v660, %v2377
      %v2538 = vmul.f32 %v661, %v2381
      %v2539 = vmul.f32 %v662, %v2381
      %v2540 = vmul.f32 %v663, %v2381
      %v2541 = vmul.f32 %v664, %v2381
      %v2542 = vmul.f32 %v665, %v2385
      %v2543 = vmul.f32 %v666, %v2385
      %v2544 = vmul.f32 %v667, %v2385
      %v2545 = vmul.f32 %v668, %v2385
      %v2546 = vld [vmem:[%s3] sm:$0xff]
      %v2547 = vld [vmem:[%s3 + $0x8] sm:$0xff]
      %v2548 = vld [vmem:[%s3 + $0x10] sm:$0xff]
      %v2549 = vld [vmem:[%s3 + $0x18] sm:$0xff]
      %v2550 = vmul.f32 %v2418, %v2546
      %v2551 = vmul.f32 %v2419, %v2547
      %v2552 = vmul.f32 %v2420, %v2548
      %v2553 = vmul.f32 %v2421, %v2549
      %v2554 = vmul.f32 %v2422, %v2546
      %v2555 = vmul.f32 %v2423, %v2547
      %v2556 = vmul.f32 %v2424, %v2548
      %v2557 = vmul.f32 %v2425, %v2549
      %v2558 = vmul.f32 %v2426, %v2546
      %v2559 = vmul.f32 %v2427, %v2547
      %v2560 = vmul.f32 %v2428, %v2548
      %v2561 = vmul.f32 %v2429, %v2549
      %v2562 = vmul.f32 %v2430, %v2546
      %v2563 = vmul.f32 %v2431, %v2547
      %v2564 = vmul.f32 %v2432, %v2548
      %v2565 = vmul.f32 %v2433, %v2549
      %v2566 = vmul.f32 %v2434, %v2546
      %v2567 = vmul.f32 %v2435, %v2547
      %v2568 = vmul.f32 %v2436, %v2548
      %v2569 = vmul.f32 %v2437, %v2549
      %v2570 = vmul.f32 %v2438, %v2546
      %v2571 = vmul.f32 %v2439, %v2547
      %v2572 = vmul.f32 %v2440, %v2548
      %v2573 = vmul.f32 %v2441, %v2549
      %v2574 = vmul.f32 %v2442, %v2546
      %v2575 = vmul.f32 %v2443, %v2547
      %v2576 = vmul.f32 %v2444, %v2548
      %v2577 = vmul.f32 %v2445, %v2549
      %v2578 = vmul.f32 %v2446, %v2546
      %v2579 = vmul.f32 %v2447, %v2547
      %v2580 = vmul.f32 %v2448, %v2548
      %v2581 = vmul.f32 %v2449, %v2549
      %v2582 = vmul.f32 %v2450, %v2546
      %v2583 = vmul.f32 %v2451, %v2547
      %v2584 = vmul.f32 %v2452, %v2548
      %v2585 = vmul.f32 %v2453, %v2549
      %v2586 = vmul.f32 %v2454, %v2546
      %v2587 = vmul.f32 %v2455, %v2547
      %v2588 = vmul.f32 %v2456, %v2548
      %v2589 = vmul.f32 %v2457, %v2549
      %v2590 = vmul.f32 %v2458, %v2546
      %v2591 = vmul.f32 %v2459, %v2547
      %v2592 = vmul.f32 %v2460, %v2548
      %v2593 = vmul.f32 %v2461, %v2549
      %v2594 = vmul.f32 %v2462, %v2546
      %v2595 = vmul.f32 %v2463, %v2547
      %v2596 = vmul.f32 %v2464, %v2548
      %v2597 = vmul.f32 %v2465, %v2549
      %v2598 = vmul.f32 %v2466, %v2546
      %v2599 = vmul.f32 %v2467, %v2547
      %v2600 = vmul.f32 %v2468, %v2548
      %v2601 = vmul.f32 %v2469, %v2549
      %v2602 = vmul.f32 %v2470, %v2546
      %v2603 = vmul.f32 %v2471, %v2547
      %v2604 = vmul.f32 %v2472, %v2548
      %v2605 = vmul.f32 %v2473, %v2549
      %v2606 = vmul.f32 %v2474, %v2546
      %v2607 = vmul.f32 %v2475, %v2547
      %v2608 = vmul.f32 %v2476, %v2548
      %v2609 = vmul.f32 %v2477, %v2549
      %v2610 = vmul.f32 %v2478, %v2546
      %v2611 = vmul.f32 %v2479, %v2547
      %v2612 = vmul.f32 %v2480, %v2548
      %v2613 = vmul.f32 %v2481, %v2549
      %v2614 = vmul.f32 %v2482, %v2546
      %v2615 = vmul.f32 %v2483, %v2547
      %v2616 = vmul.f32 %v2484, %v2548
      %v2617 = vmul.f32 %v2485, %v2549
      %v2618 = vmul.f32 %v2486, %v2546
      %v2619 = vmul.f32 %v2487, %v2547
      %v2620 = vmul.f32 %v2488, %v2548
      %v2621 = vmul.f32 %v2489, %v2549
      %v2622 = vmul.f32 %v2490, %v2546
      %v2623 = vmul.f32 %v2491, %v2547
      %v2624 = vmul.f32 %v2492, %v2548
      %v2625 = vmul.f32 %v2493, %v2549
      %v2626 = vmul.f32 %v2494, %v2546
      %v2627 = vmul.f32 %v2495, %v2547
      %v2628 = vmul.f32 %v2496, %v2548
      %v2629 = vmul.f32 %v2497, %v2549
      %v2630 = vmul.f32 %v2498, %v2546
      %v2631 = vmul.f32 %v2499, %v2547
      %v2632 = vmul.f32 %v2500, %v2548
      %v2633 = vmul.f32 %v2501, %v2549
      %v2634 = vmul.f32 %v2502, %v2546
      %v2635 = vmul.f32 %v2503, %v2547
      %v2636 = vmul.f32 %v2504, %v2548
      %v2637 = vmul.f32 %v2505, %v2549
      %v2638 = vmul.f32 %v2506, %v2546
      %v2639 = vmul.f32 %v2507, %v2547
      %v2640 = vmul.f32 %v2508, %v2548
      %v2641 = vmul.f32 %v2509, %v2549
      %v2642 = vmul.f32 %v2510, %v2546
      %v2643 = vmul.f32 %v2511, %v2547
      %v2644 = vmul.f32 %v2512, %v2548
      %v2645 = vmul.f32 %v2513, %v2549
      %v2646 = vmul.f32 %v2514, %v2546
      %v2647 = vmul.f32 %v2515, %v2547
      %v2648 = vmul.f32 %v2516, %v2548
      %v2649 = vmul.f32 %v2517, %v2549
      %v2650 = vmul.f32 %v2518, %v2546
      %v2651 = vmul.f32 %v2519, %v2547
      %v2652 = vmul.f32 %v2520, %v2548
      %v2653 = vmul.f32 %v2521, %v2549
      %v2654 = vmul.f32 %v2522, %v2546
      %v2655 = vmul.f32 %v2523, %v2547
      %v2656 = vmul.f32 %v2524, %v2548
      %v2657 = vmul.f32 %v2525, %v2549
      %v2658 = vmul.f32 %v2526, %v2546
      %v2659 = vmul.f32 %v2527, %v2547
      %v2660 = vmul.f32 %v2528, %v2548
      %v2661 = vmul.f32 %v2529, %v2549
      %v2662 = vmul.f32 %v2530, %v2546
      %v2663 = vmul.f32 %v2531, %v2547
      %v2664 = vmul.f32 %v2532, %v2548
      %v2665 = vmul.f32 %v2533, %v2549
      %v2666 = vmul.f32 %v2534, %v2546
      %v2667 = vmul.f32 %v2535, %v2547
      %v2668 = vmul.f32 %v2536, %v2548
      %v2669 = vmul.f32 %v2537, %v2549
      %v2670 = vmul.f32 %v2538, %v2546
      %v2671 = vmul.f32 %v2539, %v2547
      %v2672 = vmul.f32 %v2540, %v2548
      %v2673 = vmul.f32 %v2541, %v2549
      %v2674 = vmul.f32 %v2542, %v2546
      %v2675 = vmul.f32 %v2543, %v2547
      %v2676 = vmul.f32 %v2544, %v2548
      %v2677 = vmul.f32 %v2545, %v2549
      %v2678 = vsel %vm669, %v2418, 0.0
      %2679 = vadd.xlane.f32.xlu0 %v2678
      %v2680 = vpop.xlane.xlu0 %2679
      %v2681 = vsel %vm669, %v2419, 0.0
      %2682 = vadd.xlane.f32.xlu0 %v2681
      %v2683 = vpop.xlane.xlu0 %2682
      %v2684 = vsel %vm669, %v2420, 0.0
      %2685 = vadd.xlane.f32.xlu0 %v2684
      %v2686 = vpop.xlane.xlu0 %2685
      %v2687 = vsel %vm669, %v2421, 0.0
      %2688 = vadd.xlane.f32.xlu0 %v2687
      %v2689 = vpop.xlane.xlu0 %2688
      %v2690 = vsel %vm669, %v2422, 0.0
      %2691 = vadd.xlane.f32.xlu0 %v2690
      %v2692 = vpop.xlane.xlu0 %2691
      %v2693 = vsel %vm669, %v2423, 0.0
      %2694 = vadd.xlane.f32.xlu0 %v2693
      %v2695 = vpop.xlane.xlu0 %2694
      %v2696 = vsel %vm669, %v2424, 0.0
      %2697 = vadd.xlane.f32.xlu0 %v2696
      %v2698 = vpop.xlane.xlu0 %2697
      %v2699 = vsel %vm669, %v2425, 0.0
      %2700 = vadd.xlane.f32.xlu0 %v2699
      %v2701 = vpop.xlane.xlu0 %2700
      %v2702 = vsel %vm669, %v2426, 0.0
      %2703 = vadd.xlane.f32.xlu0 %v2702
      %v2704 = vpop.xlane.xlu0 %2703
      %v2705 = vsel %vm669, %v2427, 0.0
      %2706 = vadd.xlane.f32.xlu0 %v2705
      %v2707 = vpop.xlane.xlu0 %2706
      %v2708 = vsel %vm669, %v2428, 0.0
      %2709 = vadd.xlane.f32.xlu0 %v2708
      %v2710 = vpop.xlane.xlu0 %2709
      %v2711 = vsel %vm669, %v2429, 0.0
      %2712 = vadd.xlane.f32.xlu0 %v2711
      %v2713 = vpop.xlane.xlu0 %2712
      %v2714 = vsel %vm669, %v2430, 0.0
      %2715 = vadd.xlane.f32.xlu0 %v2714
      %v2716 = vpop.xlane.xlu0 %2715
      %v2717 = vsel %vm669, %v2431, 0.0
      %2718 = vadd.xlane.f32.xlu0 %v2717
      %v2719 = vpop.xlane.xlu0 %2718
      %v2720 = vsel %vm669, %v2432, 0.0
      %2721 = vadd.xlane.f32.xlu0 %v2720
      %v2722 = vpop.xlane.xlu0 %2721
      %v2723 = vsel %vm669, %v2433, 0.0
      %2724 = vadd.xlane.f32.xlu0 %v2723
      %v2725 = vpop.xlane.xlu0 %2724
      %v2726 = vsel %vm669, %v2434, 0.0
      %2727 = vadd.xlane.f32.xlu0 %v2726
      %v2728 = vpop.xlane.xlu0 %2727
      %v2729 = vsel %vm669, %v2435, 0.0
      %2730 = vadd.xlane.f32.xlu0 %v2729
      %v2731 = vpop.xlane.xlu0 %2730
      %v2732 = vsel %vm669, %v2436, 0.0
      %2733 = vadd.xlane.f32.xlu0 %v2732
      %v2734 = vpop.xlane.xlu0 %2733
      %v2735 = vsel %vm669, %v2437, 0.0
      %2736 = vadd.xlane.f32.xlu0 %v2735
      %v2737 = vpop.xlane.xlu0 %2736
      %v2738 = vsel %vm669, %v2438, 0.0
      %2739 = vadd.xlane.f32.xlu0 %v2738
      %v2740 = vpop.xlane.xlu0 %2739
      %v2741 = vsel %vm669, %v2439, 0.0
      %2742 = vadd.xlane.f32.xlu0 %v2741
      %v2743 = vpop.xlane.xlu0 %2742
      %v2744 = vsel %vm669, %v2440, 0.0
      %2745 = vadd.xlane.f32.xlu0 %v2744
      %v2746 = vpop.xlane.xlu0 %2745
      %v2747 = vsel %vm669, %v2441, 0.0
      %2748 = vadd.xlane.f32.xlu0 %v2747
      %v2749 = vpop.xlane.xlu0 %2748
      %v2750 = vsel %vm669, %v2442, 0.0
      %2751 = vadd.xlane.f32.xlu0 %v2750
      %v2752 = vpop.xlane.xlu0 %2751
      %v2753 = vsel %vm669, %v2443, 0.0
      %2754 = vadd.xlane.f32.xlu0 %v2753
      %v2755 = vpop.xlane.xlu0 %2754
      %v2756 = vsel %vm669, %v2444, 0.0
      %2757 = vadd.xlane.f32.xlu0 %v2756
      %v2758 = vpop.xlane.xlu0 %2757
      %v2759 = vsel %vm669, %v2445, 0.0
      %2760 = vadd.xlane.f32.xlu0 %v2759
      %v2761 = vpop.xlane.xlu0 %2760
      %v2762 = vsel %vm669, %v2446, 0.0
      %2763 = vadd.xlane.f32.xlu0 %v2762
      %v2764 = vpop.xlane.xlu0 %2763
      %v2765 = vsel %vm669, %v2447, 0.0
      %2766 = vadd.xlane.f32.xlu0 %v2765
      %v2767 = vpop.xlane.xlu0 %2766
      %v2768 = vsel %vm669, %v2448, 0.0
      %2769 = vadd.xlane.f32.xlu0 %v2768
      %v2770 = vpop.xlane.xlu0 %2769
      %v2771 = vsel %vm669, %v2449, 0.0
      %2772 = vadd.xlane.f32.xlu0 %v2771
      %v2773 = vpop.xlane.xlu0 %2772
      %v2774 = vsel %vm669, %v2450, 0.0
      %2775 = vadd.xlane.f32.xlu0 %v2774
      %v2776 = vpop.xlane.xlu0 %2775
      %v2777 = vsel %vm669, %v2451, 0.0
      %2778 = vadd.xlane.f32.xlu0 %v2777
      %v2779 = vpop.xlane.xlu0 %2778
      %v2780 = vsel %vm669, %v2452, 0.0
      %2781 = vadd.xlane.f32.xlu0 %v2780
      %v2782 = vpop.xlane.xlu0 %2781
      %v2783 = vsel %vm669, %v2453, 0.0
      %2784 = vadd.xlane.f32.xlu0 %v2783
      %v2785 = vpop.xlane.xlu0 %2784
      %v2786 = vsel %vm669, %v2454, 0.0
      %2787 = vadd.xlane.f32.xlu0 %v2786
      %v2788 = vpop.xlane.xlu0 %2787
      %v2789 = vsel %vm669, %v2455, 0.0
      %2790 = vadd.xlane.f32.xlu0 %v2789
      %v2791 = vpop.xlane.xlu0 %2790
      %v2792 = vsel %vm669, %v2456, 0.0
      %2793 = vadd.xlane.f32.xlu0 %v2792
      %v2794 = vpop.xlane.xlu0 %2793
      %v2795 = vsel %vm669, %v2457, 0.0
      %2796 = vadd.xlane.f32.xlu0 %v2795
      %v2797 = vpop.xlane.xlu0 %2796
      %v2798 = vsel %vm669, %v2458, 0.0
      %2799 = vadd.xlane.f32.xlu0 %v2798
      %v2800 = vpop.xlane.xlu0 %2799
      %v2801 = vsel %vm669, %v2459, 0.0
      %2802 = vadd.xlane.f32.xlu0 %v2801
      %v2803 = vpop.xlane.xlu0 %2802
      %v2804 = vsel %vm669, %v2460, 0.0
      %2805 = vadd.xlane.f32.xlu0 %v2804
      %v2806 = vpop.xlane.xlu0 %2805
      %v2807 = vsel %vm669, %v2461, 0.0
      %2808 = vadd.xlane.f32.xlu0 %v2807
      %v2809 = vpop.xlane.xlu0 %2808
      %v2810 = vsel %vm669, %v2462, 0.0
      %2811 = vadd.xlane.f32.xlu0 %v2810
      %v2812 = vpop.xlane.xlu0 %2811
      %v2813 = vsel %vm669, %v2463, 0.0
      %2814 = vadd.xlane.f32.xlu0 %v2813
      %v2815 = vpop.xlane.xlu0 %2814
      %v2816 = vsel %vm669, %v2464, 0.0
      %2817 = vadd.xlane.f32.xlu0 %v2816
      %v2818 = vpop.xlane.xlu0 %2817
      %v2819 = vsel %vm669, %v2465, 0.0
      %2820 = vadd.xlane.f32.xlu0 %v2819
      %v2821 = vpop.xlane.xlu0 %2820
      %v2822 = vsel %vm669, %v2466, 0.0
      %2823 = vadd.xlane.f32.xlu0 %v2822
      %v2824 = vpop.xlane.xlu0 %2823
      %v2825 = vsel %vm669, %v2467, 0.0
      %2826 = vadd.xlane.f32.xlu0 %v2825
      %v2827 = vpop.xlane.xlu0 %2826
      %v2828 = vsel %vm669, %v2468, 0.0
      %2829 = vadd.xlane.f32.xlu0 %v2828
      %v2830 = vpop.xlane.xlu0 %2829
      %v2831 = vsel %vm669, %v2469, 0.0
      %2832 = vadd.xlane.f32.xlu0 %v2831
      %v2833 = vpop.xlane.xlu0 %2832
      %v2834 = vsel %vm669, %v2470, 0.0
      %2835 = vadd.xlane.f32.xlu0 %v2834
      %v2836 = vpop.xlane.xlu0 %2835
      %v2837 = vsel %vm669, %v2471, 0.0
      %2838 = vadd.xlane.f32.xlu0 %v2837
      %v2839 = vpop.xlane.xlu0 %2838
      %v2840 = vsel %vm669, %v2472, 0.0
      %2841 = vadd.xlane.f32.xlu0 %v2840
      %v2842 = vpop.xlane.xlu0 %2841
      %v2843 = vsel %vm669, %v2473, 0.0
      %2844 = vadd.xlane.f32.xlu0 %v2843
      %v2845 = vpop.xlane.xlu0 %2844
      %v2846 = vsel %vm669, %v2474, 0.0
      %2847 = vadd.xlane.f32.xlu0 %v2846
      %v2848 = vpop.xlane.xlu0 %2847
      %v2849 = vsel %vm669, %v2475, 0.0
      %2850 = vadd.xlane.f32.xlu0 %v2849
      %v2851 = vpop.xlane.xlu0 %2850
      %v2852 = vsel %vm669, %v2476, 0.0
      %2853 = vadd.xlane.f32.xlu0 %v2852
      %v2854 = vpop.xlane.xlu0 %2853
      %v2855 = vsel %vm669, %v2477, 0.0
      %2856 = vadd.xlane.f32.xlu0 %v2855
      %v2857 = vpop.xlane.xlu0 %2856
      %v2858 = vsel %vm669, %v2478, 0.0
      %2859 = vadd.xlane.f32.xlu0 %v2858
      %v2860 = vpop.xlane.xlu0 %2859
      %v2861 = vsel %vm669, %v2479, 0.0
      %2862 = vadd.xlane.f32.xlu0 %v2861
      %v2863 = vpop.xlane.xlu0 %2862
      %v2864 = vsel %vm669, %v2480, 0.0
      %2865 = vadd.xlane.f32.xlu0 %v2864
      %v2866 = vpop.xlane.xlu0 %2865
      %v2867 = vsel %vm669, %v2481, 0.0
      %2868 = vadd.xlane.f32.xlu0 %v2867
      %v2869 = vpop.xlane.xlu0 %2868
      %v2870 = vsel %vm669, %v2482, 0.0
      %2871 = vadd.xlane.f32.xlu0 %v2870
      %v2872 = vpop.xlane.xlu0 %2871
      %v2873 = vsel %vm669, %v2483, 0.0
      %2874 = vadd.xlane.f32.xlu0 %v2873
      %v2875 = vpop.xlane.xlu0 %2874
      %v2876 = vsel %vm669, %v2484, 0.0
      %2877 = vadd.xlane.f32.xlu0 %v2876
      %v2878 = vpop.xlane.xlu0 %2877
      %v2879 = vsel %vm669, %v2485, 0.0
      %2880 = vadd.xlane.f32.xlu0 %v2879
      %v2881 = vpop.xlane.xlu0 %2880
      %v2882 = vsel %vm669, %v2486, 0.0
      %2883 = vadd.xlane.f32.xlu0 %v2882
      %v2884 = vpop.xlane.xlu0 %2883
      %v2885 = vsel %vm669, %v2487, 0.0
      %2886 = vadd.xlane.f32.xlu0 %v2885
      %v2887 = vpop.xlane.xlu0 %2886
      %v2888 = vsel %vm669, %v2488, 0.0
      %2889 = vadd.xlane.f32.xlu0 %v2888
      %v2890 = vpop.xlane.xlu0 %2889
      %v2891 = vsel %vm669, %v2489, 0.0
      %2892 = vadd.xlane.f32.xlu0 %v2891
      %v2893 = vpop.xlane.xlu0 %2892
      %v2894 = vsel %vm669, %v2490, 0.0
      %2895 = vadd.xlane.f32.xlu0 %v2894
      %v2896 = vpop.xlane.xlu0 %2895
      %v2897 = vsel %vm669, %v2491, 0.0
      %2898 = vadd.xlane.f32.xlu0 %v2897
      %v2899 = vpop.xlane.xlu0 %2898
      %v2900 = vsel %vm669, %v2492, 0.0
      %2901 = vadd.xlane.f32.xlu0 %v2900
      %v2902 = vpop.xlane.xlu0 %2901
      %v2903 = vsel %vm669, %v2493, 0.0
      %2904 = vadd.xlane.f32.xlu0 %v2903
      %v2905 = vpop.xlane.xlu0 %2904
      %v2906 = vsel %vm669, %v2494, 0.0
      %2907 = vadd.xlane.f32.xlu0 %v2906
      %v2908 = vpop.xlane.xlu0 %2907
      %v2909 = vsel %vm669, %v2495, 0.0
      %2910 = vadd.xlane.f32.xlu0 %v2909
      %v2911 = vpop.xlane.xlu0 %2910
      %v2912 = vsel %vm669, %v2496, 0.0
      %2913 = vadd.xlane.f32.xlu0 %v2912
      %v2914 = vpop.xlane.xlu0 %2913
      %v2915 = vsel %vm669, %v2497, 0.0
      %2916 = vadd.xlane.f32.xlu0 %v2915
      %v2917 = vpop.xlane.xlu0 %2916
      %v2918 = vsel %vm669, %v2498, 0.0
      %2919 = vadd.xlane.f32.xlu0 %v2918
      %v2920 = vpop.xlane.xlu0 %2919
      %v2921 = vsel %vm669, %v2499, 0.0
      %2922 = vadd.xlane.f32.xlu0 %v2921
      %v2923 = vpop.xlane.xlu0 %2922
      %v2924 = vsel %vm669, %v2500, 0.0
      %2925 = vadd.xlane.f32.xlu0 %v2924
      %v2926 = vpop.xlane.xlu0 %2925
      %v2927 = vsel %vm669, %v2501, 0.0
      %2928 = vadd.xlane.f32.xlu0 %v2927
      %v2929 = vpop.xlane.xlu0 %2928
      %v2930 = vsel %vm669, %v2502, 0.0
      %2931 = vadd.xlane.f32.xlu0 %v2930
      %v2932 = vpop.xlane.xlu0 %2931
      %v2933 = vsel %vm669, %v2503, 0.0
      %2934 = vadd.xlane.f32.xlu0 %v2933
      %v2935 = vpop.xlane.xlu0 %2934
      %v2936 = vsel %vm669, %v2504, 0.0
      %2937 = vadd.xlane.f32.xlu0 %v2936
      %v2938 = vpop.xlane.xlu0 %2937
      %v2939 = vsel %vm669, %v2505, 0.0
      %2940 = vadd.xlane.f32.xlu0 %v2939
      %v2941 = vpop.xlane.xlu0 %2940
      %v2942 = vsel %vm669, %v2506, 0.0
      %2943 = vadd.xlane.f32.xlu0 %v2942
      %v2944 = vpop.xlane.xlu0 %2943
      %v2945 = vsel %vm669, %v2507, 0.0
      %2946 = vadd.xlane.f32.xlu0 %v2945
      %v2947 = vpop.xlane.xlu0 %2946
      %v2948 = vsel %vm669, %v2508, 0.0
      %2949 = vadd.xlane.f32.xlu0 %v2948
      %v2950 = vpop.xlane.xlu0 %2949
      %v2951 = vsel %vm669, %v2509, 0.0
      %2952 = vadd.xlane.f32.xlu0 %v2951
      %v2953 = vpop.xlane.xlu0 %2952
      %v2954 = vsel %vm669, %v2510, 0.0
      %2955 = vadd.xlane.f32.xlu0 %v2954
      %v2956 = vpop.xlane.xlu0 %2955
      %v2957 = vsel %vm669, %v2511, 0.0
      %2958 = vadd.xlane.f32.xlu0 %v2957
      %v2959 = vpop.xlane.xlu0 %2958
      %v2960 = vsel %vm669, %v2512, 0.0
      %2961 = vadd.xlane.f32.xlu0 %v2960
      %v2962 = vpop.xlane.xlu0 %2961
      %v2963 = vsel %vm669, %v2513, 0.0
      %2964 = vadd.xlane.f32.xlu0 %v2963
      %v2965 = vpop.xlane.xlu0 %2964
      %v2966 = vsel %vm669, %v2514, 0.0
      %2967 = vadd.xlane.f32.xlu0 %v2966
      %v2968 = vpop.xlane.xlu0 %2967
      %v2969 = vsel %vm669, %v2515, 0.0
      %2970 = vadd.xlane.f32.xlu0 %v2969
      %v2971 = vpop.xlane.xlu0 %2970
      %v2972 = vsel %vm669, %v2516, 0.0
      %2973 = vadd.xlane.f32.xlu0 %v2972
      %v2974 = vpop.xlane.xlu0 %2973
      %v2975 = vsel %vm669, %v2517, 0.0
      %2976 = vadd.xlane.f32.xlu0 %v2975
      %v2977 = vpop.xlane.xlu0 %2976
      %v2978 = vsel %vm669, %v2518, 0.0
      %2979 = vadd.xlane.f32.xlu0 %v2978
      %v2980 = vpop.xlane.xlu0 %2979
      %v2981 = vsel %vm669, %v2519, 0.0
      %2982 = vadd.xlane.f32.xlu0 %v2981
      %v2983 = vpop.xlane.xlu0 %2982
      %v2984 = vsel %vm669, %v2520, 0.0
      %2985 = vadd.xlane.f32.xlu0 %v2984
      %v2986 = vpop.xlane.xlu0 %2985
      %v2987 = vsel %vm669, %v2521, 0.0
      %2988 = vadd.xlane.f32.xlu0 %v2987
      %v2989 = vpop.xlane.xlu0 %2988
      %v2990 = vsel %vm669, %v2522, 0.0
      %2991 = vadd.xlane.f32.xlu0 %v2990
      %v2992 = vpop.xlane.xlu0 %2991
      %v2993 = vsel %vm669, %v2523, 0.0
      %2994 = vadd.xlane.f32.xlu0 %v2993
      %v2995 = vpop.xlane.xlu0 %2994
      %v2996 = vsel %vm669, %v2524, 0.0
      %2997 = vadd.xlane.f32.xlu0 %v2996
      %v2998 = vpop.xlane.xlu0 %2997
      %v2999 = vsel %vm669, %v2525, 0.0
      %3000 = vadd.xlane.f32.xlu0 %v2999
      %v3001 = vpop.xlane.xlu0 %3000
      %v3002 = vsel %vm669, %v2526, 0.0
      %3003 = vadd.xlane.f32.xlu0 %v3002
      %v3004 = vpop.xlane.xlu0 %3003
      %v3005 = vsel %vm669, %v2527, 0.0
      %3006 = vadd.xlane.f32.xlu0 %v3005
      %v3007 = vpop.xlane.xlu0 %3006
      %v3008 = vsel %vm669, %v2528, 0.0
      %3009 = vadd.xlane.f32.xlu0 %v3008
      %v3010 = vpop.xlane.xlu0 %3009
      %v3011 = vsel %vm669, %v2529, 0.0
      %3012 = vadd.xlane.f32.xlu0 %v3011
      %v3013 = vpop.xlane.xlu0 %3012
      %v3014 = vsel %vm669, %v2530, 0.0
      %3015 = vadd.xlane.f32.xlu0 %v3014
      %v3016 = vpop.xlane.xlu0 %3015
      %v3017 = vsel %vm669, %v2531, 0.0
      %3018 = vadd.xlane.f32.xlu0 %v3017
      %v3019 = vpop.xlane.xlu0 %3018
      %v3020 = vsel %vm669, %v2532, 0.0
      %3021 = vadd.xlane.f32.xlu0 %v3020
      %v3022 = vpop.xlane.xlu0 %3021
      %v3023 = vsel %vm669, %v2533, 0.0
      %3024 = vadd.xlane.f32.xlu0 %v3023
      %v3025 = vpop.xlane.xlu0 %3024
      %v3026 = vsel %vm669, %v2534, 0.0
      %3027 = vadd.xlane.f32.xlu0 %v3026
      %v3028 = vpop.xlane.xlu0 %3027
      %v3029 = vsel %vm669, %v2535, 0.0
      %3030 = vadd.xlane.f32.xlu0 %v3029
      %v3031 = vpop.xlane.xlu0 %3030
      %v3032 = vsel %vm669, %v2536, 0.0
      %3033 = vadd.xlane.f32.xlu0 %v3032
      %v3034 = vpop.xlane.xlu0 %3033
      %v3035 = vsel %vm669, %v2537, 0.0
      %3036 = vadd.xlane.f32.xlu0 %v3035
      %v3037 = vpop.xlane.xlu0 %3036
      %v3038 = vsel %vm669, %v2538, 0.0
      %3039 = vadd.xlane.f32.xlu0 %v3038
      %v3040 = vpop.xlane.xlu0 %3039
      %v3041 = vsel %vm669, %v2539, 0.0
      %3042 = vadd.xlane.f32.xlu0 %v3041
      %v3043 = vpop.xlane.xlu0 %3042
      %v3044 = vsel %vm669, %v2540, 0.0
      %3045 = vadd.xlane.f32.xlu0 %v3044
      %v3046 = vpop.xlane.xlu0 %3045
      %v3047 = vsel %vm669, %v2541, 0.0
      %3048 = vadd.xlane.f32.xlu0 %v3047
      %v3049 = vpop.xlane.xlu0 %3048
      %v3050 = vsel %vm669, %v2542, 0.0
      %3051 = vadd.xlane.f32.xlu0 %v3050
      %v3052 = vpop.xlane.xlu0 %3051
      %v3053 = vsel %vm669, %v2543, 0.0
      %3054 = vadd.xlane.f32.xlu0 %v3053
      %v3055 = vpop.xlane.xlu0 %3054
      %v3056 = vsel %vm669, %v2544, 0.0
      %3057 = vadd.xlane.f32.xlu0 %v3056
      %v3058 = vpop.xlane.xlu0 %3057
      %v3059 = vsel %vm669, %v2545, 0.0
      %3060 = vadd.xlane.f32.xlu0 %v3059
      %v3061 = vpop.xlane.xlu0 %3060
      %v3062 = vld [vmem:[%s4] sm:$0x1]
      %v3063 = vld [vmem:[%s405] sm:$0xff]
      %v3064 = vld [vmem:[%s405 + $0x8] sm:$0xff]
      %v3065 = vld [vmem:[%s405 + $0x10] sm:$0xff]
      %v3066 = vld [vmem:[%s405 + $0x18] sm:$0xff]
      %v3067 = vmul.f32 %v3063, %v2054
      %v3068 = vmul.f32 %v3064, %v2055
      %v3069 = vmul.f32 %v3065, %v2056
      %v3070 = vmul.f32 %v3066, %v2057
      %v3075 = vlaneseq
      %v3076 = vshrl.u32 %v3075, 7
      %v3077 = vsub.s32 0, %v3076
      %v3078 = vrot.slane %v3067, %v3077
      %3080 = vbcast.lane.b32.xlu0 %v3078, 256
      %v3081 = vpop.permute.xlu0 %3080
      %s3083 = sor.u32 256, 8
      %3084 = vbcast.lane.b32.xlu0 %v3078, %s3083
      %v3085 = vpop.permute.xlu0 %3084
      %s3087 = sor.u32 256, 16
      %3088 = vbcast.lane.b32.xlu0 %v3078, %s3087
      %v3089 = vpop.permute.xlu0 %3088
      %s3091 = sor.u32 256, 24
      %3092 = vbcast.lane.b32.xlu0 %v3078, %s3091
      %v3093 = vpop.permute.xlu0 %3092
      %v3094 = vlaneseq
      %v3095 = vshrl.u32 %v3094, 7
      %v3096 = vsub.s32 1, %v3095
      %v3097 = vrot.slane %v3067, %v3096
      %3099 = vbcast.lane.b32.xlu0 %v3097, 256
      %v3100 = vpop.permute.xlu0 %3099
      %s3102 = sor.u32 256, 8
      %3103 = vbcast.lane.b32.xlu0 %v3097, %s3102
      %v3104 = vpop.permute.xlu0 %3103
      %s3106 = sor.u32 256, 16
      %3107 = vbcast.lane.b32.xlu0 %v3097, %s3106
      %v3108 = vpop.permute.xlu0 %3107
      %s3110 = sor.u32 256, 24
      %3111 = vbcast.lane.b32.xlu0 %v3097, %s3110
      %v3112 = vpop.permute.xlu0 %3111
      %v3113 = vlaneseq
      %v3114 = vshrl.u32 %v3113, 7
      %v3115 = vsub.s32 2, %v3114
      %v3116 = vrot.slane %v3067, %v3115
      %3118 = vbcast.lane.b32.xlu0 %v3116, 256
      %v3119 = vpop.permute.xlu0 %3118
      %s3121 = sor.u32 256, 8
      %3122 = vbcast.lane.b32.xlu0 %v3116, %s3121
      %v3123 = vpop.permute.xlu0 %3122
      %s3125 = sor.u32 256, 16
      %3126 = vbcast.lane.b32.xlu0 %v3116, %s3125
      %v3127 = vpop.permute.xlu0 %3126
      %s3129 = sor.u32 256, 24
      %3130 = vbcast.lane.b32.xlu0 %v3116, %s3129
      %v3131 = vpop.permute.xlu0 %3130
      %v3132 = vlaneseq
      %v3133 = vshrl.u32 %v3132, 7
      %v3134 = vsub.s32 3, %v3133
      %v3135 = vrot.slane %v3067, %v3134
      %3137 = vbcast.lane.b32.xlu0 %v3135, 256
      %v3138 = vpop.permute.xlu0 %3137
      %s3140 = sor.u32 256, 8
      %3141 = vbcast.lane.b32.xlu0 %v3135, %s3140
      %v3142 = vpop.permute.xlu0 %3141
      %s3144 = sor.u32 256, 16
      %3145 = vbcast.lane.b32.xlu0 %v3135, %s3144
      %v3146 = vpop.permute.xlu0 %3145
      %s3148 = sor.u32 256, 24
      %3149 = vbcast.lane.b32.xlu0 %v3135, %s3148
      %v3150 = vpop.permute.xlu0 %3149
      %v3151 = vlaneseq
      %v3152 = vshrl.u32 %v3151, 7
      %v3153 = vsub.s32 4, %v3152
      %v3154 = vrot.slane %v3067, %v3153
      %3156 = vbcast.lane.b32.xlu0 %v3154, 256
      %v3157 = vpop.permute.xlu0 %3156
      %s3159 = sor.u32 256, 8
      %3160 = vbcast.lane.b32.xlu0 %v3154, %s3159
      %v3161 = vpop.permute.xlu0 %3160
      %s3163 = sor.u32 256, 16
      %3164 = vbcast.lane.b32.xlu0 %v3154, %s3163
      %v3165 = vpop.permute.xlu0 %3164
      %s3167 = sor.u32 256, 24
      %3168 = vbcast.lane.b32.xlu0 %v3154, %s3167
      %v3169 = vpop.permute.xlu0 %3168
      %v3170 = vlaneseq
      %v3171 = vshrl.u32 %v3170, 7
      %v3172 = vsub.s32 5, %v3171
      %v3173 = vrot.slane %v3067, %v3172
      %3175 = vbcast.lane.b32.xlu0 %v3173, 256
      %v3176 = vpop.permute.xlu0 %3175
      %s3178 = sor.u32 256, 8
      %3179 = vbcast.lane.b32.xlu0 %v3173, %s3178
      %v3180 = vpop.permute.xlu0 %3179
      %s3182 = sor.u32 256, 16
      %3183 = vbcast.lane.b32.xlu0 %v3173, %s3182
      %v3184 = vpop.permute.xlu0 %3183
      %s3186 = sor.u32 256, 24
      %3187 = vbcast.lane.b32.xlu0 %v3173, %s3186
      %v3188 = vpop.permute.xlu0 %3187
      %v3189 = vlaneseq
      %v3190 = vshrl.u32 %v3189, 7
      %v3191 = vsub.s32 6, %v3190
      %v3192 = vrot.slane %v3067, %v3191
      %3194 = vbcast.lane.b32.xlu0 %v3192, 256
      %v3195 = vpop.permute.xlu0 %3194
      %s3197 = sor.u32 256, 8
      %3198 = vbcast.lane.b32.xlu0 %v3192, %s3197
      %v3199 = vpop.permute.xlu0 %3198
      %s3201 = sor.u32 256, 16
      %3202 = vbcast.lane.b32.xlu0 %v3192, %s3201
      %v3203 = vpop.permute.xlu0 %3202
      %s3205 = sor.u32 256, 24
      %3206 = vbcast.lane.b32.xlu0 %v3192, %s3205
      %v3207 = vpop.permute.xlu0 %3206
      %v3208 = vlaneseq
      %v3209 = vshrl.u32 %v3208, 7
      %v3210 = vsub.s32 7, %v3209
      %v3211 = vrot.slane %v3067, %v3210
      %3213 = vbcast.lane.b32.xlu0 %v3211, 256
      %v3214 = vpop.permute.xlu0 %3213
      %s3216 = sor.u32 256, 8
      %3217 = vbcast.lane.b32.xlu0 %v3211, %s3216
      %v3218 = vpop.permute.xlu0 %3217
      %s3220 = sor.u32 256, 16
      %3221 = vbcast.lane.b32.xlu0 %v3211, %s3220
      %v3222 = vpop.permute.xlu0 %3221
      %s3224 = sor.u32 256, 24
      %3225 = vbcast.lane.b32.xlu0 %v3211, %s3224
      %v3226 = vpop.permute.xlu0 %3225
      %v3227 = vlaneseq
      %v3228 = vshrl.u32 %v3227, 7
      %v3229 = vsub.s32 0, %v3228
      %v3230 = vrot.slane %v3068, %v3229
      %3232 = vbcast.lane.b32.xlu0 %v3230, 256
      %v3233 = vpop.permute.xlu0 %3232
      %s3235 = sor.u32 256, 8
      %3236 = vbcast.lane.b32.xlu0 %v3230, %s3235
      %v3237 = vpop.permute.xlu0 %3236
      %s3239 = sor.u32 256, 16
      %3240 = vbcast.lane.b32.xlu0 %v3230, %s3239
      %v3241 = vpop.permute.xlu0 %3240
      %s3243 = sor.u32 256, 24
      %3244 = vbcast.lane.b32.xlu0 %v3230, %s3243
      %v3245 = vpop.permute.xlu0 %3244
      %v3246 = vlaneseq
      %v3247 = vshrl.u32 %v3246, 7
      %v3248 = vsub.s32 1, %v3247
      %v3249 = vrot.slane %v3068, %v3248
      %3251 = vbcast.lane.b32.xlu0 %v3249, 256
      %v3252 = vpop.permute.xlu0 %3251
      %s3254 = sor.u32 256, 8
      %3255 = vbcast.lane.b32.xlu0 %v3249, %s3254
      %v3256 = vpop.permute.xlu0 %3255
      %s3258 = sor.u32 256, 16
      %3259 = vbcast.lane.b32.xlu0 %v3249, %s3258
      %v3260 = vpop.permute.xlu0 %3259
      %s3262 = sor.u32 256, 24
      %3263 = vbcast.lane.b32.xlu0 %v3249, %s3262
      %v3264 = vpop.permute.xlu0 %3263
      %v3265 = vlaneseq
      %v3266 = vshrl.u32 %v3265, 7
      %v3267 = vsub.s32 2, %v3266
      %v3268 = vrot.slane %v3068, %v3267
      %3270 = vbcast.lane.b32.xlu0 %v3268, 256
      %v3271 = vpop.permute.xlu0 %3270
      %s3273 = sor.u32 256, 8
      %3274 = vbcast.lane.b32.xlu0 %v3268, %s3273
      %v3275 = vpop.permute.xlu0 %3274
      %s3277 = sor.u32 256, 16
      %3278 = vbcast.lane.b32.xlu0 %v3268, %s3277
      %v3279 = vpop.permute.xlu0 %3278
      %s3281 = sor.u32 256, 24
      %3282 = vbcast.lane.b32.xlu0 %v3268, %s3281
      %v3283 = vpop.permute.xlu0 %3282
      %v3284 = vlaneseq
      %v3285 = vshrl.u32 %v3284, 7
      %v3286 = vsub.s32 3, %v3285
      %v3287 = vrot.slane %v3068, %v3286
      %3289 = vbcast.lane.b32.xlu0 %v3287, 256
      %v3290 = vpop.permute.xlu0 %3289
      %s3292 = sor.u32 256, 8
      %3293 = vbcast.lane.b32.xlu0 %v3287, %s3292
      %v3294 = vpop.permute.xlu0 %3293
      %s3296 = sor.u32 256, 16
      %3297 = vbcast.lane.b32.xlu0 %v3287, %s3296
      %v3298 = vpop.permute.xlu0 %3297
      %s3300 = sor.u32 256, 24
      %3301 = vbcast.lane.b32.xlu0 %v3287, %s3300
      %v3302 = vpop.permute.xlu0 %3301
      %v3303 = vlaneseq
      %v3304 = vshrl.u32 %v3303, 7
      %v3305 = vsub.s32 4, %v3304
      %v3306 = vrot.slane %v3068, %v3305
      %3308 = vbcast.lane.b32.xlu0 %v3306, 256
      %v3309 = vpop.permute.xlu0 %3308
      %s3311 = sor.u32 256, 8
      %3312 = vbcast.lane.b32.xlu0 %v3306, %s3311
      %v3313 = vpop.permute.xlu0 %3312
      %s3315 = sor.u32 256, 16
      %3316 = vbcast.lane.b32.xlu0 %v3306, %s3315
      %v3317 = vpop.permute.xlu0 %3316
      %s3319 = sor.u32 256, 24
      %3320 = vbcast.lane.b32.xlu0 %v3306, %s3319
      %v3321 = vpop.permute.xlu0 %3320
      %v3322 = vlaneseq
      %v3323 = vshrl.u32 %v3322, 7
      %v3324 = vsub.s32 5, %v3323
      %v3325 = vrot.slane %v3068, %v3324
      %3327 = vbcast.lane.b32.xlu0 %v3325, 256
      %v3328 = vpop.permute.xlu0 %3327
      %s3330 = sor.u32 256, 8
      %3331 = vbcast.lane.b32.xlu0 %v3325, %s3330
      %v3332 = vpop.permute.xlu0 %3331
      %s3334 = sor.u32 256, 16
      %3335 = vbcast.lane.b32.xlu0 %v3325, %s3334
      %v3336 = vpop.permute.xlu0 %3335
      %s3338 = sor.u32 256, 24
      %3339 = vbcast.lane.b32.xlu0 %v3325, %s3338
      %v3340 = vpop.permute.xlu0 %3339
      %v3341 = vlaneseq
      %v3342 = vshrl.u32 %v3341, 7
      %v3343 = vsub.s32 6, %v3342
      %v3344 = vrot.slane %v3068, %v3343
      %3346 = vbcast.lane.b32.xlu0 %v3344, 256
      %v3347 = vpop.permute.xlu0 %3346
      %s3349 = sor.u32 256, 8
      %3350 = vbcast.lane.b32.xlu0 %v3344, %s3349
      %v3351 = vpop.permute.xlu0 %3350
      %s3353 = sor.u32 256, 16
      %3354 = vbcast.lane.b32.xlu0 %v3344, %s3353
      %v3355 = vpop.permute.xlu0 %3354
      %s3357 = sor.u32 256, 24
      %3358 = vbcast.lane.b32.xlu0 %v3344, %s3357
      %v3359 = vpop.permute.xlu0 %3358
      %v3360 = vlaneseq
      %v3361 = vshrl.u32 %v3360, 7
      %v3362 = vsub.s32 7, %v3361
      %v3363 = vrot.slane %v3068, %v3362
      %3365 = vbcast.lane.b32.xlu0 %v3363, 256
      %v3366 = vpop.permute.xlu0 %3365
      %s3368 = sor.u32 256, 8
      %3369 = vbcast.lane.b32.xlu0 %v3363, %s3368
      %v3370 = vpop.permute.xlu0 %3369
      %s3372 = sor.u32 256, 16
      %3373 = vbcast.lane.b32.xlu0 %v3363, %s3372
      %v3374 = vpop.permute.xlu0 %3373
      %s3376 = sor.u32 256, 24
      %3377 = vbcast.lane.b32.xlu0 %v3363, %s3376
      %v3378 = vpop.permute.xlu0 %3377
      %v3379 = vlaneseq
      %v3380 = vshrl.u32 %v3379, 7
      %v3381 = vsub.s32 0, %v3380
      %v3382 = vrot.slane %v3069, %v3381
      %3384 = vbcast.lane.b32.xlu0 %v3382, 256
      %v3385 = vpop.permute.xlu0 %3384
      %s3387 = sor.u32 256, 8
      %3388 = vbcast.lane.b32.xlu0 %v3382, %s3387
      %v3389 = vpop.permute.xlu0 %3388
      %s3391 = sor.u32 256, 16
      %3392 = vbcast.lane.b32.xlu0 %v3382, %s3391
      %v3393 = vpop.permute.xlu0 %3392
      %s3395 = sor.u32 256, 24
      %3396 = vbcast.lane.b32.xlu0 %v3382, %s3395
      %v3397 = vpop.permute.xlu0 %3396
      %v3398 = vlaneseq
      %v3399 = vshrl.u32 %v3398, 7
      %v3400 = vsub.s32 1, %v3399
      %v3401 = vrot.slane %v3069, %v3400
      %3403 = vbcast.lane.b32.xlu0 %v3401, 256
      %v3404 = vpop.permute.xlu0 %3403
      %s3406 = sor.u32 256, 8
      %3407 = vbcast.lane.b32.xlu0 %v3401, %s3406
      %v3408 = vpop.permute.xlu0 %3407
      %s3410 = sor.u32 256, 16
      %3411 = vbcast.lane.b32.xlu0 %v3401, %s3410
      %v3412 = vpop.permute.xlu0 %3411
      %s3414 = sor.u32 256, 24
      %3415 = vbcast.lane.b32.xlu0 %v3401, %s3414
      %v3416 = vpop.permute.xlu0 %3415
      %v3417 = vlaneseq
      %v3418 = vshrl.u32 %v3417, 7
      %v3419 = vsub.s32 2, %v3418
      %v3420 = vrot.slane %v3069, %v3419
      %3422 = vbcast.lane.b32.xlu0 %v3420, 256
      %v3423 = vpop.permute.xlu0 %3422
      %s3425 = sor.u32 256, 8
      %3426 = vbcast.lane.b32.xlu0 %v3420, %s3425
      %v3427 = vpop.permute.xlu0 %3426
      %s3429 = sor.u32 256, 16
      %3430 = vbcast.lane.b32.xlu0 %v3420, %s3429
      %v3431 = vpop.permute.xlu0 %3430
      %s3433 = sor.u32 256, 24
      %3434 = vbcast.lane.b32.xlu0 %v3420, %s3433
      %v3435 = vpop.permute.xlu0 %3434
      %v3436 = vlaneseq
      %v3437 = vshrl.u32 %v3436, 7
      %v3438 = vsub.s32 3, %v3437
      %v3439 = vrot.slane %v3069, %v3438
      %3441 = vbcast.lane.b32.xlu0 %v3439, 256
      %v3442 = vpop.permute.xlu0 %3441
      %s3444 = sor.u32 256, 8
      %3445 = vbcast.lane.b32.xlu0 %v3439, %s3444
      %v3446 = vpop.permute.xlu0 %3445
      %s3448 = sor.u32 256, 16
      %3449 = vbcast.lane.b32.xlu0 %v3439, %s3448
      %v3450 = vpop.permute.xlu0 %3449
      %s3452 = sor.u32 256, 24
      %3453 = vbcast.lane.b32.xlu0 %v3439, %s3452
      %v3454 = vpop.permute.xlu0 %3453
      %v3455 = vlaneseq
      %v3456 = vshrl.u32 %v3455, 7
      %v3457 = vsub.s32 4, %v3456
      %v3458 = vrot.slane %v3069, %v3457
      %3460 = vbcast.lane.b32.xlu0 %v3458, 256
      %v3461 = vpop.permute.xlu0 %3460
      %s3463 = sor.u32 256, 8
      %3464 = vbcast.lane.b32.xlu0 %v3458, %s3463
      %v3465 = vpop.permute.xlu0 %3464
      %s3467 = sor.u32 256, 16
      %3468 = vbcast.lane.b32.xlu0 %v3458, %s3467
      %v3469 = vpop.permute.xlu0 %3468
      %s3471 = sor.u32 256, 24
      %3472 = vbcast.lane.b32.xlu0 %v3458, %s3471
      %v3473 = vpop.permute.xlu0 %3472
      %v3474 = vlaneseq
      %v3475 = vshrl.u32 %v3474, 7
      %v3476 = vsub.s32 5, %v3475
      %v3477 = vrot.slane %v3069, %v3476
      %3479 = vbcast.lane.b32.xlu0 %v3477, 256
      %v3480 = vpop.permute.xlu0 %3479
      %s3482 = sor.u32 256, 8
      %3483 = vbcast.lane.b32.xlu0 %v3477, %s3482
      %v3484 = vpop.permute.xlu0 %3483
      %s3486 = sor.u32 256, 16
      %3487 = vbcast.lane.b32.xlu0 %v3477, %s3486
      %v3488 = vpop.permute.xlu0 %3487
      %s3490 = sor.u32 256, 24
      %3491 = vbcast.lane.b32.xlu0 %v3477, %s3490
      %v3492 = vpop.permute.xlu0 %3491
      %v3493 = vlaneseq
      %v3494 = vshrl.u32 %v3493, 7
      %v3495 = vsub.s32 6, %v3494
      %v3496 = vrot.slane %v3069, %v3495
      %3498 = vbcast.lane.b32.xlu0 %v3496, 256
      %v3499 = vpop.permute.xlu0 %3498
      %s3501 = sor.u32 256, 8
      %3502 = vbcast.lane.b32.xlu0 %v3496, %s3501
      %v3503 = vpop.permute.xlu0 %3502
      %s3505 = sor.u32 256, 16
      %3506 = vbcast.lane.b32.xlu0 %v3496, %s3505
      %v3507 = vpop.permute.xlu0 %3506
      %s3509 = sor.u32 256, 24
      %3510 = vbcast.lane.b32.xlu0 %v3496, %s3509
      %v3511 = vpop.permute.xlu0 %3510
      %v3512 = vlaneseq
      %v3513 = vshrl.u32 %v3512, 7
      %v3514 = vsub.s32 7, %v3513
      %v3515 = vrot.slane %v3069, %v3514
      %3517 = vbcast.lane.b32.xlu0 %v3515, 256
      %v3518 = vpop.permute.xlu0 %3517
      %s3520 = sor.u32 256, 8
      %3521 = vbcast.lane.b32.xlu0 %v3515, %s3520
      %v3522 = vpop.permute.xlu0 %3521
      %s3524 = sor.u32 256, 16
      %3525 = vbcast.lane.b32.xlu0 %v3515, %s3524
      %v3526 = vpop.permute.xlu0 %3525
      %s3528 = sor.u32 256, 24
      %3529 = vbcast.lane.b32.xlu0 %v3515, %s3528
      %v3530 = vpop.permute.xlu0 %3529
      %v3531 = vlaneseq
      %v3532 = vshrl.u32 %v3531, 7
      %v3533 = vsub.s32 0, %v3532
      %v3534 = vrot.slane %v3070, %v3533
      %3536 = vbcast.lane.b32.xlu0 %v3534, 256
      %v3537 = vpop.permute.xlu0 %3536
      %s3539 = sor.u32 256, 8
      %3540 = vbcast.lane.b32.xlu0 %v3534, %s3539
      %v3541 = vpop.permute.xlu0 %3540
      %s3543 = sor.u32 256, 16
      %3544 = vbcast.lane.b32.xlu0 %v3534, %s3543
      %v3545 = vpop.permute.xlu0 %3544
      %s3547 = sor.u32 256, 24
      %3548 = vbcast.lane.b32.xlu0 %v3534, %s3547
      %v3549 = vpop.permute.xlu0 %3548
      %v3550 = vlaneseq
      %v3551 = vshrl.u32 %v3550, 7
      %v3552 = vsub.s32 1, %v3551
      %v3553 = vrot.slane %v3070, %v3552
      %3555 = vbcast.lane.b32.xlu0 %v3553, 256
      %v3556 = vpop.permute.xlu0 %3555
      %s3558 = sor.u32 256, 8
      %3559 = vbcast.lane.b32.xlu0 %v3553, %s3558
      %v3560 = vpop.permute.xlu0 %3559
      %s3562 = sor.u32 256, 16
      %3563 = vbcast.lane.b32.xlu0 %v3553, %s3562
      %v3564 = vpop.permute.xlu0 %3563
      %s3566 = sor.u32 256, 24
      %3567 = vbcast.lane.b32.xlu0 %v3553, %s3566
      %v3568 = vpop.permute.xlu0 %3567
      %v3569 = vlaneseq
      %v3570 = vshrl.u32 %v3569, 7
      %v3571 = vsub.s32 2, %v3570
      %v3572 = vrot.slane %v3070, %v3571
      %3574 = vbcast.lane.b32.xlu0 %v3572, 256
      %v3575 = vpop.permute.xlu0 %3574
      %s3577 = sor.u32 256, 8
      %3578 = vbcast.lane.b32.xlu0 %v3572, %s3577
      %v3579 = vpop.permute.xlu0 %3578
      %s3581 = sor.u32 256, 16
      %3582 = vbcast.lane.b32.xlu0 %v3572, %s3581
      %v3583 = vpop.permute.xlu0 %3582
      %s3585 = sor.u32 256, 24
      %3586 = vbcast.lane.b32.xlu0 %v3572, %s3585
      %v3587 = vpop.permute.xlu0 %3586
      %v3588 = vlaneseq
      %v3589 = vshrl.u32 %v3588, 7
      %v3590 = vsub.s32 3, %v3589
      %v3591 = vrot.slane %v3070, %v3590
      %3593 = vbcast.lane.b32.xlu0 %v3591, 256
      %v3594 = vpop.permute.xlu0 %3593
      %s3596 = sor.u32 256, 8
      %3597 = vbcast.lane.b32.xlu0 %v3591, %s3596
      %v3598 = vpop.permute.xlu0 %3597
      %s3600 = sor.u32 256, 16
      %3601 = vbcast.lane.b32.xlu0 %v3591, %s3600
      %v3602 = vpop.permute.xlu0 %3601
      %s3604 = sor.u32 256, 24
      %3605 = vbcast.lane.b32.xlu0 %v3591, %s3604
      %v3606 = vpop.permute.xlu0 %3605
      %v3607 = vlaneseq
      %v3608 = vshrl.u32 %v3607, 7
      %v3609 = vsub.s32 4, %v3608
      %v3610 = vrot.slane %v3070, %v3609
      %3612 = vbcast.lane.b32.xlu0 %v3610, 256
      %v3613 = vpop.permute.xlu0 %3612
      %s3615 = sor.u32 256, 8
      %3616 = vbcast.lane.b32.xlu0 %v3610, %s3615
      %v3617 = vpop.permute.xlu0 %3616
      %s3619 = sor.u32 256, 16
      %3620 = vbcast.lane.b32.xlu0 %v3610, %s3619
      %v3621 = vpop.permute.xlu0 %3620
      %s3623 = sor.u32 256, 24
      %3624 = vbcast.lane.b32.xlu0 %v3610, %s3623
      %v3625 = vpop.permute.xlu0 %3624
      %v3626 = vlaneseq
      %v3627 = vshrl.u32 %v3626, 7
      %v3628 = vsub.s32 5, %v3627
      %v3629 = vrot.slane %v3070, %v3628
      %3631 = vbcast.lane.b32.xlu0 %v3629, 256
      %v3632 = vpop.permute.xlu0 %3631
      %s3634 = sor.u32 256, 8
      %3635 = vbcast.lane.b32.xlu0 %v3629, %s3634
      %v3636 = vpop.permute.xlu0 %3635
      %s3638 = sor.u32 256, 16
      %3639 = vbcast.lane.b32.xlu0 %v3629, %s3638
      %v3640 = vpop.permute.xlu0 %3639
      %s3642 = sor.u32 256, 24
      %3643 = vbcast.lane.b32.xlu0 %v3629, %s3642
      %v3644 = vpop.permute.xlu0 %3643
      %v3645 = vlaneseq
      %v3646 = vshrl.u32 %v3645, 7
      %v3647 = vsub.s32 6, %v3646
      %v3648 = vrot.slane %v3070, %v3647
      %3650 = vbcast.lane.b32.xlu0 %v3648, 256
      %v3651 = vpop.permute.xlu0 %3650
      %s3653 = sor.u32 256, 8
      %3654 = vbcast.lane.b32.xlu0 %v3648, %s3653
      %v3655 = vpop.permute.xlu0 %3654
      %s3657 = sor.u32 256, 16
      %3658 = vbcast.lane.b32.xlu0 %v3648, %s3657
      %v3659 = vpop.permute.xlu0 %3658
      %s3661 = sor.u32 256, 24
      %3662 = vbcast.lane.b32.xlu0 %v3648, %s3661
      %v3663 = vpop.permute.xlu0 %3662
      %v3664 = vlaneseq
      %v3665 = vshrl.u32 %v3664, 7
      %v3666 = vsub.s32 7, %v3665
      %v3667 = vrot.slane %v3070, %v3666
      %3669 = vbcast.lane.b32.xlu0 %v3667, 256
      %v3670 = vpop.permute.xlu0 %3669
      %s3672 = sor.u32 256, 8
      %3673 = vbcast.lane.b32.xlu0 %v3667, %s3672
      %v3674 = vpop.permute.xlu0 %3673
      %s3676 = sor.u32 256, 16
      %3677 = vbcast.lane.b32.xlu0 %v3667, %s3676
      %v3678 = vpop.permute.xlu0 %3677
      %s3680 = sor.u32 256, 24
      %3681 = vbcast.lane.b32.xlu0 %v3667, %s3680
      %v3682 = vpop.permute.xlu0 %3681
      %v3811 = vsub.f32 %v2680, %v3081
      %v3812 = vsub.f32 %v2683, %v3085
      %v3813 = vsub.f32 %v2686, %v3089
      %v3814 = vsub.f32 %v2689, %v3093
      %v3815 = vsub.f32 %v2692, %v3100
      %v3816 = vsub.f32 %v2695, %v3104
      %v3817 = vsub.f32 %v2698, %v3108
      %v3818 = vsub.f32 %v2701, %v3112
      %v3819 = vsub.f32 %v2704, %v3119
      %v3820 = vsub.f32 %v2707, %v3123
      %v3821 = vsub.f32 %v2710, %v3127
      %v3822 = vsub.f32 %v2713, %v3131
      %v3823 = vsub.f32 %v2716, %v3138
      %v3824 = vsub.f32 %v2719, %v3142
      %v3825 = vsub.f32 %v2722, %v3146
      %v3826 = vsub.f32 %v2725, %v3150
      %v3827 = vsub.f32 %v2728, %v3157
      %v3828 = vsub.f32 %v2731, %v3161
      %v3829 = vsub.f32 %v2734, %v3165
      %v3830 = vsub.f32 %v2737, %v3169
      %v3831 = vsub.f32 %v2740, %v3176
      %v3832 = vsub.f32 %v2743, %v3180
      %v3833 = vsub.f32 %v2746, %v3184
      %v3834 = vsub.f32 %v2749, %v3188
      %v3835 = vsub.f32 %v2752, %v3195
      %v3836 = vsub.f32 %v2755, %v3199
      %v3837 = vsub.f32 %v2758, %v3203
      %v3838 = vsub.f32 %v2761, %v3207
      %v3839 = vsub.f32 %v2764, %v3214
      %v3840 = vsub.f32 %v2767, %v3218
      %v3841 = vsub.f32 %v2770, %v3222
      %v3842 = vsub.f32 %v2773, %v3226
      %v3843 = vsub.f32 %v2776, %v3233
      %v3844 = vsub.f32 %v2779, %v3237
      %v3845 = vsub.f32 %v2782, %v3241
      %v3846 = vsub.f32 %v2785, %v3245
      %v3847 = vsub.f32 %v2788, %v3252
      %v3848 = vsub.f32 %v2791, %v3256
      %v3849 = vsub.f32 %v2794, %v3260
      %v3850 = vsub.f32 %v2797, %v3264
      %v3851 = vsub.f32 %v2800, %v3271
      %v3852 = vsub.f32 %v2803, %v3275
      %v3853 = vsub.f32 %v2806, %v3279
      %v3854 = vsub.f32 %v2809, %v3283
      %v3855 = vsub.f32 %v2812, %v3290
      %v3856 = vsub.f32 %v2815, %v3294
      %v3857 = vsub.f32 %v2818, %v3298
      %v3858 = vsub.f32 %v2821, %v3302
      %v3859 = vsub.f32 %v2824, %v3309
      %v3860 = vsub.f32 %v2827, %v3313
      %v3861 = vsub.f32 %v2830, %v3317
      %v3862 = vsub.f32 %v2833, %v3321
      %v3863 = vsub.f32 %v2836, %v3328
      %v3864 = vsub.f32 %v2839, %v3332
      %v3865 = vsub.f32 %v2842, %v3336
      %v3866 = vsub.f32 %v2845, %v3340
      %v3867 = vsub.f32 %v2848, %v3347
      %v3868 = vsub.f32 %v2851, %v3351
      %v3869 = vsub.f32 %v2854, %v3355
      %v3870 = vsub.f32 %v2857, %v3359
      %v3871 = vsub.f32 %v2860, %v3366
      %v3872 = vsub.f32 %v2863, %v3370
      %v3873 = vsub.f32 %v2866, %v3374
      %v3874 = vsub.f32 %v2869, %v3378
      %v3875 = vsub.f32 %v2872, %v3385
      %v3876 = vsub.f32 %v2875, %v3389
      %v3877 = vsub.f32 %v2878, %v3393
      %v3878 = vsub.f32 %v2881, %v3397
      %v3879 = vsub.f32 %v2884, %v3404
      %v3880 = vsub.f32 %v2887, %v3408
      %v3881 = vsub.f32 %v2890, %v3412
      %v3882 = vsub.f32 %v2893, %v3416
      %v3883 = vsub.f32 %v2896, %v3423
      %v3884 = vsub.f32 %v2899, %v3427
      %v3885 = vsub.f32 %v2902, %v3431
      %v3886 = vsub.f32 %v2905, %v3435
      %v3887 = vsub.f32 %v2908, %v3442
      %v3888 = vsub.f32 %v2911, %v3446
      %v3889 = vsub.f32 %v2914, %v3450
      %v3890 = vsub.f32 %v2917, %v3454
      %v3891 = vsub.f32 %v2920, %v3461
      %v3892 = vsub.f32 %v2923, %v3465
      %v3893 = vsub.f32 %v2926, %v3469
      %v3894 = vsub.f32 %v2929, %v3473
      %v3895 = vsub.f32 %v2932, %v3480
      %v3896 = vsub.f32 %v2935, %v3484
      %v3897 = vsub.f32 %v2938, %v3488
      %v3898 = vsub.f32 %v2941, %v3492
      %v3899 = vsub.f32 %v2944, %v3499
      %v3900 = vsub.f32 %v2947, %v3503
      %v3901 = vsub.f32 %v2950, %v3507
      %v3902 = vsub.f32 %v2953, %v3511
      %v3903 = vsub.f32 %v2956, %v3518
      %v3904 = vsub.f32 %v2959, %v3522
      %v3905 = vsub.f32 %v2962, %v3526
      %v3906 = vsub.f32 %v2965, %v3530
      %v3907 = vsub.f32 %v2968, %v3537
      %v3908 = vsub.f32 %v2971, %v3541
      %v3909 = vsub.f32 %v2974, %v3545
      %v3910 = vsub.f32 %v2977, %v3549
      %v3911 = vsub.f32 %v2980, %v3556
      %v3912 = vsub.f32 %v2983, %v3560
      %v3913 = vsub.f32 %v2986, %v3564
      %v3914 = vsub.f32 %v2989, %v3568
      %v3915 = vsub.f32 %v2992, %v3575
      %v3916 = vsub.f32 %v2995, %v3579
      %v3917 = vsub.f32 %v2998, %v3583
      %v3918 = vsub.f32 %v3001, %v3587
      %v3919 = vsub.f32 %v3004, %v3594
      %v3920 = vsub.f32 %v3007, %v3598
      %v3921 = vsub.f32 %v3010, %v3602
      %v3922 = vsub.f32 %v3013, %v3606
      %v3923 = vsub.f32 %v3016, %v3613
      %v3924 = vsub.f32 %v3019, %v3617
      %v3925 = vsub.f32 %v3022, %v3621
      %v3926 = vsub.f32 %v3025, %v3625
      %v3927 = vsub.f32 %v3028, %v3632
      %v3928 = vsub.f32 %v3031, %v3636
      %v3929 = vsub.f32 %v3034, %v3640
      %v3930 = vsub.f32 %v3037, %v3644
      %v3931 = vsub.f32 %v3040, %v3651
      %v3932 = vsub.f32 %v3043, %v3655
      %v3933 = vsub.f32 %v3046, %v3659
      %v3934 = vsub.f32 %v3049, %v3663
      %v3935 = vsub.f32 %v3052, %v3670
      %v3936 = vsub.f32 %v3055, %v3674
      %v3937 = vsub.f32 %v3058, %v3678
      %v3938 = vsub.f32 %v3061, %v3682
      %v3940 = vlaneseq
      %v3941 = vshrl.u32 %v3940, 7
      %v3942 = vsub.s32 0, %v3941
      %v3943 = vrot.slane %v3062, %v3942
      %4073 = vset.pattern.permute.xlu0 0
      %4074 = vperm.xlu0 %4073, %v3811
      %v4075 = vpop.permute.xlu0 %4074
      %4076 = vset.pattern.permute.xlu0 0
      %4077 = vperm.xlu0 %4076, %v3812
      %v4078 = vpop.permute.xlu0 %4077
      %4079 = vset.pattern.permute.xlu0 0
      %4080 = vperm.xlu0 %4079, %v3813
      %v4081 = vpop.permute.xlu0 %4080
      %4082 = vset.pattern.permute.xlu0 0
      %4083 = vperm.xlu0 %4082, %v3814
      %v4084 = vpop.permute.xlu0 %4083
      %4085 = vset.pattern.permute.xlu0 0
      %4086 = vperm.xlu0 %4085, %v3815
      %v4087 = vpop.permute.xlu0 %4086
      %4088 = vset.pattern.permute.xlu0 0
      %4089 = vperm.xlu0 %4088, %v3816
      %v4090 = vpop.permute.xlu0 %4089
      %4091 = vset.pattern.permute.xlu0 0
      %4092 = vperm.xlu0 %4091, %v3817
      %v4093 = vpop.permute.xlu0 %4092
      %4094 = vset.pattern.permute.xlu0 0
      %4095 = vperm.xlu0 %4094, %v3818
      %v4096 = vpop.permute.xlu0 %4095
      %4097 = vset.pattern.permute.xlu0 0
      %4098 = vperm.xlu0 %4097, %v3819
      %v4099 = vpop.permute.xlu0 %4098
      %4100 = vset.pattern.permute.xlu0 0
      %4101 = vperm.xlu0 %4100, %v3820
      %v4102 = vpop.permute.xlu0 %4101
      %4103 = vset.pattern.permute.xlu0 0
      %4104 = vperm.xlu0 %4103, %v3821
      %v4105 = vpop.permute.xlu0 %4104
      %4106 = vset.pattern.permute.xlu0 0
      %4107 = vperm.xlu0 %4106, %v3822
      %v4108 = vpop.permute.xlu0 %4107
      %4109 = vset.pattern.permute.xlu0 0
      %4110 = vperm.xlu0 %4109, %v3823
      %v4111 = vpop.permute.xlu0 %4110
      %4112 = vset.pattern.permute.xlu0 0
      %4113 = vperm.xlu0 %4112, %v3824
      %v4114 = vpop.permute.xlu0 %4113
      %4115 = vset.pattern.permute.xlu0 0
      %4116 = vperm.xlu0 %4115, %v3825
      %v4117 = vpop.permute.xlu0 %4116
      %4118 = vset.pattern.permute.xlu0 0
      %4119 = vperm.xlu0 %4118, %v3826
      %v4120 = vpop.permute.xlu0 %4119
      %4121 = vset.pattern.permute.xlu0 0
      %4122 = vperm.xlu0 %4121, %v3827
      %v4123 = vpop.permute.xlu0 %4122
      %4124 = vset.pattern.permute.xlu0 0
      %4125 = vperm.xlu0 %4124, %v3828
      %v4126 = vpop.permute.xlu0 %4125
      %4127 = vset.pattern.permute.xlu0 0
      %4128 = vperm.xlu0 %4127, %v3829
      %v4129 = vpop.permute.xlu0 %4128
      %4130 = vset.pattern.permute.xlu0 0
      %4131 = vperm.xlu0 %4130, %v3830
      %v4132 = vpop.permute.xlu0 %4131
      %4133 = vset.pattern.permute.xlu0 0
      %4134 = vperm.xlu0 %4133, %v3831
      %v4135 = vpop.permute.xlu0 %4134
      %4136 = vset.pattern.permute.xlu0 0
      %4137 = vperm.xlu0 %4136, %v3832
      %v4138 = vpop.permute.xlu0 %4137
      %4139 = vset.pattern.permute.xlu0 0
      %4140 = vperm.xlu0 %4139, %v3833
      %v4141 = vpop.permute.xlu0 %4140
      %4142 = vset.pattern.permute.xlu0 0
      %4143 = vperm.xlu0 %4142, %v3834
      %v4144 = vpop.permute.xlu0 %4143
      %4145 = vset.pattern.permute.xlu0 0
      %4146 = vperm.xlu0 %4145, %v3835
      %v4147 = vpop.permute.xlu0 %4146
      %4148 = vset.pattern.permute.xlu0 0
      %4149 = vperm.xlu0 %4148, %v3836
      %v4150 = vpop.permute.xlu0 %4149
      %4151 = vset.pattern.permute.xlu0 0
      %4152 = vperm.xlu0 %4151, %v3837
      %v4153 = vpop.permute.xlu0 %4152
      %4154 = vset.pattern.permute.xlu0 0
      %4155 = vperm.xlu0 %4154, %v3838
      %v4156 = vpop.permute.xlu0 %4155
      %4157 = vset.pattern.permute.xlu0 0
      %4158 = vperm.xlu0 %4157, %v3839
      %v4159 = vpop.permute.xlu0 %4158
      %4160 = vset.pattern.permute.xlu0 0
      %4161 = vperm.xlu0 %4160, %v3840
      %v4162 = vpop.permute.xlu0 %4161
      %4163 = vset.pattern.permute.xlu0 0
      %4164 = vperm.xlu0 %4163, %v3841
      %v4165 = vpop.permute.xlu0 %4164
      %4166 = vset.pattern.permute.xlu0 0
      %4167 = vperm.xlu0 %4166, %v3842
      %v4168 = vpop.permute.xlu0 %4167
      %4169 = vset.pattern.permute.xlu0 0
      %4170 = vperm.xlu0 %4169, %v3843
      %v4171 = vpop.permute.xlu0 %4170
      %4172 = vset.pattern.permute.xlu0 0
      %4173 = vperm.xlu0 %4172, %v3844
      %v4174 = vpop.permute.xlu0 %4173
      %4175 = vset.pattern.permute.xlu0 0
      %4176 = vperm.xlu0 %4175, %v3845
      %v4177 = vpop.permute.xlu0 %4176
      %4178 = vset.pattern.permute.xlu0 0
      %4179 = vperm.xlu0 %4178, %v3846
      %v4180 = vpop.permute.xlu0 %4179
      %4181 = vset.pattern.permute.xlu0 0
      %4182 = vperm.xlu0 %4181, %v3847
      %v4183 = vpop.permute.xlu0 %4182
      %4184 = vset.pattern.permute.xlu0 0
      %4185 = vperm.xlu0 %4184, %v3848
      %v4186 = vpop.permute.xlu0 %4185
      %4187 = vset.pattern.permute.xlu0 0
      %4188 = vperm.xlu0 %4187, %v3849
      %v4189 = vpop.permute.xlu0 %4188
      %4190 = vset.pattern.permute.xlu0 0
      %4191 = vperm.xlu0 %4190, %v3850
      %v4192 = vpop.permute.xlu0 %4191
      %4193 = vset.pattern.permute.xlu0 0
      %4194 = vperm.xlu0 %4193, %v3851
      %v4195 = vpop.permute.xlu0 %4194
      %4196 = vset.pattern.permute.xlu0 0
      %4197 = vperm.xlu0 %4196, %v3852
      %v4198 = vpop.permute.xlu0 %4197
      %4199 = vset.pattern.permute.xlu0 0
      %4200 = vperm.xlu0 %4199, %v3853
      %v4201 = vpop.permute.xlu0 %4200
      %4202 = vset.pattern.permute.xlu0 0
      %4203 = vperm.xlu0 %4202, %v3854
      %v4204 = vpop.permute.xlu0 %4203
      %4205 = vset.pattern.permute.xlu0 0
      %4206 = vperm.xlu0 %4205, %v3855
      %v4207 = vpop.permute.xlu0 %4206
      %4208 = vset.pattern.permute.xlu0 0
      %4209 = vperm.xlu0 %4208, %v3856
      %v4210 = vpop.permute.xlu0 %4209
      %4211 = vset.pattern.permute.xlu0 0
      %4212 = vperm.xlu0 %4211, %v3857
      %v4213 = vpop.permute.xlu0 %4212
      %4214 = vset.pattern.permute.xlu0 0
      %4215 = vperm.xlu0 %4214, %v3858
      %v4216 = vpop.permute.xlu0 %4215
      %4217 = vset.pattern.permute.xlu0 0
      %4218 = vperm.xlu0 %4217, %v3859
      %v4219 = vpop.permute.xlu0 %4218
      %4220 = vset.pattern.permute.xlu0 0
      %4221 = vperm.xlu0 %4220, %v3860
      %v4222 = vpop.permute.xlu0 %4221
      %4223 = vset.pattern.permute.xlu0 0
      %4224 = vperm.xlu0 %4223, %v3861
      %v4225 = vpop.permute.xlu0 %4224
      %4226 = vset.pattern.permute.xlu0 0
      %4227 = vperm.xlu0 %4226, %v3862
      %v4228 = vpop.permute.xlu0 %4227
      %4229 = vset.pattern.permute.xlu0 0
      %4230 = vperm.xlu0 %4229, %v3863
      %v4231 = vpop.permute.xlu0 %4230
      %4232 = vset.pattern.permute.xlu0 0
      %4233 = vperm.xlu0 %4232, %v3864
      %v4234 = vpop.permute.xlu0 %4233
      %4235 = vset.pattern.permute.xlu0 0
      %4236 = vperm.xlu0 %4235, %v3865
      %v4237 = vpop.permute.xlu0 %4236
      %4238 = vset.pattern.permute.xlu0 0
      %4239 = vperm.xlu0 %4238, %v3866
      %v4240 = vpop.permute.xlu0 %4239
      %4241 = vset.pattern.permute.xlu0 0
      %4242 = vperm.xlu0 %4241, %v3867
      %v4243 = vpop.permute.xlu0 %4242
      %4244 = vset.pattern.permute.xlu0 0
      %4245 = vperm.xlu0 %4244, %v3868
      %v4246 = vpop.permute.xlu0 %4245
      %4247 = vset.pattern.permute.xlu0 0
      %4248 = vperm.xlu0 %4247, %v3869
      %v4249 = vpop.permute.xlu0 %4248
      %4250 = vset.pattern.permute.xlu0 0
      %4251 = vperm.xlu0 %4250, %v3870
      %v4252 = vpop.permute.xlu0 %4251
      %4253 = vset.pattern.permute.xlu0 0
      %4254 = vperm.xlu0 %4253, %v3871
      %v4255 = vpop.permute.xlu0 %4254
      %4256 = vset.pattern.permute.xlu0 0
      %4257 = vperm.xlu0 %4256, %v3872
      %v4258 = vpop.permute.xlu0 %4257
      %4259 = vset.pattern.permute.xlu0 0
      %4260 = vperm.xlu0 %4259, %v3873
      %v4261 = vpop.permute.xlu0 %4260
      %4262 = vset.pattern.permute.xlu0 0
      %4263 = vperm.xlu0 %4262, %v3874
      %v4264 = vpop.permute.xlu0 %4263
      %4265 = vset.pattern.permute.xlu0 0
      %4266 = vperm.xlu0 %4265, %v3875
      %v4267 = vpop.permute.xlu0 %4266
      %4268 = vset.pattern.permute.xlu0 0
      %4269 = vperm.xlu0 %4268, %v3876
      %v4270 = vpop.permute.xlu0 %4269
      %4271 = vset.pattern.permute.xlu0 0
      %4272 = vperm.xlu0 %4271, %v3877
      %v4273 = vpop.permute.xlu0 %4272
      %4274 = vset.pattern.permute.xlu0 0
      %4275 = vperm.xlu0 %4274, %v3878
      %v4276 = vpop.permute.xlu0 %4275
      %4277 = vset.pattern.permute.xlu0 0
      %4278 = vperm.xlu0 %4277, %v3879
      %v4279 = vpop.permute.xlu0 %4278
      %4280 = vset.pattern.permute.xlu0 0
      %4281 = vperm.xlu0 %4280, %v3880
      %v4282 = vpop.permute.xlu0 %4281
      %4283 = vset.pattern.permute.xlu0 0
      %4284 = vperm.xlu0 %4283, %v3881
      %v4285 = vpop.permute.xlu0 %4284
      %4286 = vset.pattern.permute.xlu0 0
      %4287 = vperm.xlu0 %4286, %v3882
      %v4288 = vpop.permute.xlu0 %4287
      %4289 = vset.pattern.permute.xlu0 0
      %4290 = vperm.xlu0 %4289, %v3883
      %v4291 = vpop.permute.xlu0 %4290
      %4292 = vset.pattern.permute.xlu0 0
      %4293 = vperm.xlu0 %4292, %v3884
      %v4294 = vpop.permute.xlu0 %4293
      %4295 = vset.pattern.permute.xlu0 0
      %4296 = vperm.xlu0 %4295, %v3885
      %v4297 = vpop.permute.xlu0 %4296
      %4298 = vset.pattern.permute.xlu0 0
      %4299 = vperm.xlu0 %4298, %v3886
      %v4300 = vpop.permute.xlu0 %4299
      %4301 = vset.pattern.permute.xlu0 0
      %4302 = vperm.xlu0 %4301, %v3887
      %v4303 = vpop.permute.xlu0 %4302
      %4304 = vset.pattern.permute.xlu0 0
      %4305 = vperm.xlu0 %4304, %v3888
      %v4306 = vpop.permute.xlu0 %4305
      %4307 = vset.pattern.permute.xlu0 0
      %4308 = vperm.xlu0 %4307, %v3889
      %v4309 = vpop.permute.xlu0 %4308
      %4310 = vset.pattern.permute.xlu0 0
      %4311 = vperm.xlu0 %4310, %v3890
      %v4312 = vpop.permute.xlu0 %4311
      %4313 = vset.pattern.permute.xlu0 0
      %4314 = vperm.xlu0 %4313, %v3891
      %v4315 = vpop.permute.xlu0 %4314
      %4316 = vset.pattern.permute.xlu0 0
      %4317 = vperm.xlu0 %4316, %v3892
      %v4318 = vpop.permute.xlu0 %4317
      %4319 = vset.pattern.permute.xlu0 0
      %4320 = vperm.xlu0 %4319, %v3893
      %v4321 = vpop.permute.xlu0 %4320
      %4322 = vset.pattern.permute.xlu0 0
      %4323 = vperm.xlu0 %4322, %v3894
      %v4324 = vpop.permute.xlu0 %4323
      %4325 = vset.pattern.permute.xlu0 0
      %4326 = vperm.xlu0 %4325, %v3895
      %v4327 = vpop.permute.xlu0 %4326
      %4328 = vset.pattern.permute.xlu0 0
      %4329 = vperm.xlu0 %4328, %v3896
      %v4330 = vpop.permute.xlu0 %4329
      %4331 = vset.pattern.permute.xlu0 0
      %4332 = vperm.xlu0 %4331, %v3897
      %v4333 = vpop.permute.xlu0 %4332
      %4334 = vset.pattern.permute.xlu0 0
      %4335 = vperm.xlu0 %4334, %v3898
      %v4336 = vpop.permute.xlu0 %4335
      %4337 = vset.pattern.permute.xlu0 0
      %4338 = vperm.xlu0 %4337, %v3899
      %v4339 = vpop.permute.xlu0 %4338
      %4340 = vset.pattern.permute.xlu0 0
      %4341 = vperm.xlu0 %4340, %v3900
      %v4342 = vpop.permute.xlu0 %4341
      %4343 = vset.pattern.permute.xlu0 0
      %4344 = vperm.xlu0 %4343, %v3901
      %v4345 = vpop.permute.xlu0 %4344
      %4346 = vset.pattern.permute.xlu0 0
      %4347 = vperm.xlu0 %4346, %v3902
      %v4348 = vpop.permute.xlu0 %4347
      %4349 = vset.pattern.permute.xlu0 0
      %4350 = vperm.xlu0 %4349, %v3903
      %v4351 = vpop.permute.xlu0 %4350
      %4352 = vset.pattern.permute.xlu0 0
      %4353 = vperm.xlu0 %4352, %v3904
      %v4354 = vpop.permute.xlu0 %4353
      %4355 = vset.pattern.permute.xlu0 0
      %4356 = vperm.xlu0 %4355, %v3905
      %v4357 = vpop.permute.xlu0 %4356
      %4358 = vset.pattern.permute.xlu0 0
      %4359 = vperm.xlu0 %4358, %v3906
      %v4360 = vpop.permute.xlu0 %4359
      %4361 = vset.pattern.permute.xlu0 0
      %4362 = vperm.xlu0 %4361, %v3907
      %v4363 = vpop.permute.xlu0 %4362
      %4364 = vset.pattern.permute.xlu0 0
      %4365 = vperm.xlu0 %4364, %v3908
      %v4366 = vpop.permute.xlu0 %4365
      %4367 = vset.pattern.permute.xlu0 0
      %4368 = vperm.xlu0 %4367, %v3909
      %v4369 = vpop.permute.xlu0 %4368
      %4370 = vset.pattern.permute.xlu0 0
      %4371 = vperm.xlu0 %4370, %v3910
      %v4372 = vpop.permute.xlu0 %4371
      %4373 = vset.pattern.permute.xlu0 0
      %4374 = vperm.xlu0 %4373, %v3911
      %v4375 = vpop.permute.xlu0 %4374
      %4376 = vset.pattern.permute.xlu0 0
      %4377 = vperm.xlu0 %4376, %v3912
      %v4378 = vpop.permute.xlu0 %4377
      %4379 = vset.pattern.permute.xlu0 0
      %4380 = vperm.xlu0 %4379, %v3913
      %v4381 = vpop.permute.xlu0 %4380
      %4382 = vset.pattern.permute.xlu0 0
      %4383 = vperm.xlu0 %4382, %v3914
      %v4384 = vpop.permute.xlu0 %4383
      %4385 = vset.pattern.permute.xlu0 0
      %4386 = vperm.xlu0 %4385, %v3915
      %v4387 = vpop.permute.xlu0 %4386
      %4388 = vset.pattern.permute.xlu0 0
      %4389 = vperm.xlu0 %4388, %v3916
      %v4390 = vpop.permute.xlu0 %4389
      %4391 = vset.pattern.permute.xlu0 0
      %4392 = vperm.xlu0 %4391, %v3917
      %v4393 = vpop.permute.xlu0 %4392
      %4394 = vset.pattern.permute.xlu0 0
      %4395 = vperm.xlu0 %4394, %v3918
      %v4396 = vpop.permute.xlu0 %4395
      %4397 = vset.pattern.permute.xlu0 0
      %4398 = vperm.xlu0 %4397, %v3919
      %v4399 = vpop.permute.xlu0 %4398
      %4400 = vset.pattern.permute.xlu0 0
      %4401 = vperm.xlu0 %4400, %v3920
      %v4402 = vpop.permute.xlu0 %4401
      %4403 = vset.pattern.permute.xlu0 0
      %4404 = vperm.xlu0 %4403, %v3921
      %v4405 = vpop.permute.xlu0 %4404
      %4406 = vset.pattern.permute.xlu0 0
      %4407 = vperm.xlu0 %4406, %v3922
      %v4408 = vpop.permute.xlu0 %4407
      %4409 = vset.pattern.permute.xlu0 0
      %4410 = vperm.xlu0 %4409, %v3923
      %v4411 = vpop.permute.xlu0 %4410
      %4412 = vset.pattern.permute.xlu0 0
      %4413 = vperm.xlu0 %4412, %v3924
      %v4414 = vpop.permute.xlu0 %4413
      %4415 = vset.pattern.permute.xlu0 0
      %4416 = vperm.xlu0 %4415, %v3925
      %v4417 = vpop.permute.xlu0 %4416
      %4418 = vset.pattern.permute.xlu0 0
      %4419 = vperm.xlu0 %4418, %v3926
      %v4420 = vpop.permute.xlu0 %4419
      %4421 = vset.pattern.permute.xlu0 0
      %4422 = vperm.xlu0 %4421, %v3927
      %v4423 = vpop.permute.xlu0 %4422
      %4424 = vset.pattern.permute.xlu0 0
      %4425 = vperm.xlu0 %4424, %v3928
      %v4426 = vpop.permute.xlu0 %4425
      %4427 = vset.pattern.permute.xlu0 0
      %4428 = vperm.xlu0 %4427, %v3929
      %v4429 = vpop.permute.xlu0 %4428
      %4430 = vset.pattern.permute.xlu0 0
      %4431 = vperm.xlu0 %4430, %v3930
      %v4432 = vpop.permute.xlu0 %4431
      %4433 = vset.pattern.permute.xlu0 0
      %4434 = vperm.xlu0 %4433, %v3931
      %v4435 = vpop.permute.xlu0 %4434
      %4436 = vset.pattern.permute.xlu0 0
      %4437 = vperm.xlu0 %4436, %v3932
      %v4438 = vpop.permute.xlu0 %4437
      %4439 = vset.pattern.permute.xlu0 0
      %4440 = vperm.xlu0 %4439, %v3933
      %v4441 = vpop.permute.xlu0 %4440
      %4442 = vset.pattern.permute.xlu0 0
      %4443 = vperm.xlu0 %4442, %v3934
      %v4444 = vpop.permute.xlu0 %4443
      %4445 = vset.pattern.permute.xlu0 0
      %4446 = vperm.xlu0 %4445, %v3935
      %v4447 = vpop.permute.xlu0 %4446
      %4448 = vset.pattern.permute.xlu0 0
      %4449 = vperm.xlu0 %4448, %v3936
      %v4450 = vpop.permute.xlu0 %4449
      %4451 = vset.pattern.permute.xlu0 0
      %4452 = vperm.xlu0 %4451, %v3937
      %v4453 = vpop.permute.xlu0 %4452
      %4454 = vset.pattern.permute.xlu0 0
      %4455 = vperm.xlu0 %4454, %v3938
      %v4456 = vpop.permute.xlu0 %4455
      %v4457 = vlaneseq
      %v4458 = vshrl.u32 %v4457, 7
      %v4459 = vsub.s32 %v1187, %v4458
      %v4460 = vrot.slane %v4075, %v4459
      %v4461 = vlaneseq
      %v4462 = vshrl.u32 %v4461, 7
      %v4463 = vsub.s32 %v1192, %v4462
      %v4464 = vrot.slane %v4078, %v4463
      %v4465 = vsel %vm1197, %v4464, %v4460
      %v4466 = vlaneseq
      %v4467 = vshrl.u32 %v4466, 7
      %v4468 = vsub.s32 %v1199, %v4467
      %v4469 = vrot.slane %v4081, %v4468
      %v4470 = vsel %vm1204, %v4469, %v4465
      %v4471 = vlaneseq
      %v4472 = vshrl.u32 %v4471, 7
      %v4473 = vsub.s32 %v1206, %v4472
      %v4474 = vrot.slane %v4084, %v4473
      %v4475 = vsel %vm1211, %v4474, %v4470
      %v4476 = vlaneseq
      %v4477 = vshrl.u32 %v4476, 7
      %v4478 = vsub.s32 %v1187, %v4477
      %v4479 = vrot.slane %v4087, %v4478
      %v4480 = vlaneseq
      %v4481 = vshrl.u32 %v4480, 7
      %v4482 = vsub.s32 %v1192, %v4481
      %v4483 = vrot.slane %v4090, %v4482
      %v4484 = vsel %vm1197, %v4483, %v4479
      %v4485 = vlaneseq
      %v4486 = vshrl.u32 %v4485, 7
      %v4487 = vsub.s32 %v1199, %v4486
      %v4488 = vrot.slane %v4093, %v4487
      %v4489 = vsel %vm1204, %v4488, %v4484
      %v4490 = vlaneseq
      %v4491 = vshrl.u32 %v4490, 7
      %v4492 = vsub.s32 %v1206, %v4491
      %v4493 = vrot.slane %v4096, %v4492
      %v4494 = vsel %vm1211, %v4493, %v4489
      %v4495 = vlaneseq
      %v4496 = vshrl.u32 %v4495, 7
      %v4497 = vsub.s32 %v1187, %v4496
      %v4498 = vrot.slane %v4099, %v4497
      %v4499 = vlaneseq
      %v4500 = vshrl.u32 %v4499, 7
      %v4501 = vsub.s32 %v1192, %v4500
      %v4502 = vrot.slane %v4102, %v4501
      %v4503 = vsel %vm1197, %v4502, %v4498
      %v4504 = vlaneseq
      %v4505 = vshrl.u32 %v4504, 7
      %v4506 = vsub.s32 %v1199, %v4505
      %v4507 = vrot.slane %v4105, %v4506
      %v4508 = vsel %vm1204, %v4507, %v4503
      %v4509 = vlaneseq
      %v4510 = vshrl.u32 %v4509, 7
      %v4511 = vsub.s32 %v1206, %v4510
      %v4512 = vrot.slane %v4108, %v4511
      %v4513 = vsel %vm1211, %v4512, %v4508
      %v4514 = vlaneseq
      %v4515 = vshrl.u32 %v4514, 7
      %v4516 = vsub.s32 %v1187, %v4515
      %v4517 = vrot.slane %v4111, %v4516
      %v4518 = vlaneseq
      %v4519 = vshrl.u32 %v4518, 7
      %v4520 = vsub.s32 %v1192, %v4519
      %v4521 = vrot.slane %v4114, %v4520
      %v4522 = vsel %vm1197, %v4521, %v4517
      %v4523 = vlaneseq
      %v4524 = vshrl.u32 %v4523, 7
      %v4525 = vsub.s32 %v1199, %v4524
      %v4526 = vrot.slane %v4117, %v4525
      %v4527 = vsel %vm1204, %v4526, %v4522
      %v4528 = vlaneseq
      %v4529 = vshrl.u32 %v4528, 7
      %v4530 = vsub.s32 %v1206, %v4529
      %v4531 = vrot.slane %v4120, %v4530
      %v4532 = vsel %vm1211, %v4531, %v4527
      %v4533 = vlaneseq
      %v4534 = vshrl.u32 %v4533, 7
      %v4535 = vsub.s32 %v1187, %v4534
      %v4536 = vrot.slane %v4123, %v4535
      %v4537 = vlaneseq
      %v4538 = vshrl.u32 %v4537, 7
      %v4539 = vsub.s32 %v1192, %v4538
      %v4540 = vrot.slane %v4126, %v4539
      %v4541 = vsel %vm1197, %v4540, %v4536
      %v4542 = vlaneseq
      %v4543 = vshrl.u32 %v4542, 7
      %v4544 = vsub.s32 %v1199, %v4543
      %v4545 = vrot.slane %v4129, %v4544
      %v4546 = vsel %vm1204, %v4545, %v4541
      %v4547 = vlaneseq
      %v4548 = vshrl.u32 %v4547, 7
      %v4549 = vsub.s32 %v1206, %v4548
      %v4550 = vrot.slane %v4132, %v4549
      %v4551 = vsel %vm1211, %v4550, %v4546
      %v4552 = vlaneseq
      %v4553 = vshrl.u32 %v4552, 7
      %v4554 = vsub.s32 %v1187, %v4553
      %v4555 = vrot.slane %v4135, %v4554
      %v4556 = vlaneseq
      %v4557 = vshrl.u32 %v4556, 7
      %v4558 = vsub.s32 %v1192, %v4557
      %v4559 = vrot.slane %v4138, %v4558
      %v4560 = vsel %vm1197, %v4559, %v4555
      %v4561 = vlaneseq
      %v4562 = vshrl.u32 %v4561, 7
      %v4563 = vsub.s32 %v1199, %v4562
      %v4564 = vrot.slane %v4141, %v4563
      %v4565 = vsel %vm1204, %v4564, %v4560
      %v4566 = vlaneseq
      %v4567 = vshrl.u32 %v4566, 7
      %v4568 = vsub.s32 %v1206, %v4567
      %v4569 = vrot.slane %v4144, %v4568
      %v4570 = vsel %vm1211, %v4569, %v4565
      %v4571 = vlaneseq
      %v4572 = vshrl.u32 %v4571, 7
      %v4573 = vsub.s32 %v1187, %v4572
      %v4574 = vrot.slane %v4147, %v4573
      %v4575 = vlaneseq
      %v4576 = vshrl.u32 %v4575, 7
      %v4577 = vsub.s32 %v1192, %v4576
      %v4578 = vrot.slane %v4150, %v4577
      %v4579 = vsel %vm1197, %v4578, %v4574
      %v4580 = vlaneseq
      %v4581 = vshrl.u32 %v4580, 7
      %v4582 = vsub.s32 %v1199, %v4581
      %v4583 = vrot.slane %v4153, %v4582
      %v4584 = vsel %vm1204, %v4583, %v4579
      %v4585 = vlaneseq
      %v4586 = vshrl.u32 %v4585, 7
      %v4587 = vsub.s32 %v1206, %v4586
      %v4588 = vrot.slane %v4156, %v4587
      %v4589 = vsel %vm1211, %v4588, %v4584
      %v4590 = vlaneseq
      %v4591 = vshrl.u32 %v4590, 7
      %v4592 = vsub.s32 %v1187, %v4591
      %v4593 = vrot.slane %v4159, %v4592
      %v4594 = vlaneseq
      %v4595 = vshrl.u32 %v4594, 7
      %v4596 = vsub.s32 %v1192, %v4595
      %v4597 = vrot.slane %v4162, %v4596
      %v4598 = vsel %vm1197, %v4597, %v4593
      %v4599 = vlaneseq
      %v4600 = vshrl.u32 %v4599, 7
      %v4601 = vsub.s32 %v1199, %v4600
      %v4602 = vrot.slane %v4165, %v4601
      %v4603 = vsel %vm1204, %v4602, %v4598
      %v4604 = vlaneseq
      %v4605 = vshrl.u32 %v4604, 7
      %v4606 = vsub.s32 %v1206, %v4605
      %v4607 = vrot.slane %v4168, %v4606
      %v4608 = vsel %vm1211, %v4607, %v4603
      %v4609 = vlaneseq
      %v4610 = vshrl.u32 %v4609, 7
      %v4611 = vsub.s32 %v1187, %v4610
      %v4612 = vrot.slane %v4171, %v4611
      %v4613 = vlaneseq
      %v4614 = vshrl.u32 %v4613, 7
      %v4615 = vsub.s32 %v1192, %v4614
      %v4616 = vrot.slane %v4174, %v4615
      %v4617 = vsel %vm1197, %v4616, %v4612
      %v4618 = vlaneseq
      %v4619 = vshrl.u32 %v4618, 7
      %v4620 = vsub.s32 %v1199, %v4619
      %v4621 = vrot.slane %v4177, %v4620
      %v4622 = vsel %vm1204, %v4621, %v4617
      %v4623 = vlaneseq
      %v4624 = vshrl.u32 %v4623, 7
      %v4625 = vsub.s32 %v1206, %v4624
      %v4626 = vrot.slane %v4180, %v4625
      %v4627 = vsel %vm1211, %v4626, %v4622
      %v4628 = vlaneseq
      %v4629 = vshrl.u32 %v4628, 7
      %v4630 = vsub.s32 %v1187, %v4629
      %v4631 = vrot.slane %v4183, %v4630
      %v4632 = vlaneseq
      %v4633 = vshrl.u32 %v4632, 7
      %v4634 = vsub.s32 %v1192, %v4633
      %v4635 = vrot.slane %v4186, %v4634
      %v4636 = vsel %vm1197, %v4635, %v4631
      %v4637 = vlaneseq
      %v4638 = vshrl.u32 %v4637, 7
      %v4639 = vsub.s32 %v1199, %v4638
      %v4640 = vrot.slane %v4189, %v4639
      %v4641 = vsel %vm1204, %v4640, %v4636
      %v4642 = vlaneseq
      %v4643 = vshrl.u32 %v4642, 7
      %v4644 = vsub.s32 %v1206, %v4643
      %v4645 = vrot.slane %v4192, %v4644
      %v4646 = vsel %vm1211, %v4645, %v4641
      %v4647 = vlaneseq
      %v4648 = vshrl.u32 %v4647, 7
      %v4649 = vsub.s32 %v1187, %v4648
      %v4650 = vrot.slane %v4195, %v4649
      %v4651 = vlaneseq
      %v4652 = vshrl.u32 %v4651, 7
      %v4653 = vsub.s32 %v1192, %v4652
      %v4654 = vrot.slane %v4198, %v4653
      %v4655 = vsel %vm1197, %v4654, %v4650
      %v4656 = vlaneseq
      %v4657 = vshrl.u32 %v4656, 7
      %v4658 = vsub.s32 %v1199, %v4657
      %v4659 = vrot.slane %v4201, %v4658
      %v4660 = vsel %vm1204, %v4659, %v4655
      %v4661 = vlaneseq
      %v4662 = vshrl.u32 %v4661, 7
      %v4663 = vsub.s32 %v1206, %v4662
      %v4664 = vrot.slane %v4204, %v4663
      %v4665 = vsel %vm1211, %v4664, %v4660
      %v4666 = vlaneseq
      %v4667 = vshrl.u32 %v4666, 7
      %v4668 = vsub.s32 %v1187, %v4667
      %v4669 = vrot.slane %v4207, %v4668
      %v4670 = vlaneseq
      %v4671 = vshrl.u32 %v4670, 7
      %v4672 = vsub.s32 %v1192, %v4671
      %v4673 = vrot.slane %v4210, %v4672
      %v4674 = vsel %vm1197, %v4673, %v4669
      %v4675 = vlaneseq
      %v4676 = vshrl.u32 %v4675, 7
      %v4677 = vsub.s32 %v1199, %v4676
      %v4678 = vrot.slane %v4213, %v4677
      %v4679 = vsel %vm1204, %v4678, %v4674
      %v4680 = vlaneseq
      %v4681 = vshrl.u32 %v4680, 7
      %v4682 = vsub.s32 %v1206, %v4681
      %v4683 = vrot.slane %v4216, %v4682
      %v4684 = vsel %vm1211, %v4683, %v4679
      %v4685 = vlaneseq
      %v4686 = vshrl.u32 %v4685, 7
      %v4687 = vsub.s32 %v1187, %v4686
      %v4688 = vrot.slane %v4219, %v4687
      %v4689 = vlaneseq
      %v4690 = vshrl.u32 %v4689, 7
      %v4691 = vsub.s32 %v1192, %v4690
      %v4692 = vrot.slane %v4222, %v4691
      %v4693 = vsel %vm1197, %v4692, %v4688
      %v4694 = vlaneseq
      %v4695 = vshrl.u32 %v4694, 7
      %v4696 = vsub.s32 %v1199, %v4695
      %v4697 = vrot.slane %v4225, %v4696
      %v4698 = vsel %vm1204, %v4697, %v4693
      %v4699 = vlaneseq
      %v4700 = vshrl.u32 %v4699, 7
      %v4701 = vsub.s32 %v1206, %v4700
      %v4702 = vrot.slane %v4228, %v4701
      %v4703 = vsel %vm1211, %v4702, %v4698
      %v4704 = vlaneseq
      %v4705 = vshrl.u32 %v4704, 7
      %v4706 = vsub.s32 %v1187, %v4705
      %v4707 = vrot.slane %v4231, %v4706
      %v4708 = vlaneseq
      %v4709 = vshrl.u32 %v4708, 7
      %v4710 = vsub.s32 %v1192, %v4709
      %v4711 = vrot.slane %v4234, %v4710
      %v4712 = vsel %vm1197, %v4711, %v4707
      %v4713 = vlaneseq
      %v4714 = vshrl.u32 %v4713, 7
      %v4715 = vsub.s32 %v1199, %v4714
      %v4716 = vrot.slane %v4237, %v4715
      %v4717 = vsel %vm1204, %v4716, %v4712
      %v4718 = vlaneseq
      %v4719 = vshrl.u32 %v4718, 7
      %v4720 = vsub.s32 %v1206, %v4719
      %v4721 = vrot.slane %v4240, %v4720
      %v4722 = vsel %vm1211, %v4721, %v4717
      %v4723 = vlaneseq
      %v4724 = vshrl.u32 %v4723, 7
      %v4725 = vsub.s32 %v1187, %v4724
      %v4726 = vrot.slane %v4243, %v4725
      %v4727 = vlaneseq
      %v4728 = vshrl.u32 %v4727, 7
      %v4729 = vsub.s32 %v1192, %v4728
      %v4730 = vrot.slane %v4246, %v4729
      %v4731 = vsel %vm1197, %v4730, %v4726
      %v4732 = vlaneseq
      %v4733 = vshrl.u32 %v4732, 7
      %v4734 = vsub.s32 %v1199, %v4733
      %v4735 = vrot.slane %v4249, %v4734
      %v4736 = vsel %vm1204, %v4735, %v4731
      %v4737 = vlaneseq
      %v4738 = vshrl.u32 %v4737, 7
      %v4739 = vsub.s32 %v1206, %v4738
      %v4740 = vrot.slane %v4252, %v4739
      %v4741 = vsel %vm1211, %v4740, %v4736
      %v4742 = vlaneseq
      %v4743 = vshrl.u32 %v4742, 7
      %v4744 = vsub.s32 %v1187, %v4743
      %v4745 = vrot.slane %v4255, %v4744
      %v4746 = vlaneseq
      %v4747 = vshrl.u32 %v4746, 7
      %v4748 = vsub.s32 %v1192, %v4747
      %v4749 = vrot.slane %v4258, %v4748
      %v4750 = vsel %vm1197, %v4749, %v4745
      %v4751 = vlaneseq
      %v4752 = vshrl.u32 %v4751, 7
      %v4753 = vsub.s32 %v1199, %v4752
      %v4754 = vrot.slane %v4261, %v4753
      %v4755 = vsel %vm1204, %v4754, %v4750
      %v4756 = vlaneseq
      %v4757 = vshrl.u32 %v4756, 7
      %v4758 = vsub.s32 %v1206, %v4757
      %v4759 = vrot.slane %v4264, %v4758
      %v4760 = vsel %vm1211, %v4759, %v4755
      %v4761 = vlaneseq
      %v4762 = vshrl.u32 %v4761, 7
      %v4763 = vsub.s32 %v1187, %v4762
      %v4764 = vrot.slane %v4267, %v4763
      %v4765 = vlaneseq
      %v4766 = vshrl.u32 %v4765, 7
      %v4767 = vsub.s32 %v1192, %v4766
      %v4768 = vrot.slane %v4270, %v4767
      %v4769 = vsel %vm1197, %v4768, %v4764
      %v4770 = vlaneseq
      %v4771 = vshrl.u32 %v4770, 7
      %v4772 = vsub.s32 %v1199, %v4771
      %v4773 = vrot.slane %v4273, %v4772
      %v4774 = vsel %vm1204, %v4773, %v4769
      %v4775 = vlaneseq
      %v4776 = vshrl.u32 %v4775, 7
      %v4777 = vsub.s32 %v1206, %v4776
      %v4778 = vrot.slane %v4276, %v4777
      %v4779 = vsel %vm1211, %v4778, %v4774
      %v4780 = vlaneseq
      %v4781 = vshrl.u32 %v4780, 7
      %v4782 = vsub.s32 %v1187, %v4781
      %v4783 = vrot.slane %v4279, %v4782
      %v4784 = vlaneseq
      %v4785 = vshrl.u32 %v4784, 7
      %v4786 = vsub.s32 %v1192, %v4785
      %v4787 = vrot.slane %v4282, %v4786
      %v4788 = vsel %vm1197, %v4787, %v4783
      %v4789 = vlaneseq
      %v4790 = vshrl.u32 %v4789, 7
      %v4791 = vsub.s32 %v1199, %v4790
      %v4792 = vrot.slane %v4285, %v4791
      %v4793 = vsel %vm1204, %v4792, %v4788
      %v4794 = vlaneseq
      %v4795 = vshrl.u32 %v4794, 7
      %v4796 = vsub.s32 %v1206, %v4795
      %v4797 = vrot.slane %v4288, %v4796
      %v4798 = vsel %vm1211, %v4797, %v4793
      %v4799 = vlaneseq
      %v4800 = vshrl.u32 %v4799, 7
      %v4801 = vsub.s32 %v1187, %v4800
      %v4802 = vrot.slane %v4291, %v4801
      %v4803 = vlaneseq
      %v4804 = vshrl.u32 %v4803, 7
      %v4805 = vsub.s32 %v1192, %v4804
      %v4806 = vrot.slane %v4294, %v4805
      %v4807 = vsel %vm1197, %v4806, %v4802
      %v4808 = vlaneseq
      %v4809 = vshrl.u32 %v4808, 7
      %v4810 = vsub.s32 %v1199, %v4809
      %v4811 = vrot.slane %v4297, %v4810
      %v4812 = vsel %vm1204, %v4811, %v4807
      %v4813 = vlaneseq
      %v4814 = vshrl.u32 %v4813, 7
      %v4815 = vsub.s32 %v1206, %v4814
      %v4816 = vrot.slane %v4300, %v4815
      %v4817 = vsel %vm1211, %v4816, %v4812
      %v4818 = vlaneseq
      %v4819 = vshrl.u32 %v4818, 7
      %v4820 = vsub.s32 %v1187, %v4819
      %v4821 = vrot.slane %v4303, %v4820
      %v4822 = vlaneseq
      %v4823 = vshrl.u32 %v4822, 7
      %v4824 = vsub.s32 %v1192, %v4823
      %v4825 = vrot.slane %v4306, %v4824
      %v4826 = vsel %vm1197, %v4825, %v4821
      %v4827 = vlaneseq
      %v4828 = vshrl.u32 %v4827, 7
      %v4829 = vsub.s32 %v1199, %v4828
      %v4830 = vrot.slane %v4309, %v4829
      %v4831 = vsel %vm1204, %v4830, %v4826
      %v4832 = vlaneseq
      %v4833 = vshrl.u32 %v4832, 7
      %v4834 = vsub.s32 %v1206, %v4833
      %v4835 = vrot.slane %v4312, %v4834
      %v4836 = vsel %vm1211, %v4835, %v4831
      %v4837 = vlaneseq
      %v4838 = vshrl.u32 %v4837, 7
      %v4839 = vsub.s32 %v1187, %v4838
      %v4840 = vrot.slane %v4315, %v4839
      %v4841 = vlaneseq
      %v4842 = vshrl.u32 %v4841, 7
      %v4843 = vsub.s32 %v1192, %v4842
      %v4844 = vrot.slane %v4318, %v4843
      %v4845 = vsel %vm1197, %v4844, %v4840
      %v4846 = vlaneseq
      %v4847 = vshrl.u32 %v4846, 7
      %v4848 = vsub.s32 %v1199, %v4847
      %v4849 = vrot.slane %v4321, %v4848
      %v4850 = vsel %vm1204, %v4849, %v4845
      %v4851 = vlaneseq
      %v4852 = vshrl.u32 %v4851, 7
      %v4853 = vsub.s32 %v1206, %v4852
      %v4854 = vrot.slane %v4324, %v4853
      %v4855 = vsel %vm1211, %v4854, %v4850
      %v4856 = vlaneseq
      %v4857 = vshrl.u32 %v4856, 7
      %v4858 = vsub.s32 %v1187, %v4857
      %v4859 = vrot.slane %v4327, %v4858
      %v4860 = vlaneseq
      %v4861 = vshrl.u32 %v4860, 7
      %v4862 = vsub.s32 %v1192, %v4861
      %v4863 = vrot.slane %v4330, %v4862
      %v4864 = vsel %vm1197, %v4863, %v4859
      %v4865 = vlaneseq
      %v4866 = vshrl.u32 %v4865, 7
      %v4867 = vsub.s32 %v1199, %v4866
      %v4868 = vrot.slane %v4333, %v4867
      %v4869 = vsel %vm1204, %v4868, %v4864
      %v4870 = vlaneseq
      %v4871 = vshrl.u32 %v4870, 7
      %v4872 = vsub.s32 %v1206, %v4871
      %v4873 = vrot.slane %v4336, %v4872
      %v4874 = vsel %vm1211, %v4873, %v4869
      %v4875 = vlaneseq
      %v4876 = vshrl.u32 %v4875, 7
      %v4877 = vsub.s32 %v1187, %v4876
      %v4878 = vrot.slane %v4339, %v4877
      %v4879 = vlaneseq
      %v4880 = vshrl.u32 %v4879, 7
      %v4881 = vsub.s32 %v1192, %v4880
      %v4882 = vrot.slane %v4342, %v4881
      %v4883 = vsel %vm1197, %v4882, %v4878
      %v4884 = vlaneseq
      %v4885 = vshrl.u32 %v4884, 7
      %v4886 = vsub.s32 %v1199, %v4885
      %v4887 = vrot.slane %v4345, %v4886
      %v4888 = vsel %vm1204, %v4887, %v4883
      %v4889 = vlaneseq
      %v4890 = vshrl.u32 %v4889, 7
      %v4891 = vsub.s32 %v1206, %v4890
      %v4892 = vrot.slane %v4348, %v4891
      %v4893 = vsel %vm1211, %v4892, %v4888
      %v4894 = vlaneseq
      %v4895 = vshrl.u32 %v4894, 7
      %v4896 = vsub.s32 %v1187, %v4895
      %v4897 = vrot.slane %v4351, %v4896
      %v4898 = vlaneseq
      %v4899 = vshrl.u32 %v4898, 7
      %v4900 = vsub.s32 %v1192, %v4899
      %v4901 = vrot.slane %v4354, %v4900
      %v4902 = vsel %vm1197, %v4901, %v4897
      %v4903 = vlaneseq
      %v4904 = vshrl.u32 %v4903, 7
      %v4905 = vsub.s32 %v1199, %v4904
      %v4906 = vrot.slane %v4357, %v4905
      %v4907 = vsel %vm1204, %v4906, %v4902
      %v4908 = vlaneseq
      %v4909 = vshrl.u32 %v4908, 7
      %v4910 = vsub.s32 %v1206, %v4909
      %v4911 = vrot.slane %v4360, %v4910
      %v4912 = vsel %vm1211, %v4911, %v4907
      %v4913 = vlaneseq
      %v4914 = vshrl.u32 %v4913, 7
      %v4915 = vsub.s32 %v1187, %v4914
      %v4916 = vrot.slane %v4363, %v4915
      %v4917 = vlaneseq
      %v4918 = vshrl.u32 %v4917, 7
      %v4919 = vsub.s32 %v1192, %v4918
      %v4920 = vrot.slane %v4366, %v4919
      %v4921 = vsel %vm1197, %v4920, %v4916
      %v4922 = vlaneseq
      %v4923 = vshrl.u32 %v4922, 7
      %v4924 = vsub.s32 %v1199, %v4923
      %v4925 = vrot.slane %v4369, %v4924
      %v4926 = vsel %vm1204, %v4925, %v4921
      %v4927 = vlaneseq
      %v4928 = vshrl.u32 %v4927, 7
      %v4929 = vsub.s32 %v1206, %v4928
      %v4930 = vrot.slane %v4372, %v4929
      %v4931 = vsel %vm1211, %v4930, %v4926
      %v4932 = vlaneseq
      %v4933 = vshrl.u32 %v4932, 7
      %v4934 = vsub.s32 %v1187, %v4933
      %v4935 = vrot.slane %v4375, %v4934
      %v4936 = vlaneseq
      %v4937 = vshrl.u32 %v4936, 7
      %v4938 = vsub.s32 %v1192, %v4937
      %v4939 = vrot.slane %v4378, %v4938
      %v4940 = vsel %vm1197, %v4939, %v4935
      %v4941 = vlaneseq
      %v4942 = vshrl.u32 %v4941, 7
      %v4943 = vsub.s32 %v1199, %v4942
      %v4944 = vrot.slane %v4381, %v4943
      %v4945 = vsel %vm1204, %v4944, %v4940
      %v4946 = vlaneseq
      %v4947 = vshrl.u32 %v4946, 7
      %v4948 = vsub.s32 %v1206, %v4947
      %v4949 = vrot.slane %v4384, %v4948
      %v4950 = vsel %vm1211, %v4949, %v4945
      %v4951 = vlaneseq
      %v4952 = vshrl.u32 %v4951, 7
      %v4953 = vsub.s32 %v1187, %v4952
      %v4954 = vrot.slane %v4387, %v4953
      %v4955 = vlaneseq
      %v4956 = vshrl.u32 %v4955, 7
      %v4957 = vsub.s32 %v1192, %v4956
      %v4958 = vrot.slane %v4390, %v4957
      %v4959 = vsel %vm1197, %v4958, %v4954
      %v4960 = vlaneseq
      %v4961 = vshrl.u32 %v4960, 7
      %v4962 = vsub.s32 %v1199, %v4961
      %v4963 = vrot.slane %v4393, %v4962
      %v4964 = vsel %vm1204, %v4963, %v4959
      %v4965 = vlaneseq
      %v4966 = vshrl.u32 %v4965, 7
      %v4967 = vsub.s32 %v1206, %v4966
      %v4968 = vrot.slane %v4396, %v4967
      %v4969 = vsel %vm1211, %v4968, %v4964
      %v4970 = vlaneseq
      %v4971 = vshrl.u32 %v4970, 7
      %v4972 = vsub.s32 %v1187, %v4971
      %v4973 = vrot.slane %v4399, %v4972
      %v4974 = vlaneseq
      %v4975 = vshrl.u32 %v4974, 7
      %v4976 = vsub.s32 %v1192, %v4975
      %v4977 = vrot.slane %v4402, %v4976
      %v4978 = vsel %vm1197, %v4977, %v4973
      %v4979 = vlaneseq
      %v4980 = vshrl.u32 %v4979, 7
      %v4981 = vsub.s32 %v1199, %v4980
      %v4982 = vrot.slane %v4405, %v4981
      %v4983 = vsel %vm1204, %v4982, %v4978
      %v4984 = vlaneseq
      %v4985 = vshrl.u32 %v4984, 7
      %v4986 = vsub.s32 %v1206, %v4985
      %v4987 = vrot.slane %v4408, %v4986
      %v4988 = vsel %vm1211, %v4987, %v4983
      %v4989 = vlaneseq
      %v4990 = vshrl.u32 %v4989, 7
      %v4991 = vsub.s32 %v1187, %v4990
      %v4992 = vrot.slane %v4411, %v4991
      %v4993 = vlaneseq
      %v4994 = vshrl.u32 %v4993, 7
      %v4995 = vsub.s32 %v1192, %v4994
      %v4996 = vrot.slane %v4414, %v4995
      %v4997 = vsel %vm1197, %v4996, %v4992
      %v4998 = vlaneseq
      %v4999 = vshrl.u32 %v4998, 7
      %v5000 = vsub.s32 %v1199, %v4999
      %v5001 = vrot.slane %v4417, %v5000
      %v5002 = vsel %vm1204, %v5001, %v4997
      %v5003 = vlaneseq
      %v5004 = vshrl.u32 %v5003, 7
      %v5005 = vsub.s32 %v1206, %v5004
      %v5006 = vrot.slane %v4420, %v5005
      %v5007 = vsel %vm1211, %v5006, %v5002
      %v5008 = vlaneseq
      %v5009 = vshrl.u32 %v5008, 7
      %v5010 = vsub.s32 %v1187, %v5009
      %v5011 = vrot.slane %v4423, %v5010
      %v5012 = vlaneseq
      %v5013 = vshrl.u32 %v5012, 7
      %v5014 = vsub.s32 %v1192, %v5013
      %v5015 = vrot.slane %v4426, %v5014
      %v5016 = vsel %vm1197, %v5015, %v5011
      %v5017 = vlaneseq
      %v5018 = vshrl.u32 %v5017, 7
      %v5019 = vsub.s32 %v1199, %v5018
      %v5020 = vrot.slane %v4429, %v5019
      %v5021 = vsel %vm1204, %v5020, %v5016
      %v5022 = vlaneseq
      %v5023 = vshrl.u32 %v5022, 7
      %v5024 = vsub.s32 %v1206, %v5023
      %v5025 = vrot.slane %v4432, %v5024
      %v5026 = vsel %vm1211, %v5025, %v5021
      %v5027 = vlaneseq
      %v5028 = vshrl.u32 %v5027, 7
      %v5029 = vsub.s32 %v1187, %v5028
      %v5030 = vrot.slane %v4435, %v5029
      %v5031 = vlaneseq
      %v5032 = vshrl.u32 %v5031, 7
      %v5033 = vsub.s32 %v1192, %v5032
      %v5034 = vrot.slane %v4438, %v5033
      %v5035 = vsel %vm1197, %v5034, %v5030
      %v5036 = vlaneseq
      %v5037 = vshrl.u32 %v5036, 7
      %v5038 = vsub.s32 %v1199, %v5037
      %v5039 = vrot.slane %v4441, %v5038
      %v5040 = vsel %vm1204, %v5039, %v5035
      %v5041 = vlaneseq
      %v5042 = vshrl.u32 %v5041, 7
      %v5043 = vsub.s32 %v1206, %v5042
      %v5044 = vrot.slane %v4444, %v5043
      %v5045 = vsel %vm1211, %v5044, %v5040
      %v5046 = vlaneseq
      %v5047 = vshrl.u32 %v5046, 7
      %v5048 = vsub.s32 %v1187, %v5047
      %v5049 = vrot.slane %v4447, %v5048
      %v5050 = vlaneseq
      %v5051 = vshrl.u32 %v5050, 7
      %v5052 = vsub.s32 %v1192, %v5051
      %v5053 = vrot.slane %v4450, %v5052
      %v5054 = vsel %vm1197, %v5053, %v5049
      %v5055 = vlaneseq
      %v5056 = vshrl.u32 %v5055, 7
      %v5057 = vsub.s32 %v1199, %v5056
      %v5058 = vrot.slane %v4453, %v5057
      %v5059 = vsel %vm1204, %v5058, %v5054
      %v5060 = vlaneseq
      %v5061 = vshrl.u32 %v5060, 7
      %v5062 = vsub.s32 %v1206, %v5061
      %v5063 = vrot.slane %v4456, %v5062
      %v5064 = vsel %vm1211, %v5063, %v5059
      %v5065 = vsel %vm1802, %v4494, %v4475
      %v5066 = vsel %vm1804, %v4513, %v5065
      %v5067 = vsel %vm1806, %v4532, %v5066
      %v5068 = vsel %vm1808, %v4551, %v5067
      %v5069 = vsel %vm1810, %v4570, %v5068
      %v5070 = vsel %vm1812, %v4589, %v5069
      %v5071 = vsel %vm1814, %v4608, %v5070
      %v5072 = vsel %vm1802, %v4646, %v4627
      %v5073 = vsel %vm1804, %v4665, %v5072
      %v5074 = vsel %vm1806, %v4684, %v5073
      %v5075 = vsel %vm1808, %v4703, %v5074
      %v5076 = vsel %vm1810, %v4722, %v5075
      %v5077 = vsel %vm1812, %v4741, %v5076
      %v5078 = vsel %vm1814, %v4760, %v5077
      %v5079 = vsel %vm1802, %v4798, %v4779
      %v5080 = vsel %vm1804, %v4817, %v5079
      %v5081 = vsel %vm1806, %v4836, %v5080
      %v5082 = vsel %vm1808, %v4855, %v5081
      %v5083 = vsel %vm1810, %v4874, %v5082
      %v5084 = vsel %vm1812, %v4893, %v5083
      %v5085 = vsel %vm1814, %v4912, %v5084
      %v5086 = vsel %vm1802, %v4950, %v4931
      %v5087 = vsel %vm1804, %v4969, %v5086
      %v5088 = vsel %vm1806, %v4988, %v5087
      %v5089 = vsel %vm1808, %v5007, %v5088
      %v5090 = vsel %vm1810, %v5026, %v5089
      %v5091 = vsel %vm1812, %v5045, %v5090
      %v5092 = vsel %vm1814, %v5064, %v5091
      %v5097 = vmul.f32 %v3943, %v5071
      %v5098 = vmul.f32 %v3943, %v5078
      %v5099 = vmul.f32 %v3943, %v5085
      %v5100 = vmul.f32 %v3943, %v5092
      %v5101 = vlaneseq
      %v5102 = vshrl.u32 %v5101, 7
      %v5103 = vsub.s32 0, %v5102
      %v5104 = vrot.slane %v5097, %v5103
      %5106 = vbcast.lane.b32.xlu0 %v5104, 256
      %v5107 = vpop.permute.xlu0 %5106
      %s5109 = sor.u32 256, 8
      %5110 = vbcast.lane.b32.xlu0 %v5104, %s5109
      %v5111 = vpop.permute.xlu0 %5110
      %s5113 = sor.u32 256, 16
      %5114 = vbcast.lane.b32.xlu0 %v5104, %s5113
      %v5115 = vpop.permute.xlu0 %5114
      %s5117 = sor.u32 256, 24
      %5118 = vbcast.lane.b32.xlu0 %v5104, %s5117
      %v5119 = vpop.permute.xlu0 %5118
      %v5120 = vlaneseq
      %v5121 = vshrl.u32 %v5120, 7
      %v5122 = vsub.s32 1, %v5121
      %v5123 = vrot.slane %v5097, %v5122
      %5125 = vbcast.lane.b32.xlu0 %v5123, 256
      %v5126 = vpop.permute.xlu0 %5125
      %s5128 = sor.u32 256, 8
      %5129 = vbcast.lane.b32.xlu0 %v5123, %s5128
      %v5130 = vpop.permute.xlu0 %5129
      %s5132 = sor.u32 256, 16
      %5133 = vbcast.lane.b32.xlu0 %v5123, %s5132
      %v5134 = vpop.permute.xlu0 %5133
      %s5136 = sor.u32 256, 24
      %5137 = vbcast.lane.b32.xlu0 %v5123, %s5136
      %v5138 = vpop.permute.xlu0 %5137
      %v5139 = vlaneseq
      %v5140 = vshrl.u32 %v5139, 7
      %v5141 = vsub.s32 2, %v5140
      %v5142 = vrot.slane %v5097, %v5141
      %5144 = vbcast.lane.b32.xlu0 %v5142, 256
      %v5145 = vpop.permute.xlu0 %5144
      %s5147 = sor.u32 256, 8
      %5148 = vbcast.lane.b32.xlu0 %v5142, %s5147
      %v5149 = vpop.permute.xlu0 %5148
      %s5151 = sor.u32 256, 16
      %5152 = vbcast.lane.b32.xlu0 %v5142, %s5151
      %v5153 = vpop.permute.xlu0 %5152
      %s5155 = sor.u32 256, 24
      %5156 = vbcast.lane.b32.xlu0 %v5142, %s5155
      %v5157 = vpop.permute.xlu0 %5156
      %v5158 = vlaneseq
      %v5159 = vshrl.u32 %v5158, 7
      %v5160 = vsub.s32 3, %v5159
      %v5161 = vrot.slane %v5097, %v5160
      %5163 = vbcast.lane.b32.xlu0 %v5161, 256
      %v5164 = vpop.permute.xlu0 %5163
      %s5166 = sor.u32 256, 8
      %5167 = vbcast.lane.b32.xlu0 %v5161, %s5166
      %v5168 = vpop.permute.xlu0 %5167
      %s5170 = sor.u32 256, 16
      %5171 = vbcast.lane.b32.xlu0 %v5161, %s5170
      %v5172 = vpop.permute.xlu0 %5171
      %s5174 = sor.u32 256, 24
      %5175 = vbcast.lane.b32.xlu0 %v5161, %s5174
      %v5176 = vpop.permute.xlu0 %5175
      %v5177 = vlaneseq
      %v5178 = vshrl.u32 %v5177, 7
      %v5179 = vsub.s32 4, %v5178
      %v5180 = vrot.slane %v5097, %v5179
      %5182 = vbcast.lane.b32.xlu0 %v5180, 256
      %v5183 = vpop.permute.xlu0 %5182
      %s5185 = sor.u32 256, 8
      %5186 = vbcast.lane.b32.xlu0 %v5180, %s5185
      %v5187 = vpop.permute.xlu0 %5186
      %s5189 = sor.u32 256, 16
      %5190 = vbcast.lane.b32.xlu0 %v5180, %s5189
      %v5191 = vpop.permute.xlu0 %5190
      %s5193 = sor.u32 256, 24
      %5194 = vbcast.lane.b32.xlu0 %v5180, %s5193
      %v5195 = vpop.permute.xlu0 %5194
      %v5196 = vlaneseq
      %v5197 = vshrl.u32 %v5196, 7
      %v5198 = vsub.s32 5, %v5197
      %v5199 = vrot.slane %v5097, %v5198
      %5201 = vbcast.lane.b32.xlu0 %v5199, 256
      %v5202 = vpop.permute.xlu0 %5201
      %s5204 = sor.u32 256, 8
      %5205 = vbcast.lane.b32.xlu0 %v5199, %s5204
      %v5206 = vpop.permute.xlu0 %5205
      %s5208 = sor.u32 256, 16
      %5209 = vbcast.lane.b32.xlu0 %v5199, %s5208
      %v5210 = vpop.permute.xlu0 %5209
      %s5212 = sor.u32 256, 24
      %5213 = vbcast.lane.b32.xlu0 %v5199, %s5212
      %v5214 = vpop.permute.xlu0 %5213
      %v5215 = vlaneseq
      %v5216 = vshrl.u32 %v5215, 7
      %v5217 = vsub.s32 6, %v5216
      %v5218 = vrot.slane %v5097, %v5217
      %5220 = vbcast.lane.b32.xlu0 %v5218, 256
      %v5221 = vpop.permute.xlu0 %5220
      %s5223 = sor.u32 256, 8
      %5224 = vbcast.lane.b32.xlu0 %v5218, %s5223
      %v5225 = vpop.permute.xlu0 %5224
      %s5227 = sor.u32 256, 16
      %5228 = vbcast.lane.b32.xlu0 %v5218, %s5227
      %v5229 = vpop.permute.xlu0 %5228
      %s5231 = sor.u32 256, 24
      %5232 = vbcast.lane.b32.xlu0 %v5218, %s5231
      %v5233 = vpop.permute.xlu0 %5232
      %v5234 = vlaneseq
      %v5235 = vshrl.u32 %v5234, 7
      %v5236 = vsub.s32 7, %v5235
      %v5237 = vrot.slane %v5097, %v5236
      %5239 = vbcast.lane.b32.xlu0 %v5237, 256
      %v5240 = vpop.permute.xlu0 %5239
      %s5242 = sor.u32 256, 8
      %5243 = vbcast.lane.b32.xlu0 %v5237, %s5242
      %v5244 = vpop.permute.xlu0 %5243
      %s5246 = sor.u32 256, 16
      %5247 = vbcast.lane.b32.xlu0 %v5237, %s5246
      %v5248 = vpop.permute.xlu0 %5247
      %s5250 = sor.u32 256, 24
      %5251 = vbcast.lane.b32.xlu0 %v5237, %s5250
      %v5252 = vpop.permute.xlu0 %5251
      %v5253 = vlaneseq
      %v5254 = vshrl.u32 %v5253, 7
      %v5255 = vsub.s32 0, %v5254
      %v5256 = vrot.slane %v5098, %v5255
      %5258 = vbcast.lane.b32.xlu0 %v5256, 256
      %v5259 = vpop.permute.xlu0 %5258
      %s5261 = sor.u32 256, 8
      %5262 = vbcast.lane.b32.xlu0 %v5256, %s5261
      %v5263 = vpop.permute.xlu0 %5262
      %s5265 = sor.u32 256, 16
      %5266 = vbcast.lane.b32.xlu0 %v5256, %s5265
      %v5267 = vpop.permute.xlu0 %5266
      %s5269 = sor.u32 256, 24
      %5270 = vbcast.lane.b32.xlu0 %v5256, %s5269
      %v5271 = vpop.permute.xlu0 %5270
      %v5272 = vlaneseq
      %v5273 = vshrl.u32 %v5272, 7
      %v5274 = vsub.s32 1, %v5273
      %v5275 = vrot.slane %v5098, %v5274
      %5277 = vbcast.lane.b32.xlu0 %v5275, 256
      %v5278 = vpop.permute.xlu0 %5277
      %s5280 = sor.u32 256, 8
      %5281 = vbcast.lane.b32.xlu0 %v5275, %s5280
      %v5282 = vpop.permute.xlu0 %5281
      %s5284 = sor.u32 256, 16
      %5285 = vbcast.lane.b32.xlu0 %v5275, %s5284
      %v5286 = vpop.permute.xlu0 %5285
      %s5288 = sor.u32 256, 24
      %5289 = vbcast.lane.b32.xlu0 %v5275, %s5288
      %v5290 = vpop.permute.xlu0 %5289
      %v5291 = vlaneseq
      %v5292 = vshrl.u32 %v5291, 7
      %v5293 = vsub.s32 2, %v5292
      %v5294 = vrot.slane %v5098, %v5293
      %5296 = vbcast.lane.b32.xlu0 %v5294, 256
      %v5297 = vpop.permute.xlu0 %5296
      %s5299 = sor.u32 256, 8
      %5300 = vbcast.lane.b32.xlu0 %v5294, %s5299
      %v5301 = vpop.permute.xlu0 %5300
      %s5303 = sor.u32 256, 16
      %5304 = vbcast.lane.b32.xlu0 %v5294, %s5303
      %v5305 = vpop.permute.xlu0 %5304
      %s5307 = sor.u32 256, 24
      %5308 = vbcast.lane.b32.xlu0 %v5294, %s5307
      %v5309 = vpop.permute.xlu0 %5308
      %v5310 = vlaneseq
      %v5311 = vshrl.u32 %v5310, 7
      %v5312 = vsub.s32 3, %v5311
      %v5313 = vrot.slane %v5098, %v5312
      %5315 = vbcast.lane.b32.xlu0 %v5313, 256
      %v5316 = vpop.permute.xlu0 %5315
      %s5318 = sor.u32 256, 8
      %5319 = vbcast.lane.b32.xlu0 %v5313, %s5318
      %v5320 = vpop.permute.xlu0 %5319
      %s5322 = sor.u32 256, 16
      %5323 = vbcast.lane.b32.xlu0 %v5313, %s5322
      %v5324 = vpop.permute.xlu0 %5323
      %s5326 = sor.u32 256, 24
      %5327 = vbcast.lane.b32.xlu0 %v5313, %s5326
      %v5328 = vpop.permute.xlu0 %5327
      %v5329 = vlaneseq
      %v5330 = vshrl.u32 %v5329, 7
      %v5331 = vsub.s32 4, %v5330
      %v5332 = vrot.slane %v5098, %v5331
      %5334 = vbcast.lane.b32.xlu0 %v5332, 256
      %v5335 = vpop.permute.xlu0 %5334
      %s5337 = sor.u32 256, 8
      %5338 = vbcast.lane.b32.xlu0 %v5332, %s5337
      %v5339 = vpop.permute.xlu0 %5338
      %s5341 = sor.u32 256, 16
      %5342 = vbcast.lane.b32.xlu0 %v5332, %s5341
      %v5343 = vpop.permute.xlu0 %5342
      %s5345 = sor.u32 256, 24
      %5346 = vbcast.lane.b32.xlu0 %v5332, %s5345
      %v5347 = vpop.permute.xlu0 %5346
      %v5348 = vlaneseq
      %v5349 = vshrl.u32 %v5348, 7
      %v5350 = vsub.s32 5, %v5349
      %v5351 = vrot.slane %v5098, %v5350
      %5353 = vbcast.lane.b32.xlu0 %v5351, 256
      %v5354 = vpop.permute.xlu0 %5353
      %s5356 = sor.u32 256, 8
      %5357 = vbcast.lane.b32.xlu0 %v5351, %s5356
      %v5358 = vpop.permute.xlu0 %5357
      %s5360 = sor.u32 256, 16
      %5361 = vbcast.lane.b32.xlu0 %v5351, %s5360
      %v5362 = vpop.permute.xlu0 %5361
      %s5364 = sor.u32 256, 24
      %5365 = vbcast.lane.b32.xlu0 %v5351, %s5364
      %v5366 = vpop.permute.xlu0 %5365
      %v5367 = vlaneseq
      %v5368 = vshrl.u32 %v5367, 7
      %v5369 = vsub.s32 6, %v5368
      %v5370 = vrot.slane %v5098, %v5369
      %5372 = vbcast.lane.b32.xlu0 %v5370, 256
      %v5373 = vpop.permute.xlu0 %5372
      %s5375 = sor.u32 256, 8
      %5376 = vbcast.lane.b32.xlu0 %v5370, %s5375
      %v5377 = vpop.permute.xlu0 %5376
      %s5379 = sor.u32 256, 16
      %5380 = vbcast.lane.b32.xlu0 %v5370, %s5379
      %v5381 = vpop.permute.xlu0 %5380
      %s5383 = sor.u32 256, 24
      %5384 = vbcast.lane.b32.xlu0 %v5370, %s5383
      %v5385 = vpop.permute.xlu0 %5384
      %v5386 = vlaneseq
      %v5387 = vshrl.u32 %v5386, 7
      %v5388 = vsub.s32 7, %v5387
      %v5389 = vrot.slane %v5098, %v5388
      %5391 = vbcast.lane.b32.xlu0 %v5389, 256
      %v5392 = vpop.permute.xlu0 %5391
      %s5394 = sor.u32 256, 8
      %5395 = vbcast.lane.b32.xlu0 %v5389, %s5394
      %v5396 = vpop.permute.xlu0 %5395
      %s5398 = sor.u32 256, 16
      %5399 = vbcast.lane.b32.xlu0 %v5389, %s5398
      %v5400 = vpop.permute.xlu0 %5399
      %s5402 = sor.u32 256, 24
      %5403 = vbcast.lane.b32.xlu0 %v5389, %s5402
      %v5404 = vpop.permute.xlu0 %5403
      %v5405 = vlaneseq
      %v5406 = vshrl.u32 %v5405, 7
      %v5407 = vsub.s32 0, %v5406
      %v5408 = vrot.slane %v5099, %v5407
      %5410 = vbcast.lane.b32.xlu0 %v5408, 256
      %v5411 = vpop.permute.xlu0 %5410
      %s5413 = sor.u32 256, 8
      %5414 = vbcast.lane.b32.xlu0 %v5408, %s5413
      %v5415 = vpop.permute.xlu0 %5414
      %s5417 = sor.u32 256, 16
      %5418 = vbcast.lane.b32.xlu0 %v5408, %s5417
      %v5419 = vpop.permute.xlu0 %5418
      %s5421 = sor.u32 256, 24
      %5422 = vbcast.lane.b32.xlu0 %v5408, %s5421
      %v5423 = vpop.permute.xlu0 %5422
      %v5424 = vlaneseq
      %v5425 = vshrl.u32 %v5424, 7
      %v5426 = vsub.s32 1, %v5425
      %v5427 = vrot.slane %v5099, %v5426
      %5429 = vbcast.lane.b32.xlu0 %v5427, 256
      %v5430 = vpop.permute.xlu0 %5429
      %s5432 = sor.u32 256, 8
      %5433 = vbcast.lane.b32.xlu0 %v5427, %s5432
      %v5434 = vpop.permute.xlu0 %5433
      %s5436 = sor.u32 256, 16
      %5437 = vbcast.lane.b32.xlu0 %v5427, %s5436
      %v5438 = vpop.permute.xlu0 %5437
      %s5440 = sor.u32 256, 24
      %5441 = vbcast.lane.b32.xlu0 %v5427, %s5440
      %v5442 = vpop.permute.xlu0 %5441
      %v5443 = vlaneseq
      %v5444 = vshrl.u32 %v5443, 7
      %v5445 = vsub.s32 2, %v5444
      %v5446 = vrot.slane %v5099, %v5445
      %5448 = vbcast.lane.b32.xlu0 %v5446, 256
      %v5449 = vpop.permute.xlu0 %5448
      %s5451 = sor.u32 256, 8
      %5452 = vbcast.lane.b32.xlu0 %v5446, %s5451
      %v5453 = vpop.permute.xlu0 %5452
      %s5455 = sor.u32 256, 16
      %5456 = vbcast.lane.b32.xlu0 %v5446, %s5455
      %v5457 = vpop.permute.xlu0 %5456
      %s5459 = sor.u32 256, 24
      %5460 = vbcast.lane.b32.xlu0 %v5446, %s5459
      %v5461 = vpop.permute.xlu0 %5460
      %v5462 = vlaneseq
      %v5463 = vshrl.u32 %v5462, 7
      %v5464 = vsub.s32 3, %v5463
      %v5465 = vrot.slane %v5099, %v5464
      %5467 = vbcast.lane.b32.xlu0 %v5465, 256
      %v5468 = vpop.permute.xlu0 %5467
      %s5470 = sor.u32 256, 8
      %5471 = vbcast.lane.b32.xlu0 %v5465, %s5470
      %v5472 = vpop.permute.xlu0 %5471
      %s5474 = sor.u32 256, 16
      %5475 = vbcast.lane.b32.xlu0 %v5465, %s5474
      %v5476 = vpop.permute.xlu0 %5475
      %s5478 = sor.u32 256, 24
      %5479 = vbcast.lane.b32.xlu0 %v5465, %s5478
      %v5480 = vpop.permute.xlu0 %5479
      %v5481 = vlaneseq
      %v5482 = vshrl.u32 %v5481, 7
      %v5483 = vsub.s32 4, %v5482
      %v5484 = vrot.slane %v5099, %v5483
      %5486 = vbcast.lane.b32.xlu0 %v5484, 256
      %v5487 = vpop.permute.xlu0 %5486
      %s5489 = sor.u32 256, 8
      %5490 = vbcast.lane.b32.xlu0 %v5484, %s5489
      %v5491 = vpop.permute.xlu0 %5490
      %s5493 = sor.u32 256, 16
      %5494 = vbcast.lane.b32.xlu0 %v5484, %s5493
      %v5495 = vpop.permute.xlu0 %5494
      %s5497 = sor.u32 256, 24
      %5498 = vbcast.lane.b32.xlu0 %v5484, %s5497
      %v5499 = vpop.permute.xlu0 %5498
      %v5500 = vlaneseq
      %v5501 = vshrl.u32 %v5500, 7
      %v5502 = vsub.s32 5, %v5501
      %v5503 = vrot.slane %v5099, %v5502
      %5505 = vbcast.lane.b32.xlu0 %v5503, 256
      %v5506 = vpop.permute.xlu0 %5505
      %s5508 = sor.u32 256, 8
      %5509 = vbcast.lane.b32.xlu0 %v5503, %s5508
      %v5510 = vpop.permute.xlu0 %5509
      %s5512 = sor.u32 256, 16
      %5513 = vbcast.lane.b32.xlu0 %v5503, %s5512
      %v5514 = vpop.permute.xlu0 %5513
      %s5516 = sor.u32 256, 24
      %5517 = vbcast.lane.b32.xlu0 %v5503, %s5516
      %v5518 = vpop.permute.xlu0 %5517
      %v5519 = vlaneseq
      %v5520 = vshrl.u32 %v5519, 7
      %v5521 = vsub.s32 6, %v5520
      %v5522 = vrot.slane %v5099, %v5521
      %5524 = vbcast.lane.b32.xlu0 %v5522, 256
      %v5525 = vpop.permute.xlu0 %5524
      %s5527 = sor.u32 256, 8
      %5528 = vbcast.lane.b32.xlu0 %v5522, %s5527
      %v5529 = vpop.permute.xlu0 %5528
      %s5531 = sor.u32 256, 16
      %5532 = vbcast.lane.b32.xlu0 %v5522, %s5531
      %v5533 = vpop.permute.xlu0 %5532
      %s5535 = sor.u32 256, 24
      %5536 = vbcast.lane.b32.xlu0 %v5522, %s5535
      %v5537 = vpop.permute.xlu0 %5536
      %v5538 = vlaneseq
      %v5539 = vshrl.u32 %v5538, 7
      %v5540 = vsub.s32 7, %v5539
      %v5541 = vrot.slane %v5099, %v5540
      %5543 = vbcast.lane.b32.xlu0 %v5541, 256
      %v5544 = vpop.permute.xlu0 %5543
      %s5546 = sor.u32 256, 8
      %5547 = vbcast.lane.b32.xlu0 %v5541, %s5546
      %v5548 = vpop.permute.xlu0 %5547
      %s5550 = sor.u32 256, 16
      %5551 = vbcast.lane.b32.xlu0 %v5541, %s5550
      %v5552 = vpop.permute.xlu0 %5551
      %s5554 = sor.u32 256, 24
      %5555 = vbcast.lane.b32.xlu0 %v5541, %s5554
      %v5556 = vpop.permute.xlu0 %5555
      %v5557 = vlaneseq
      %v5558 = vshrl.u32 %v5557, 7
      %v5559 = vsub.s32 0, %v5558
      %v5560 = vrot.slane %v5100, %v5559
      %5562 = vbcast.lane.b32.xlu0 %v5560, 256
      %v5563 = vpop.permute.xlu0 %5562
      %s5565 = sor.u32 256, 8
      %5566 = vbcast.lane.b32.xlu0 %v5560, %s5565
      %v5567 = vpop.permute.xlu0 %5566
      %s5569 = sor.u32 256, 16
      %5570 = vbcast.lane.b32.xlu0 %v5560, %s5569
      %v5571 = vpop.permute.xlu0 %5570
      %s5573 = sor.u32 256, 24
      %5574 = vbcast.lane.b32.xlu0 %v5560, %s5573
      %v5575 = vpop.permute.xlu0 %5574
      %v5576 = vlaneseq
      %v5577 = vshrl.u32 %v5576, 7
      %v5578 = vsub.s32 1, %v5577
      %v5579 = vrot.slane %v5100, %v5578
      %5581 = vbcast.lane.b32.xlu0 %v5579, 256
      %v5582 = vpop.permute.xlu0 %5581
      %s5584 = sor.u32 256, 8
      %5585 = vbcast.lane.b32.xlu0 %v5579, %s5584
      %v5586 = vpop.permute.xlu0 %5585
      %s5588 = sor.u32 256, 16
      %5589 = vbcast.lane.b32.xlu0 %v5579, %s5588
      %v5590 = vpop.permute.xlu0 %5589
      %s5592 = sor.u32 256, 24
      %5593 = vbcast.lane.b32.xlu0 %v5579, %s5592
      %v5594 = vpop.permute.xlu0 %5593
      %v5595 = vlaneseq
      %v5596 = vshrl.u32 %v5595, 7
      %v5597 = vsub.s32 2, %v5596
      %v5598 = vrot.slane %v5100, %v5597
      %5600 = vbcast.lane.b32.xlu0 %v5598, 256
      %v5601 = vpop.permute.xlu0 %5600
      %s5603 = sor.u32 256, 8
      %5604 = vbcast.lane.b32.xlu0 %v5598, %s5603
      %v5605 = vpop.permute.xlu0 %5604
      %s5607 = sor.u32 256, 16
      %5608 = vbcast.lane.b32.xlu0 %v5598, %s5607
      %v5609 = vpop.permute.xlu0 %5608
      %s5611 = sor.u32 256, 24
      %5612 = vbcast.lane.b32.xlu0 %v5598, %s5611
      %v5613 = vpop.permute.xlu0 %5612
      %v5614 = vlaneseq
      %v5615 = vshrl.u32 %v5614, 7
      %v5616 = vsub.s32 3, %v5615
      %v5617 = vrot.slane %v5100, %v5616
      %5619 = vbcast.lane.b32.xlu0 %v5617, 256
      %v5620 = vpop.permute.xlu0 %5619
      %s5622 = sor.u32 256, 8
      %5623 = vbcast.lane.b32.xlu0 %v5617, %s5622
      %v5624 = vpop.permute.xlu0 %5623
      %s5626 = sor.u32 256, 16
      %5627 = vbcast.lane.b32.xlu0 %v5617, %s5626
      %v5628 = vpop.permute.xlu0 %5627
      %s5630 = sor.u32 256, 24
      %5631 = vbcast.lane.b32.xlu0 %v5617, %s5630
      %v5632 = vpop.permute.xlu0 %5631
      %v5633 = vlaneseq
      %v5634 = vshrl.u32 %v5633, 7
      %v5635 = vsub.s32 4, %v5634
      %v5636 = vrot.slane %v5100, %v5635
      %5638 = vbcast.lane.b32.xlu0 %v5636, 256
      %v5639 = vpop.permute.xlu0 %5638
      %s5641 = sor.u32 256, 8
      %5642 = vbcast.lane.b32.xlu0 %v5636, %s5641
      %v5643 = vpop.permute.xlu0 %5642
      %s5645 = sor.u32 256, 16
      %5646 = vbcast.lane.b32.xlu0 %v5636, %s5645
      %v5647 = vpop.permute.xlu0 %5646
      %s5649 = sor.u32 256, 24
      %5650 = vbcast.lane.b32.xlu0 %v5636, %s5649
      %v5651 = vpop.permute.xlu0 %5650
      %v5652 = vlaneseq
      %v5653 = vshrl.u32 %v5652, 7
      %v5654 = vsub.s32 5, %v5653
      %v5655 = vrot.slane %v5100, %v5654
      %5657 = vbcast.lane.b32.xlu0 %v5655, 256
      %v5658 = vpop.permute.xlu0 %5657
      %s5660 = sor.u32 256, 8
      %5661 = vbcast.lane.b32.xlu0 %v5655, %s5660
      %v5662 = vpop.permute.xlu0 %5661
      %s5664 = sor.u32 256, 16
      %5665 = vbcast.lane.b32.xlu0 %v5655, %s5664
      %v5666 = vpop.permute.xlu0 %5665
      %s5668 = sor.u32 256, 24
      %5669 = vbcast.lane.b32.xlu0 %v5655, %s5668
      %v5670 = vpop.permute.xlu0 %5669
      %v5671 = vlaneseq
      %v5672 = vshrl.u32 %v5671, 7
      %v5673 = vsub.s32 6, %v5672
      %v5674 = vrot.slane %v5100, %v5673
      %5676 = vbcast.lane.b32.xlu0 %v5674, 256
      %v5677 = vpop.permute.xlu0 %5676
      %s5679 = sor.u32 256, 8
      %5680 = vbcast.lane.b32.xlu0 %v5674, %s5679
      %v5681 = vpop.permute.xlu0 %5680
      %s5683 = sor.u32 256, 16
      %5684 = vbcast.lane.b32.xlu0 %v5674, %s5683
      %v5685 = vpop.permute.xlu0 %5684
      %s5687 = sor.u32 256, 24
      %5688 = vbcast.lane.b32.xlu0 %v5674, %s5687
      %v5689 = vpop.permute.xlu0 %5688
      %v5690 = vlaneseq
      %v5691 = vshrl.u32 %v5690, 7
      %v5692 = vsub.s32 7, %v5691
      %v5693 = vrot.slane %v5100, %v5692
      %5695 = vbcast.lane.b32.xlu0 %v5693, 256
      %v5696 = vpop.permute.xlu0 %5695
      %s5698 = sor.u32 256, 8
      %5699 = vbcast.lane.b32.xlu0 %v5693, %s5698
      %v5700 = vpop.permute.xlu0 %5699
      %s5702 = sor.u32 256, 16
      %5703 = vbcast.lane.b32.xlu0 %v5693, %s5702
      %v5704 = vpop.permute.xlu0 %5703
      %s5706 = sor.u32 256, 24
      %5707 = vbcast.lane.b32.xlu0 %v5693, %s5706
      %v5708 = vpop.permute.xlu0 %5707
      %v5709 = vmul.f32 %v413, %v5107
      %v5710 = vmul.f32 %v414, %v5111
      %v5711 = vmul.f32 %v415, %v5115
      %v5712 = vmul.f32 %v416, %v5119
      %v5713 = vmul.f32 %v417, %v5126
      %v5714 = vmul.f32 %v418, %v5130
      %v5715 = vmul.f32 %v419, %v5134
      %v5716 = vmul.f32 %v420, %v5138
      %v5717 = vmul.f32 %v421, %v5145
      %v5718 = vmul.f32 %v422, %v5149
      %v5719 = vmul.f32 %v423, %v5153
      %v5720 = vmul.f32 %v424, %v5157
      %v5721 = vmul.f32 %v425, %v5164
      %v5722 = vmul.f32 %v426, %v5168
      %v5723 = vmul.f32 %v427, %v5172
      %v5724 = vmul.f32 %v428, %v5176
      %v5725 = vmul.f32 %v429, %v5183
      %v5726 = vmul.f32 %v430, %v5187
      %v5727 = vmul.f32 %v431, %v5191
      %v5728 = vmul.f32 %v432, %v5195
      %v5729 = vmul.f32 %v433, %v5202
      %v5730 = vmul.f32 %v434, %v5206
      %v5731 = vmul.f32 %v435, %v5210
      %v5732 = vmul.f32 %v436, %v5214
      %v5733 = vmul.f32 %v437, %v5221
      %v5734 = vmul.f32 %v438, %v5225
      %v5735 = vmul.f32 %v439, %v5229
      %v5736 = vmul.f32 %v440, %v5233
      %v5737 = vmul.f32 %v441, %v5240
      %v5738 = vmul.f32 %v442, %v5244
      %v5739 = vmul.f32 %v443, %v5248
      %v5740 = vmul.f32 %v444, %v5252
      %v5741 = vmul.f32 %v445, %v5259
      %v5742 = vmul.f32 %v446, %v5263
      %v5743 = vmul.f32 %v447, %v5267
      %v5744 = vmul.f32 %v448, %v5271
      %v5745 = vmul.f32 %v449, %v5278
      %v5746 = vmul.f32 %v450, %v5282
      %v5747 = vmul.f32 %v451, %v5286
      %v5748 = vmul.f32 %v452, %v5290
      %v5749 = vmul.f32 %v453, %v5297
      %v5750 = vmul.f32 %v454, %v5301
      %v5751 = vmul.f32 %v455, %v5305
      %v5752 = vmul.f32 %v456, %v5309
      %v5753 = vmul.f32 %v457, %v5316
      %v5754 = vmul.f32 %v458, %v5320
      %v5755 = vmul.f32 %v459, %v5324
      %v5756 = vmul.f32 %v460, %v5328
      %v5757 = vmul.f32 %v461, %v5335
      %v5758 = vmul.f32 %v462, %v5339
      %v5759 = vmul.f32 %v463, %v5343
      %v5760 = vmul.f32 %v464, %v5347
      %v5761 = vmul.f32 %v465, %v5354
      %v5762 = vmul.f32 %v466, %v5358
      %v5763 = vmul.f32 %v467, %v5362
      %v5764 = vmul.f32 %v468, %v5366
      %v5765 = vmul.f32 %v469, %v5373
      %v5766 = vmul.f32 %v470, %v5377
      %v5767 = vmul.f32 %v471, %v5381
      %v5768 = vmul.f32 %v472, %v5385
      %v5769 = vmul.f32 %v473, %v5392
      %v5770 = vmul.f32 %v474, %v5396
      %v5771 = vmul.f32 %v475, %v5400
      %v5772 = vmul.f32 %v476, %v5404
      %v5773 = vmul.f32 %v477, %v5411
      %v5774 = vmul.f32 %v478, %v5415
      %v5775 = vmul.f32 %v479, %v5419
      %v5776 = vmul.f32 %v480, %v5423
      %v5777 = vmul.f32 %v481, %v5430
      %v5778 = vmul.f32 %v482, %v5434
      %v5779 = vmul.f32 %v483, %v5438
      %v5780 = vmul.f32 %v484, %v5442
      %v5781 = vmul.f32 %v485, %v5449
      %v5782 = vmul.f32 %v486, %v5453
      %v5783 = vmul.f32 %v487, %v5457
      %v5784 = vmul.f32 %v488, %v5461
      %v5785 = vmul.f32 %v489, %v5468
      %v5786 = vmul.f32 %v490, %v5472
      %v5787 = vmul.f32 %v491, %v5476
      %v5788 = vmul.f32 %v492, %v5480
      %v5789 = vmul.f32 %v493, %v5487
      %v5790 = vmul.f32 %v494, %v5491
      %v5791 = vmul.f32 %v495, %v5495
      %v5792 = vmul.f32 %v496, %v5499
      %v5793 = vmul.f32 %v497, %v5506
      %v5794 = vmul.f32 %v498, %v5510
      %v5795 = vmul.f32 %v499, %v5514
      %v5796 = vmul.f32 %v500, %v5518
      %v5797 = vmul.f32 %v501, %v5525
      %v5798 = vmul.f32 %v502, %v5529
      %v5799 = vmul.f32 %v503, %v5533
      %v5800 = vmul.f32 %v504, %v5537
      %v5801 = vmul.f32 %v505, %v5544
      %v5802 = vmul.f32 %v506, %v5548
      %v5803 = vmul.f32 %v507, %v5552
      %v5804 = vmul.f32 %v508, %v5556
      %v5805 = vmul.f32 %v509, %v5563
      %v5806 = vmul.f32 %v510, %v5567
      %v5807 = vmul.f32 %v511, %v5571
      %v5808 = vmul.f32 %v512, %v5575
      %v5809 = vmul.f32 %v513, %v5582
      %v5810 = vmul.f32 %v514, %v5586
      %v5811 = vmul.f32 %v515, %v5590
      %v5812 = vmul.f32 %v516, %v5594
      %v5813 = vmul.f32 %v517, %v5601
      %v5814 = vmul.f32 %v518, %v5605
      %v5815 = vmul.f32 %v519, %v5609
      %v5816 = vmul.f32 %v520, %v5613
      %v5817 = vmul.f32 %v521, %v5620
      %v5818 = vmul.f32 %v522, %v5624
      %v5819 = vmul.f32 %v523, %v5628
      %v5820 = vmul.f32 %v524, %v5632
      %v5821 = vmul.f32 %v525, %v5639
      %v5822 = vmul.f32 %v526, %v5643
      %v5823 = vmul.f32 %v527, %v5647
      %v5824 = vmul.f32 %v528, %v5651
      %v5825 = vmul.f32 %v529, %v5658
      %v5826 = vmul.f32 %v530, %v5662
      %v5827 = vmul.f32 %v531, %v5666
      %v5828 = vmul.f32 %v532, %v5670
      %v5829 = vmul.f32 %v533, %v5677
      %v5830 = vmul.f32 %v534, %v5681
      %v5831 = vmul.f32 %v535, %v5685
      %v5832 = vmul.f32 %v536, %v5689
      %v5833 = vmul.f32 %v537, %v5696
      %v5834 = vmul.f32 %v538, %v5700
      %v5835 = vmul.f32 %v539, %v5704
      %v5836 = vmul.f32 %v540, %v5708
      %v5838 = vsel %vm669, %v2550, 0
      %v5841 = vsel %vm669, %v2551, 0
      %v5844 = vsel %vm669, %v2552, 0
      %v5847 = vsel %vm669, %v2553, 0
      %5849 = vmatprep.subr.mxu0 0.0
      %5850 = vmatpush1.msra.mxu0 0.0
      %5851 = vmatprep.subr.mxu0 0.0
      %5852 = vmatpush1.msra.mxu0 0.0
      %5853 = vmatprep.subr.mxu0 0.0
      %5854 = vmatpush1.msra.mxu0 0.0
      %5855 = vmatprep.subr.mxu0 0.0
      %5856 = vmatpush1.msra.mxu0 0.0
      %5857 = vmatprep.subr.mxu0 0.0
      %5858 = vmatpush1.msra.mxu0 0.0
      %5859 = vmatprep.subr.mxu0 0.0
      %5860 = vmatpush1.msra.mxu0 0.0
      %5861 = vmatprep.subr.mxu0 0.0
      %5862 = vmatpush1.msra.mxu0 0.0
      %5863 = vmatprep.subr.mxu0 0.0
      %5864 = vmatpush1.msra.mxu0 0.0
      %5865 = vmatprep.subr.mxu0 0.0
      %5866 = vmatpush1.msra.mxu0 0.0
      %5867 = vmatprep.subr.mxu0 0.0
      %5868 = vmatpush1.msra.mxu0 0.0
      %5869 = vmatprep.subr.mxu0 0.0
      %5870 = vmatpush1.msra.mxu0 0.0
      %5871 = vmatprep.subr.mxu0 0.0
      %5872 = vmatpush1.msra.mxu0 0.0
      %5873 = vmatprep.subr.mxu0 0.0
      %5874 = vmatpush1.msra.mxu0 %v416
      %5875 = vmatprep.subr.mxu0 0.0
      %5876 = vmatpush1.msra.mxu0 %v415
      %5877 = vmatprep.subr.mxu0 0.0
      %5878 = vmatpush1.msra.mxu0 %v414
      %5879 = vmatprep.subr.mxu0 0.0
      %5880 = vmatpush1.msra.mxu0 %v413
      %5881 = vmatprep.subr.mxu0 0.0
      %5882 = vmatpush2.msra.mxu0 0.0
      %5883 = vmatprep.subr.mxu0 0.0
      %5884 = vmatpush2.msra.mxu0 0.0
      %5885 = vmatprep.subr.mxu0 0.0
      %5886 = vmatpush2.msra.mxu0 0.0
      %5887 = vmatprep.subr.mxu0 0.0
      %5888 = vmatpush2.msra.mxu0 0.0
      %5889 = vmatprep.subr.mxu0 0.0
      %5890 = vmatpush2.msra.mxu0 0.0
      %5891 = vmatprep.subr.mxu0 0.0
      %5892 = vmatpush2.msra.mxu0 0.0
      %5893 = vmatprep.subr.mxu0 0.0
      %5894 = vmatpush2.msra.mxu0 0.0
      %5895 = vmatprep.subr.mxu0 0.0
      %5896 = vmatpush2.msra.mxu0 0.0
      %5897 = vmatprep.subr.mxu0 0.0
      %5898 = vmatpush2.msra.mxu0 0.0
      %5899 = vmatprep.subr.mxu0 0.0
      %5900 = vmatpush2.msra.mxu0 0.0
      %5901 = vmatprep.subr.mxu0 0.0
      %5902 = vmatpush2.msra.mxu0 0.0
      %5903 = vmatprep.subr.mxu0 0.0
      %5904 = vmatpush2.msra.mxu0 0.0
      %5905 = vmatprep.subr.mxu0 0.0
      %5906 = vmatpush2.msra.mxu0 0.0
      %5907 = vmatprep.subr.mxu0 0.0
      %5908 = vmatpush2.msra.mxu0 0.0
      %5909 = vmatprep.subr.mxu0 0.0
      %5910 = vmatpush2.msra.mxu0 0.0
      %5911 = vmatprep.subr.mxu0 0.0
      %5912 = vmatpush2.msra.mxu0 0.0
      %5913 = vmatprep.mubr.f32.mxu0 0.0
      %5914 = vmatmul.mubr.f32.gmra.mxu0 %v5838
      %v5915 = vpop.f32.mrf.mxu0
      %v5916 = vadd.f32 0.0, %v5915
      %v5917 = vpop.f32.mrf.mxu0
      %5918 = vmatprep.mubr.f32.mxu0 0.0
      %5919 = vmatmul.mubr.f32.gmra.mxu0 %v5841
      %v5920 = vpop.f32.mrf.mxu0
      %v5921 = vadd.f32 0.0, %v5920
      %v5922 = vpop.f32.mrf.mxu0
      %5923 = vmatprep.mubr.f32.mxu0 0.0
      %5924 = vmatmul.mubr.f32.gmra.mxu0 %v5844
      %v5925 = vpop.f32.mrf.mxu0
      %v5926 = vadd.f32 0.0, %v5925
      %v5927 = vpop.f32.mrf.mxu0
      %5928 = vmatprep.mubr.f32.mxu0 0.0
      %5929 = vmatmul.mubr.f32.gmra.mxu0 %v5847
      %v5930 = vpop.f32.mrf.mxu0
      %v5931 = vadd.f32 0.0, %v5930
      %v5932 = vpop.f32.mrf.mxu0
      %5933 = vdwg.mxu0
      %v5935 = vsel %vm669, %v2554, 0
      %v5938 = vsel %vm669, %v2555, 0
      %v5941 = vsel %vm669, %v2556, 0
      %v5944 = vsel %vm669, %v2557, 0
      %5946 = vmatprep.subr.mxu0 0.0
      %5947 = vmatpush1.msra.mxu0 0.0
      %5948 = vmatprep.subr.mxu0 0.0
      %5949 = vmatpush1.msra.mxu0 0.0
      %5950 = vmatprep.subr.mxu0 0.0
      %5951 = vmatpush1.msra.mxu0 0.0
      %5952 = vmatprep.subr.mxu0 0.0
      %5953 = vmatpush1.msra.mxu0 0.0
      %5954 = vmatprep.subr.mxu0 0.0
      %5955 = vmatpush1.msra.mxu0 0.0
      %5956 = vmatprep.subr.mxu0 0.0
      %5957 = vmatpush1.msra.mxu0 0.0
      %5958 = vmatprep.subr.mxu0 0.0
      %5959 = vmatpush1.msra.mxu0 0.0
      %5960 = vmatprep.subr.mxu0 0.0
      %5961 = vmatpush1.msra.mxu0 0.0
      %5962 = vmatprep.subr.mxu0 0.0
      %5963 = vmatpush1.msra.mxu0 0.0
      %5964 = vmatprep.subr.mxu0 0.0
      %5965 = vmatpush1.msra.mxu0 0.0
      %5966 = vmatprep.subr.mxu0 0.0
      %5967 = vmatpush1.msra.mxu0 0.0
      %5968 = vmatprep.subr.mxu0 0.0
      %5969 = vmatpush1.msra.mxu0 0.0
      %5970 = vmatprep.subr.mxu0 0.0
      %5971 = vmatpush1.msra.mxu0 %v420
      %5972 = vmatprep.subr.mxu0 0.0
      %5973 = vmatpush1.msra.mxu0 %v419
      %5974 = vmatprep.subr.mxu0 0.0
      %5975 = vmatpush1.msra.mxu0 %v418
      %5976 = vmatprep.subr.mxu0 0.0
      %5977 = vmatpush1.msra.mxu0 %v417
      %5978 = vmatprep.subr.mxu0 0.0
      %5979 = vmatpush2.msra.mxu0 0.0
      %5980 = vmatprep.subr.mxu0 0.0
      %5981 = vmatpush2.msra.mxu0 0.0
      %5982 = vmatprep.subr.mxu0 0.0
      %5983 = vmatpush2.msra.mxu0 0.0
      %5984 = vmatprep.subr.mxu0 0.0
      %5985 = vmatpush2.msra.mxu0 0.0
      %5986 = vmatprep.subr.mxu0 0.0
      %5987 = vmatpush2.msra.mxu0 0.0
      %5988 = vmatprep.subr.mxu0 0.0
      %5989 = vmatpush2.msra.mxu0 0.0
      %5990 = vmatprep.subr.mxu0 0.0
      %5991 = vmatpush2.msra.mxu0 0.0
      %5992 = vmatprep.subr.mxu0 0.0
      %5993 = vmatpush2.msra.mxu0 0.0
      %5994 = vmatprep.subr.mxu0 0.0
      %5995 = vmatpush2.msra.mxu0 0.0
      %5996 = vmatprep.subr.mxu0 0.0
      %5997 = vmatpush2.msra.mxu0 0.0
      %5998 = vmatprep.subr.mxu0 0.0
      %5999 = vmatpush2.msra.mxu0 0.0
      %6000 = vmatprep.subr.mxu0 0.0
      %6001 = vmatpush2.msra.mxu0 0.0
      %6002 = vmatprep.subr.mxu0 0.0
      %6003 = vmatpush2.msra.mxu0 0.0
      %6004 = vmatprep.subr.mxu0 0.0
      %6005 = vmatpush2.msra.mxu0 0.0
      %6006 = vmatprep.subr.mxu0 0.0
      %6007 = vmatpush2.msra.mxu0 0.0
      %6008 = vmatprep.subr.mxu0 0.0
      %6009 = vmatpush2.msra.mxu0 0.0
      %6010 = vmatprep.mubr.f32.mxu0 0.0
      %6011 = vmatmul.mubr.f32.gmra.mxu0 %v5935
      %v6012 = vpop.f32.mrf.mxu0
      %v6013 = vadd.f32 0.0, %v6012
      %v6014 = vpop.f32.mrf.mxu0
      %6015 = vmatprep.mubr.f32.mxu0 0.0
      %6016 = vmatmul.mubr.f32.gmra.mxu0 %v5938
      %v6017 = vpop.f32.mrf.mxu0
      %v6018 = vadd.f32 0.0, %v6017
      %v6019 = vpop.f32.mrf.mxu0
      %6020 = vmatprep.mubr.f32.mxu0 0.0
      %6021 = vmatmul.mubr.f32.gmra.mxu0 %v5941
      %v6022 = vpop.f32.mrf.mxu0
      %v6023 = vadd.f32 0.0, %v6022
      %v6024 = vpop.f32.mrf.mxu0
      %6025 = vmatprep.mubr.f32.mxu0 0.0
      %6026 = vmatmul.mubr.f32.gmra.mxu0 %v5944
      %v6027 = vpop.f32.mrf.mxu0
      %v6028 = vadd.f32 0.0, %v6027
      %v6029 = vpop.f32.mrf.mxu0
      %6030 = vdwg.mxu0
      %v6032 = vsel %vm669, %v2558, 0
      %v6035 = vsel %vm669, %v2559, 0
      %v6038 = vsel %vm669, %v2560, 0
      %v6041 = vsel %vm669, %v2561, 0
      %6043 = vmatprep.subr.mxu0 0.0
      %6044 = vmatpush1.msra.mxu0 0.0
      %6045 = vmatprep.subr.mxu0 0.0
      %6046 = vmatpush1.msra.mxu0 0.0
      %6047 = vmatprep.subr.mxu0 0.0
      %6048 = vmatpush1.msra.mxu0 0.0
      %6049 = vmatprep.subr.mxu0 0.0
      %6050 = vmatpush1.msra.mxu0 0.0
      %6051 = vmatprep.subr.mxu0 0.0
      %6052 = vmatpush1.msra.mxu0 0.0
      %6053 = vmatprep.subr.mxu0 0.0
      %6054 = vmatpush1.msra.mxu0 0.0
      %6055 = vmatprep.subr.mxu0 0.0
      %6056 = vmatpush1.msra.mxu0 0.0
      %6057 = vmatprep.subr.mxu0 0.0
      %6058 = vmatpush1.msra.mxu0 0.0
      %6059 = vmatprep.subr.mxu0 0.0
      %6060 = vmatpush1.msra.mxu0 0.0
      %6061 = vmatprep.subr.mxu0 0.0
      %6062 = vmatpush1.msra.mxu0 0.0
      %6063 = vmatprep.subr.mxu0 0.0
      %6064 = vmatpush1.msra.mxu0 0.0
      %6065 = vmatprep.subr.mxu0 0.0
      %6066 = vmatpush1.msra.mxu0 0.0
      %6067 = vmatprep.subr.mxu0 0.0
      %6068 = vmatpush1.msra.mxu0 %v424
      %6069 = vmatprep.subr.mxu0 0.0
      %6070 = vmatpush1.msra.mxu0 %v423
      %6071 = vmatprep.subr.mxu0 0.0
      %6072 = vmatpush1.msra.mxu0 %v422
      %6073 = vmatprep.subr.mxu0 0.0
      %6074 = vmatpush1.msra.mxu0 %v421
      %6075 = vmatprep.subr.mxu0 0.0
      %6076 = vmatpush2.msra.mxu0 0.0
      %6077 = vmatprep.subr.mxu0 0.0
      %6078 = vmatpush2.msra.mxu0 0.0
      %6079 = vmatprep.subr.mxu0 0.0
      %6080 = vmatpush2.msra.mxu0 0.0
      %6081 = vmatprep.subr.mxu0 0.0
      %6082 = vmatpush2.msra.mxu0 0.0
      %6083 = vmatprep.subr.mxu0 0.0
      %6084 = vmatpush2.msra.mxu0 0.0
      %6085 = vmatprep.subr.mxu0 0.0
      %6086 = vmatpush2.msra.mxu0 0.0
      %6087 = vmatprep.subr.mxu0 0.0
      %6088 = vmatpush2.msra.mxu0 0.0
      %6089 = vmatprep.subr.mxu0 0.0
      %6090 = vmatpush2.msra.mxu0 0.0
      %6091 = vmatprep.subr.mxu0 0.0
      %6092 = vmatpush2.msra.mxu0 0.0
      %6093 = vmatprep.subr.mxu0 0.0
      %6094 = vmatpush2.msra.mxu0 0.0
      %6095 = vmatprep.subr.mxu0 0.0
      %6096 = vmatpush2.msra.mxu0 0.0
      %6097 = vmatprep.subr.mxu0 0.0
      %6098 = vmatpush2.msra.mxu0 0.0
      %6099 = vmatprep.subr.mxu0 0.0
      %6100 = vmatpush2.msra.mxu0 0.0
      %6101 = vmatprep.subr.mxu0 0.0
      %6102 = vmatpush2.msra.mxu0 0.0
      %6103 = vmatprep.subr.mxu0 0.0
      %6104 = vmatpush2.msra.mxu0 0.0
      %6105 = vmatprep.subr.mxu0 0.0
      %6106 = vmatpush2.msra.mxu0 0.0
      %6107 = vmatprep.mubr.f32.mxu0 0.0
      %6108 = vmatmul.mubr.f32.gmra.mxu0 %v6032
      %v6109 = vpop.f32.mrf.mxu0
      %v6110 = vadd.f32 0.0, %v6109
      %v6111 = vpop.f32.mrf.mxu0
      %6112 = vmatprep.mubr.f32.mxu0 0.0
      %6113 = vmatmul.mubr.f32.gmra.mxu0 %v6035
      %v6114 = vpop.f32.mrf.mxu0
      %v6115 = vadd.f32 0.0, %v6114
      %v6116 = vpop.f32.mrf.mxu0
      %6117 = vmatprep.mubr.f32.mxu0 0.0
      %6118 = vmatmul.mubr.f32.gmra.mxu0 %v6038
      %v6119 = vpop.f32.mrf.mxu0
      %v6120 = vadd.f32 0.0, %v6119
      %v6121 = vpop.f32.mrf.mxu0
      %6122 = vmatprep.mubr.f32.mxu0 0.0
      %6123 = vmatmul.mubr.f32.gmra.mxu0 %v6041
      %v6124 = vpop.f32.mrf.mxu0
      %v6125 = vadd.f32 0.0, %v6124
      %v6126 = vpop.f32.mrf.mxu0
      %6127 = vdwg.mxu0
      %v6129 = vsel %vm669, %v2562, 0
      %v6132 = vsel %vm669, %v2563, 0
      %v6135 = vsel %vm669, %v2564, 0
      %v6138 = vsel %vm669, %v2565, 0
      %6140 = vmatprep.subr.mxu0 0.0
      %6141 = vmatpush1.msra.mxu0 0.0
      %6142 = vmatprep.subr.mxu0 0.0
      %6143 = vmatpush1.msra.mxu0 0.0
      %6144 = vmatprep.subr.mxu0 0.0
      %6145 = vmatpush1.msra.mxu0 0.0
      %6146 = vmatprep.subr.mxu0 0.0
      %6147 = vmatpush1.msra.mxu0 0.0
      %6148 = vmatprep.subr.mxu0 0.0
      %6149 = vmatpush1.msra.mxu0 0.0
      %6150 = vmatprep.subr.mxu0 0.0
      %6151 = vmatpush1.msra.mxu0 0.0
      %6152 = vmatprep.subr.mxu0 0.0
      %6153 = vmatpush1.msra.mxu0 0.0
      %6154 = vmatprep.subr.mxu0 0.0
      %6155 = vmatpush1.msra.mxu0 0.0
      %6156 = vmatprep.subr.mxu0 0.0
      %6157 = vmatpush1.msra.mxu0 0.0
      %6158 = vmatprep.subr.mxu0 0.0
      %6159 = vmatpush1.msra.mxu0 0.0
      %6160 = vmatprep.subr.mxu0 0.0
      %6161 = vmatpush1.msra.mxu0 0.0
      %6162 = vmatprep.subr.mxu0 0.0
      %6163 = vmatpush1.msra.mxu0 0.0
      %6164 = vmatprep.subr.mxu0 0.0
      %6165 = vmatpush1.msra.mxu0 %v428
      %6166 = vmatprep.subr.mxu0 0.0
      %6167 = vmatpush1.msra.mxu0 %v427
      %6168 = vmatprep.subr.mxu0 0.0
      %6169 = vmatpush1.msra.mxu0 %v426
      %6170 = vmatprep.subr.mxu0 0.0
      %6171 = vmatpush1.msra.mxu0 %v425
      %6172 = vmatprep.subr.mxu0 0.0
      %6173 = vmatpush2.msra.mxu0 0.0
      %6174 = vmatprep.subr.mxu0 0.0
      %6175 = vmatpush2.msra.mxu0 0.0
      %6176 = vmatprep.subr.mxu0 0.0
      %6177 = vmatpush2.msra.mxu0 0.0
      %6178 = vmatprep.subr.mxu0 0.0
      %6179 = vmatpush2.msra.mxu0 0.0
      %6180 = vmatprep.subr.mxu0 0.0
      %6181 = vmatpush2.msra.mxu0 0.0
      %6182 = vmatprep.subr.mxu0 0.0
      %6183 = vmatpush2.msra.mxu0 0.0
      %6184 = vmatprep.subr.mxu0 0.0
      %6185 = vmatpush2.msra.mxu0 0.0
      %6186 = vmatprep.subr.mxu0 0.0
      %6187 = vmatpush2.msra.mxu0 0.0
      %6188 = vmatprep.subr.mxu0 0.0
      %6189 = vmatpush2.msra.mxu0 0.0
      %6190 = vmatprep.subr.mxu0 0.0
      %6191 = vmatpush2.msra.mxu0 0.0
      %6192 = vmatprep.subr.mxu0 0.0
      %6193 = vmatpush2.msra.mxu0 0.0
      %6194 = vmatprep.subr.mxu0 0.0
      %6195 = vmatpush2.msra.mxu0 0.0
      %6196 = vmatprep.subr.mxu0 0.0
      %6197 = vmatpush2.msra.mxu0 0.0
      %6198 = vmatprep.subr.mxu0 0.0
      %6199 = vmatpush2.msra.mxu0 0.0
      %6200 = vmatprep.subr.mxu0 0.0
      %6201 = vmatpush2.msra.mxu0 0.0
      %6202 = vmatprep.subr.mxu0 0.0
      %6203 = vmatpush2.msra.mxu0 0.0
      %6204 = vmatprep.mubr.f32.mxu0 0.0
      %6205 = vmatmul.mubr.f32.gmra.mxu0 %v6129
      %v6206 = vpop.f32.mrf.mxu0
      %v6207 = vadd.f32 0.0, %v6206
      %v6208 = vpop.f32.mrf.mxu0
      %6209 = vmatprep.mubr.f32.mxu0 0.0
      %6210 = vmatmul.mubr.f32.gmra.mxu0 %v6132
      %v6211 = vpop.f32.mrf.mxu0
      %v6212 = vadd.f32 0.0, %v6211
      %v6213 = vpop.f32.mrf.mxu0
      %6214 = vmatprep.mubr.f32.mxu0 0.0
      %6215 = vmatmul.mubr.f32.gmra.mxu0 %v6135
      %v6216 = vpop.f32.mrf.mxu0
      %v6217 = vadd.f32 0.0, %v6216
      %v6218 = vpop.f32.mrf.mxu0
      %6219 = vmatprep.mubr.f32.mxu0 0.0
      %6220 = vmatmul.mubr.f32.gmra.mxu0 %v6138
      %v6221 = vpop.f32.mrf.mxu0
      %v6222 = vadd.f32 0.0, %v6221
      %v6223 = vpop.f32.mrf.mxu0
      %6224 = vdwg.mxu0
      %v6226 = vsel %vm669, %v2566, 0
      %v6229 = vsel %vm669, %v2567, 0
      %v6232 = vsel %vm669, %v2568, 0
      %v6235 = vsel %vm669, %v2569, 0
      %6237 = vmatprep.subr.mxu0 0.0
      %6238 = vmatpush1.msra.mxu0 0.0
      %6239 = vmatprep.subr.mxu0 0.0
      %6240 = vmatpush1.msra.mxu0 0.0
      %6241 = vmatprep.subr.mxu0 0.0
      %6242 = vmatpush1.msra.mxu0 0.0
      %6243 = vmatprep.subr.mxu0 0.0
      %6244 = vmatpush1.msra.mxu0 0.0
      %6245 = vmatprep.subr.mxu0 0.0
      %6246 = vmatpush1.msra.mxu0 0.0
      %6247 = vmatprep.subr.mxu0 0.0
      %6248 = vmatpush1.msra.mxu0 0.0
      %6249 = vmatprep.subr.mxu0 0.0
      %6250 = vmatpush1.msra.mxu0 0.0
      %6251 = vmatprep.subr.mxu0 0.0
      %6252 = vmatpush1.msra.mxu0 0.0
      %6253 = vmatprep.subr.mxu0 0.0
      %6254 = vmatpush1.msra.mxu0 0.0
      %6255 = vmatprep.subr.mxu0 0.0
      %6256 = vmatpush1.msra.mxu0 0.0
      %6257 = vmatprep.subr.mxu0 0.0
      %6258 = vmatpush1.msra.mxu0 0.0
      %6259 = vmatprep.subr.mxu0 0.0
      %6260 = vmatpush1.msra.mxu0 0.0
      %6261 = vmatprep.subr.mxu0 0.0
      %6262 = vmatpush1.msra.mxu0 %v432
      %6263 = vmatprep.subr.mxu0 0.0
      %6264 = vmatpush1.msra.mxu0 %v431
      %6265 = vmatprep.subr.mxu0 0.0
      %6266 = vmatpush1.msra.mxu0 %v430
      %6267 = vmatprep.subr.mxu0 0.0
      %6268 = vmatpush1.msra.mxu0 %v429
      %6269 = vmatprep.subr.mxu0 0.0
      %6270 = vmatpush2.msra.mxu0 0.0
      %6271 = vmatprep.subr.mxu0 0.0
      %6272 = vmatpush2.msra.mxu0 0.0
      %6273 = vmatprep.subr.mxu0 0.0
      %6274 = vmatpush2.msra.mxu0 0.0
      %6275 = vmatprep.subr.mxu0 0.0
      %6276 = vmatpush2.msra.mxu0 0.0
      %6277 = vmatprep.subr.mxu0 0.0
      %6278 = vmatpush2.msra.mxu0 0.0
      %6279 = vmatprep.subr.mxu0 0.0
      %6280 = vmatpush2.msra.mxu0 0.0
      %6281 = vmatprep.subr.mxu0 0.0
      %6282 = vmatpush2.msra.mxu0 0.0
      %6283 = vmatprep.subr.mxu0 0.0
      %6284 = vmatpush2.msra.mxu0 0.0
      %6285 = vmatprep.subr.mxu0 0.0
      %6286 = vmatpush2.msra.mxu0 0.0
      %6287 = vmatprep.subr.mxu0 0.0
      %6288 = vmatpush2.msra.mxu0 0.0
      %6289 = vmatprep.subr.mxu0 0.0
      %6290 = vmatpush2.msra.mxu0 0.0
      %6291 = vmatprep.subr.mxu0 0.0
      %6292 = vmatpush2.msra.mxu0 0.0
      %6293 = vmatprep.subr.mxu0 0.0
      %6294 = vmatpush2.msra.mxu0 0.0
      %6295 = vmatprep.subr.mxu0 0.0
      %6296 = vmatpush2.msra.mxu0 0.0
      %6297 = vmatprep.subr.mxu0 0.0
      %6298 = vmatpush2.msra.mxu0 0.0
      %6299 = vmatprep.subr.mxu0 0.0
      %6300 = vmatpush2.msra.mxu0 0.0
      %6301 = vmatprep.mubr.f32.mxu0 0.0
      %6302 = vmatmul.mubr.f32.gmra.mxu0 %v6226
      %v6303 = vpop.f32.mrf.mxu0
      %v6304 = vadd.f32 0.0, %v6303
      %v6305 = vpop.f32.mrf.mxu0
      %6306 = vmatprep.mubr.f32.mxu0 0.0
      %6307 = vmatmul.mubr.f32.gmra.mxu0 %v6229
      %v6308 = vpop.f32.mrf.mxu0
      %v6309 = vadd.f32 0.0, %v6308
      %v6310 = vpop.f32.mrf.mxu0
      %6311 = vmatprep.mubr.f32.mxu0 0.0
      %6312 = vmatmul.mubr.f32.gmra.mxu0 %v6232
      %v6313 = vpop.f32.mrf.mxu0
      %v6314 = vadd.f32 0.0, %v6313
      %v6315 = vpop.f32.mrf.mxu0
      %6316 = vmatprep.mubr.f32.mxu0 0.0
      %6317 = vmatmul.mubr.f32.gmra.mxu0 %v6235
      %v6318 = vpop.f32.mrf.mxu0
      %v6319 = vadd.f32 0.0, %v6318
      %v6320 = vpop.f32.mrf.mxu0
      %6321 = vdwg.mxu0
      %v6323 = vsel %vm669, %v2570, 0
      %v6326 = vsel %vm669, %v2571, 0
      %v6329 = vsel %vm669, %v2572, 0
      %v6332 = vsel %vm669, %v2573, 0
      %6334 = vmatprep.subr.mxu0 0.0
      %6335 = vmatpush1.msra.mxu0 0.0
      %6336 = vmatprep.subr.mxu0 0.0
      %6337 = vmatpush1.msra.mxu0 0.0
      %6338 = vmatprep.subr.mxu0 0.0
      %6339 = vmatpush1.msra.mxu0 0.0
      %6340 = vmatprep.subr.mxu0 0.0
      %6341 = vmatpush1.msra.mxu0 0.0
      %6342 = vmatprep.subr.mxu0 0.0
      %6343 = vmatpush1.msra.mxu0 0.0
      %6344 = vmatprep.subr.mxu0 0.0
      %6345 = vmatpush1.msra.mxu0 0.0
      %6346 = vmatprep.subr.mxu0 0.0
      %6347 = vmatpush1.msra.mxu0 0.0
      %6348 = vmatprep.subr.mxu0 0.0
      %6349 = vmatpush1.msra.mxu0 0.0
      %6350 = vmatprep.subr.mxu0 0.0
      %6351 = vmatpush1.msra.mxu0 0.0
      %6352 = vmatprep.subr.mxu0 0.0
      %6353 = vmatpush1.msra.mxu0 0.0
      %6354 = vmatprep.subr.mxu0 0.0
      %6355 = vmatpush1.msra.mxu0 0.0
      %6356 = vmatprep.subr.mxu0 0.0
      %6357 = vmatpush1.msra.mxu0 0.0
      %6358 = vmatprep.subr.mxu0 0.0
      %6359 = vmatpush1.msra.mxu0 %v436
      %6360 = vmatprep.subr.mxu0 0.0
      %6361 = vmatpush1.msra.mxu0 %v435
      %6362 = vmatprep.subr.mxu0 0.0
      %6363 = vmatpush1.msra.mxu0 %v434
      %6364 = vmatprep.subr.mxu0 0.0
      %6365 = vmatpush1.msra.mxu0 %v433
      %6366 = vmatprep.subr.mxu0 0.0
      %6367 = vmatpush2.msra.mxu0 0.0
      %6368 = vmatprep.subr.mxu0 0.0
      %6369 = vmatpush2.msra.mxu0 0.0
      %6370 = vmatprep.subr.mxu0 0.0
      %6371 = vmatpush2.msra.mxu0 0.0
      %6372 = vmatprep.subr.mxu0 0.0
      %6373 = vmatpush2.msra.mxu0 0.0
      %6374 = vmatprep.subr.mxu0 0.0
      %6375 = vmatpush2.msra.mxu0 0.0
      %6376 = vmatprep.subr.mxu0 0.0
      %6377 = vmatpush2.msra.mxu0 0.0
      %6378 = vmatprep.subr.mxu0 0.0
      %6379 = vmatpush2.msra.mxu0 0.0
      %6380 = vmatprep.subr.mxu0 0.0
      %6381 = vmatpush2.msra.mxu0 0.0
      %6382 = vmatprep.subr.mxu0 0.0
      %6383 = vmatpush2.msra.mxu0 0.0
      %6384 = vmatprep.subr.mxu0 0.0
      %6385 = vmatpush2.msra.mxu0 0.0
      %6386 = vmatprep.subr.mxu0 0.0
      %6387 = vmatpush2.msra.mxu0 0.0
      %6388 = vmatprep.subr.mxu0 0.0
      %6389 = vmatpush2.msra.mxu0 0.0
      %6390 = vmatprep.subr.mxu0 0.0
      %6391 = vmatpush2.msra.mxu0 0.0
      %6392 = vmatprep.subr.mxu0 0.0
      %6393 = vmatpush2.msra.mxu0 0.0
      %6394 = vmatprep.subr.mxu0 0.0
      %6395 = vmatpush2.msra.mxu0 0.0
      %6396 = vmatprep.subr.mxu0 0.0
      %6397 = vmatpush2.msra.mxu0 0.0
      %6398 = vmatprep.mubr.f32.mxu0 0.0
      %6399 = vmatmul.mubr.f32.gmra.mxu0 %v6323
      %v6400 = vpop.f32.mrf.mxu0
      %v6401 = vadd.f32 0.0, %v6400
      %v6402 = vpop.f32.mrf.mxu0
      %6403 = vmatprep.mubr.f32.mxu0 0.0
      %6404 = vmatmul.mubr.f32.gmra.mxu0 %v6326
      %v6405 = vpop.f32.mrf.mxu0
      %v6406 = vadd.f32 0.0, %v6405
      %v6407 = vpop.f32.mrf.mxu0
      %6408 = vmatprep.mubr.f32.mxu0 0.0
      %6409 = vmatmul.mubr.f32.gmra.mxu0 %v6329
      %v6410 = vpop.f32.mrf.mxu0
      %v6411 = vadd.f32 0.0, %v6410
      %v6412 = vpop.f32.mrf.mxu0
      %6413 = vmatprep.mubr.f32.mxu0 0.0
      %6414 = vmatmul.mubr.f32.gmra.mxu0 %v6332
      %v6415 = vpop.f32.mrf.mxu0
      %v6416 = vadd.f32 0.0, %v6415
      %v6417 = vpop.f32.mrf.mxu0
      %6418 = vdwg.mxu0
      %v6420 = vsel %vm669, %v2574, 0
      %v6423 = vsel %vm669, %v2575, 0
      %v6426 = vsel %vm669, %v2576, 0
      %v6429 = vsel %vm669, %v2577, 0
      %6431 = vmatprep.subr.mxu0 0.0
      %6432 = vmatpush1.msra.mxu0 0.0
      %6433 = vmatprep.subr.mxu0 0.0
      %6434 = vmatpush1.msra.mxu0 0.0
      %6435 = vmatprep.subr.mxu0 0.0
      %6436 = vmatpush1.msra.mxu0 0.0
      %6437 = vmatprep.subr.mxu0 0.0
      %6438 = vmatpush1.msra.mxu0 0.0
      %6439 = vmatprep.subr.mxu0 0.0
      %6440 = vmatpush1.msra.mxu0 0.0
      %6441 = vmatprep.subr.mxu0 0.0
      %6442 = vmatpush1.msra.mxu0 0.0
      %6443 = vmatprep.subr.mxu0 0.0
      %6444 = vmatpush1.msra.mxu0 0.0
      %6445 = vmatprep.subr.mxu0 0.0
      %6446 = vmatpush1.msra.mxu0 0.0
      %6447 = vmatprep.subr.mxu0 0.0
      %6448 = vmatpush1.msra.mxu0 0.0
      %6449 = vmatprep.subr.mxu0 0.0
      %6450 = vmatpush1.msra.mxu0 0.0
      %6451 = vmatprep.subr.mxu0 0.0
      %6452 = vmatpush1.msra.mxu0 0.0
      %6453 = vmatprep.subr.mxu0 0.0
      %6454 = vmatpush1.msra.mxu0 0.0
      %6455 = vmatprep.subr.mxu0 0.0
      %6456 = vmatpush1.msra.mxu0 %v440
      %6457 = vmatprep.subr.mxu0 0.0
      %6458 = vmatpush1.msra.mxu0 %v439
      %6459 = vmatprep.subr.mxu0 0.0
      %6460 = vmatpush1.msra.mxu0 %v438
      %6461 = vmatprep.subr.mxu0 0.0
      %6462 = vmatpush1.msra.mxu0 %v437
      %6463 = vmatprep.subr.mxu0 0.0
      %6464 = vmatpush2.msra.mxu0 0.0
      %6465 = vmatprep.subr.mxu0 0.0
      %6466 = vmatpush2.msra.mxu0 0.0
      %6467 = vmatprep.subr.mxu0 0.0
      %6468 = vmatpush2.msra.mxu0 0.0
      %6469 = vmatprep.subr.mxu0 0.0
      %6470 = vmatpush2.msra.mxu0 0.0
      %6471 = vmatprep.subr.mxu0 0.0
      %6472 = vmatpush2.msra.mxu0 0.0
      %6473 = vmatprep.subr.mxu0 0.0
      %6474 = vmatpush2.msra.mxu0 0.0
      %6475 = vmatprep.subr.mxu0 0.0
      %6476 = vmatpush2.msra.mxu0 0.0
      %6477 = vmatprep.subr.mxu0 0.0
      %6478 = vmatpush2.msra.mxu0 0.0
      %6479 = vmatprep.subr.mxu0 0.0
      %6480 = vmatpush2.msra.mxu0 0.0
      %6481 = vmatprep.subr.mxu0 0.0
      %6482 = vmatpush2.msra.mxu0 0.0
      %6483 = vmatprep.subr.mxu0 0.0
      %6484 = vmatpush2.msra.mxu0 0.0
      %6485 = vmatprep.subr.mxu0 0.0
      %6486 = vmatpush2.msra.mxu0 0.0
      %6487 = vmatprep.subr.mxu0 0.0
      %6488 = vmatpush2.msra.mxu0 0.0
      %6489 = vmatprep.subr.mxu0 0.0
      %6490 = vmatpush2.msra.mxu0 0.0
      %6491 = vmatprep.subr.mxu0 0.0
      %6492 = vmatpush2.msra.mxu0 0.0
      %6493 = vmatprep.subr.mxu0 0.0
      %6494 = vmatpush2.msra.mxu0 0.0
      %6495 = vmatprep.mubr.f32.mxu0 0.0
      %6496 = vmatmul.mubr.f32.gmra.mxu0 %v6420
      %v6497 = vpop.f32.mrf.mxu0
      %v6498 = vadd.f32 0.0, %v6497
      %v6499 = vpop.f32.mrf.mxu0
      %6500 = vmatprep.mubr.f32.mxu0 0.0
      %6501 = vmatmul.mubr.f32.gmra.mxu0 %v6423
      %v6502 = vpop.f32.mrf.mxu0
      %v6503 = vadd.f32 0.0, %v6502
      %v6504 = vpop.f32.mrf.mxu0
      %6505 = vmatprep.mubr.f32.mxu0 0.0
      %6506 = vmatmul.mubr.f32.gmra.mxu0 %v6426
      %v6507 = vpop.f32.mrf.mxu0
      %v6508 = vadd.f32 0.0, %v6507
      %v6509 = vpop.f32.mrf.mxu0
      %6510 = vmatprep.mubr.f32.mxu0 0.0
      %6511 = vmatmul.mubr.f32.gmra.mxu0 %v6429
      %v6512 = vpop.f32.mrf.mxu0
      %v6513 = vadd.f32 0.0, %v6512
      %v6514 = vpop.f32.mrf.mxu0
      %6515 = vdwg.mxu0
      %v6517 = vsel %vm669, %v2578, 0
      %v6520 = vsel %vm669, %v2579, 0
      %v6523 = vsel %vm669, %v2580, 0
      %v6526 = vsel %vm669, %v2581, 0
      %6528 = vmatprep.subr.mxu0 0.0
      %6529 = vmatpush1.msra.mxu0 0.0
      %6530 = vmatprep.subr.mxu0 0.0
      %6531 = vmatpush1.msra.mxu0 0.0
      %6532 = vmatprep.subr.mxu0 0.0
      %6533 = vmatpush1.msra.mxu0 0.0
      %6534 = vmatprep.subr.mxu0 0.0
      %6535 = vmatpush1.msra.mxu0 0.0
      %6536 = vmatprep.subr.mxu0 0.0
      %6537 = vmatpush1.msra.mxu0 0.0
      %6538 = vmatprep.subr.mxu0 0.0
      %6539 = vmatpush1.msra.mxu0 0.0
      %6540 = vmatprep.subr.mxu0 0.0
      %6541 = vmatpush1.msra.mxu0 0.0
      %6542 = vmatprep.subr.mxu0 0.0
      %6543 = vmatpush1.msra.mxu0 0.0
      %6544 = vmatprep.subr.mxu0 0.0
      %6545 = vmatpush1.msra.mxu0 0.0
      %6546 = vmatprep.subr.mxu0 0.0
      %6547 = vmatpush1.msra.mxu0 0.0
      %6548 = vmatprep.subr.mxu0 0.0
      %6549 = vmatpush1.msra.mxu0 0.0
      %6550 = vmatprep.subr.mxu0 0.0
      %6551 = vmatpush1.msra.mxu0 0.0
      %6552 = vmatprep.subr.mxu0 0.0
      %6553 = vmatpush1.msra.mxu0 %v444
      %6554 = vmatprep.subr.mxu0 0.0
      %6555 = vmatpush1.msra.mxu0 %v443
      %6556 = vmatprep.subr.mxu0 0.0
      %6557 = vmatpush1.msra.mxu0 %v442
      %6558 = vmatprep.subr.mxu0 0.0
      %6559 = vmatpush1.msra.mxu0 %v441
      %6560 = vmatprep.subr.mxu0 0.0
      %6561 = vmatpush2.msra.mxu0 0.0
      %6562 = vmatprep.subr.mxu0 0.0
      %6563 = vmatpush2.msra.mxu0 0.0
      %6564 = vmatprep.subr.mxu0 0.0
      %6565 = vmatpush2.msra.mxu0 0.0
      %6566 = vmatprep.subr.mxu0 0.0
      %6567 = vmatpush2.msra.mxu0 0.0
      %6568 = vmatprep.subr.mxu0 0.0
      %6569 = vmatpush2.msra.mxu0 0.0
      %6570 = vmatprep.subr.mxu0 0.0
      %6571 = vmatpush2.msra.mxu0 0.0
      %6572 = vmatprep.subr.mxu0 0.0
      %6573 = vmatpush2.msra.mxu0 0.0
      %6574 = vmatprep.subr.mxu0 0.0
      %6575 = vmatpush2.msra.mxu0 0.0
      %6576 = vmatprep.subr.mxu0 0.0
      %6577 = vmatpush2.msra.mxu0 0.0
      %6578 = vmatprep.subr.mxu0 0.0
      %6579 = vmatpush2.msra.mxu0 0.0
      %6580 = vmatprep.subr.mxu0 0.0
      %6581 = vmatpush2.msra.mxu0 0.0
      %6582 = vmatprep.subr.mxu0 0.0
      %6583 = vmatpush2.msra.mxu0 0.0
      %6584 = vmatprep.subr.mxu0 0.0
      %6585 = vmatpush2.msra.mxu0 0.0
      %6586 = vmatprep.subr.mxu0 0.0
      %6587 = vmatpush2.msra.mxu0 0.0
      %6588 = vmatprep.subr.mxu0 0.0
      %6589 = vmatpush2.msra.mxu0 0.0
      %6590 = vmatprep.subr.mxu0 0.0
      %6591 = vmatpush2.msra.mxu0 0.0
      %6592 = vmatprep.mubr.f32.mxu0 0.0
      %6593 = vmatmul.mubr.f32.gmra.mxu0 %v6517
      %v6594 = vpop.f32.mrf.mxu0
      %v6595 = vadd.f32 0.0, %v6594
      %v6596 = vpop.f32.mrf.mxu0
      %6597 = vmatprep.mubr.f32.mxu0 0.0
      %6598 = vmatmul.mubr.f32.gmra.mxu0 %v6520
      %v6599 = vpop.f32.mrf.mxu0
      %v6600 = vadd.f32 0.0, %v6599
      %v6601 = vpop.f32.mrf.mxu0
      %6602 = vmatprep.mubr.f32.mxu0 0.0
      %6603 = vmatmul.mubr.f32.gmra.mxu0 %v6523
      %v6604 = vpop.f32.mrf.mxu0
      %v6605 = vadd.f32 0.0, %v6604
      %v6606 = vpop.f32.mrf.mxu0
      %6607 = vmatprep.mubr.f32.mxu0 0.0
      %6608 = vmatmul.mubr.f32.gmra.mxu0 %v6526
      %v6609 = vpop.f32.mrf.mxu0
      %v6610 = vadd.f32 0.0, %v6609
      %v6611 = vpop.f32.mrf.mxu0
      %6612 = vdwg.mxu0
      %v6614 = vsel %vm669, %v2582, 0
      %v6617 = vsel %vm669, %v2583, 0
      %v6620 = vsel %vm669, %v2584, 0
      %v6623 = vsel %vm669, %v2585, 0
      %6625 = vmatprep.subr.mxu0 0.0
      %6626 = vmatpush1.msra.mxu0 0.0
      %6627 = vmatprep.subr.mxu0 0.0
      %6628 = vmatpush1.msra.mxu0 0.0
      %6629 = vmatprep.subr.mxu0 0.0
      %6630 = vmatpush1.msra.mxu0 0.0
      %6631 = vmatprep.subr.mxu0 0.0
      %6632 = vmatpush1.msra.mxu0 0.0
      %6633 = vmatprep.subr.mxu0 0.0
      %6634 = vmatpush1.msra.mxu0 0.0
      %6635 = vmatprep.subr.mxu0 0.0
      %6636 = vmatpush1.msra.mxu0 0.0
      %6637 = vmatprep.subr.mxu0 0.0
      %6638 = vmatpush1.msra.mxu0 0.0
      %6639 = vmatprep.subr.mxu0 0.0
      %6640 = vmatpush1.msra.mxu0 0.0
      %6641 = vmatprep.subr.mxu0 0.0
      %6642 = vmatpush1.msra.mxu0 0.0
      %6643 = vmatprep.subr.mxu0 0.0
      %6644 = vmatpush1.msra.mxu0 0.0
      %6645 = vmatprep.subr.mxu0 0.0
      %6646 = vmatpush1.msra.mxu0 0.0
      %6647 = vmatprep.subr.mxu0 0.0
      %6648 = vmatpush1.msra.mxu0 0.0
      %6649 = vmatprep.subr.mxu0 0.0
      %6650 = vmatpush1.msra.mxu0 %v448
      %6651 = vmatprep.subr.mxu0 0.0
      %6652 = vmatpush1.msra.mxu0 %v447
      %6653 = vmatprep.subr.mxu0 0.0
      %6654 = vmatpush1.msra.mxu0 %v446
      %6655 = vmatprep.subr.mxu0 0.0
      %6656 = vmatpush1.msra.mxu0 %v445
      %6657 = vmatprep.subr.mxu0 0.0
      %6658 = vmatpush2.msra.mxu0 0.0
      %6659 = vmatprep.subr.mxu0 0.0
      %6660 = vmatpush2.msra.mxu0 0.0
      %6661 = vmatprep.subr.mxu0 0.0
      %6662 = vmatpush2.msra.mxu0 0.0
      %6663 = vmatprep.subr.mxu0 0.0
      %6664 = vmatpush2.msra.mxu0 0.0
      %6665 = vmatprep.subr.mxu0 0.0
      %6666 = vmatpush2.msra.mxu0 0.0
      %6667 = vmatprep.subr.mxu0 0.0
      %6668 = vmatpush2.msra.mxu0 0.0
      %6669 = vmatprep.subr.mxu0 0.0
      %6670 = vmatpush2.msra.mxu0 0.0
      %6671 = vmatprep.subr.mxu0 0.0
      %6672 = vmatpush2.msra.mxu0 0.0
      %6673 = vmatprep.subr.mxu0 0.0
      %6674 = vmatpush2.msra.mxu0 0.0
      %6675 = vmatprep.subr.mxu0 0.0
      %6676 = vmatpush2.msra.mxu0 0.0
      %6677 = vmatprep.subr.mxu0 0.0
      %6678 = vmatpush2.msra.mxu0 0.0
      %6679 = vmatprep.subr.mxu0 0.0
      %6680 = vmatpush2.msra.mxu0 0.0
      %6681 = vmatprep.subr.mxu0 0.0
      %6682 = vmatpush2.msra.mxu0 0.0
      %6683 = vmatprep.subr.mxu0 0.0
      %6684 = vmatpush2.msra.mxu0 0.0
      %6685 = vmatprep.subr.mxu0 0.0
      %6686 = vmatpush2.msra.mxu0 0.0
      %6687 = vmatprep.subr.mxu0 0.0
      %6688 = vmatpush2.msra.mxu0 0.0
      %6689 = vmatprep.mubr.f32.mxu0 0.0
      %6690 = vmatmul.mubr.f32.gmra.mxu0 %v6614
      %v6691 = vpop.f32.mrf.mxu0
      %v6692 = vadd.f32 0.0, %v6691
      %v6693 = vpop.f32.mrf.mxu0
      %6694 = vmatprep.mubr.f32.mxu0 0.0
      %6695 = vmatmul.mubr.f32.gmra.mxu0 %v6617
      %v6696 = vpop.f32.mrf.mxu0
      %v6697 = vadd.f32 0.0, %v6696
      %v6698 = vpop.f32.mrf.mxu0
      %6699 = vmatprep.mubr.f32.mxu0 0.0
      %6700 = vmatmul.mubr.f32.gmra.mxu0 %v6620
      %v6701 = vpop.f32.mrf.mxu0
      %v6702 = vadd.f32 0.0, %v6701
      %v6703 = vpop.f32.mrf.mxu0
      %6704 = vmatprep.mubr.f32.mxu0 0.0
      %6705 = vmatmul.mubr.f32.gmra.mxu0 %v6623
      %v6706 = vpop.f32.mrf.mxu0
      %v6707 = vadd.f32 0.0, %v6706
      %v6708 = vpop.f32.mrf.mxu0
      %6709 = vdwg.mxu0
      %v6711 = vsel %vm669, %v2586, 0
      %v6714 = vsel %vm669, %v2587, 0
      %v6717 = vsel %vm669, %v2588, 0
      %v6720 = vsel %vm669, %v2589, 0
      %6722 = vmatprep.subr.mxu0 0.0
      %6723 = vmatpush1.msra.mxu0 0.0
      %6724 = vmatprep.subr.mxu0 0.0
      %6725 = vmatpush1.msra.mxu0 0.0
      %6726 = vmatprep.subr.mxu0 0.0
      %6727 = vmatpush1.msra.mxu0 0.0
      %6728 = vmatprep.subr.mxu0 0.0
      %6729 = vmatpush1.msra.mxu0 0.0
      %6730 = vmatprep.subr.mxu0 0.0
      %6731 = vmatpush1.msra.mxu0 0.0
      %6732 = vmatprep.subr.mxu0 0.0
      %6733 = vmatpush1.msra.mxu0 0.0
      %6734 = vmatprep.subr.mxu0 0.0
      %6735 = vmatpush1.msra.mxu0 0.0
      %6736 = vmatprep.subr.mxu0 0.0
      %6737 = vmatpush1.msra.mxu0 0.0
      %6738 = vmatprep.subr.mxu0 0.0
      %6739 = vmatpush1.msra.mxu0 0.0
      %6740 = vmatprep.subr.mxu0 0.0
      %6741 = vmatpush1.msra.mxu0 0.0
      %6742 = vmatprep.subr.mxu0 0.0
      %6743 = vmatpush1.msra.mxu0 0.0
      %6744 = vmatprep.subr.mxu0 0.0
      %6745 = vmatpush1.msra.mxu0 0.0
      %6746 = vmatprep.subr.mxu0 0.0
      %6747 = vmatpush1.msra.mxu0 %v452
      %6748 = vmatprep.subr.mxu0 0.0
      %6749 = vmatpush1.msra.mxu0 %v451
      %6750 = vmatprep.subr.mxu0 0.0
      %6751 = vmatpush1.msra.mxu0 %v450
      %6752 = vmatprep.subr.mxu0 0.0
      %6753 = vmatpush1.msra.mxu0 %v449
      %6754 = vmatprep.subr.mxu0 0.0
      %6755 = vmatpush2.msra.mxu0 0.0
      %6756 = vmatprep.subr.mxu0 0.0
      %6757 = vmatpush2.msra.mxu0 0.0
      %6758 = vmatprep.subr.mxu0 0.0
      %6759 = vmatpush2.msra.mxu0 0.0
      %6760 = vmatprep.subr.mxu0 0.0
      %6761 = vmatpush2.msra.mxu0 0.0
      %6762 = vmatprep.subr.mxu0 0.0
      %6763 = vmatpush2.msra.mxu0 0.0
      %6764 = vmatprep.subr.mxu0 0.0
      %6765 = vmatpush2.msra.mxu0 0.0
      %6766 = vmatprep.subr.mxu0 0.0
      %6767 = vmatpush2.msra.mxu0 0.0
      %6768 = vmatprep.subr.mxu0 0.0
      %6769 = vmatpush2.msra.mxu0 0.0
      %6770 = vmatprep.subr.mxu0 0.0
      %6771 = vmatpush2.msra.mxu0 0.0
      %6772 = vmatprep.subr.mxu0 0.0
      %6773 = vmatpush2.msra.mxu0 0.0
      %6774 = vmatprep.subr.mxu0 0.0
      %6775 = vmatpush2.msra.mxu0 0.0
      %6776 = vmatprep.subr.mxu0 0.0
      %6777 = vmatpush2.msra.mxu0 0.0
      %6778 = vmatprep.subr.mxu0 0.0
      %6779 = vmatpush2.msra.mxu0 0.0
      %6780 = vmatprep.subr.mxu0 0.0
      %6781 = vmatpush2.msra.mxu0 0.0
      %6782 = vmatprep.subr.mxu0 0.0
      %6783 = vmatpush2.msra.mxu0 0.0
      %6784 = vmatprep.subr.mxu0 0.0
      %6785 = vmatpush2.msra.mxu0 0.0
      %6786 = vmatprep.mubr.f32.mxu0 0.0
      %6787 = vmatmul.mubr.f32.gmra.mxu0 %v6711
      %v6788 = vpop.f32.mrf.mxu0
      %v6789 = vadd.f32 0.0, %v6788
      %v6790 = vpop.f32.mrf.mxu0
      %6791 = vmatprep.mubr.f32.mxu0 0.0
      %6792 = vmatmul.mubr.f32.gmra.mxu0 %v6714
      %v6793 = vpop.f32.mrf.mxu0
      %v6794 = vadd.f32 0.0, %v6793
      %v6795 = vpop.f32.mrf.mxu0
      %6796 = vmatprep.mubr.f32.mxu0 0.0
      %6797 = vmatmul.mubr.f32.gmra.mxu0 %v6717
      %v6798 = vpop.f32.mrf.mxu0
      %v6799 = vadd.f32 0.0, %v6798
      %v6800 = vpop.f32.mrf.mxu0
      %6801 = vmatprep.mubr.f32.mxu0 0.0
      %6802 = vmatmul.mubr.f32.gmra.mxu0 %v6720
      %v6803 = vpop.f32.mrf.mxu0
      %v6804 = vadd.f32 0.0, %v6803
      %v6805 = vpop.f32.mrf.mxu0
      %6806 = vdwg.mxu0
      %v6808 = vsel %vm669, %v2590, 0
      %v6811 = vsel %vm669, %v2591, 0
      %v6814 = vsel %vm669, %v2592, 0
      %v6817 = vsel %vm669, %v2593, 0
      %6819 = vmatprep.subr.mxu0 0.0
      %6820 = vmatpush1.msra.mxu0 0.0
      %6821 = vmatprep.subr.mxu0 0.0
      %6822 = vmatpush1.msra.mxu0 0.0
      %6823 = vmatprep.subr.mxu0 0.0
      %6824 = vmatpush1.msra.mxu0 0.0
      %6825 = vmatprep.subr.mxu0 0.0
      %6826 = vmatpush1.msra.mxu0 0.0
      %6827 = vmatprep.subr.mxu0 0.0
      %6828 = vmatpush1.msra.mxu0 0.0
      %6829 = vmatprep.subr.mxu0 0.0
      %6830 = vmatpush1.msra.mxu0 0.0
      %6831 = vmatprep.subr.mxu0 0.0
      %6832 = vmatpush1.msra.mxu0 0.0
      %6833 = vmatprep.subr.mxu0 0.0
      %6834 = vmatpush1.msra.mxu0 0.0
      %6835 = vmatprep.subr.mxu0 0.0
      %6836 = vmatpush1.msra.mxu0 0.0
      %6837 = vmatprep.subr.mxu0 0.0
      %6838 = vmatpush1.msra.mxu0 0.0
      %6839 = vmatprep.subr.mxu0 0.0
      %6840 = vmatpush1.msra.mxu0 0.0
      %6841 = vmatprep.subr.mxu0 0.0
      %6842 = vmatpush1.msra.mxu0 0.0
      %6843 = vmatprep.subr.mxu0 0.0
      %6844 = vmatpush1.msra.mxu0 %v456
      %6845 = vmatprep.subr.mxu0 0.0
      %6846 = vmatpush1.msra.mxu0 %v455
      %6847 = vmatprep.subr.mxu0 0.0
      %6848 = vmatpush1.msra.mxu0 %v454
      %6849 = vmatprep.subr.mxu0 0.0
      %6850 = vmatpush1.msra.mxu0 %v453
      %6851 = vmatprep.subr.mxu0 0.0
      %6852 = vmatpush2.msra.mxu0 0.0
      %6853 = vmatprep.subr.mxu0 0.0
      %6854 = vmatpush2.msra.mxu0 0.0
      %6855 = vmatprep.subr.mxu0 0.0
      %6856 = vmatpush2.msra.mxu0 0.0
      %6857 = vmatprep.subr.mxu0 0.0
      %6858 = vmatpush2.msra.mxu0 0.0
      %6859 = vmatprep.subr.mxu0 0.0
      %6860 = vmatpush2.msra.mxu0 0.0
      %6861 = vmatprep.subr.mxu0 0.0
      %6862 = vmatpush2.msra.mxu0 0.0
      %6863 = vmatprep.subr.mxu0 0.0
      %6864 = vmatpush2.msra.mxu0 0.0
      %6865 = vmatprep.subr.mxu0 0.0
      %6866 = vmatpush2.msra.mxu0 0.0
      %6867 = vmatprep.subr.mxu0 0.0
      %6868 = vmatpush2.msra.mxu0 0.0
      %6869 = vmatprep.subr.mxu0 0.0
      %6870 = vmatpush2.msra.mxu0 0.0
      %6871 = vmatprep.subr.mxu0 0.0
      %6872 = vmatpush2.msra.mxu0 0.0
      %6873 = vmatprep.subr.mxu0 0.0
      %6874 = vmatpush2.msra.mxu0 0.0
      %6875 = vmatprep.subr.mxu0 0.0
      %6876 = vmatpush2.msra.mxu0 0.0
      %6877 = vmatprep.subr.mxu0 0.0
      %6878 = vmatpush2.msra.mxu0 0.0
      %6879 = vmatprep.subr.mxu0 0.0
      %6880 = vmatpush2.msra.mxu0 0.0
      %6881 = vmatprep.subr.mxu0 0.0
      %6882 = vmatpush2.msra.mxu0 0.0
      %6883 = vmatprep.mubr.f32.mxu0 0.0
      %6884 = vmatmul.mubr.f32.gmra.mxu0 %v6808
      %v6885 = vpop.f32.mrf.mxu0
      %v6886 = vadd.f32 0.0, %v6885
      %v6887 = vpop.f32.mrf.mxu0
      %6888 = vmatprep.mubr.f32.mxu0 0.0
      %6889 = vmatmul.mubr.f32.gmra.mxu0 %v6811
      %v6890 = vpop.f32.mrf.mxu0
      %v6891 = vadd.f32 0.0, %v6890
      %v6892 = vpop.f32.mrf.mxu0
      %6893 = vmatprep.mubr.f32.mxu0 0.0
      %6894 = vmatmul.mubr.f32.gmra.mxu0 %v6814
      %v6895 = vpop.f32.mrf.mxu0
      %v6896 = vadd.f32 0.0, %v6895
      %v6897 = vpop.f32.mrf.mxu0
      %6898 = vmatprep.mubr.f32.mxu0 0.0
      %6899 = vmatmul.mubr.f32.gmra.mxu0 %v6817
      %v6900 = vpop.f32.mrf.mxu0
      %v6901 = vadd.f32 0.0, %v6900
      %v6902 = vpop.f32.mrf.mxu0
      %6903 = vdwg.mxu0
      %v6905 = vsel %vm669, %v2594, 0
      %v6908 = vsel %vm669, %v2595, 0
      %v6911 = vsel %vm669, %v2596, 0
      %v6914 = vsel %vm669, %v2597, 0
      %6916 = vmatprep.subr.mxu0 0.0
      %6917 = vmatpush1.msra.mxu0 0.0
      %6918 = vmatprep.subr.mxu0 0.0
      %6919 = vmatpush1.msra.mxu0 0.0
      %6920 = vmatprep.subr.mxu0 0.0
      %6921 = vmatpush1.msra.mxu0 0.0
      %6922 = vmatprep.subr.mxu0 0.0
      %6923 = vmatpush1.msra.mxu0 0.0
      %6924 = vmatprep.subr.mxu0 0.0
      %6925 = vmatpush1.msra.mxu0 0.0
      %6926 = vmatprep.subr.mxu0 0.0
      %6927 = vmatpush1.msra.mxu0 0.0
      %6928 = vmatprep.subr.mxu0 0.0
      %6929 = vmatpush1.msra.mxu0 0.0
      %6930 = vmatprep.subr.mxu0 0.0
      %6931 = vmatpush1.msra.mxu0 0.0
      %6932 = vmatprep.subr.mxu0 0.0
      %6933 = vmatpush1.msra.mxu0 0.0
      %6934 = vmatprep.subr.mxu0 0.0
      %6935 = vmatpush1.msra.mxu0 0.0
      %6936 = vmatprep.subr.mxu0 0.0
      %6937 = vmatpush1.msra.mxu0 0.0
      %6938 = vmatprep.subr.mxu0 0.0
      %6939 = vmatpush1.msra.mxu0 0.0
      %6940 = vmatprep.subr.mxu0 0.0
      %6941 = vmatpush1.msra.mxu0 %v460
      %6942 = vmatprep.subr.mxu0 0.0
      %6943 = vmatpush1.msra.mxu0 %v459
      %6944 = vmatprep.subr.mxu0 0.0
      %6945 = vmatpush1.msra.mxu0 %v458
      %6946 = vmatprep.subr.mxu0 0.0
      %6947 = vmatpush1.msra.mxu0 %v457
      %6948 = vmatprep.subr.mxu0 0.0
      %6949 = vmatpush2.msra.mxu0 0.0
      %6950 = vmatprep.subr.mxu0 0.0
      %6951 = vmatpush2.msra.mxu0 0.0
      %6952 = vmatprep.subr.mxu0 0.0
      %6953 = vmatpush2.msra.mxu0 0.0
      %6954 = vmatprep.subr.mxu0 0.0
      %6955 = vmatpush2.msra.mxu0 0.0
      %6956 = vmatprep.subr.mxu0 0.0
      %6957 = vmatpush2.msra.mxu0 0.0
      %6958 = vmatprep.subr.mxu0 0.0
      %6959 = vmatpush2.msra.mxu0 0.0
      %6960 = vmatprep.subr.mxu0 0.0
      %6961 = vmatpush2.msra.mxu0 0.0
      %6962 = vmatprep.subr.mxu0 0.0
      %6963 = vmatpush2.msra.mxu0 0.0
      %6964 = vmatprep.subr.mxu0 0.0
      %6965 = vmatpush2.msra.mxu0 0.0
      %6966 = vmatprep.subr.mxu0 0.0
      %6967 = vmatpush2.msra.mxu0 0.0
      %6968 = vmatprep.subr.mxu0 0.0
      %6969 = vmatpush2.msra.mxu0 0.0
      %6970 = vmatprep.subr.mxu0 0.0
      %6971 = vmatpush2.msra.mxu0 0.0
      %6972 = vmatprep.subr.mxu0 0.0
      %6973 = vmatpush2.msra.mxu0 0.0
      %6974 = vmatprep.subr.mxu0 0.0
      %6975 = vmatpush2.msra.mxu0 0.0
      %6976 = vmatprep.subr.mxu0 0.0
      %6977 = vmatpush2.msra.mxu0 0.0
      %6978 = vmatprep.subr.mxu0 0.0
      %6979 = vmatpush2.msra.mxu0 0.0
      %6980 = vmatprep.mubr.f32.mxu0 0.0
      %6981 = vmatmul.mubr.f32.gmra.mxu0 %v6905
      %v6982 = vpop.f32.mrf.mxu0
      %v6983 = vadd.f32 0.0, %v6982
      %v6984 = vpop.f32.mrf.mxu0
      %6985 = vmatprep.mubr.f32.mxu0 0.0
      %6986 = vmatmul.mubr.f32.gmra.mxu0 %v6908
      %v6987 = vpop.f32.mrf.mxu0
      %v6988 = vadd.f32 0.0, %v6987
      %v6989 = vpop.f32.mrf.mxu0
      %6990 = vmatprep.mubr.f32.mxu0 0.0
      %6991 = vmatmul.mubr.f32.gmra.mxu0 %v6911
      %v6992 = vpop.f32.mrf.mxu0
      %v6993 = vadd.f32 0.0, %v6992
      %v6994 = vpop.f32.mrf.mxu0
      %6995 = vmatprep.mubr.f32.mxu0 0.0
      %6996 = vmatmul.mubr.f32.gmra.mxu0 %v6914
      %v6997 = vpop.f32.mrf.mxu0
      %v6998 = vadd.f32 0.0, %v6997
      %v6999 = vpop.f32.mrf.mxu0
      %7000 = vdwg.mxu0
      %v7002 = vsel %vm669, %v2598, 0
      %v7005 = vsel %vm669, %v2599, 0
      %v7008 = vsel %vm669, %v2600, 0
      %v7011 = vsel %vm669, %v2601, 0
      %7013 = vmatprep.subr.mxu0 0.0
      %7014 = vmatpush1.msra.mxu0 0.0
      %7015 = vmatprep.subr.mxu0 0.0
      %7016 = vmatpush1.msra.mxu0 0.0
      %7017 = vmatprep.subr.mxu0 0.0
      %7018 = vmatpush1.msra.mxu0 0.0
      %7019 = vmatprep.subr.mxu0 0.0
      %7020 = vmatpush1.msra.mxu0 0.0
      %7021 = vmatprep.subr.mxu0 0.0
      %7022 = vmatpush1.msra.mxu0 0.0
      %7023 = vmatprep.subr.mxu0 0.0
      %7024 = vmatpush1.msra.mxu0 0.0
      %7025 = vmatprep.subr.mxu0 0.0
      %7026 = vmatpush1.msra.mxu0 0.0
      %7027 = vmatprep.subr.mxu0 0.0
      %7028 = vmatpush1.msra.mxu0 0.0
      %7029 = vmatprep.subr.mxu0 0.0
      %7030 = vmatpush1.msra.mxu0 0.0
      %7031 = vmatprep.subr.mxu0 0.0
      %7032 = vmatpush1.msra.mxu0 0.0
      %7033 = vmatprep.subr.mxu0 0.0
      %7034 = vmatpush1.msra.mxu0 0.0
      %7035 = vmatprep.subr.mxu0 0.0
      %7036 = vmatpush1.msra.mxu0 0.0
      %7037 = vmatprep.subr.mxu0 0.0
      %7038 = vmatpush1.msra.mxu0 %v464
      %7039 = vmatprep.subr.mxu0 0.0
      %7040 = vmatpush1.msra.mxu0 %v463
      %7041 = vmatprep.subr.mxu0 0.0
      %7042 = vmatpush1.msra.mxu0 %v462
      %7043 = vmatprep.subr.mxu0 0.0
      %7044 = vmatpush1.msra.mxu0 %v461
      %7045 = vmatprep.subr.mxu0 0.0
      %7046 = vmatpush2.msra.mxu0 0.0
      %7047 = vmatprep.subr.mxu0 0.0
      %7048 = vmatpush2.msra.mxu0 0.0
      %7049 = vmatprep.subr.mxu0 0.0
      %7050 = vmatpush2.msra.mxu0 0.0
      %7051 = vmatprep.subr.mxu0 0.0
      %7052 = vmatpush2.msra.mxu0 0.0
      %7053 = vmatprep.subr.mxu0 0.0
      %7054 = vmatpush2.msra.mxu0 0.0
      %7055 = vmatprep.subr.mxu0 0.0
      %7056 = vmatpush2.msra.mxu0 0.0
      %7057 = vmatprep.subr.mxu0 0.0
      %7058 = vmatpush2.msra.mxu0 0.0
      %7059 = vmatprep.subr.mxu0 0.0
      %7060 = vmatpush2.msra.mxu0 0.0
      %7061 = vmatprep.subr.mxu0 0.0
      %7062 = vmatpush2.msra.mxu0 0.0
      %7063 = vmatprep.subr.mxu0 0.0
      %7064 = vmatpush2.msra.mxu0 0.0
      %7065 = vmatprep.subr.mxu0 0.0
      %7066 = vmatpush2.msra.mxu0 0.0
      %7067 = vmatprep.subr.mxu0 0.0
      %7068 = vmatpush2.msra.mxu0 0.0
      %7069 = vmatprep.subr.mxu0 0.0
      %7070 = vmatpush2.msra.mxu0 0.0
      %7071 = vmatprep.subr.mxu0 0.0
      %7072 = vmatpush2.msra.mxu0 0.0
      %7073 = vmatprep.subr.mxu0 0.0
      %7074 = vmatpush2.msra.mxu0 0.0
      %7075 = vmatprep.subr.mxu0 0.0
      %7076 = vmatpush2.msra.mxu0 0.0
      %7077 = vmatprep.mubr.f32.mxu0 0.0
      %7078 = vmatmul.mubr.f32.gmra.mxu0 %v7002
      %v7079 = vpop.f32.mrf.mxu0
      %v7080 = vadd.f32 0.0, %v7079
      %v7081 = vpop.f32.mrf.mxu0
      %7082 = vmatprep.mubr.f32.mxu0 0.0
      %7083 = vmatmul.mubr.f32.gmra.mxu0 %v7005
      %v7084 = vpop.f32.mrf.mxu0
      %v7085 = vadd.f32 0.0, %v7084
      %v7086 = vpop.f32.mrf.mxu0
      %7087 = vmatprep.mubr.f32.mxu0 0.0
      %7088 = vmatmul.mubr.f32.gmra.mxu0 %v7008
      %v7089 = vpop.f32.mrf.mxu0
      %v7090 = vadd.f32 0.0, %v7089
      %v7091 = vpop.f32.mrf.mxu0
      %7092 = vmatprep.mubr.f32.mxu0 0.0
      %7093 = vmatmul.mubr.f32.gmra.mxu0 %v7011
      %v7094 = vpop.f32.mrf.mxu0
      %v7095 = vadd.f32 0.0, %v7094
      %v7096 = vpop.f32.mrf.mxu0
      %7097 = vdwg.mxu0
      %v7099 = vsel %vm669, %v2602, 0
      %v7102 = vsel %vm669, %v2603, 0
      %v7105 = vsel %vm669, %v2604, 0
      %v7108 = vsel %vm669, %v2605, 0
      %7110 = vmatprep.subr.mxu0 0.0
      %7111 = vmatpush1.msra.mxu0 0.0
      %7112 = vmatprep.subr.mxu0 0.0
      %7113 = vmatpush1.msra.mxu0 0.0
      %7114 = vmatprep.subr.mxu0 0.0
      %7115 = vmatpush1.msra.mxu0 0.0
      %7116 = vmatprep.subr.mxu0 0.0
      %7117 = vmatpush1.msra.mxu0 0.0
      %7118 = vmatprep.subr.mxu0 0.0
      %7119 = vmatpush1.msra.mxu0 0.0
      %7120 = vmatprep.subr.mxu0 0.0
      %7121 = vmatpush1.msra.mxu0 0.0
      %7122 = vmatprep.subr.mxu0 0.0
      %7123 = vmatpush1.msra.mxu0 0.0
      %7124 = vmatprep.subr.mxu0 0.0
      %7125 = vmatpush1.msra.mxu0 0.0
      %7126 = vmatprep.subr.mxu0 0.0
      %7127 = vmatpush1.msra.mxu0 0.0
      %7128 = vmatprep.subr.mxu0 0.0
      %7129 = vmatpush1.msra.mxu0 0.0
      %7130 = vmatprep.subr.mxu0 0.0
      %7131 = vmatpush1.msra.mxu0 0.0
      %7132 = vmatprep.subr.mxu0 0.0
      %7133 = vmatpush1.msra.mxu0 0.0
      %7134 = vmatprep.subr.mxu0 0.0
      %7135 = vmatpush1.msra.mxu0 %v468
      %7136 = vmatprep.subr.mxu0 0.0
      %7137 = vmatpush1.msra.mxu0 %v467
      %7138 = vmatprep.subr.mxu0 0.0
      %7139 = vmatpush1.msra.mxu0 %v466
      %7140 = vmatprep.subr.mxu0 0.0
      %7141 = vmatpush1.msra.mxu0 %v465
      %7142 = vmatprep.subr.mxu0 0.0
      %7143 = vmatpush2.msra.mxu0 0.0
      %7144 = vmatprep.subr.mxu0 0.0
      %7145 = vmatpush2.msra.mxu0 0.0
      %7146 = vmatprep.subr.mxu0 0.0
      %7147 = vmatpush2.msra.mxu0 0.0
      %7148 = vmatprep.subr.mxu0 0.0
      %7149 = vmatpush2.msra.mxu0 0.0
      %7150 = vmatprep.subr.mxu0 0.0
      %7151 = vmatpush2.msra.mxu0 0.0
      %7152 = vmatprep.subr.mxu0 0.0
      %7153 = vmatpush2.msra.mxu0 0.0
      %7154 = vmatprep.subr.mxu0 0.0
      %7155 = vmatpush2.msra.mxu0 0.0
      %7156 = vmatprep.subr.mxu0 0.0
      %7157 = vmatpush2.msra.mxu0 0.0
      %7158 = vmatprep.subr.mxu0 0.0
      %7159 = vmatpush2.msra.mxu0 0.0
      %7160 = vmatprep.subr.mxu0 0.0
      %7161 = vmatpush2.msra.mxu0 0.0
      %7162 = vmatprep.subr.mxu0 0.0
      %7163 = vmatpush2.msra.mxu0 0.0
      %7164 = vmatprep.subr.mxu0 0.0
      %7165 = vmatpush2.msra.mxu0 0.0
      %7166 = vmatprep.subr.mxu0 0.0
      %7167 = vmatpush2.msra.mxu0 0.0
      %7168 = vmatprep.subr.mxu0 0.0
      %7169 = vmatpush2.msra.mxu0 0.0
      %7170 = vmatprep.subr.mxu0 0.0
      %7171 = vmatpush2.msra.mxu0 0.0
      %7172 = vmatprep.subr.mxu0 0.0
      %7173 = vmatpush2.msra.mxu0 0.0
      %7174 = vmatprep.mubr.f32.mxu0 0.0
      %7175 = vmatmul.mubr.f32.gmra.mxu0 %v7099
      %v7176 = vpop.f32.mrf.mxu0
      %v7177 = vadd.f32 0.0, %v7176
      %v7178 = vpop.f32.mrf.mxu0
      %7179 = vmatprep.mubr.f32.mxu0 0.0
      %7180 = vmatmul.mubr.f32.gmra.mxu0 %v7102
      %v7181 = vpop.f32.mrf.mxu0
      %v7182 = vadd.f32 0.0, %v7181
      %v7183 = vpop.f32.mrf.mxu0
      %7184 = vmatprep.mubr.f32.mxu0 0.0
      %7185 = vmatmul.mubr.f32.gmra.mxu0 %v7105
      %v7186 = vpop.f32.mrf.mxu0
      %v7187 = vadd.f32 0.0, %v7186
      %v7188 = vpop.f32.mrf.mxu0
      %7189 = vmatprep.mubr.f32.mxu0 0.0
      %7190 = vmatmul.mubr.f32.gmra.mxu0 %v7108
      %v7191 = vpop.f32.mrf.mxu0
      %v7192 = vadd.f32 0.0, %v7191
      %v7193 = vpop.f32.mrf.mxu0
      %7194 = vdwg.mxu0
      %v7196 = vsel %vm669, %v2606, 0
      %v7199 = vsel %vm669, %v2607, 0
      %v7202 = vsel %vm669, %v2608, 0
      %v7205 = vsel %vm669, %v2609, 0
      %7207 = vmatprep.subr.mxu0 0.0
      %7208 = vmatpush1.msra.mxu0 0.0
      %7209 = vmatprep.subr.mxu0 0.0
      %7210 = vmatpush1.msra.mxu0 0.0
      %7211 = vmatprep.subr.mxu0 0.0
      %7212 = vmatpush1.msra.mxu0 0.0
      %7213 = vmatprep.subr.mxu0 0.0
      %7214 = vmatpush1.msra.mxu0 0.0
      %7215 = vmatprep.subr.mxu0 0.0
      %7216 = vmatpush1.msra.mxu0 0.0
      %7217 = vmatprep.subr.mxu0 0.0
      %7218 = vmatpush1.msra.mxu0 0.0
      %7219 = vmatprep.subr.mxu0 0.0
      %7220 = vmatpush1.msra.mxu0 0.0
      %7221 = vmatprep.subr.mxu0 0.0
      %7222 = vmatpush1.msra.mxu0 0.0
      %7223 = vmatprep.subr.mxu0 0.0
      %7224 = vmatpush1.msra.mxu0 0.0
      %7225 = vmatprep.subr.mxu0 0.0
      %7226 = vmatpush1.msra.mxu0 0.0
      %7227 = vmatprep.subr.mxu0 0.0
      %7228 = vmatpush1.msra.mxu0 0.0
      %7229 = vmatprep.subr.mxu0 0.0
      %7230 = vmatpush1.msra.mxu0 0.0
      %7231 = vmatprep.subr.mxu0 0.0
      %7232 = vmatpush1.msra.mxu0 %v472
      %7233 = vmatprep.subr.mxu0 0.0
      %7234 = vmatpush1.msra.mxu0 %v471
      %7235 = vmatprep.subr.mxu0 0.0
      %7236 = vmatpush1.msra.mxu0 %v470
      %7237 = vmatprep.subr.mxu0 0.0
      %7238 = vmatpush1.msra.mxu0 %v469
      %7239 = vmatprep.subr.mxu0 0.0
      %7240 = vmatpush2.msra.mxu0 0.0
      %7241 = vmatprep.subr.mxu0 0.0
      %7242 = vmatpush2.msra.mxu0 0.0
      %7243 = vmatprep.subr.mxu0 0.0
      %7244 = vmatpush2.msra.mxu0 0.0
      %7245 = vmatprep.subr.mxu0 0.0
      %7246 = vmatpush2.msra.mxu0 0.0
      %7247 = vmatprep.subr.mxu0 0.0
      %7248 = vmatpush2.msra.mxu0 0.0
      %7249 = vmatprep.subr.mxu0 0.0
      %7250 = vmatpush2.msra.mxu0 0.0
      %7251 = vmatprep.subr.mxu0 0.0
      %7252 = vmatpush2.msra.mxu0 0.0
      %7253 = vmatprep.subr.mxu0 0.0
      %7254 = vmatpush2.msra.mxu0 0.0
      %7255 = vmatprep.subr.mxu0 0.0
      %7256 = vmatpush2.msra.mxu0 0.0
      %7257 = vmatprep.subr.mxu0 0.0
      %7258 = vmatpush2.msra.mxu0 0.0
      %7259 = vmatprep.subr.mxu0 0.0
      %7260 = vmatpush2.msra.mxu0 0.0
      %7261 = vmatprep.subr.mxu0 0.0
      %7262 = vmatpush2.msra.mxu0 0.0
      %7263 = vmatprep.subr.mxu0 0.0
      %7264 = vmatpush2.msra.mxu0 0.0
      %7265 = vmatprep.subr.mxu0 0.0
      %7266 = vmatpush2.msra.mxu0 0.0
      %7267 = vmatprep.subr.mxu0 0.0
      %7268 = vmatpush2.msra.mxu0 0.0
      %7269 = vmatprep.subr.mxu0 0.0
      %7270 = vmatpush2.msra.mxu0 0.0
      %7271 = vmatprep.mubr.f32.mxu0 0.0
      %7272 = vmatmul.mubr.f32.gmra.mxu0 %v7196
      %v7273 = vpop.f32.mrf.mxu0
      %v7274 = vadd.f32 0.0, %v7273
      %v7275 = vpop.f32.mrf.mxu0
      %7276 = vmatprep.mubr.f32.mxu0 0.0
      %7277 = vmatmul.mubr.f32.gmra.mxu0 %v7199
      %v7278 = vpop.f32.mrf.mxu0
      %v7279 = vadd.f32 0.0, %v7278
      %v7280 = vpop.f32.mrf.mxu0
      %7281 = vmatprep.mubr.f32.mxu0 0.0
      %7282 = vmatmul.mubr.f32.gmra.mxu0 %v7202
      %v7283 = vpop.f32.mrf.mxu0
      %v7284 = vadd.f32 0.0, %v7283
      %v7285 = vpop.f32.mrf.mxu0
      %7286 = vmatprep.mubr.f32.mxu0 0.0
      %7287 = vmatmul.mubr.f32.gmra.mxu0 %v7205
      %v7288 = vpop.f32.mrf.mxu0
      %v7289 = vadd.f32 0.0, %v7288
      %v7290 = vpop.f32.mrf.mxu0
      %7291 = vdwg.mxu0
      %v7293 = vsel %vm669, %v2610, 0
      %v7296 = vsel %vm669, %v2611, 0
      %v7299 = vsel %vm669, %v2612, 0
      %v7302 = vsel %vm669, %v2613, 0
      %7304 = vmatprep.subr.mxu0 0.0
      %7305 = vmatpush1.msra.mxu0 0.0
      %7306 = vmatprep.subr.mxu0 0.0
      %7307 = vmatpush1.msra.mxu0 0.0
      %7308 = vmatprep.subr.mxu0 0.0
      %7309 = vmatpush1.msra.mxu0 0.0
      %7310 = vmatprep.subr.mxu0 0.0
      %7311 = vmatpush1.msra.mxu0 0.0
      %7312 = vmatprep.subr.mxu0 0.0
      %7313 = vmatpush1.msra.mxu0 0.0
      %7314 = vmatprep.subr.mxu0 0.0
      %7315 = vmatpush1.msra.mxu0 0.0
      %7316 = vmatprep.subr.mxu0 0.0
      %7317 = vmatpush1.msra.mxu0 0.0
      %7318 = vmatprep.subr.mxu0 0.0
      %7319 = vmatpush1.msra.mxu0 0.0
      %7320 = vmatprep.subr.mxu0 0.0
      %7321 = vmatpush1.msra.mxu0 0.0
      %7322 = vmatprep.subr.mxu0 0.0
      %7323 = vmatpush1.msra.mxu0 0.0
      %7324 = vmatprep.subr.mxu0 0.0
      %7325 = vmatpush1.msra.mxu0 0.0
      %7326 = vmatprep.subr.mxu0 0.0
      %7327 = vmatpush1.msra.mxu0 0.0
      %7328 = vmatprep.subr.mxu0 0.0
      %7329 = vmatpush1.msra.mxu0 %v476
      %7330 = vmatprep.subr.mxu0 0.0
      %7331 = vmatpush1.msra.mxu0 %v475
      %7332 = vmatprep.subr.mxu0 0.0
      %7333 = vmatpush1.msra.mxu0 %v474
      %7334 = vmatprep.subr.mxu0 0.0
      %7335 = vmatpush1.msra.mxu0 %v473
      %7336 = vmatprep.subr.mxu0 0.0
      %7337 = vmatpush2.msra.mxu0 0.0
      %7338 = vmatprep.subr.mxu0 0.0
      %7339 = vmatpush2.msra.mxu0 0.0
      %7340 = vmatprep.subr.mxu0 0.0
      %7341 = vmatpush2.msra.mxu0 0.0
      %7342 = vmatprep.subr.mxu0 0.0
      %7343 = vmatpush2.msra.mxu0 0.0
      %7344 = vmatprep.subr.mxu0 0.0
      %7345 = vmatpush2.msra.mxu0 0.0
      %7346 = vmatprep.subr.mxu0 0.0
      %7347 = vmatpush2.msra.mxu0 0.0
      %7348 = vmatprep.subr.mxu0 0.0
      %7349 = vmatpush2.msra.mxu0 0.0
      %7350 = vmatprep.subr.mxu0 0.0
      %7351 = vmatpush2.msra.mxu0 0.0
      %7352 = vmatprep.subr.mxu0 0.0
      %7353 = vmatpush2.msra.mxu0 0.0
      %7354 = vmatprep.subr.mxu0 0.0
      %7355 = vmatpush2.msra.mxu0 0.0
      %7356 = vmatprep.subr.mxu0 0.0
      %7357 = vmatpush2.msra.mxu0 0.0
      %7358 = vmatprep.subr.mxu0 0.0
      %7359 = vmatpush2.msra.mxu0 0.0
      %7360 = vmatprep.subr.mxu0 0.0
      %7361 = vmatpush2.msra.mxu0 0.0
      %7362 = vmatprep.subr.mxu0 0.0
      %7363 = vmatpush2.msra.mxu0 0.0
      %7364 = vmatprep.subr.mxu0 0.0
      %7365 = vmatpush2.msra.mxu0 0.0
      %7366 = vmatprep.subr.mxu0 0.0
      %7367 = vmatpush2.msra.mxu0 0.0
      %7368 = vmatprep.mubr.f32.mxu0 0.0
      %7369 = vmatmul.mubr.f32.gmra.mxu0 %v7293
      %v7370 = vpop.f32.mrf.mxu0
      %v7371 = vadd.f32 0.0, %v7370
      %v7372 = vpop.f32.mrf.mxu0
      %7373 = vmatprep.mubr.f32.mxu0 0.0
      %7374 = vmatmul.mubr.f32.gmra.mxu0 %v7296
      %v7375 = vpop.f32.mrf.mxu0
      %v7376 = vadd.f32 0.0, %v7375
      %v7377 = vpop.f32.mrf.mxu0
      %7378 = vmatprep.mubr.f32.mxu0 0.0
      %7379 = vmatmul.mubr.f32.gmra.mxu0 %v7299
      %v7380 = vpop.f32.mrf.mxu0
      %v7381 = vadd.f32 0.0, %v7380
      %v7382 = vpop.f32.mrf.mxu0
      %7383 = vmatprep.mubr.f32.mxu0 0.0
      %7384 = vmatmul.mubr.f32.gmra.mxu0 %v7302
      %v7385 = vpop.f32.mrf.mxu0
      %v7386 = vadd.f32 0.0, %v7385
      %v7387 = vpop.f32.mrf.mxu0
      %7388 = vdwg.mxu0
      %v7390 = vsel %vm669, %v2614, 0
      %v7393 = vsel %vm669, %v2615, 0
      %v7396 = vsel %vm669, %v2616, 0
      %v7399 = vsel %vm669, %v2617, 0
      %7401 = vmatprep.subr.mxu0 0.0
      %7402 = vmatpush1.msra.mxu0 0.0
      %7403 = vmatprep.subr.mxu0 0.0
      %7404 = vmatpush1.msra.mxu0 0.0
      %7405 = vmatprep.subr.mxu0 0.0
      %7406 = vmatpush1.msra.mxu0 0.0
      %7407 = vmatprep.subr.mxu0 0.0
      %7408 = vmatpush1.msra.mxu0 0.0
      %7409 = vmatprep.subr.mxu0 0.0
      %7410 = vmatpush1.msra.mxu0 0.0
      %7411 = vmatprep.subr.mxu0 0.0
      %7412 = vmatpush1.msra.mxu0 0.0
      %7413 = vmatprep.subr.mxu0 0.0
      %7414 = vmatpush1.msra.mxu0 0.0
      %7415 = vmatprep.subr.mxu0 0.0
      %7416 = vmatpush1.msra.mxu0 0.0
      %7417 = vmatprep.subr.mxu0 0.0
      %7418 = vmatpush1.msra.mxu0 0.0
      %7419 = vmatprep.subr.mxu0 0.0
      %7420 = vmatpush1.msra.mxu0 0.0
      %7421 = vmatprep.subr.mxu0 0.0
      %7422 = vmatpush1.msra.mxu0 0.0
      %7423 = vmatprep.subr.mxu0 0.0
      %7424 = vmatpush1.msra.mxu0 0.0
      %7425 = vmatprep.subr.mxu0 0.0
      %7426 = vmatpush1.msra.mxu0 %v480
      %7427 = vmatprep.subr.mxu0 0.0
      %7428 = vmatpush1.msra.mxu0 %v479
      %7429 = vmatprep.subr.mxu0 0.0
      %7430 = vmatpush1.msra.mxu0 %v478
      %7431 = vmatprep.subr.mxu0 0.0
      %7432 = vmatpush1.msra.mxu0 %v477
      %7433 = vmatprep.subr.mxu0 0.0
      %7434 = vmatpush2.msra.mxu0 0.0
      %7435 = vmatprep.subr.mxu0 0.0
      %7436 = vmatpush2.msra.mxu0 0.0
      %7437 = vmatprep.subr.mxu0 0.0
      %7438 = vmatpush2.msra.mxu0 0.0
      %7439 = vmatprep.subr.mxu0 0.0
      %7440 = vmatpush2.msra.mxu0 0.0
      %7441 = vmatprep.subr.mxu0 0.0
      %7442 = vmatpush2.msra.mxu0 0.0
      %7443 = vmatprep.subr.mxu0 0.0
      %7444 = vmatpush2.msra.mxu0 0.0
      %7445 = vmatprep.subr.mxu0 0.0
      %7446 = vmatpush2.msra.mxu0 0.0
      %7447 = vmatprep.subr.mxu0 0.0
      %7448 = vmatpush2.msra.mxu0 0.0
      %7449 = vmatprep.subr.mxu0 0.0
      %7450 = vmatpush2.msra.mxu0 0.0
      %7451 = vmatprep.subr.mxu0 0.0
      %7452 = vmatpush2.msra.mxu0 0.0
      %7453 = vmatprep.subr.mxu0 0.0
      %7454 = vmatpush2.msra.mxu0 0.0
      %7455 = vmatprep.subr.mxu0 0.0
      %7456 = vmatpush2.msra.mxu0 0.0
      %7457 = vmatprep.subr.mxu0 0.0
      %7458 = vmatpush2.msra.mxu0 0.0
      %7459 = vmatprep.subr.mxu0 0.0
      %7460 = vmatpush2.msra.mxu0 0.0
      %7461 = vmatprep.subr.mxu0 0.0
      %7462 = vmatpush2.msra.mxu0 0.0
      %7463 = vmatprep.subr.mxu0 0.0
      %7464 = vmatpush2.msra.mxu0 0.0
      %7465 = vmatprep.mubr.f32.mxu0 0.0
      %7466 = vmatmul.mubr.f32.gmra.mxu0 %v7390
      %v7467 = vpop.f32.mrf.mxu0
      %v7468 = vadd.f32 0.0, %v7467
      %v7469 = vpop.f32.mrf.mxu0
      %7470 = vmatprep.mubr.f32.mxu0 0.0
      %7471 = vmatmul.mubr.f32.gmra.mxu0 %v7393
      %v7472 = vpop.f32.mrf.mxu0
      %v7473 = vadd.f32 0.0, %v7472
      %v7474 = vpop.f32.mrf.mxu0
      %7475 = vmatprep.mubr.f32.mxu0 0.0
      %7476 = vmatmul.mubr.f32.gmra.mxu0 %v7396
      %v7477 = vpop.f32.mrf.mxu0
      %v7478 = vadd.f32 0.0, %v7477
      %v7479 = vpop.f32.mrf.mxu0
      %7480 = vmatprep.mubr.f32.mxu0 0.0
      %7481 = vmatmul.mubr.f32.gmra.mxu0 %v7399
      %v7482 = vpop.f32.mrf.mxu0
      %v7483 = vadd.f32 0.0, %v7482
      %v7484 = vpop.f32.mrf.mxu0
      %7485 = vdwg.mxu0
      %v7487 = vsel %vm669, %v2618, 0
      %v7490 = vsel %vm669, %v2619, 0
      %v7493 = vsel %vm669, %v2620, 0
      %v7496 = vsel %vm669, %v2621, 0
      %7498 = vmatprep.subr.mxu0 0.0
      %7499 = vmatpush1.msra.mxu0 0.0
      %7500 = vmatprep.subr.mxu0 0.0
      %7501 = vmatpush1.msra.mxu0 0.0
      %7502 = vmatprep.subr.mxu0 0.0
      %7503 = vmatpush1.msra.mxu0 0.0
      %7504 = vmatprep.subr.mxu0 0.0
      %7505 = vmatpush1.msra.mxu0 0.0
      %7506 = vmatprep.subr.mxu0 0.0
      %7507 = vmatpush1.msra.mxu0 0.0
      %7508 = vmatprep.subr.mxu0 0.0
      %7509 = vmatpush1.msra.mxu0 0.0
      %7510 = vmatprep.subr.mxu0 0.0
      %7511 = vmatpush1.msra.mxu0 0.0
      %7512 = vmatprep.subr.mxu0 0.0
      %7513 = vmatpush1.msra.mxu0 0.0
      %7514 = vmatprep.subr.mxu0 0.0
      %7515 = vmatpush1.msra.mxu0 0.0
      %7516 = vmatprep.subr.mxu0 0.0
      %7517 = vmatpush1.msra.mxu0 0.0
      %7518 = vmatprep.subr.mxu0 0.0
      %7519 = vmatpush1.msra.mxu0 0.0
      %7520 = vmatprep.subr.mxu0 0.0
      %7521 = vmatpush1.msra.mxu0 0.0
      %7522 = vmatprep.subr.mxu0 0.0
      %7523 = vmatpush1.msra.mxu0 %v484
      %7524 = vmatprep.subr.mxu0 0.0
      %7525 = vmatpush1.msra.mxu0 %v483
      %7526 = vmatprep.subr.mxu0 0.0
      %7527 = vmatpush1.msra.mxu0 %v482
      %7528 = vmatprep.subr.mxu0 0.0
      %7529 = vmatpush1.msra.mxu0 %v481
      %7530 = vmatprep.subr.mxu0 0.0
      %7531 = vmatpush2.msra.mxu0 0.0
      %7532 = vmatprep.subr.mxu0 0.0
      %7533 = vmatpush2.msra.mxu0 0.0
      %7534 = vmatprep.subr.mxu0 0.0
      %7535 = vmatpush2.msra.mxu0 0.0
      %7536 = vmatprep.subr.mxu0 0.0
      %7537 = vmatpush2.msra.mxu0 0.0
      %7538 = vmatprep.subr.mxu0 0.0
      %7539 = vmatpush2.msra.mxu0 0.0
      %7540 = vmatprep.subr.mxu0 0.0
      %7541 = vmatpush2.msra.mxu0 0.0
      %7542 = vmatprep.subr.mxu0 0.0
      %7543 = vmatpush2.msra.mxu0 0.0
      %7544 = vmatprep.subr.mxu0 0.0
      %7545 = vmatpush2.msra.mxu0 0.0
      %7546 = vmatprep.subr.mxu0 0.0
      %7547 = vmatpush2.msra.mxu0 0.0
      %7548 = vmatprep.subr.mxu0 0.0
      %7549 = vmatpush2.msra.mxu0 0.0
      %7550 = vmatprep.subr.mxu0 0.0
      %7551 = vmatpush2.msra.mxu0 0.0
      %7552 = vmatprep.subr.mxu0 0.0
      %7553 = vmatpush2.msra.mxu0 0.0
      %7554 = vmatprep.subr.mxu0 0.0
      %7555 = vmatpush2.msra.mxu0 0.0
      %7556 = vmatprep.subr.mxu0 0.0
      %7557 = vmatpush2.msra.mxu0 0.0
      %7558 = vmatprep.subr.mxu0 0.0
      %7559 = vmatpush2.msra.mxu0 0.0
      %7560 = vmatprep.subr.mxu0 0.0
      %7561 = vmatpush2.msra.mxu0 0.0
      %7562 = vmatprep.mubr.f32.mxu0 0.0
      %7563 = vmatmul.mubr.f32.gmra.mxu0 %v7487
      %v7564 = vpop.f32.mrf.mxu0
      %v7565 = vadd.f32 0.0, %v7564
      %v7566 = vpop.f32.mrf.mxu0
      %7567 = vmatprep.mubr.f32.mxu0 0.0
      %7568 = vmatmul.mubr.f32.gmra.mxu0 %v7490
      %v7569 = vpop.f32.mrf.mxu0
      %v7570 = vadd.f32 0.0, %v7569
      %v7571 = vpop.f32.mrf.mxu0
      %7572 = vmatprep.mubr.f32.mxu0 0.0
      %7573 = vmatmul.mubr.f32.gmra.mxu0 %v7493
      %v7574 = vpop.f32.mrf.mxu0
      %v7575 = vadd.f32 0.0, %v7574
      %v7576 = vpop.f32.mrf.mxu0
      %7577 = vmatprep.mubr.f32.mxu0 0.0
      %7578 = vmatmul.mubr.f32.gmra.mxu0 %v7496
      %v7579 = vpop.f32.mrf.mxu0
      %v7580 = vadd.f32 0.0, %v7579
      %v7581 = vpop.f32.mrf.mxu0
      %7582 = vdwg.mxu0
      %v7584 = vsel %vm669, %v2622, 0
      %v7587 = vsel %vm669, %v2623, 0
      %v7590 = vsel %vm669, %v2624, 0
      %v7593 = vsel %vm669, %v2625, 0
      %7595 = vmatprep.subr.mxu0 0.0
      %7596 = vmatpush1.msra.mxu0 0.0
      %7597 = vmatprep.subr.mxu0 0.0
      %7598 = vmatpush1.msra.mxu0 0.0
      %7599 = vmatprep.subr.mxu0 0.0
      %7600 = vmatpush1.msra.mxu0 0.0
      %7601 = vmatprep.subr.mxu0 0.0
      %7602 = vmatpush1.msra.mxu0 0.0
      %7603 = vmatprep.subr.mxu0 0.0
      %7604 = vmatpush1.msra.mxu0 0.0
      %7605 = vmatprep.subr.mxu0 0.0
      %7606 = vmatpush1.msra.mxu0 0.0
      %7607 = vmatprep.subr.mxu0 0.0
      %7608 = vmatpush1.msra.mxu0 0.0
      %7609 = vmatprep.subr.mxu0 0.0
      %7610 = vmatpush1.msra.mxu0 0.0
      %7611 = vmatprep.subr.mxu0 0.0
      %7612 = vmatpush1.msra.mxu0 0.0
      %7613 = vmatprep.subr.mxu0 0.0
      %7614 = vmatpush1.msra.mxu0 0.0
      %7615 = vmatprep.subr.mxu0 0.0
      %7616 = vmatpush1.msra.mxu0 0.0
      %7617 = vmatprep.subr.mxu0 0.0
      %7618 = vmatpush1.msra.mxu0 0.0
      %7619 = vmatprep.subr.mxu0 0.0
      %7620 = vmatpush1.msra.mxu0 %v488
      %7621 = vmatprep.subr.mxu0 0.0
      %7622 = vmatpush1.msra.mxu0 %v487
      %7623 = vmatprep.subr.mxu0 0.0
      %7624 = vmatpush1.msra.mxu0 %v486
      %7625 = vmatprep.subr.mxu0 0.0
      %7626 = vmatpush1.msra.mxu0 %v485
      %7627 = vmatprep.subr.mxu0 0.0
      %7628 = vmatpush2.msra.mxu0 0.0
      %7629 = vmatprep.subr.mxu0 0.0
      %7630 = vmatpush2.msra.mxu0 0.0
      %7631 = vmatprep.subr.mxu0 0.0
      %7632 = vmatpush2.msra.mxu0 0.0
      %7633 = vmatprep.subr.mxu0 0.0
      %7634 = vmatpush2.msra.mxu0 0.0
      %7635 = vmatprep.subr.mxu0 0.0
      %7636 = vmatpush2.msra.mxu0 0.0
      %7637 = vmatprep.subr.mxu0 0.0
      %7638 = vmatpush2.msra.mxu0 0.0
      %7639 = vmatprep.subr.mxu0 0.0
      %7640 = vmatpush2.msra.mxu0 0.0
      %7641 = vmatprep.subr.mxu0 0.0
      %7642 = vmatpush2.msra.mxu0 0.0
      %7643 = vmatprep.subr.mxu0 0.0
      %7644 = vmatpush2.msra.mxu0 0.0
      %7645 = vmatprep.subr.mxu0 0.0
      %7646 = vmatpush2.msra.mxu0 0.0
      %7647 = vmatprep.subr.mxu0 0.0
      %7648 = vmatpush2.msra.mxu0 0.0
      %7649 = vmatprep.subr.mxu0 0.0
      %7650 = vmatpush2.msra.mxu0 0.0
      %7651 = vmatprep.subr.mxu0 0.0
      %7652 = vmatpush2.msra.mxu0 0.0
      %7653 = vmatprep.subr.mxu0 0.0
      %7654 = vmatpush2.msra.mxu0 0.0
      %7655 = vmatprep.subr.mxu0 0.0
      %7656 = vmatpush2.msra.mxu0 0.0
      %7657 = vmatprep.subr.mxu0 0.0
      %7658 = vmatpush2.msra.mxu0 0.0
      %7659 = vmatprep.mubr.f32.mxu0 0.0
      %7660 = vmatmul.mubr.f32.gmra.mxu0 %v7584
      %v7661 = vpop.f32.mrf.mxu0
      %v7662 = vadd.f32 0.0, %v7661
      %v7663 = vpop.f32.mrf.mxu0
      %7664 = vmatprep.mubr.f32.mxu0 0.0
      %7665 = vmatmul.mubr.f32.gmra.mxu0 %v7587
      %v7666 = vpop.f32.mrf.mxu0
      %v7667 = vadd.f32 0.0, %v7666
      %v7668 = vpop.f32.mrf.mxu0
      %7669 = vmatprep.mubr.f32.mxu0 0.0
      %7670 = vmatmul.mubr.f32.gmra.mxu0 %v7590
      %v7671 = vpop.f32.mrf.mxu0
      %v7672 = vadd.f32 0.0, %v7671
      %v7673 = vpop.f32.mrf.mxu0
      %7674 = vmatprep.mubr.f32.mxu0 0.0
      %7675 = vmatmul.mubr.f32.gmra.mxu0 %v7593
      %v7676 = vpop.f32.mrf.mxu0
      %v7677 = vadd.f32 0.0, %v7676
      %v7678 = vpop.f32.mrf.mxu0
      %7679 = vdwg.mxu0
      %v7681 = vsel %vm669, %v2626, 0
      %v7684 = vsel %vm669, %v2627, 0
      %v7687 = vsel %vm669, %v2628, 0
      %v7690 = vsel %vm669, %v2629, 0
      %7692 = vmatprep.subr.mxu0 0.0
      %7693 = vmatpush1.msra.mxu0 0.0
      %7694 = vmatprep.subr.mxu0 0.0
      %7695 = vmatpush1.msra.mxu0 0.0
      %7696 = vmatprep.subr.mxu0 0.0
      %7697 = vmatpush1.msra.mxu0 0.0
      %7698 = vmatprep.subr.mxu0 0.0
      %7699 = vmatpush1.msra.mxu0 0.0
      %7700 = vmatprep.subr.mxu0 0.0
      %7701 = vmatpush1.msra.mxu0 0.0
      %7702 = vmatprep.subr.mxu0 0.0
      %7703 = vmatpush1.msra.mxu0 0.0
      %7704 = vmatprep.subr.mxu0 0.0
      %7705 = vmatpush1.msra.mxu0 0.0
      %7706 = vmatprep.subr.mxu0 0.0
      %7707 = vmatpush1.msra.mxu0 0.0
      %7708 = vmatprep.subr.mxu0 0.0
      %7709 = vmatpush1.msra.mxu0 0.0
      %7710 = vmatprep.subr.mxu0 0.0
      %7711 = vmatpush1.msra.mxu0 0.0
      %7712 = vmatprep.subr.mxu0 0.0
      %7713 = vmatpush1.msra.mxu0 0.0
      %7714 = vmatprep.subr.mxu0 0.0
      %7715 = vmatpush1.msra.mxu0 0.0
      %7716 = vmatprep.subr.mxu0 0.0
      %7717 = vmatpush1.msra.mxu0 %v492
      %7718 = vmatprep.subr.mxu0 0.0
      %7719 = vmatpush1.msra.mxu0 %v491
      %7720 = vmatprep.subr.mxu0 0.0
      %7721 = vmatpush1.msra.mxu0 %v490
      %7722 = vmatprep.subr.mxu0 0.0
      %7723 = vmatpush1.msra.mxu0 %v489
      %7724 = vmatprep.subr.mxu0 0.0
      %7725 = vmatpush2.msra.mxu0 0.0
      %7726 = vmatprep.subr.mxu0 0.0
      %7727 = vmatpush2.msra.mxu0 0.0
      %7728 = vmatprep.subr.mxu0 0.0
      %7729 = vmatpush2.msra.mxu0 0.0
      %7730 = vmatprep.subr.mxu0 0.0
      %7731 = vmatpush2.msra.mxu0 0.0
      %7732 = vmatprep.subr.mxu0 0.0
      %7733 = vmatpush2.msra.mxu0 0.0
      %7734 = vmatprep.subr.mxu0 0.0
      %7735 = vmatpush2.msra.mxu0 0.0
      %7736 = vmatprep.subr.mxu0 0.0
      %7737 = vmatpush2.msra.mxu0 0.0
      %7738 = vmatprep.subr.mxu0 0.0
      %7739 = vmatpush2.msra.mxu0 0.0
      %7740 = vmatprep.subr.mxu0 0.0
      %7741 = vmatpush2.msra.mxu0 0.0
      %7742 = vmatprep.subr.mxu0 0.0
      %7743 = vmatpush2.msra.mxu0 0.0
      %7744 = vmatprep.subr.mxu0 0.0
      %7745 = vmatpush2.msra.mxu0 0.0
      %7746 = vmatprep.subr.mxu0 0.0
      %7747 = vmatpush2.msra.mxu0 0.0
      %7748 = vmatprep.subr.mxu0 0.0
      %7749 = vmatpush2.msra.mxu0 0.0
      %7750 = vmatprep.subr.mxu0 0.0
      %7751 = vmatpush2.msra.mxu0 0.0
      %7752 = vmatprep.subr.mxu0 0.0
      %7753 = vmatpush2.msra.mxu0 0.0
      %7754 = vmatprep.subr.mxu0 0.0
      %7755 = vmatpush2.msra.mxu0 0.0
      %7756 = vmatprep.mubr.f32.mxu0 0.0
      %7757 = vmatmul.mubr.f32.gmra.mxu0 %v7681
      %v7758 = vpop.f32.mrf.mxu0
      %v7759 = vadd.f32 0.0, %v7758
      %v7760 = vpop.f32.mrf.mxu0
      %7761 = vmatprep.mubr.f32.mxu0 0.0
      %7762 = vmatmul.mubr.f32.gmra.mxu0 %v7684
      %v7763 = vpop.f32.mrf.mxu0
      %v7764 = vadd.f32 0.0, %v7763
      %v7765 = vpop.f32.mrf.mxu0
      %7766 = vmatprep.mubr.f32.mxu0 0.0
      %7767 = vmatmul.mubr.f32.gmra.mxu0 %v7687
      %v7768 = vpop.f32.mrf.mxu0
      %v7769 = vadd.f32 0.0, %v7768
      %v7770 = vpop.f32.mrf.mxu0
      %7771 = vmatprep.mubr.f32.mxu0 0.0
      %7772 = vmatmul.mubr.f32.gmra.mxu0 %v7690
      %v7773 = vpop.f32.mrf.mxu0
      %v7774 = vadd.f32 0.0, %v7773
      %v7775 = vpop.f32.mrf.mxu0
      %7776 = vdwg.mxu0
      %v7778 = vsel %vm669, %v2630, 0
      %v7781 = vsel %vm669, %v2631, 0
      %v7784 = vsel %vm669, %v2632, 0
      %v7787 = vsel %vm669, %v2633, 0
      %7789 = vmatprep.subr.mxu0 0.0
      %7790 = vmatpush1.msra.mxu0 0.0
      %7791 = vmatprep.subr.mxu0 0.0
      %7792 = vmatpush1.msra.mxu0 0.0
      %7793 = vmatprep.subr.mxu0 0.0
      %7794 = vmatpush1.msra.mxu0 0.0
      %7795 = vmatprep.subr.mxu0 0.0
      %7796 = vmatpush1.msra.mxu0 0.0
      %7797 = vmatprep.subr.mxu0 0.0
      %7798 = vmatpush1.msra.mxu0 0.0
      %7799 = vmatprep.subr.mxu0 0.0
      %7800 = vmatpush1.msra.mxu0 0.0
      %7801 = vmatprep.subr.mxu0 0.0
      %7802 = vmatpush1.msra.mxu0 0.0
      %7803 = vmatprep.subr.mxu0 0.0
      %7804 = vmatpush1.msra.mxu0 0.0
      %7805 = vmatprep.subr.mxu0 0.0
      %7806 = vmatpush1.msra.mxu0 0.0
      %7807 = vmatprep.subr.mxu0 0.0
      %7808 = vmatpush1.msra.mxu0 0.0
      %7809 = vmatprep.subr.mxu0 0.0
      %7810 = vmatpush1.msra.mxu0 0.0
      %7811 = vmatprep.subr.mxu0 0.0
      %7812 = vmatpush1.msra.mxu0 0.0
      %7813 = vmatprep.subr.mxu0 0.0
      %7814 = vmatpush1.msra.mxu0 %v496
      %7815 = vmatprep.subr.mxu0 0.0
      %7816 = vmatpush1.msra.mxu0 %v495
      %7817 = vmatprep.subr.mxu0 0.0
      %7818 = vmatpush1.msra.mxu0 %v494
      %7819 = vmatprep.subr.mxu0 0.0
      %7820 = vmatpush1.msra.mxu0 %v493
      %7821 = vmatprep.subr.mxu0 0.0
      %7822 = vmatpush2.msra.mxu0 0.0
      %7823 = vmatprep.subr.mxu0 0.0
      %7824 = vmatpush2.msra.mxu0 0.0
      %7825 = vmatprep.subr.mxu0 0.0
      %7826 = vmatpush2.msra.mxu0 0.0
      %7827 = vmatprep.subr.mxu0 0.0
      %7828 = vmatpush2.msra.mxu0 0.0
      %7829 = vmatprep.subr.mxu0 0.0
      %7830 = vmatpush2.msra.mxu0 0.0
      %7831 = vmatprep.subr.mxu0 0.0
      %7832 = vmatpush2.msra.mxu0 0.0
      %7833 = vmatprep.subr.mxu0 0.0
      %7834 = vmatpush2.msra.mxu0 0.0
      %7835 = vmatprep.subr.mxu0 0.0
      %7836 = vmatpush2.msra.mxu0 0.0
      %7837 = vmatprep.subr.mxu0 0.0
      %7838 = vmatpush2.msra.mxu0 0.0
      %7839 = vmatprep.subr.mxu0 0.0
      %7840 = vmatpush2.msra.mxu0 0.0
      %7841 = vmatprep.subr.mxu0 0.0
      %7842 = vmatpush2.msra.mxu0 0.0
      %7843 = vmatprep.subr.mxu0 0.0
      %7844 = vmatpush2.msra.mxu0 0.0
      %7845 = vmatprep.subr.mxu0 0.0
      %7846 = vmatpush2.msra.mxu0 0.0
      %7847 = vmatprep.subr.mxu0 0.0
      %7848 = vmatpush2.msra.mxu0 0.0
      %7849 = vmatprep.subr.mxu0 0.0
      %7850 = vmatpush2.msra.mxu0 0.0
      %7851 = vmatprep.subr.mxu0 0.0
      %7852 = vmatpush2.msra.mxu0 0.0
      %7853 = vmatprep.mubr.f32.mxu0 0.0
      %7854 = vmatmul.mubr.f32.gmra.mxu0 %v7778
      %v7855 = vpop.f32.mrf.mxu0
      %v7856 = vadd.f32 0.0, %v7855
      %v7857 = vpop.f32.mrf.mxu0
      %7858 = vmatprep.mubr.f32.mxu0 0.0
      %7859 = vmatmul.mubr.f32.gmra.mxu0 %v7781
      %v7860 = vpop.f32.mrf.mxu0
      %v7861 = vadd.f32 0.0, %v7860
      %v7862 = vpop.f32.mrf.mxu0
      %7863 = vmatprep.mubr.f32.mxu0 0.0
      %7864 = vmatmul.mubr.f32.gmra.mxu0 %v7784
      %v7865 = vpop.f32.mrf.mxu0
      %v7866 = vadd.f32 0.0, %v7865
      %v7867 = vpop.f32.mrf.mxu0
      %7868 = vmatprep.mubr.f32.mxu0 0.0
      %7869 = vmatmul.mubr.f32.gmra.mxu0 %v7787
      %v7870 = vpop.f32.mrf.mxu0
      %v7871 = vadd.f32 0.0, %v7870
      %v7872 = vpop.f32.mrf.mxu0
      %7873 = vdwg.mxu0
      %v7875 = vsel %vm669, %v2634, 0
      %v7878 = vsel %vm669, %v2635, 0
      %v7881 = vsel %vm669, %v2636, 0
      %v7884 = vsel %vm669, %v2637, 0
      %7886 = vmatprep.subr.mxu0 0.0
      %7887 = vmatpush1.msra.mxu0 0.0
      %7888 = vmatprep.subr.mxu0 0.0
      %7889 = vmatpush1.msra.mxu0 0.0
      %7890 = vmatprep.subr.mxu0 0.0
      %7891 = vmatpush1.msra.mxu0 0.0
      %7892 = vmatprep.subr.mxu0 0.0
      %7893 = vmatpush1.msra.mxu0 0.0
      %7894 = vmatprep.subr.mxu0 0.0
      %7895 = vmatpush1.msra.mxu0 0.0
      %7896 = vmatprep.subr.mxu0 0.0
      %7897 = vmatpush1.msra.mxu0 0.0
      %7898 = vmatprep.subr.mxu0 0.0
      %7899 = vmatpush1.msra.mxu0 0.0
      %7900 = vmatprep.subr.mxu0 0.0
      %7901 = vmatpush1.msra.mxu0 0.0
      %7902 = vmatprep.subr.mxu0 0.0
      %7903 = vmatpush1.msra.mxu0 0.0
      %7904 = vmatprep.subr.mxu0 0.0
      %7905 = vmatpush1.msra.mxu0 0.0
      %7906 = vmatprep.subr.mxu0 0.0
      %7907 = vmatpush1.msra.mxu0 0.0
      %7908 = vmatprep.subr.mxu0 0.0
      %7909 = vmatpush1.msra.mxu0 0.0
      %7910 = vmatprep.subr.mxu0 0.0
      %7911 = vmatpush1.msra.mxu0 %v500
      %7912 = vmatprep.subr.mxu0 0.0
      %7913 = vmatpush1.msra.mxu0 %v499
      %7914 = vmatprep.subr.mxu0 0.0
      %7915 = vmatpush1.msra.mxu0 %v498
      %7916 = vmatprep.subr.mxu0 0.0
      %7917 = vmatpush1.msra.mxu0 %v497
      %7918 = vmatprep.subr.mxu0 0.0
      %7919 = vmatpush2.msra.mxu0 0.0
      %7920 = vmatprep.subr.mxu0 0.0
      %7921 = vmatpush2.msra.mxu0 0.0
      %7922 = vmatprep.subr.mxu0 0.0
      %7923 = vmatpush2.msra.mxu0 0.0
      %7924 = vmatprep.subr.mxu0 0.0
      %7925 = vmatpush2.msra.mxu0 0.0
      %7926 = vmatprep.subr.mxu0 0.0
      %7927 = vmatpush2.msra.mxu0 0.0
      %7928 = vmatprep.subr.mxu0 0.0
      %7929 = vmatpush2.msra.mxu0 0.0
      %7930 = vmatprep.subr.mxu0 0.0
      %7931 = vmatpush2.msra.mxu0 0.0
      %7932 = vmatprep.subr.mxu0 0.0
      %7933 = vmatpush2.msra.mxu0 0.0
      %7934 = vmatprep.subr.mxu0 0.0
      %7935 = vmatpush2.msra.mxu0 0.0
      %7936 = vmatprep.subr.mxu0 0.0
      %7937 = vmatpush2.msra.mxu0 0.0
      %7938 = vmatprep.subr.mxu0 0.0
      %7939 = vmatpush2.msra.mxu0 0.0
      %7940 = vmatprep.subr.mxu0 0.0
      %7941 = vmatpush2.msra.mxu0 0.0
      %7942 = vmatprep.subr.mxu0 0.0
      %7943 = vmatpush2.msra.mxu0 0.0
      %7944 = vmatprep.subr.mxu0 0.0
      %7945 = vmatpush2.msra.mxu0 0.0
      %7946 = vmatprep.subr.mxu0 0.0
      %7947 = vmatpush2.msra.mxu0 0.0
      %7948 = vmatprep.subr.mxu0 0.0
      %7949 = vmatpush2.msra.mxu0 0.0
      %7950 = vmatprep.mubr.f32.mxu0 0.0
      %7951 = vmatmul.mubr.f32.gmra.mxu0 %v7875
      %v7952 = vpop.f32.mrf.mxu0
      %v7953 = vadd.f32 0.0, %v7952
      %v7954 = vpop.f32.mrf.mxu0
      %7955 = vmatprep.mubr.f32.mxu0 0.0
      %7956 = vmatmul.mubr.f32.gmra.mxu0 %v7878
      %v7957 = vpop.f32.mrf.mxu0
      %v7958 = vadd.f32 0.0, %v7957
      %v7959 = vpop.f32.mrf.mxu0
      %7960 = vmatprep.mubr.f32.mxu0 0.0
      %7961 = vmatmul.mubr.f32.gmra.mxu0 %v7881
      %v7962 = vpop.f32.mrf.mxu0
      %v7963 = vadd.f32 0.0, %v7962
      %v7964 = vpop.f32.mrf.mxu0
      %7965 = vmatprep.mubr.f32.mxu0 0.0
      %7966 = vmatmul.mubr.f32.gmra.mxu0 %v7884
      %v7967 = vpop.f32.mrf.mxu0
      %v7968 = vadd.f32 0.0, %v7967
      %v7969 = vpop.f32.mrf.mxu0
      %7970 = vdwg.mxu0
      %v7972 = vsel %vm669, %v2638, 0
      %v7975 = vsel %vm669, %v2639, 0
      %v7978 = vsel %vm669, %v2640, 0
      %v7981 = vsel %vm669, %v2641, 0
      %7983 = vmatprep.subr.mxu0 0.0
      %7984 = vmatpush1.msra.mxu0 0.0
      %7985 = vmatprep.subr.mxu0 0.0
      %7986 = vmatpush1.msra.mxu0 0.0
      %7987 = vmatprep.subr.mxu0 0.0
      %7988 = vmatpush1.msra.mxu0 0.0
      %7989 = vmatprep.subr.mxu0 0.0
      %7990 = vmatpush1.msra.mxu0 0.0
      %7991 = vmatprep.subr.mxu0 0.0
      %7992 = vmatpush1.msra.mxu0 0.0
      %7993 = vmatprep.subr.mxu0 0.0
      %7994 = vmatpush1.msra.mxu0 0.0
      %7995 = vmatprep.subr.mxu0 0.0
      %7996 = vmatpush1.msra.mxu0 0.0
      %7997 = vmatprep.subr.mxu0 0.0
      %7998 = vmatpush1.msra.mxu0 0.0
      %7999 = vmatprep.subr.mxu0 0.0
      %8000 = vmatpush1.msra.mxu0 0.0
      %8001 = vmatprep.subr.mxu0 0.0
      %8002 = vmatpush1.msra.mxu0 0.0
      %8003 = vmatprep.subr.mxu0 0.0
      %8004 = vmatpush1.msra.mxu0 0.0
      %8005 = vmatprep.subr.mxu0 0.0
      %8006 = vmatpush1.msra.mxu0 0.0
      %8007 = vmatprep.subr.mxu0 0.0
      %8008 = vmatpush1.msra.mxu0 %v504
      %8009 = vmatprep.subr.mxu0 0.0
      %8010 = vmatpush1.msra.mxu0 %v503
      %8011 = vmatprep.subr.mxu0 0.0
      %8012 = vmatpush1.msra.mxu0 %v502
      %8013 = vmatprep.subr.mxu0 0.0
      %8014 = vmatpush1.msra.mxu0 %v501
      %8015 = vmatprep.subr.mxu0 0.0
      %8016 = vmatpush2.msra.mxu0 0.0
      %8017 = vmatprep.subr.mxu0 0.0
      %8018 = vmatpush2.msra.mxu0 0.0
      %8019 = vmatprep.subr.mxu0 0.0
      %8020 = vmatpush2.msra.mxu0 0.0
      %8021 = vmatprep.subr.mxu0 0.0
      %8022 = vmatpush2.msra.mxu0 0.0
      %8023 = vmatprep.subr.mxu0 0.0
      %8024 = vmatpush2.msra.mxu0 0.0
      %8025 = vmatprep.subr.mxu0 0.0
      %8026 = vmatpush2.msra.mxu0 0.0
      %8027 = vmatprep.subr.mxu0 0.0
      %8028 = vmatpush2.msra.mxu0 0.0
      %8029 = vmatprep.subr.mxu0 0.0
      %8030 = vmatpush2.msra.mxu0 0.0
      %8031 = vmatprep.subr.mxu0 0.0
      %8032 = vmatpush2.msra.mxu0 0.0
      %8033 = vmatprep.subr.mxu0 0.0
      %8034 = vmatpush2.msra.mxu0 0.0
      %8035 = vmatprep.subr.mxu0 0.0
      %8036 = vmatpush2.msra.mxu0 0.0
      %8037 = vmatprep.subr.mxu0 0.0
      %8038 = vmatpush2.msra.mxu0 0.0
      %8039 = vmatprep.subr.mxu0 0.0
      %8040 = vmatpush2.msra.mxu0 0.0
      %8041 = vmatprep.subr.mxu0 0.0
      %8042 = vmatpush2.msra.mxu0 0.0
      %8043 = vmatprep.subr.mxu0 0.0
      %8044 = vmatpush2.msra.mxu0 0.0
      %8045 = vmatprep.subr.mxu0 0.0
      %8046 = vmatpush2.msra.mxu0 0.0
      %8047 = vmatprep.mubr.f32.mxu0 0.0
      %8048 = vmatmul.mubr.f32.gmra.mxu0 %v7972
      %v8049 = vpop.f32.mrf.mxu0
      %v8050 = vadd.f32 0.0, %v8049
      %v8051 = vpop.f32.mrf.mxu0
      %8052 = vmatprep.mubr.f32.mxu0 0.0
      %8053 = vmatmul.mubr.f32.gmra.mxu0 %v7975
      %v8054 = vpop.f32.mrf.mxu0
      %v8055 = vadd.f32 0.0, %v8054
      %v8056 = vpop.f32.mrf.mxu0
      %8057 = vmatprep.mubr.f32.mxu0 0.0
      %8058 = vmatmul.mubr.f32.gmra.mxu0 %v7978
      %v8059 = vpop.f32.mrf.mxu0
      %v8060 = vadd.f32 0.0, %v8059
      %v8061 = vpop.f32.mrf.mxu0
      %8062 = vmatprep.mubr.f32.mxu0 0.0
      %8063 = vmatmul.mubr.f32.gmra.mxu0 %v7981
      %v8064 = vpop.f32.mrf.mxu0
      %v8065 = vadd.f32 0.0, %v8064
      %v8066 = vpop.f32.mrf.mxu0
      %8067 = vdwg.mxu0
      %v8069 = vsel %vm669, %v2642, 0
      %v8072 = vsel %vm669, %v2643, 0
      %v8075 = vsel %vm669, %v2644, 0
      %v8078 = vsel %vm669, %v2645, 0
      %8080 = vmatprep.subr.mxu0 0.0
      %8081 = vmatpush1.msra.mxu0 0.0
      %8082 = vmatprep.subr.mxu0 0.0
      %8083 = vmatpush1.msra.mxu0 0.0
      %8084 = vmatprep.subr.mxu0 0.0
      %8085 = vmatpush1.msra.mxu0 0.0
      %8086 = vmatprep.subr.mxu0 0.0
      %8087 = vmatpush1.msra.mxu0 0.0
      %8088 = vmatprep.subr.mxu0 0.0
      %8089 = vmatpush1.msra.mxu0 0.0
      %8090 = vmatprep.subr.mxu0 0.0
      %8091 = vmatpush1.msra.mxu0 0.0
      %8092 = vmatprep.subr.mxu0 0.0
      %8093 = vmatpush1.msra.mxu0 0.0
      %8094 = vmatprep.subr.mxu0 0.0
      %8095 = vmatpush1.msra.mxu0 0.0
      %8096 = vmatprep.subr.mxu0 0.0
      %8097 = vmatpush1.msra.mxu0 0.0
      %8098 = vmatprep.subr.mxu0 0.0
      %8099 = vmatpush1.msra.mxu0 0.0
      %8100 = vmatprep.subr.mxu0 0.0
      %8101 = vmatpush1.msra.mxu0 0.0
      %8102 = vmatprep.subr.mxu0 0.0
      %8103 = vmatpush1.msra.mxu0 0.0
      %8104 = vmatprep.subr.mxu0 0.0
      %8105 = vmatpush1.msra.mxu0 %v508
      %8106 = vmatprep.subr.mxu0 0.0
      %8107 = vmatpush1.msra.mxu0 %v507
      %8108 = vmatprep.subr.mxu0 0.0
      %8109 = vmatpush1.msra.mxu0 %v506
      %8110 = vmatprep.subr.mxu0 0.0
      %8111 = vmatpush1.msra.mxu0 %v505
      %8112 = vmatprep.subr.mxu0 0.0
      %8113 = vmatpush2.msra.mxu0 0.0
      %8114 = vmatprep.subr.mxu0 0.0
      %8115 = vmatpush2.msra.mxu0 0.0
      %8116 = vmatprep.subr.mxu0 0.0
      %8117 = vmatpush2.msra.mxu0 0.0
      %8118 = vmatprep.subr.mxu0 0.0
      %8119 = vmatpush2.msra.mxu0 0.0
      %8120 = vmatprep.subr.mxu0 0.0
      %8121 = vmatpush2.msra.mxu0 0.0
      %8122 = vmatprep.subr.mxu0 0.0
      %8123 = vmatpush2.msra.mxu0 0.0
      %8124 = vmatprep.subr.mxu0 0.0
      %8125 = vmatpush2.msra.mxu0 0.0
      %8126 = vmatprep.subr.mxu0 0.0
      %8127 = vmatpush2.msra.mxu0 0.0
      %8128 = vmatprep.subr.mxu0 0.0
      %8129 = vmatpush2.msra.mxu0 0.0
      %8130 = vmatprep.subr.mxu0 0.0
      %8131 = vmatpush2.msra.mxu0 0.0
      %8132 = vmatprep.subr.mxu0 0.0
      %8133 = vmatpush2.msra.mxu0 0.0
      %8134 = vmatprep.subr.mxu0 0.0
      %8135 = vmatpush2.msra.mxu0 0.0
      %8136 = vmatprep.subr.mxu0 0.0
      %8137 = vmatpush2.msra.mxu0 0.0
      %8138 = vmatprep.subr.mxu0 0.0
      %8139 = vmatpush2.msra.mxu0 0.0
      %8140 = vmatprep.subr.mxu0 0.0
      %8141 = vmatpush2.msra.mxu0 0.0
      %8142 = vmatprep.subr.mxu0 0.0
      %8143 = vmatpush2.msra.mxu0 0.0
      %8144 = vmatprep.mubr.f32.mxu0 0.0
      %8145 = vmatmul.mubr.f32.gmra.mxu0 %v8069
      %v8146 = vpop.f32.mrf.mxu0
      %v8147 = vadd.f32 0.0, %v8146
      %v8148 = vpop.f32.mrf.mxu0
      %8149 = vmatprep.mubr.f32.mxu0 0.0
      %8150 = vmatmul.mubr.f32.gmra.mxu0 %v8072
      %v8151 = vpop.f32.mrf.mxu0
      %v8152 = vadd.f32 0.0, %v8151
      %v8153 = vpop.f32.mrf.mxu0
      %8154 = vmatprep.mubr.f32.mxu0 0.0
      %8155 = vmatmul.mubr.f32.gmra.mxu0 %v8075
      %v8156 = vpop.f32.mrf.mxu0
      %v8157 = vadd.f32 0.0, %v8156
      %v8158 = vpop.f32.mrf.mxu0
      %8159 = vmatprep.mubr.f32.mxu0 0.0
      %8160 = vmatmul.mubr.f32.gmra.mxu0 %v8078
      %v8161 = vpop.f32.mrf.mxu0
      %v8162 = vadd.f32 0.0, %v8161
      %v8163 = vpop.f32.mrf.mxu0
      %8164 = vdwg.mxu0
      %v8166 = vsel %vm669, %v2646, 0
      %v8169 = vsel %vm669, %v2647, 0
      %v8172 = vsel %vm669, %v2648, 0
      %v8175 = vsel %vm669, %v2649, 0
      %8177 = vmatprep.subr.mxu0 0.0
      %8178 = vmatpush1.msra.mxu0 0.0
      %8179 = vmatprep.subr.mxu0 0.0
      %8180 = vmatpush1.msra.mxu0 0.0
      %8181 = vmatprep.subr.mxu0 0.0
      %8182 = vmatpush1.msra.mxu0 0.0
      %8183 = vmatprep.subr.mxu0 0.0
      %8184 = vmatpush1.msra.mxu0 0.0
      %8185 = vmatprep.subr.mxu0 0.0
      %8186 = vmatpush1.msra.mxu0 0.0
      %8187 = vmatprep.subr.mxu0 0.0
      %8188 = vmatpush1.msra.mxu0 0.0
      %8189 = vmatprep.subr.mxu0 0.0
      %8190 = vmatpush1.msra.mxu0 0.0
      %8191 = vmatprep.subr.mxu0 0.0
      %8192 = vmatpush1.msra.mxu0 0.0
      %8193 = vmatprep.subr.mxu0 0.0
      %8194 = vmatpush1.msra.mxu0 0.0
      %8195 = vmatprep.subr.mxu0 0.0
      %8196 = vmatpush1.msra.mxu0 0.0
      %8197 = vmatprep.subr.mxu0 0.0
      %8198 = vmatpush1.msra.mxu0 0.0
      %8199 = vmatprep.subr.mxu0 0.0
      %8200 = vmatpush1.msra.mxu0 0.0
      %8201 = vmatprep.subr.mxu0 0.0
      %8202 = vmatpush1.msra.mxu0 %v512
      %8203 = vmatprep.subr.mxu0 0.0
      %8204 = vmatpush1.msra.mxu0 %v511
      %8205 = vmatprep.subr.mxu0 0.0
      %8206 = vmatpush1.msra.mxu0 %v510
      %8207 = vmatprep.subr.mxu0 0.0
      %8208 = vmatpush1.msra.mxu0 %v509
      %8209 = vmatprep.subr.mxu0 0.0
      %8210 = vmatpush2.msra.mxu0 0.0
      %8211 = vmatprep.subr.mxu0 0.0
      %8212 = vmatpush2.msra.mxu0 0.0
      %8213 = vmatprep.subr.mxu0 0.0
      %8214 = vmatpush2.msra.mxu0 0.0
      %8215 = vmatprep.subr.mxu0 0.0
      %8216 = vmatpush2.msra.mxu0 0.0
      %8217 = vmatprep.subr.mxu0 0.0
      %8218 = vmatpush2.msra.mxu0 0.0
      %8219 = vmatprep.subr.mxu0 0.0
      %8220 = vmatpush2.msra.mxu0 0.0
      %8221 = vmatprep.subr.mxu0 0.0
      %8222 = vmatpush2.msra.mxu0 0.0
      %8223 = vmatprep.subr.mxu0 0.0
      %8224 = vmatpush2.msra.mxu0 0.0
      %8225 = vmatprep.subr.mxu0 0.0
      %8226 = vmatpush2.msra.mxu0 0.0
      %8227 = vmatprep.subr.mxu0 0.0
      %8228 = vmatpush2.msra.mxu0 0.0
      %8229 = vmatprep.subr.mxu0 0.0
      %8230 = vmatpush2.msra.mxu0 0.0
      %8231 = vmatprep.subr.mxu0 0.0
      %8232 = vmatpush2.msra.mxu0 0.0
      %8233 = vmatprep.subr.mxu0 0.0
      %8234 = vmatpush2.msra.mxu0 0.0
      %8235 = vmatprep.subr.mxu0 0.0
      %8236 = vmatpush2.msra.mxu0 0.0
      %8237 = vmatprep.subr.mxu0 0.0
      %8238 = vmatpush2.msra.mxu0 0.0
      %8239 = vmatprep.subr.mxu0 0.0
      %8240 = vmatpush2.msra.mxu0 0.0
      %8241 = vmatprep.mubr.f32.mxu0 0.0
      %8242 = vmatmul.mubr.f32.gmra.mxu0 %v8166
      %v8243 = vpop.f32.mrf.mxu0
      %v8244 = vadd.f32 0.0, %v8243
      %v8245 = vpop.f32.mrf.mxu0
      %8246 = vmatprep.mubr.f32.mxu0 0.0
      %8247 = vmatmul.mubr.f32.gmra.mxu0 %v8169
      %v8248 = vpop.f32.mrf.mxu0
      %v8249 = vadd.f32 0.0, %v8248
      %v8250 = vpop.f32.mrf.mxu0
      %8251 = vmatprep.mubr.f32.mxu0 0.0
      %8252 = vmatmul.mubr.f32.gmra.mxu0 %v8172
      %v8253 = vpop.f32.mrf.mxu0
      %v8254 = vadd.f32 0.0, %v8253
      %v8255 = vpop.f32.mrf.mxu0
      %8256 = vmatprep.mubr.f32.mxu0 0.0
      %8257 = vmatmul.mubr.f32.gmra.mxu0 %v8175
      %v8258 = vpop.f32.mrf.mxu0
      %v8259 = vadd.f32 0.0, %v8258
      %v8260 = vpop.f32.mrf.mxu0
      %8261 = vdwg.mxu0
      %v8263 = vsel %vm669, %v2650, 0
      %v8266 = vsel %vm669, %v2651, 0
      %v8269 = vsel %vm669, %v2652, 0
      %v8272 = vsel %vm669, %v2653, 0
      %8274 = vmatprep.subr.mxu0 0.0
      %8275 = vmatpush1.msra.mxu0 0.0
      %8276 = vmatprep.subr.mxu0 0.0
      %8277 = vmatpush1.msra.mxu0 0.0
      %8278 = vmatprep.subr.mxu0 0.0
      %8279 = vmatpush1.msra.mxu0 0.0
      %8280 = vmatprep.subr.mxu0 0.0
      %8281 = vmatpush1.msra.mxu0 0.0
      %8282 = vmatprep.subr.mxu0 0.0
      %8283 = vmatpush1.msra.mxu0 0.0
      %8284 = vmatprep.subr.mxu0 0.0
      %8285 = vmatpush1.msra.mxu0 0.0
      %8286 = vmatprep.subr.mxu0 0.0
      %8287 = vmatpush1.msra.mxu0 0.0
      %8288 = vmatprep.subr.mxu0 0.0
      %8289 = vmatpush1.msra.mxu0 0.0
      %8290 = vmatprep.subr.mxu0 0.0
      %8291 = vmatpush1.msra.mxu0 0.0
      %8292 = vmatprep.subr.mxu0 0.0
      %8293 = vmatpush1.msra.mxu0 0.0
      %8294 = vmatprep.subr.mxu0 0.0
      %8295 = vmatpush1.msra.mxu0 0.0
      %8296 = vmatprep.subr.mxu0 0.0
      %8297 = vmatpush1.msra.mxu0 0.0
      %8298 = vmatprep.subr.mxu0 0.0
      %8299 = vmatpush1.msra.mxu0 %v516
      %8300 = vmatprep.subr.mxu0 0.0
      %8301 = vmatpush1.msra.mxu0 %v515
      %8302 = vmatprep.subr.mxu0 0.0
      %8303 = vmatpush1.msra.mxu0 %v514
      %8304 = vmatprep.subr.mxu0 0.0
      %8305 = vmatpush1.msra.mxu0 %v513
      %8306 = vmatprep.subr.mxu0 0.0
      %8307 = vmatpush2.msra.mxu0 0.0
      %8308 = vmatprep.subr.mxu0 0.0
      %8309 = vmatpush2.msra.mxu0 0.0
      %8310 = vmatprep.subr.mxu0 0.0
      %8311 = vmatpush2.msra.mxu0 0.0
      %8312 = vmatprep.subr.mxu0 0.0
      %8313 = vmatpush2.msra.mxu0 0.0
      %8314 = vmatprep.subr.mxu0 0.0
      %8315 = vmatpush2.msra.mxu0 0.0
      %8316 = vmatprep.subr.mxu0 0.0
      %8317 = vmatpush2.msra.mxu0 0.0
      %8318 = vmatprep.subr.mxu0 0.0
      %8319 = vmatpush2.msra.mxu0 0.0
      %8320 = vmatprep.subr.mxu0 0.0
      %8321 = vmatpush2.msra.mxu0 0.0
      %8322 = vmatprep.subr.mxu0 0.0
      %8323 = vmatpush2.msra.mxu0 0.0
      %8324 = vmatprep.subr.mxu0 0.0
      %8325 = vmatpush2.msra.mxu0 0.0
      %8326 = vmatprep.subr.mxu0 0.0
      %8327 = vmatpush2.msra.mxu0 0.0
      %8328 = vmatprep.subr.mxu0 0.0
      %8329 = vmatpush2.msra.mxu0 0.0
      %8330 = vmatprep.subr.mxu0 0.0
      %8331 = vmatpush2.msra.mxu0 0.0
      %8332 = vmatprep.subr.mxu0 0.0
      %8333 = vmatpush2.msra.mxu0 0.0
      %8334 = vmatprep.subr.mxu0 0.0
      %8335 = vmatpush2.msra.mxu0 0.0
      %8336 = vmatprep.subr.mxu0 0.0
      %8337 = vmatpush2.msra.mxu0 0.0
      %8338 = vmatprep.mubr.f32.mxu0 0.0
      %8339 = vmatmul.mubr.f32.gmra.mxu0 %v8263
      %v8340 = vpop.f32.mrf.mxu0
      %v8341 = vadd.f32 0.0, %v8340
      %v8342 = vpop.f32.mrf.mxu0
      %8343 = vmatprep.mubr.f32.mxu0 0.0
      %8344 = vmatmul.mubr.f32.gmra.mxu0 %v8266
      %v8345 = vpop.f32.mrf.mxu0
      %v8346 = vadd.f32 0.0, %v8345
      %v8347 = vpop.f32.mrf.mxu0
      %8348 = vmatprep.mubr.f32.mxu0 0.0
      %8349 = vmatmul.mubr.f32.gmra.mxu0 %v8269
      %v8350 = vpop.f32.mrf.mxu0
      %v8351 = vadd.f32 0.0, %v8350
      %v8352 = vpop.f32.mrf.mxu0
      %8353 = vmatprep.mubr.f32.mxu0 0.0
      %8354 = vmatmul.mubr.f32.gmra.mxu0 %v8272
      %v8355 = vpop.f32.mrf.mxu0
      %v8356 = vadd.f32 0.0, %v8355
      %v8357 = vpop.f32.mrf.mxu0
      %8358 = vdwg.mxu0
      %v8360 = vsel %vm669, %v2654, 0
      %v8363 = vsel %vm669, %v2655, 0
      %v8366 = vsel %vm669, %v2656, 0
      %v8369 = vsel %vm669, %v2657, 0
      %8371 = vmatprep.subr.mxu0 0.0
      %8372 = vmatpush1.msra.mxu0 0.0
      %8373 = vmatprep.subr.mxu0 0.0
      %8374 = vmatpush1.msra.mxu0 0.0
      %8375 = vmatprep.subr.mxu0 0.0
      %8376 = vmatpush1.msra.mxu0 0.0
      %8377 = vmatprep.subr.mxu0 0.0
      %8378 = vmatpush1.msra.mxu0 0.0
      %8379 = vmatprep.subr.mxu0 0.0
      %8380 = vmatpush1.msra.mxu0 0.0
      %8381 = vmatprep.subr.mxu0 0.0
      %8382 = vmatpush1.msra.mxu0 0.0
      %8383 = vmatprep.subr.mxu0 0.0
      %8384 = vmatpush1.msra.mxu0 0.0
      %8385 = vmatprep.subr.mxu0 0.0
      %8386 = vmatpush1.msra.mxu0 0.0
      %8387 = vmatprep.subr.mxu0 0.0
      %8388 = vmatpush1.msra.mxu0 0.0
      %8389 = vmatprep.subr.mxu0 0.0
      %8390 = vmatpush1.msra.mxu0 0.0
      %8391 = vmatprep.subr.mxu0 0.0
      %8392 = vmatpush1.msra.mxu0 0.0
      %8393 = vmatprep.subr.mxu0 0.0
      %8394 = vmatpush1.msra.mxu0 0.0
      %8395 = vmatprep.subr.mxu0 0.0
      %8396 = vmatpush1.msra.mxu0 %v520
      %8397 = vmatprep.subr.mxu0 0.0
      %8398 = vmatpush1.msra.mxu0 %v519
      %8399 = vmatprep.subr.mxu0 0.0
      %8400 = vmatpush1.msra.mxu0 %v518
      %8401 = vmatprep.subr.mxu0 0.0
      %8402 = vmatpush1.msra.mxu0 %v517
      %8403 = vmatprep.subr.mxu0 0.0
      %8404 = vmatpush2.msra.mxu0 0.0
      %8405 = vmatprep.subr.mxu0 0.0
      %8406 = vmatpush2.msra.mxu0 0.0
      %8407 = vmatprep.subr.mxu0 0.0
      %8408 = vmatpush2.msra.mxu0 0.0
      %8409 = vmatprep.subr.mxu0 0.0
      %8410 = vmatpush2.msra.mxu0 0.0
      %8411 = vmatprep.subr.mxu0 0.0
      %8412 = vmatpush2.msra.mxu0 0.0
      %8413 = vmatprep.subr.mxu0 0.0
      %8414 = vmatpush2.msra.mxu0 0.0
      %8415 = vmatprep.subr.mxu0 0.0
      %8416 = vmatpush2.msra.mxu0 0.0
      %8417 = vmatprep.subr.mxu0 0.0
      %8418 = vmatpush2.msra.mxu0 0.0
      %8419 = vmatprep.subr.mxu0 0.0
      %8420 = vmatpush2.msra.mxu0 0.0
      %8421 = vmatprep.subr.mxu0 0.0
      %8422 = vmatpush2.msra.mxu0 0.0
      %8423 = vmatprep.subr.mxu0 0.0
      %8424 = vmatpush2.msra.mxu0 0.0
      %8425 = vmatprep.subr.mxu0 0.0
      %8426 = vmatpush2.msra.mxu0 0.0
      %8427 = vmatprep.subr.mxu0 0.0
      %8428 = vmatpush2.msra.mxu0 0.0
      %8429 = vmatprep.subr.mxu0 0.0
      %8430 = vmatpush2.msra.mxu0 0.0
      %8431 = vmatprep.subr.mxu0 0.0
      %8432 = vmatpush2.msra.mxu0 0.0
      %8433 = vmatprep.subr.mxu0 0.0
      %8434 = vmatpush2.msra.mxu0 0.0
      %8435 = vmatprep.mubr.f32.mxu0 0.0
      %8436 = vmatmul.mubr.f32.gmra.mxu0 %v8360
      %v8437 = vpop.f32.mrf.mxu0
      %v8438 = vadd.f32 0.0, %v8437
      %v8439 = vpop.f32.mrf.mxu0
      %8440 = vmatprep.mubr.f32.mxu0 0.0
      %8441 = vmatmul.mubr.f32.gmra.mxu0 %v8363
      %v8442 = vpop.f32.mrf.mxu0
      %v8443 = vadd.f32 0.0, %v8442
      %v8444 = vpop.f32.mrf.mxu0
      %8445 = vmatprep.mubr.f32.mxu0 0.0
      %8446 = vmatmul.mubr.f32.gmra.mxu0 %v8366
      %v8447 = vpop.f32.mrf.mxu0
      %v8448 = vadd.f32 0.0, %v8447
      %v8449 = vpop.f32.mrf.mxu0
      %8450 = vmatprep.mubr.f32.mxu0 0.0
      %8451 = vmatmul.mubr.f32.gmra.mxu0 %v8369
      %v8452 = vpop.f32.mrf.mxu0
      %v8453 = vadd.f32 0.0, %v8452
      %v8454 = vpop.f32.mrf.mxu0
      %8455 = vdwg.mxu0
      %v8457 = vsel %vm669, %v2658, 0
      %v8460 = vsel %vm669, %v2659, 0
      %v8463 = vsel %vm669, %v2660, 0
      %v8466 = vsel %vm669, %v2661, 0
      %8468 = vmatprep.subr.mxu0 0.0
      %8469 = vmatpush1.msra.mxu0 0.0
      %8470 = vmatprep.subr.mxu0 0.0
      %8471 = vmatpush1.msra.mxu0 0.0
      %8472 = vmatprep.subr.mxu0 0.0
      %8473 = vmatpush1.msra.mxu0 0.0
      %8474 = vmatprep.subr.mxu0 0.0
      %8475 = vmatpush1.msra.mxu0 0.0
      %8476 = vmatprep.subr.mxu0 0.0
      %8477 = vmatpush1.msra.mxu0 0.0
      %8478 = vmatprep.subr.mxu0 0.0
      %8479 = vmatpush1.msra.mxu0 0.0
      %8480 = vmatprep.subr.mxu0 0.0
      %8481 = vmatpush1.msra.mxu0 0.0
      %8482 = vmatprep.subr.mxu0 0.0
      %8483 = vmatpush1.msra.mxu0 0.0
      %8484 = vmatprep.subr.mxu0 0.0
      %8485 = vmatpush1.msra.mxu0 0.0
      %8486 = vmatprep.subr.mxu0 0.0
      %8487 = vmatpush1.msra.mxu0 0.0
      %8488 = vmatprep.subr.mxu0 0.0
      %8489 = vmatpush1.msra.mxu0 0.0
      %8490 = vmatprep.subr.mxu0 0.0
      %8491 = vmatpush1.msra.mxu0 0.0
      %8492 = vmatprep.subr.mxu0 0.0
      %8493 = vmatpush1.msra.mxu0 %v524
      %8494 = vmatprep.subr.mxu0 0.0
      %8495 = vmatpush1.msra.mxu0 %v523
      %8496 = vmatprep.subr.mxu0 0.0
      %8497 = vmatpush1.msra.mxu0 %v522
      %8498 = vmatprep.subr.mxu0 0.0
      %8499 = vmatpush1.msra.mxu0 %v521
      %8500 = vmatprep.subr.mxu0 0.0
      %8501 = vmatpush2.msra.mxu0 0.0
      %8502 = vmatprep.subr.mxu0 0.0
      %8503 = vmatpush2.msra.mxu0 0.0
      %8504 = vmatprep.subr.mxu0 0.0
      %8505 = vmatpush2.msra.mxu0 0.0
      %8506 = vmatprep.subr.mxu0 0.0
      %8507 = vmatpush2.msra.mxu0 0.0
      %8508 = vmatprep.subr.mxu0 0.0
      %8509 = vmatpush2.msra.mxu0 0.0
      %8510 = vmatprep.subr.mxu0 0.0
      %8511 = vmatpush2.msra.mxu0 0.0
      %8512 = vmatprep.subr.mxu0 0.0
      %8513 = vmatpush2.msra.mxu0 0.0
      %8514 = vmatprep.subr.mxu0 0.0
      %8515 = vmatpush2.msra.mxu0 0.0
      %8516 = vmatprep.subr.mxu0 0.0
      %8517 = vmatpush2.msra.mxu0 0.0
      %8518 = vmatprep.subr.mxu0 0.0
      %8519 = vmatpush2.msra.mxu0 0.0
      %8520 = vmatprep.subr.mxu0 0.0
      %8521 = vmatpush2.msra.mxu0 0.0
      %8522 = vmatprep.subr.mxu0 0.0
      %8523 = vmatpush2.msra.mxu0 0.0
      %8524 = vmatprep.subr.mxu0 0.0
      %8525 = vmatpush2.msra.mxu0 0.0
      %8526 = vmatprep.subr.mxu0 0.0
      %8527 = vmatpush2.msra.mxu0 0.0
      %8528 = vmatprep.subr.mxu0 0.0
      %8529 = vmatpush2.msra.mxu0 0.0
      %8530 = vmatprep.subr.mxu0 0.0
      %8531 = vmatpush2.msra.mxu0 0.0
      %8532 = vmatprep.mubr.f32.mxu0 0.0
      %8533 = vmatmul.mubr.f32.gmra.mxu0 %v8457
      %v8534 = vpop.f32.mrf.mxu0
      %v8535 = vadd.f32 0.0, %v8534
      %v8536 = vpop.f32.mrf.mxu0
      %8537 = vmatprep.mubr.f32.mxu0 0.0
      %8538 = vmatmul.mubr.f32.gmra.mxu0 %v8460
      %v8539 = vpop.f32.mrf.mxu0
      %v8540 = vadd.f32 0.0, %v8539
      %v8541 = vpop.f32.mrf.mxu0
      %8542 = vmatprep.mubr.f32.mxu0 0.0
      %8543 = vmatmul.mubr.f32.gmra.mxu0 %v8463
      %v8544 = vpop.f32.mrf.mxu0
      %v8545 = vadd.f32 0.0, %v8544
      %v8546 = vpop.f32.mrf.mxu0
      %8547 = vmatprep.mubr.f32.mxu0 0.0
      %8548 = vmatmul.mubr.f32.gmra.mxu0 %v8466
      %v8549 = vpop.f32.mrf.mxu0
      %v8550 = vadd.f32 0.0, %v8549
      %v8551 = vpop.f32.mrf.mxu0
      %8552 = vdwg.mxu0
      %v8554 = vsel %vm669, %v2662, 0
      %v8557 = vsel %vm669, %v2663, 0
      %v8560 = vsel %vm669, %v2664, 0
      %v8563 = vsel %vm669, %v2665, 0
      %8565 = vmatprep.subr.mxu0 0.0
      %8566 = vmatpush1.msra.mxu0 0.0
      %8567 = vmatprep.subr.mxu0 0.0
      %8568 = vmatpush1.msra.mxu0 0.0
      %8569 = vmatprep.subr.mxu0 0.0
      %8570 = vmatpush1.msra.mxu0 0.0
      %8571 = vmatprep.subr.mxu0 0.0
      %8572 = vmatpush1.msra.mxu0 0.0
      %8573 = vmatprep.subr.mxu0 0.0
      %8574 = vmatpush1.msra.mxu0 0.0
      %8575 = vmatprep.subr.mxu0 0.0
      %8576 = vmatpush1.msra.mxu0 0.0
      %8577 = vmatprep.subr.mxu0 0.0
      %8578 = vmatpush1.msra.mxu0 0.0
      %8579 = vmatprep.subr.mxu0 0.0
      %8580 = vmatpush1.msra.mxu0 0.0
      %8581 = vmatprep.subr.mxu0 0.0
      %8582 = vmatpush1.msra.mxu0 0.0
      %8583 = vmatprep.subr.mxu0 0.0
      %8584 = vmatpush1.msra.mxu0 0.0
      %8585 = vmatprep.subr.mxu0 0.0
      %8586 = vmatpush1.msra.mxu0 0.0
      %8587 = vmatprep.subr.mxu0 0.0
      %8588 = vmatpush1.msra.mxu0 0.0
      %8589 = vmatprep.subr.mxu0 0.0
      %8590 = vmatpush1.msra.mxu0 %v528
      %8591 = vmatprep.subr.mxu0 0.0
      %8592 = vmatpush1.msra.mxu0 %v527
      %8593 = vmatprep.subr.mxu0 0.0
      %8594 = vmatpush1.msra.mxu0 %v526
      %8595 = vmatprep.subr.mxu0 0.0
      %8596 = vmatpush1.msra.mxu0 %v525
      %8597 = vmatprep.subr.mxu0 0.0
      %8598 = vmatpush2.msra.mxu0 0.0
      %8599 = vmatprep.subr.mxu0 0.0
      %8600 = vmatpush2.msra.mxu0 0.0
      %8601 = vmatprep.subr.mxu0 0.0
      %8602 = vmatpush2.msra.mxu0 0.0
      %8603 = vmatprep.subr.mxu0 0.0
      %8604 = vmatpush2.msra.mxu0 0.0
      %8605 = vmatprep.subr.mxu0 0.0
      %8606 = vmatpush2.msra.mxu0 0.0
      %8607 = vmatprep.subr.mxu0 0.0
      %8608 = vmatpush2.msra.mxu0 0.0
      %8609 = vmatprep.subr.mxu0 0.0
      %8610 = vmatpush2.msra.mxu0 0.0
      %8611 = vmatprep.subr.mxu0 0.0
      %8612 = vmatpush2.msra.mxu0 0.0
      %8613 = vmatprep.subr.mxu0 0.0
      %8614 = vmatpush2.msra.mxu0 0.0
      %8615 = vmatprep.subr.mxu0 0.0
      %8616 = vmatpush2.msra.mxu0 0.0
      %8617 = vmatprep.subr.mxu0 0.0
      %8618 = vmatpush2.msra.mxu0 0.0
      %8619 = vmatprep.subr.mxu0 0.0
      %8620 = vmatpush2.msra.mxu0 0.0
      %8621 = vmatprep.subr.mxu0 0.0
      %8622 = vmatpush2.msra.mxu0 0.0
      %8623 = vmatprep.subr.mxu0 0.0
      %8624 = vmatpush2.msra.mxu0 0.0
      %8625 = vmatprep.subr.mxu0 0.0
      %8626 = vmatpush2.msra.mxu0 0.0
      %8627 = vmatprep.subr.mxu0 0.0
      %8628 = vmatpush2.msra.mxu0 0.0
      %8629 = vmatprep.mubr.f32.mxu0 0.0
      %8630 = vmatmul.mubr.f32.gmra.mxu0 %v8554
      %v8631 = vpop.f32.mrf.mxu0
      %v8632 = vadd.f32 0.0, %v8631
      %v8633 = vpop.f32.mrf.mxu0
      %8634 = vmatprep.mubr.f32.mxu0 0.0
      %8635 = vmatmul.mubr.f32.gmra.mxu0 %v8557
      %v8636 = vpop.f32.mrf.mxu0
      %v8637 = vadd.f32 0.0, %v8636
      %v8638 = vpop.f32.mrf.mxu0
      %8639 = vmatprep.mubr.f32.mxu0 0.0
      %8640 = vmatmul.mubr.f32.gmra.mxu0 %v8560
      %v8641 = vpop.f32.mrf.mxu0
      %v8642 = vadd.f32 0.0, %v8641
      %v8643 = vpop.f32.mrf.mxu0
      %8644 = vmatprep.mubr.f32.mxu0 0.0
      %8645 = vmatmul.mubr.f32.gmra.mxu0 %v8563
      %v8646 = vpop.f32.mrf.mxu0
      %v8647 = vadd.f32 0.0, %v8646
      %v8648 = vpop.f32.mrf.mxu0
      %8649 = vdwg.mxu0
      %v8651 = vsel %vm669, %v2666, 0
      %v8654 = vsel %vm669, %v2667, 0
      %v8657 = vsel %vm669, %v2668, 0
      %v8660 = vsel %vm669, %v2669, 0
      %8662 = vmatprep.subr.mxu0 0.0
      %8663 = vmatpush1.msra.mxu0 0.0
      %8664 = vmatprep.subr.mxu0 0.0
      %8665 = vmatpush1.msra.mxu0 0.0
      %8666 = vmatprep.subr.mxu0 0.0
      %8667 = vmatpush1.msra.mxu0 0.0
      %8668 = vmatprep.subr.mxu0 0.0
      %8669 = vmatpush1.msra.mxu0 0.0
      %8670 = vmatprep.subr.mxu0 0.0
      %8671 = vmatpush1.msra.mxu0 0.0
      %8672 = vmatprep.subr.mxu0 0.0
      %8673 = vmatpush1.msra.mxu0 0.0
      %8674 = vmatprep.subr.mxu0 0.0
      %8675 = vmatpush1.msra.mxu0 0.0
      %8676 = vmatprep.subr.mxu0 0.0
      %8677 = vmatpush1.msra.mxu0 0.0
      %8678 = vmatprep.subr.mxu0 0.0
      %8679 = vmatpush1.msra.mxu0 0.0
      %8680 = vmatprep.subr.mxu0 0.0
      %8681 = vmatpush1.msra.mxu0 0.0
      %8682 = vmatprep.subr.mxu0 0.0
      %8683 = vmatpush1.msra.mxu0 0.0
      %8684 = vmatprep.subr.mxu0 0.0
      %8685 = vmatpush1.msra.mxu0 0.0
      %8686 = vmatprep.subr.mxu0 0.0
      %8687 = vmatpush1.msra.mxu0 %v532
      %8688 = vmatprep.subr.mxu0 0.0
      %8689 = vmatpush1.msra.mxu0 %v531
      %8690 = vmatprep.subr.mxu0 0.0
      %8691 = vmatpush1.msra.mxu0 %v530
      %8692 = vmatprep.subr.mxu0 0.0
      %8693 = vmatpush1.msra.mxu0 %v529
      %8694 = vmatprep.subr.mxu0 0.0
      %8695 = vmatpush2.msra.mxu0 0.0
      %8696 = vmatprep.subr.mxu0 0.0
      %8697 = vmatpush2.msra.mxu0 0.0
      %8698 = vmatprep.subr.mxu0 0.0
      %8699 = vmatpush2.msra.mxu0 0.0
      %8700 = vmatprep.subr.mxu0 0.0
      %8701 = vmatpush2.msra.mxu0 0.0
      %8702 = vmatprep.subr.mxu0 0.0
      %8703 = vmatpush2.msra.mxu0 0.0
      %8704 = vmatprep.subr.mxu0 0.0
      %8705 = vmatpush2.msra.mxu0 0.0
      %8706 = vmatprep.subr.mxu0 0.0
      %8707 = vmatpush2.msra.mxu0 0.0
      %8708 = vmatprep.subr.mxu0 0.0
      %8709 = vmatpush2.msra.mxu0 0.0
      %8710 = vmatprep.subr.mxu0 0.0
      %8711 = vmatpush2.msra.mxu0 0.0
      %8712 = vmatprep.subr.mxu0 0.0
      %8713 = vmatpush2.msra.mxu0 0.0
      %8714 = vmatprep.subr.mxu0 0.0
      %8715 = vmatpush2.msra.mxu0 0.0
      %8716 = vmatprep.subr.mxu0 0.0
      %8717 = vmatpush2.msra.mxu0 0.0
      %8718 = vmatprep.subr.mxu0 0.0
      %8719 = vmatpush2.msra.mxu0 0.0
      %8720 = vmatprep.subr.mxu0 0.0
      %8721 = vmatpush2.msra.mxu0 0.0
      %8722 = vmatprep.subr.mxu0 0.0
      %8723 = vmatpush2.msra.mxu0 0.0
      %8724 = vmatprep.subr.mxu0 0.0
      %8725 = vmatpush2.msra.mxu0 0.0
      %8726 = vmatprep.mubr.f32.mxu0 0.0
      %8727 = vmatmul.mubr.f32.gmra.mxu0 %v8651
      %v8728 = vpop.f32.mrf.mxu0
      %v8729 = vadd.f32 0.0, %v8728
      %v8730 = vpop.f32.mrf.mxu0
      %8731 = vmatprep.mubr.f32.mxu0 0.0
      %8732 = vmatmul.mubr.f32.gmra.mxu0 %v8654
      %v8733 = vpop.f32.mrf.mxu0
      %v8734 = vadd.f32 0.0, %v8733
      %v8735 = vpop.f32.mrf.mxu0
      %8736 = vmatprep.mubr.f32.mxu0 0.0
      %8737 = vmatmul.mubr.f32.gmra.mxu0 %v8657
      %v8738 = vpop.f32.mrf.mxu0
      %v8739 = vadd.f32 0.0, %v8738
      %v8740 = vpop.f32.mrf.mxu0
      %8741 = vmatprep.mubr.f32.mxu0 0.0
      %8742 = vmatmul.mubr.f32.gmra.mxu0 %v8660
      %v8743 = vpop.f32.mrf.mxu0
      %v8744 = vadd.f32 0.0, %v8743
      %v8745 = vpop.f32.mrf.mxu0
      %8746 = vdwg.mxu0
      %v8748 = vsel %vm669, %v2670, 0
      %v8751 = vsel %vm669, %v2671, 0
      %v8754 = vsel %vm669, %v2672, 0
      %v8757 = vsel %vm669, %v2673, 0
      %8759 = vmatprep.subr.mxu0 0.0
      %8760 = vmatpush1.msra.mxu0 0.0
      %8761 = vmatprep.subr.mxu0 0.0
      %8762 = vmatpush1.msra.mxu0 0.0
      %8763 = vmatprep.subr.mxu0 0.0
      %8764 = vmatpush1.msra.mxu0 0.0
      %8765 = vmatprep.subr.mxu0 0.0
      %8766 = vmatpush1.msra.mxu0 0.0
      %8767 = vmatprep.subr.mxu0 0.0
      %8768 = vmatpush1.msra.mxu0 0.0
      %8769 = vmatprep.subr.mxu0 0.0
      %8770 = vmatpush1.msra.mxu0 0.0
      %8771 = vmatprep.subr.mxu0 0.0
      %8772 = vmatpush1.msra.mxu0 0.0
      %8773 = vmatprep.subr.mxu0 0.0
      %8774 = vmatpush1.msra.mxu0 0.0
      %8775 = vmatprep.subr.mxu0 0.0
      %8776 = vmatpush1.msra.mxu0 0.0
      %8777 = vmatprep.subr.mxu0 0.0
      %8778 = vmatpush1.msra.mxu0 0.0
      %8779 = vmatprep.subr.mxu0 0.0
      %8780 = vmatpush1.msra.mxu0 0.0
      %8781 = vmatprep.subr.mxu0 0.0
      %8782 = vmatpush1.msra.mxu0 0.0
      %8783 = vmatprep.subr.mxu0 0.0
      %8784 = vmatpush1.msra.mxu0 %v536
      %8785 = vmatprep.subr.mxu0 0.0
      %8786 = vmatpush1.msra.mxu0 %v535
      %8787 = vmatprep.subr.mxu0 0.0
      %8788 = vmatpush1.msra.mxu0 %v534
      %8789 = vmatprep.subr.mxu0 0.0
      %8790 = vmatpush1.msra.mxu0 %v533
      %8791 = vmatprep.subr.mxu0 0.0
      %8792 = vmatpush2.msra.mxu0 0.0
      %8793 = vmatprep.subr.mxu0 0.0
      %8794 = vmatpush2.msra.mxu0 0.0
      %8795 = vmatprep.subr.mxu0 0.0
      %8796 = vmatpush2.msra.mxu0 0.0
      %8797 = vmatprep.subr.mxu0 0.0
      %8798 = vmatpush2.msra.mxu0 0.0
      %8799 = vmatprep.subr.mxu0 0.0
      %8800 = vmatpush2.msra.mxu0 0.0
      %8801 = vmatprep.subr.mxu0 0.0
      %8802 = vmatpush2.msra.mxu0 0.0
      %8803 = vmatprep.subr.mxu0 0.0
      %8804 = vmatpush2.msra.mxu0 0.0
      %8805 = vmatprep.subr.mxu0 0.0
      %8806 = vmatpush2.msra.mxu0 0.0
      %8807 = vmatprep.subr.mxu0 0.0
      %8808 = vmatpush2.msra.mxu0 0.0
      %8809 = vmatprep.subr.mxu0 0.0
      %8810 = vmatpush2.msra.mxu0 0.0
      %8811 = vmatprep.subr.mxu0 0.0
      %8812 = vmatpush2.msra.mxu0 0.0
      %8813 = vmatprep.subr.mxu0 0.0
      %8814 = vmatpush2.msra.mxu0 0.0
      %8815 = vmatprep.subr.mxu0 0.0
      %8816 = vmatpush2.msra.mxu0 0.0
      %8817 = vmatprep.subr.mxu0 0.0
      %8818 = vmatpush2.msra.mxu0 0.0
      %8819 = vmatprep.subr.mxu0 0.0
      %8820 = vmatpush2.msra.mxu0 0.0
      %8821 = vmatprep.subr.mxu0 0.0
      %8822 = vmatpush2.msra.mxu0 0.0
      %8823 = vmatprep.mubr.f32.mxu0 0.0
      %8824 = vmatmul.mubr.f32.gmra.mxu0 %v8748
      %v8825 = vpop.f32.mrf.mxu0
      %v8826 = vadd.f32 0.0, %v8825
      %v8827 = vpop.f32.mrf.mxu0
      %8828 = vmatprep.mubr.f32.mxu0 0.0
      %8829 = vmatmul.mubr.f32.gmra.mxu0 %v8751
      %v8830 = vpop.f32.mrf.mxu0
      %v8831 = vadd.f32 0.0, %v8830
      %v8832 = vpop.f32.mrf.mxu0
      %8833 = vmatprep.mubr.f32.mxu0 0.0
      %8834 = vmatmul.mubr.f32.gmra.mxu0 %v8754
      %v8835 = vpop.f32.mrf.mxu0
      %v8836 = vadd.f32 0.0, %v8835
      %v8837 = vpop.f32.mrf.mxu0
      %8838 = vmatprep.mubr.f32.mxu0 0.0
      %8839 = vmatmul.mubr.f32.gmra.mxu0 %v8757
      %v8840 = vpop.f32.mrf.mxu0
      %v8841 = vadd.f32 0.0, %v8840
      %v8842 = vpop.f32.mrf.mxu0
      %8843 = vdwg.mxu0
      %v8845 = vsel %vm669, %v2674, 0
      %v8848 = vsel %vm669, %v2675, 0
      %v8851 = vsel %vm669, %v2676, 0
      %v8854 = vsel %vm669, %v2677, 0
      %8856 = vmatprep.subr.mxu0 0.0
      %8857 = vmatpush1.msra.mxu0 0.0
      %8858 = vmatprep.subr.mxu0 0.0
      %8859 = vmatpush1.msra.mxu0 0.0
      %8860 = vmatprep.subr.mxu0 0.0
      %8861 = vmatpush1.msra.mxu0 0.0
      %8862 = vmatprep.subr.mxu0 0.0
      %8863 = vmatpush1.msra.mxu0 0.0
      %8864 = vmatprep.subr.mxu0 0.0
      %8865 = vmatpush1.msra.mxu0 0.0
      %8866 = vmatprep.subr.mxu0 0.0
      %8867 = vmatpush1.msra.mxu0 0.0
      %8868 = vmatprep.subr.mxu0 0.0
      %8869 = vmatpush1.msra.mxu0 0.0
      %8870 = vmatprep.subr.mxu0 0.0
      %8871 = vmatpush1.msra.mxu0 0.0
      %8872 = vmatprep.subr.mxu0 0.0
      %8873 = vmatpush1.msra.mxu0 0.0
      %8874 = vmatprep.subr.mxu0 0.0
      %8875 = vmatpush1.msra.mxu0 0.0
      %8876 = vmatprep.subr.mxu0 0.0
      %8877 = vmatpush1.msra.mxu0 0.0
      %8878 = vmatprep.subr.mxu0 0.0
      %8879 = vmatpush1.msra.mxu0 0.0
      %8880 = vmatprep.subr.mxu0 0.0
      %8881 = vmatpush1.msra.mxu0 %v540
      %8882 = vmatprep.subr.mxu0 0.0
      %8883 = vmatpush1.msra.mxu0 %v539
      %8884 = vmatprep.subr.mxu0 0.0
      %8885 = vmatpush1.msra.mxu0 %v538
      %8886 = vmatprep.subr.mxu0 0.0
      %8887 = vmatpush1.msra.mxu0 %v537
      %8888 = vmatprep.subr.mxu0 0.0
      %8889 = vmatpush2.msra.mxu0 0.0
      %8890 = vmatprep.subr.mxu0 0.0
      %8891 = vmatpush2.msra.mxu0 0.0
      %8892 = vmatprep.subr.mxu0 0.0
      %8893 = vmatpush2.msra.mxu0 0.0
      %8894 = vmatprep.subr.mxu0 0.0
      %8895 = vmatpush2.msra.mxu0 0.0
      %8896 = vmatprep.subr.mxu0 0.0
      %8897 = vmatpush2.msra.mxu0 0.0
      %8898 = vmatprep.subr.mxu0 0.0
      %8899 = vmatpush2.msra.mxu0 0.0
      %8900 = vmatprep.subr.mxu0 0.0
      %8901 = vmatpush2.msra.mxu0 0.0
      %8902 = vmatprep.subr.mxu0 0.0
      %8903 = vmatpush2.msra.mxu0 0.0
      %8904 = vmatprep.subr.mxu0 0.0
      %8905 = vmatpush2.msra.mxu0 0.0
      %8906 = vmatprep.subr.mxu0 0.0
      %8907 = vmatpush2.msra.mxu0 0.0
      %8908 = vmatprep.subr.mxu0 0.0
      %8909 = vmatpush2.msra.mxu0 0.0
      %8910 = vmatprep.subr.mxu0 0.0
      %8911 = vmatpush2.msra.mxu0 0.0
      %8912 = vmatprep.subr.mxu0 0.0
      %8913 = vmatpush2.msra.mxu0 0.0
      %8914 = vmatprep.subr.mxu0 0.0
      %8915 = vmatpush2.msra.mxu0 0.0
      %8916 = vmatprep.subr.mxu0 0.0
      %8917 = vmatpush2.msra.mxu0 0.0
      %8918 = vmatprep.subr.mxu0 0.0
      %8919 = vmatpush2.msra.mxu0 0.0
      %8920 = vmatprep.mubr.f32.mxu0 0.0
      %8921 = vmatmul.mubr.f32.gmra.mxu0 %v8845
      %v8922 = vpop.f32.mrf.mxu0
      %v8923 = vadd.f32 0.0, %v8922
      %v8924 = vpop.f32.mrf.mxu0
      %8925 = vmatprep.mubr.f32.mxu0 0.0
      %8926 = vmatmul.mubr.f32.gmra.mxu0 %v8848
      %v8927 = vpop.f32.mrf.mxu0
      %v8928 = vadd.f32 0.0, %v8927
      %v8929 = vpop.f32.mrf.mxu0
      %8930 = vmatprep.mubr.f32.mxu0 0.0
      %8931 = vmatmul.mubr.f32.gmra.mxu0 %v8851
      %v8932 = vpop.f32.mrf.mxu0
      %v8933 = vadd.f32 0.0, %v8932
      %v8934 = vpop.f32.mrf.mxu0
      %8935 = vmatprep.mubr.f32.mxu0 0.0
      %8936 = vmatmul.mubr.f32.gmra.mxu0 %v8854
      %v8937 = vpop.f32.mrf.mxu0
      %v8938 = vadd.f32 0.0, %v8937
      %v8939 = vpop.f32.mrf.mxu0
      %8940 = vdwg.mxu0
      %v8941 = vld [vmem:[%s7] sm:$0xff]
      %v8942 = vld [vmem:[%s7 + $0x8] sm:$0xff]
      %v8943 = vld [vmem:[%s7 + $0x10] sm:$0xff]
      %v8944 = vld [vmem:[%s7 + $0x18] sm:$0xff]
      %v8945 = vld [vmem:[%s8] sm:$0xff]
      %v8946 = vld [vmem:[%s8 + $0x8] sm:$0xff]
      %v8947 = vld [vmem:[%s8 + $0x10] sm:$0xff]
      %v8948 = vld [vmem:[%s8 + $0x18] sm:$0xff]
      %v8950 = vsel %vm669, %v5916, 0
      %v8953 = vsel %vm669, %v5921, 0
      %v8956 = vsel %vm669, %v5926, 0
      %v8959 = vsel %vm669, %v5931, 0
      %v8962 = vsel %vm669, %v6013, 0
      %v8965 = vsel %vm669, %v6018, 0
      %v8968 = vsel %vm669, %v6023, 0
      %v8971 = vsel %vm669, %v6028, 0
      %v8974 = vsel %vm669, %v6110, 0
      %v8977 = vsel %vm669, %v6115, 0
      %v8980 = vsel %vm669, %v6120, 0
      %v8983 = vsel %vm669, %v6125, 0
      %v8986 = vsel %vm669, %v6207, 0
      %v8989 = vsel %vm669, %v6212, 0
      %v8992 = vsel %vm669, %v6217, 0
      %v8995 = vsel %vm669, %v6222, 0
      %v8998 = vsel %vm669, %v6304, 0
      %v9001 = vsel %vm669, %v6309, 0
      %v9004 = vsel %vm669, %v6314, 0
      %v9007 = vsel %vm669, %v6319, 0
      %v9010 = vsel %vm669, %v6401, 0
      %v9013 = vsel %vm669, %v6406, 0
      %v9016 = vsel %vm669, %v6411, 0
      %v9019 = vsel %vm669, %v6416, 0
      %v9022 = vsel %vm669, %v6498, 0
      %v9025 = vsel %vm669, %v6503, 0
      %v9028 = vsel %vm669, %v6508, 0
      %v9031 = vsel %vm669, %v6513, 0
      %v9034 = vsel %vm669, %v6595, 0
      %v9037 = vsel %vm669, %v6600, 0
      %v9040 = vsel %vm669, %v6605, 0
      %v9043 = vsel %vm669, %v6610, 0
      %v9046 = vsel %vm669, %v6692, 0
      %v9049 = vsel %vm669, %v6697, 0
      %v9052 = vsel %vm669, %v6702, 0
      %v9055 = vsel %vm669, %v6707, 0
      %v9058 = vsel %vm669, %v6789, 0
      %v9061 = vsel %vm669, %v6794, 0
      %v9064 = vsel %vm669, %v6799, 0
      %v9067 = vsel %vm669, %v6804, 0
      %v9070 = vsel %vm669, %v6886, 0
      %v9073 = vsel %vm669, %v6891, 0
      %v9076 = vsel %vm669, %v6896, 0
      %v9079 = vsel %vm669, %v6901, 0
      %v9082 = vsel %vm669, %v6983, 0
      %v9085 = vsel %vm669, %v6988, 0
      %v9088 = vsel %vm669, %v6993, 0
      %v9091 = vsel %vm669, %v6998, 0
      %v9094 = vsel %vm669, %v7080, 0
      %v9097 = vsel %vm669, %v7085, 0
      %v9100 = vsel %vm669, %v7090, 0
      %v9103 = vsel %vm669, %v7095, 0
      %v9106 = vsel %vm669, %v7177, 0
      %v9109 = vsel %vm669, %v7182, 0
      %v9112 = vsel %vm669, %v7187, 0
      %v9115 = vsel %vm669, %v7192, 0
      %v9118 = vsel %vm669, %v7274, 0
      %v9121 = vsel %vm669, %v7279, 0
      %v9124 = vsel %vm669, %v7284, 0
      %v9127 = vsel %vm669, %v7289, 0
      %v9130 = vsel %vm669, %v7371, 0
      %v9133 = vsel %vm669, %v7376, 0
      %v9136 = vsel %vm669, %v7381, 0
      %v9139 = vsel %vm669, %v7386, 0
      %v9142 = vsel %vm669, %v7468, 0
      %v9145 = vsel %vm669, %v7473, 0
      %v9148 = vsel %vm669, %v7478, 0
      %v9151 = vsel %vm669, %v7483, 0
      %v9154 = vsel %vm669, %v7565, 0
      %v9157 = vsel %vm669, %v7570, 0
      %v9160 = vsel %vm669, %v7575, 0
      %v9163 = vsel %vm669, %v7580, 0
      %v9166 = vsel %vm669, %v7662, 0
      %v9169 = vsel %vm669, %v7667, 0
      %v9172 = vsel %vm669, %v7672, 0
      %v9175 = vsel %vm669, %v7677, 0
      %v9178 = vsel %vm669, %v7759, 0
      %v9181 = vsel %vm669, %v7764, 0
      %v9184 = vsel %vm669, %v7769, 0
      %v9187 = vsel %vm669, %v7774, 0
      %v9190 = vsel %vm669, %v7856, 0
      %v9193 = vsel %vm669, %v7861, 0
      %v9196 = vsel %vm669, %v7866, 0
      %v9199 = vsel %vm669, %v7871, 0
      %v9202 = vsel %vm669, %v7953, 0
      %v9205 = vsel %vm669, %v7958, 0
      %v9208 = vsel %vm669, %v7963, 0
      %v9211 = vsel %vm669, %v7968, 0
      %v9214 = vsel %vm669, %v8050, 0
      %v9217 = vsel %vm669, %v8055, 0
      %v9220 = vsel %vm669, %v8060, 0
      %v9223 = vsel %vm669, %v8065, 0
      %v9226 = vsel %vm669, %v8147, 0
      %v9229 = vsel %vm669, %v8152, 0
      %v9232 = vsel %vm669, %v8157, 0
      %v9235 = vsel %vm669, %v8162, 0
      %v9238 = vsel %vm669, %v8244, 0
      %v9241 = vsel %vm669, %v8249, 0
      %v9244 = vsel %vm669, %v8254, 0
      %v9247 = vsel %vm669, %v8259, 0
      %v9250 = vsel %vm669, %v8341, 0
      %v9253 = vsel %vm669, %v8346, 0
      %v9256 = vsel %vm669, %v8351, 0
      %v9259 = vsel %vm669, %v8356, 0
      %v9262 = vsel %vm669, %v8438, 0
      %v9265 = vsel %vm669, %v8443, 0
      %v9268 = vsel %vm669, %v8448, 0
      %v9271 = vsel %vm669, %v8453, 0
      %v9274 = vsel %vm669, %v8535, 0
      %v9277 = vsel %vm669, %v8540, 0
      %v9280 = vsel %vm669, %v8545, 0
      %v9283 = vsel %vm669, %v8550, 0
      %v9286 = vsel %vm669, %v8632, 0
      %v9289 = vsel %vm669, %v8637, 0
      %v9292 = vsel %vm669, %v8642, 0
      %v9295 = vsel %vm669, %v8647, 0
      %v9298 = vsel %vm669, %v8729, 0
      %v9301 = vsel %vm669, %v8734, 0
      %v9304 = vsel %vm669, %v8739, 0
      %v9307 = vsel %vm669, %v8744, 0
      %v9310 = vsel %vm669, %v8826, 0
      %v9313 = vsel %vm669, %v8831, 0
      %v9316 = vsel %vm669, %v8836, 0
      %v9319 = vsel %vm669, %v8841, 0
      %v9322 = vsel %vm669, %v8923, 0
      %v9325 = vsel %vm669, %v8928, 0
      %v9328 = vsel %vm669, %v8933, 0
      %v9331 = vsel %vm669, %v8938, 0
      %9333 = vmatprep.subr.mxu0 0.0
      %9334 = vmatpush1.msra.mxu0 0.0
      %9335 = vmatprep.subr.mxu0 0.0
      %9336 = vmatpush1.msra.mxu0 0.0
      %9337 = vmatprep.subr.mxu0 0.0
      %9338 = vmatpush1.msra.mxu0 0.0
      %9339 = vmatprep.subr.mxu0 0.0
      %9340 = vmatpush1.msra.mxu0 0.0
      %9341 = vmatprep.subr.mxu0 0.0
      %9342 = vmatpush1.msra.mxu0 0.0
      %9343 = vmatprep.subr.mxu0 0.0
      %9344 = vmatpush1.msra.mxu0 0.0
      %9345 = vmatprep.subr.mxu0 0.0
      %9346 = vmatpush1.msra.mxu0 0.0
      %9347 = vmatprep.subr.mxu0 0.0
      %9348 = vmatpush1.msra.mxu0 0.0
      %9349 = vmatprep.subr.mxu0 0.0
      %9350 = vmatpush1.msra.mxu0 0.0
      %9351 = vmatprep.subr.mxu0 0.0
      %9352 = vmatpush1.msra.mxu0 0.0
      %9353 = vmatprep.subr.mxu0 0.0
      %9354 = vmatpush1.msra.mxu0 0.0
      %9355 = vmatprep.subr.mxu0 0.0
      %9356 = vmatpush1.msra.mxu0 0.0
      %9357 = vmatprep.subr.mxu0 0.0
      %9358 = vmatpush1.msra.mxu0 %v8948
      %9359 = vmatprep.subr.mxu0 0.0
      %9360 = vmatpush1.msra.mxu0 %v8947
      %9361 = vmatprep.subr.mxu0 0.0
      %9362 = vmatpush1.msra.mxu0 %v8946
      %9363 = vmatprep.subr.mxu0 0.0
      %9364 = vmatpush1.msra.mxu0 %v8945
      %9365 = vmatprep.subr.mxu0 0.0
      %9366 = vmatpush2.msra.mxu0 0.0
      %9367 = vmatprep.subr.mxu0 0.0
      %9368 = vmatpush2.msra.mxu0 0.0
      %9369 = vmatprep.subr.mxu0 0.0
      %9370 = vmatpush2.msra.mxu0 0.0
      %9371 = vmatprep.subr.mxu0 0.0
      %9372 = vmatpush2.msra.mxu0 0.0
      %9373 = vmatprep.subr.mxu0 0.0
      %9374 = vmatpush2.msra.mxu0 0.0
      %9375 = vmatprep.subr.mxu0 0.0
      %9376 = vmatpush2.msra.mxu0 0.0
      %9377 = vmatprep.subr.mxu0 0.0
      %9378 = vmatpush2.msra.mxu0 0.0
      %9379 = vmatprep.subr.mxu0 0.0
      %9380 = vmatpush2.msra.mxu0 0.0
      %9381 = vmatprep.subr.mxu0 0.0
      %9382 = vmatpush2.msra.mxu0 0.0
      %9383 = vmatprep.subr.mxu0 0.0
      %9384 = vmatpush2.msra.mxu0 0.0
      %9385 = vmatprep.subr.mxu0 0.0
      %9386 = vmatpush2.msra.mxu0 0.0
      %9387 = vmatprep.subr.mxu0 0.0
      %9388 = vmatpush2.msra.mxu0 0.0
      %9389 = vmatprep.subr.mxu0 0.0
      %9390 = vmatpush2.msra.mxu0 0.0
      %9391 = vmatprep.subr.mxu0 0.0
      %9392 = vmatpush2.msra.mxu0 0.0
      %9393 = vmatprep.subr.mxu0 0.0
      %9394 = vmatpush2.msra.mxu0 0.0
      %9395 = vmatprep.subr.mxu0 0.0
      %9396 = vmatpush2.msra.mxu0 0.0
      %9397 = vmatprep.mubr.f32.mxu0 0.0
      %9398 = vmatmul.mubr.f32.gmra.mxu0 %v8950
      %v9399 = vpop.f32.mrf.mxu0
      %v9400 = vadd.f32 0.0, %v9399
      %v9401 = vpop.f32.mrf.mxu0
      %9402 = vmatprep.mubr.f32.mxu0 0.0
      %9403 = vmatmul.mubr.f32.gmra.mxu0 %v8953
      %v9404 = vpop.f32.mrf.mxu0
      %v9405 = vadd.f32 0.0, %v9404
      %v9406 = vpop.f32.mrf.mxu0
      %9407 = vmatprep.mubr.f32.mxu0 0.0
      %9408 = vmatmul.mubr.f32.gmra.mxu0 %v8956
      %v9409 = vpop.f32.mrf.mxu0
      %v9410 = vadd.f32 0.0, %v9409
      %v9411 = vpop.f32.mrf.mxu0
      %9412 = vmatprep.mubr.f32.mxu0 0.0
      %9413 = vmatmul.mubr.f32.gmra.mxu0 %v8959
      %v9414 = vpop.f32.mrf.mxu0
      %v9415 = vadd.f32 0.0, %v9414
      %v9416 = vpop.f32.mrf.mxu0
      %9417 = vmatprep.mubr.f32.mxu0 0.0
      %9418 = vmatmul.mubr.f32.gmra.mxu0 %v8962
      %v9419 = vpop.f32.mrf.mxu0
      %v9420 = vadd.f32 0.0, %v9419
      %v9421 = vpop.f32.mrf.mxu0
      %9422 = vmatprep.mubr.f32.mxu0 0.0
      %9423 = vmatmul.mubr.f32.gmra.mxu0 %v8965
      %v9424 = vpop.f32.mrf.mxu0
      %v9425 = vadd.f32 0.0, %v9424
      %v9426 = vpop.f32.mrf.mxu0
      %9427 = vmatprep.mubr.f32.mxu0 0.0
      %9428 = vmatmul.mubr.f32.gmra.mxu0 %v8968
      %v9429 = vpop.f32.mrf.mxu0
      %v9430 = vadd.f32 0.0, %v9429
      %v9431 = vpop.f32.mrf.mxu0
      %9432 = vmatprep.mubr.f32.mxu0 0.0
      %9433 = vmatmul.mubr.f32.gmra.mxu0 %v8971
      %v9434 = vpop.f32.mrf.mxu0
      %v9435 = vadd.f32 0.0, %v9434
      %v9436 = vpop.f32.mrf.mxu0
      %9437 = vmatprep.mubr.f32.mxu0 0.0
      %9438 = vmatmul.mubr.f32.gmra.mxu0 %v8974
      %v9439 = vpop.f32.mrf.mxu0
      %v9440 = vadd.f32 0.0, %v9439
      %v9441 = vpop.f32.mrf.mxu0
      %9442 = vmatprep.mubr.f32.mxu0 0.0
      %9443 = vmatmul.mubr.f32.gmra.mxu0 %v8977
      %v9444 = vpop.f32.mrf.mxu0
      %v9445 = vadd.f32 0.0, %v9444
      %v9446 = vpop.f32.mrf.mxu0
      %9447 = vmatprep.mubr.f32.mxu0 0.0
      %9448 = vmatmul.mubr.f32.gmra.mxu0 %v8980
      %v9449 = vpop.f32.mrf.mxu0
      %v9450 = vadd.f32 0.0, %v9449
      %v9451 = vpop.f32.mrf.mxu0
      %9452 = vmatprep.mubr.f32.mxu0 0.0
      %9453 = vmatmul.mubr.f32.gmra.mxu0 %v8983
      %v9454 = vpop.f32.mrf.mxu0
      %v9455 = vadd.f32 0.0, %v9454
      %v9456 = vpop.f32.mrf.mxu0
      %9457 = vmatprep.mubr.f32.mxu0 0.0
      %9458 = vmatmul.mubr.f32.gmra.mxu0 %v8986
      %v9459 = vpop.f32.mrf.mxu0
      %v9460 = vadd.f32 0.0, %v9459
      %v9461 = vpop.f32.mrf.mxu0
      %9462 = vmatprep.mubr.f32.mxu0 0.0
      %9463 = vmatmul.mubr.f32.gmra.mxu0 %v8989
      %v9464 = vpop.f32.mrf.mxu0
      %v9465 = vadd.f32 0.0, %v9464
      %v9466 = vpop.f32.mrf.mxu0
      %9467 = vmatprep.mubr.f32.mxu0 0.0
      %9468 = vmatmul.mubr.f32.gmra.mxu0 %v8992
      %v9469 = vpop.f32.mrf.mxu0
      %v9470 = vadd.f32 0.0, %v9469
      %v9471 = vpop.f32.mrf.mxu0
      %9472 = vmatprep.mubr.f32.mxu0 0.0
      %9473 = vmatmul.mubr.f32.gmra.mxu0 %v8995
      %v9474 = vpop.f32.mrf.mxu0
      %v9475 = vadd.f32 0.0, %v9474
      %v9476 = vpop.f32.mrf.mxu0
      %9477 = vmatprep.mubr.f32.mxu0 0.0
      %9478 = vmatmul.mubr.f32.gmra.mxu0 %v8998
      %v9479 = vpop.f32.mrf.mxu0
      %v9480 = vadd.f32 0.0, %v9479
      %v9481 = vpop.f32.mrf.mxu0
      %9482 = vmatprep.mubr.f32.mxu0 0.0
      %9483 = vmatmul.mubr.f32.gmra.mxu0 %v9001
      %v9484 = vpop.f32.mrf.mxu0
      %v9485 = vadd.f32 0.0, %v9484
      %v9486 = vpop.f32.mrf.mxu0
      %9487 = vmatprep.mubr.f32.mxu0 0.0
      %9488 = vmatmul.mubr.f32.gmra.mxu0 %v9004
      %v9489 = vpop.f32.mrf.mxu0
      %v9490 = vadd.f32 0.0, %v9489
      %v9491 = vpop.f32.mrf.mxu0
      %9492 = vmatprep.mubr.f32.mxu0 0.0
      %9493 = vmatmul.mubr.f32.gmra.mxu0 %v9007
      %v9494 = vpop.f32.mrf.mxu0
      %v9495 = vadd.f32 0.0, %v9494
      %v9496 = vpop.f32.mrf.mxu0
      %9497 = vmatprep.mubr.f32.mxu0 0.0
      %9498 = vmatmul.mubr.f32.gmra.mxu0 %v9010
      %v9499 = vpop.f32.mrf.mxu0
      %v9500 = vadd.f32 0.0, %v9499
      %v9501 = vpop.f32.mrf.mxu0
      %9502 = vmatprep.mubr.f32.mxu0 0.0
      %9503 = vmatmul.mubr.f32.gmra.mxu0 %v9013
      %v9504 = vpop.f32.mrf.mxu0
      %v9505 = vadd.f32 0.0, %v9504
      %v9506 = vpop.f32.mrf.mxu0
      %9507 = vmatprep.mubr.f32.mxu0 0.0
      %9508 = vmatmul.mubr.f32.gmra.mxu0 %v9016
      %v9509 = vpop.f32.mrf.mxu0
      %v9510 = vadd.f32 0.0, %v9509
      %v9511 = vpop.f32.mrf.mxu0
      %9512 = vmatprep.mubr.f32.mxu0 0.0
      %9513 = vmatmul.mubr.f32.gmra.mxu0 %v9019
      %v9514 = vpop.f32.mrf.mxu0
      %v9515 = vadd.f32 0.0, %v9514
      %v9516 = vpop.f32.mrf.mxu0
      %9517 = vmatprep.mubr.f32.mxu0 0.0
      %9518 = vmatmul.mubr.f32.gmra.mxu0 %v9022
      %v9519 = vpop.f32.mrf.mxu0
      %v9520 = vadd.f32 0.0, %v9519
      %v9521 = vpop.f32.mrf.mxu0
      %9522 = vmatprep.mubr.f32.mxu0 0.0
      %9523 = vmatmul.mubr.f32.gmra.mxu0 %v9025
      %v9524 = vpop.f32.mrf.mxu0
      %v9525 = vadd.f32 0.0, %v9524
      %v9526 = vpop.f32.mrf.mxu0
      %9527 = vmatprep.mubr.f32.mxu0 0.0
      %9528 = vmatmul.mubr.f32.gmra.mxu0 %v9028
      %v9529 = vpop.f32.mrf.mxu0
      %v9530 = vadd.f32 0.0, %v9529
      %v9531 = vpop.f32.mrf.mxu0
      %9532 = vmatprep.mubr.f32.mxu0 0.0
      %9533 = vmatmul.mubr.f32.gmra.mxu0 %v9031
      %v9534 = vpop.f32.mrf.mxu0
      %v9535 = vadd.f32 0.0, %v9534
      %v9536 = vpop.f32.mrf.mxu0
      %9537 = vmatprep.mubr.f32.mxu0 0.0
      %9538 = vmatmul.mubr.f32.gmra.mxu0 %v9034
      %v9539 = vpop.f32.mrf.mxu0
      %v9540 = vadd.f32 0.0, %v9539
      %v9541 = vpop.f32.mrf.mxu0
      %9542 = vmatprep.mubr.f32.mxu0 0.0
      %9543 = vmatmul.mubr.f32.gmra.mxu0 %v9037
      %v9544 = vpop.f32.mrf.mxu0
      %v9545 = vadd.f32 0.0, %v9544
      %v9546 = vpop.f32.mrf.mxu0
      %9547 = vmatprep.mubr.f32.mxu0 0.0
      %9548 = vmatmul.mubr.f32.gmra.mxu0 %v9040
      %v9549 = vpop.f32.mrf.mxu0
      %v9550 = vadd.f32 0.0, %v9549
      %v9551 = vpop.f32.mrf.mxu0
      %9552 = vmatprep.mubr.f32.mxu0 0.0
      %9553 = vmatmul.mubr.f32.gmra.mxu0 %v9043
      %v9554 = vpop.f32.mrf.mxu0
      %v9555 = vadd.f32 0.0, %v9554
      %v9556 = vpop.f32.mrf.mxu0
      %9557 = vmatprep.mubr.f32.mxu0 0.0
      %9558 = vmatmul.mubr.f32.gmra.mxu0 %v9046
      %v9559 = vpop.f32.mrf.mxu0
      %v9560 = vadd.f32 0.0, %v9559
      %v9561 = vpop.f32.mrf.mxu0
      %9562 = vmatprep.mubr.f32.mxu0 0.0
      %9563 = vmatmul.mubr.f32.gmra.mxu0 %v9049
      %v9564 = vpop.f32.mrf.mxu0
      %v9565 = vadd.f32 0.0, %v9564
      %v9566 = vpop.f32.mrf.mxu0
      %9567 = vmatprep.mubr.f32.mxu0 0.0
      %9568 = vmatmul.mubr.f32.gmra.mxu0 %v9052
      %v9569 = vpop.f32.mrf.mxu0
      %v9570 = vadd.f32 0.0, %v9569
      %v9571 = vpop.f32.mrf.mxu0
      %9572 = vmatprep.mubr.f32.mxu0 0.0
      %9573 = vmatmul.mubr.f32.gmra.mxu0 %v9055
      %v9574 = vpop.f32.mrf.mxu0
      %v9575 = vadd.f32 0.0, %v9574
      %v9576 = vpop.f32.mrf.mxu0
      %9577 = vmatprep.mubr.f32.mxu0 0.0
      %9578 = vmatmul.mubr.f32.gmra.mxu0 %v9058
      %v9579 = vpop.f32.mrf.mxu0
      %v9580 = vadd.f32 0.0, %v9579
      %v9581 = vpop.f32.mrf.mxu0
      %9582 = vmatprep.mubr.f32.mxu0 0.0
      %9583 = vmatmul.mubr.f32.gmra.mxu0 %v9061
      %v9584 = vpop.f32.mrf.mxu0
      %v9585 = vadd.f32 0.0, %v9584
      %v9586 = vpop.f32.mrf.mxu0
      %9587 = vmatprep.mubr.f32.mxu0 0.0
      %9588 = vmatmul.mubr.f32.gmra.mxu0 %v9064
      %v9589 = vpop.f32.mrf.mxu0
      %v9590 = vadd.f32 0.0, %v9589
      %v9591 = vpop.f32.mrf.mxu0
      %9592 = vmatprep.mubr.f32.mxu0 0.0
      %9593 = vmatmul.mubr.f32.gmra.mxu0 %v9067
      %v9594 = vpop.f32.mrf.mxu0
      %v9595 = vadd.f32 0.0, %v9594
      %v9596 = vpop.f32.mrf.mxu0
      %9597 = vmatprep.mubr.f32.mxu0 0.0
      %9598 = vmatmul.mubr.f32.gmra.mxu0 %v9070
      %v9599 = vpop.f32.mrf.mxu0
      %v9600 = vadd.f32 0.0, %v9599
      %v9601 = vpop.f32.mrf.mxu0
      %9602 = vmatprep.mubr.f32.mxu0 0.0
      %9603 = vmatmul.mubr.f32.gmra.mxu0 %v9073
      %v9604 = vpop.f32.mrf.mxu0
      %v9605 = vadd.f32 0.0, %v9604
      %v9606 = vpop.f32.mrf.mxu0
      %9607 = vmatprep.mubr.f32.mxu0 0.0
      %9608 = vmatmul.mubr.f32.gmra.mxu0 %v9076
      %v9609 = vpop.f32.mrf.mxu0
      %v9610 = vadd.f32 0.0, %v9609
      %v9611 = vpop.f32.mrf.mxu0
      %9612 = vmatprep.mubr.f32.mxu0 0.0
      %9613 = vmatmul.mubr.f32.gmra.mxu0 %v9079
      %v9614 = vpop.f32.mrf.mxu0
      %v9615 = vadd.f32 0.0, %v9614
      %v9616 = vpop.f32.mrf.mxu0
      %9617 = vmatprep.mubr.f32.mxu0 0.0
      %9618 = vmatmul.mubr.f32.gmra.mxu0 %v9082
      %v9619 = vpop.f32.mrf.mxu0
      %v9620 = vadd.f32 0.0, %v9619
      %v9621 = vpop.f32.mrf.mxu0
      %9622 = vmatprep.mubr.f32.mxu0 0.0
      %9623 = vmatmul.mubr.f32.gmra.mxu0 %v9085
      %v9624 = vpop.f32.mrf.mxu0
      %v9625 = vadd.f32 0.0, %v9624
      %v9626 = vpop.f32.mrf.mxu0
      %9627 = vmatprep.mubr.f32.mxu0 0.0
      %9628 = vmatmul.mubr.f32.gmra.mxu0 %v9088
      %v9629 = vpop.f32.mrf.mxu0
      %v9630 = vadd.f32 0.0, %v9629
      %v9631 = vpop.f32.mrf.mxu0
      %9632 = vmatprep.mubr.f32.mxu0 0.0
      %9633 = vmatmul.mubr.f32.gmra.mxu0 %v9091
      %v9634 = vpop.f32.mrf.mxu0
      %v9635 = vadd.f32 0.0, %v9634
      %v9636 = vpop.f32.mrf.mxu0
      %9637 = vmatprep.mubr.f32.mxu0 0.0
      %9638 = vmatmul.mubr.f32.gmra.mxu0 %v9094
      %v9639 = vpop.f32.mrf.mxu0
      %v9640 = vadd.f32 0.0, %v9639
      %v9641 = vpop.f32.mrf.mxu0
      %9642 = vmatprep.mubr.f32.mxu0 0.0
      %9643 = vmatmul.mubr.f32.gmra.mxu0 %v9097
      %v9644 = vpop.f32.mrf.mxu0
      %v9645 = vadd.f32 0.0, %v9644
      %v9646 = vpop.f32.mrf.mxu0
      %9647 = vmatprep.mubr.f32.mxu0 0.0
      %9648 = vmatmul.mubr.f32.gmra.mxu0 %v9100
      %v9649 = vpop.f32.mrf.mxu0
      %v9650 = vadd.f32 0.0, %v9649
      %v9651 = vpop.f32.mrf.mxu0
      %9652 = vmatprep.mubr.f32.mxu0 0.0
      %9653 = vmatmul.mubr.f32.gmra.mxu0 %v9103
      %v9654 = vpop.f32.mrf.mxu0
      %v9655 = vadd.f32 0.0, %v9654
      %v9656 = vpop.f32.mrf.mxu0
      %9657 = vmatprep.mubr.f32.mxu0 0.0
      %9658 = vmatmul.mubr.f32.gmra.mxu0 %v9106
      %v9659 = vpop.f32.mrf.mxu0
      %v9660 = vadd.f32 0.0, %v9659
      %v9661 = vpop.f32.mrf.mxu0
      %9662 = vmatprep.mubr.f32.mxu0 0.0
      %9663 = vmatmul.mubr.f32.gmra.mxu0 %v9109
      %v9664 = vpop.f32.mrf.mxu0
      %v9665 = vadd.f32 0.0, %v9664
      %v9666 = vpop.f32.mrf.mxu0
      %9667 = vmatprep.mubr.f32.mxu0 0.0
      %9668 = vmatmul.mubr.f32.gmra.mxu0 %v9112
      %v9669 = vpop.f32.mrf.mxu0
      %v9670 = vadd.f32 0.0, %v9669
      %v9671 = vpop.f32.mrf.mxu0
      %9672 = vmatprep.mubr.f32.mxu0 0.0
      %9673 = vmatmul.mubr.f32.gmra.mxu0 %v9115
      %v9674 = vpop.f32.mrf.mxu0
      %v9675 = vadd.f32 0.0, %v9674
      %v9676 = vpop.f32.mrf.mxu0
      %9677 = vmatprep.mubr.f32.mxu0 0.0
      %9678 = vmatmul.mubr.f32.gmra.mxu0 %v9118
      %v9679 = vpop.f32.mrf.mxu0
      %v9680 = vadd.f32 0.0, %v9679
      %v9681 = vpop.f32.mrf.mxu0
      %9682 = vmatprep.mubr.f32.mxu0 0.0
      %9683 = vmatmul.mubr.f32.gmra.mxu0 %v9121
      %v9684 = vpop.f32.mrf.mxu0
      %v9685 = vadd.f32 0.0, %v9684
      %v9686 = vpop.f32.mrf.mxu0
      %9687 = vmatprep.mubr.f32.mxu0 0.0
      %9688 = vmatmul.mubr.f32.gmra.mxu0 %v9124
      %v9689 = vpop.f32.mrf.mxu0
      %v9690 = vadd.f32 0.0, %v9689
      %v9691 = vpop.f32.mrf.mxu0
      %9692 = vmatprep.mubr.f32.mxu0 0.0
      %9693 = vmatmul.mubr.f32.gmra.mxu0 %v9127
      %v9694 = vpop.f32.mrf.mxu0
      %v9695 = vadd.f32 0.0, %v9694
      %v9696 = vpop.f32.mrf.mxu0
      %9697 = vmatprep.mubr.f32.mxu0 0.0
      %9698 = vmatmul.mubr.f32.gmra.mxu0 %v9130
      %v9699 = vpop.f32.mrf.mxu0
      %v9700 = vadd.f32 0.0, %v9699
      %v9701 = vpop.f32.mrf.mxu0
      %9702 = vmatprep.mubr.f32.mxu0 0.0
      %9703 = vmatmul.mubr.f32.gmra.mxu0 %v9133
      %v9704 = vpop.f32.mrf.mxu0
      %v9705 = vadd.f32 0.0, %v9704
      %v9706 = vpop.f32.mrf.mxu0
      %9707 = vmatprep.mubr.f32.mxu0 0.0
      %9708 = vmatmul.mubr.f32.gmra.mxu0 %v9136
      %v9709 = vpop.f32.mrf.mxu0
      %v9710 = vadd.f32 0.0, %v9709
      %v9711 = vpop.f32.mrf.mxu0
      %9712 = vmatprep.mubr.f32.mxu0 0.0
      %9713 = vmatmul.mubr.f32.gmra.mxu0 %v9139
      %v9714 = vpop.f32.mrf.mxu0
      %v9715 = vadd.f32 0.0, %v9714
      %v9716 = vpop.f32.mrf.mxu0
      %9717 = vmatprep.mubr.f32.mxu0 0.0
      %9718 = vmatmul.mubr.f32.gmra.mxu0 %v9142
      %v9719 = vpop.f32.mrf.mxu0
      %v9720 = vadd.f32 0.0, %v9719
      %v9721 = vpop.f32.mrf.mxu0
      %9722 = vmatprep.mubr.f32.mxu0 0.0
      %9723 = vmatmul.mubr.f32.gmra.mxu0 %v9145
      %v9724 = vpop.f32.mrf.mxu0
      %v9725 = vadd.f32 0.0, %v9724
      %v9726 = vpop.f32.mrf.mxu0
      %9727 = vmatprep.mubr.f32.mxu0 0.0
      %9728 = vmatmul.mubr.f32.gmra.mxu0 %v9148
      %v9729 = vpop.f32.mrf.mxu0
      %v9730 = vadd.f32 0.0, %v9729
      %v9731 = vpop.f32.mrf.mxu0
      %9732 = vmatprep.mubr.f32.mxu0 0.0
      %9733 = vmatmul.mubr.f32.gmra.mxu0 %v9151
      %v9734 = vpop.f32.mrf.mxu0
      %v9735 = vadd.f32 0.0, %v9734
      %v9736 = vpop.f32.mrf.mxu0
      %9737 = vmatprep.mubr.f32.mxu0 0.0
      %9738 = vmatmul.mubr.f32.gmra.mxu0 %v9154
      %v9739 = vpop.f32.mrf.mxu0
      %v9740 = vadd.f32 0.0, %v9739
      %v9741 = vpop.f32.mrf.mxu0
      %9742 = vmatprep.mubr.f32.mxu0 0.0
      %9743 = vmatmul.mubr.f32.gmra.mxu0 %v9157
      %v9744 = vpop.f32.mrf.mxu0
      %v9745 = vadd.f32 0.0, %v9744
      %v9746 = vpop.f32.mrf.mxu0
      %9747 = vmatprep.mubr.f32.mxu0 0.0
      %9748 = vmatmul.mubr.f32.gmra.mxu0 %v9160
      %v9749 = vpop.f32.mrf.mxu0
      %v9750 = vadd.f32 0.0, %v9749
      %v9751 = vpop.f32.mrf.mxu0
      %9752 = vmatprep.mubr.f32.mxu0 0.0
      %9753 = vmatmul.mubr.f32.gmra.mxu0 %v9163
      %v9754 = vpop.f32.mrf.mxu0
      %v9755 = vadd.f32 0.0, %v9754
      %v9756 = vpop.f32.mrf.mxu0
      %9757 = vmatprep.mubr.f32.mxu0 0.0
      %9758 = vmatmul.mubr.f32.gmra.mxu0 %v9166
      %v9759 = vpop.f32.mrf.mxu0
      %v9760 = vadd.f32 0.0, %v9759
      %v9761 = vpop.f32.mrf.mxu0
      %9762 = vmatprep.mubr.f32.mxu0 0.0
      %9763 = vmatmul.mubr.f32.gmra.mxu0 %v9169
      %v9764 = vpop.f32.mrf.mxu0
      %v9765 = vadd.f32 0.0, %v9764
      %v9766 = vpop.f32.mrf.mxu0
      %9767 = vmatprep.mubr.f32.mxu0 0.0
      %9768 = vmatmul.mubr.f32.gmra.mxu0 %v9172
      %v9769 = vpop.f32.mrf.mxu0
      %v9770 = vadd.f32 0.0, %v9769
      %v9771 = vpop.f32.mrf.mxu0
      %9772 = vmatprep.mubr.f32.mxu0 0.0
      %9773 = vmatmul.mubr.f32.gmra.mxu0 %v9175
      %v9774 = vpop.f32.mrf.mxu0
      %v9775 = vadd.f32 0.0, %v9774
      %v9776 = vpop.f32.mrf.mxu0
      %9777 = vmatprep.mubr.f32.mxu0 0.0
      %9778 = vmatmul.mubr.f32.gmra.mxu0 %v9178
      %v9779 = vpop.f32.mrf.mxu0
      %v9780 = vadd.f32 0.0, %v9779
      %v9781 = vpop.f32.mrf.mxu0
      %9782 = vmatprep.mubr.f32.mxu0 0.0
      %9783 = vmatmul.mubr.f32.gmra.mxu0 %v9181
      %v9784 = vpop.f32.mrf.mxu0
      %v9785 = vadd.f32 0.0, %v9784
      %v9786 = vpop.f32.mrf.mxu0
      %9787 = vmatprep.mubr.f32.mxu0 0.0
      %9788 = vmatmul.mubr.f32.gmra.mxu0 %v9184
      %v9789 = vpop.f32.mrf.mxu0
      %v9790 = vadd.f32 0.0, %v9789
      %v9791 = vpop.f32.mrf.mxu0
      %9792 = vmatprep.mubr.f32.mxu0 0.0
      %9793 = vmatmul.mubr.f32.gmra.mxu0 %v9187
      %v9794 = vpop.f32.mrf.mxu0
      %v9795 = vadd.f32 0.0, %v9794
      %v9796 = vpop.f32.mrf.mxu0
      %9797 = vmatprep.mubr.f32.mxu0 0.0
      %9798 = vmatmul.mubr.f32.gmra.mxu0 %v9190
      %v9799 = vpop.f32.mrf.mxu0
      %v9800 = vadd.f32 0.0, %v9799
      %v9801 = vpop.f32.mrf.mxu0
      %9802 = vmatprep.mubr.f32.mxu0 0.0
      %9803 = vmatmul.mubr.f32.gmra.mxu0 %v9193
      %v9804 = vpop.f32.mrf.mxu0
      %v9805 = vadd.f32 0.0, %v9804
      %v9806 = vpop.f32.mrf.mxu0
      %9807 = vmatprep.mubr.f32.mxu0 0.0
      %9808 = vmatmul.mubr.f32.gmra.mxu0 %v9196
      %v9809 = vpop.f32.mrf.mxu0
      %v9810 = vadd.f32 0.0, %v9809
      %v9811 = vpop.f32.mrf.mxu0
      %9812 = vmatprep.mubr.f32.mxu0 0.0
      %9813 = vmatmul.mubr.f32.gmra.mxu0 %v9199
      %v9814 = vpop.f32.mrf.mxu0
      %v9815 = vadd.f32 0.0, %v9814
      %v9816 = vpop.f32.mrf.mxu0
      %9817 = vmatprep.mubr.f32.mxu0 0.0
      %9818 = vmatmul.mubr.f32.gmra.mxu0 %v9202
      %v9819 = vpop.f32.mrf.mxu0
      %v9820 = vadd.f32 0.0, %v9819
      %v9821 = vpop.f32.mrf.mxu0
      %9822 = vmatprep.mubr.f32.mxu0 0.0
      %9823 = vmatmul.mubr.f32.gmra.mxu0 %v9205
      %v9824 = vpop.f32.mrf.mxu0
      %v9825 = vadd.f32 0.0, %v9824
      %v9826 = vpop.f32.mrf.mxu0
      %9827 = vmatprep.mubr.f32.mxu0 0.0
      %9828 = vmatmul.mubr.f32.gmra.mxu0 %v9208
      %v9829 = vpop.f32.mrf.mxu0
      %v9830 = vadd.f32 0.0, %v9829
      %v9831 = vpop.f32.mrf.mxu0
      %9832 = vmatprep.mubr.f32.mxu0 0.0
      %9833 = vmatmul.mubr.f32.gmra.mxu0 %v9211
      %v9834 = vpop.f32.mrf.mxu0
      %v9835 = vadd.f32 0.0, %v9834
      %v9836 = vpop.f32.mrf.mxu0
      %9837 = vmatprep.mubr.f32.mxu0 0.0
      %9838 = vmatmul.mubr.f32.gmra.mxu0 %v9214
      %v9839 = vpop.f32.mrf.mxu0
      %v9840 = vadd.f32 0.0, %v9839
      %v9841 = vpop.f32.mrf.mxu0
      %9842 = vmatprep.mubr.f32.mxu0 0.0
      %9843 = vmatmul.mubr.f32.gmra.mxu0 %v9217
      %v9844 = vpop.f32.mrf.mxu0
      %v9845 = vadd.f32 0.0, %v9844
      %v9846 = vpop.f32.mrf.mxu0
      %9847 = vmatprep.mubr.f32.mxu0 0.0
      %9848 = vmatmul.mubr.f32.gmra.mxu0 %v9220
      %v9849 = vpop.f32.mrf.mxu0
      %v9850 = vadd.f32 0.0, %v9849
      %v9851 = vpop.f32.mrf.mxu0
      %9852 = vmatprep.mubr.f32.mxu0 0.0
      %9853 = vmatmul.mubr.f32.gmra.mxu0 %v9223
      %v9854 = vpop.f32.mrf.mxu0
      %v9855 = vadd.f32 0.0, %v9854
      %v9856 = vpop.f32.mrf.mxu0
      %9857 = vmatprep.mubr.f32.mxu0 0.0
      %9858 = vmatmul.mubr.f32.gmra.mxu0 %v9226
      %v9859 = vpop.f32.mrf.mxu0
      %v9860 = vadd.f32 0.0, %v9859
      %v9861 = vpop.f32.mrf.mxu0
      %9862 = vmatprep.mubr.f32.mxu0 0.0
      %9863 = vmatmul.mubr.f32.gmra.mxu0 %v9229
      %v9864 = vpop.f32.mrf.mxu0
      %v9865 = vadd.f32 0.0, %v9864
      %v9866 = vpop.f32.mrf.mxu0
      %9867 = vmatprep.mubr.f32.mxu0 0.0
      %9868 = vmatmul.mubr.f32.gmra.mxu0 %v9232
      %v9869 = vpop.f32.mrf.mxu0
      %v9870 = vadd.f32 0.0, %v9869
      %v9871 = vpop.f32.mrf.mxu0
      %9872 = vmatprep.mubr.f32.mxu0 0.0
      %9873 = vmatmul.mubr.f32.gmra.mxu0 %v9235
      %v9874 = vpop.f32.mrf.mxu0
      %v9875 = vadd.f32 0.0, %v9874
      %v9876 = vpop.f32.mrf.mxu0
      %9877 = vmatprep.mubr.f32.mxu0 0.0
      %9878 = vmatmul.mubr.f32.gmra.mxu0 %v9238
      %v9879 = vpop.f32.mrf.mxu0
      %v9880 = vadd.f32 0.0, %v9879
      %v9881 = vpop.f32.mrf.mxu0
      %9882 = vmatprep.mubr.f32.mxu0 0.0
      %9883 = vmatmul.mubr.f32.gmra.mxu0 %v9241
      %v9884 = vpop.f32.mrf.mxu0
      %v9885 = vadd.f32 0.0, %v9884
      %v9886 = vpop.f32.mrf.mxu0
      %9887 = vmatprep.mubr.f32.mxu0 0.0
      %9888 = vmatmul.mubr.f32.gmra.mxu0 %v9244
      %v9889 = vpop.f32.mrf.mxu0
      %v9890 = vadd.f32 0.0, %v9889
      %v9891 = vpop.f32.mrf.mxu0
      %9892 = vmatprep.mubr.f32.mxu0 0.0
      %9893 = vmatmul.mubr.f32.gmra.mxu0 %v9247
      %v9894 = vpop.f32.mrf.mxu0
      %v9895 = vadd.f32 0.0, %v9894
      %v9896 = vpop.f32.mrf.mxu0
      %9897 = vmatprep.mubr.f32.mxu0 0.0
      %9898 = vmatmul.mubr.f32.gmra.mxu0 %v9250
      %v9899 = vpop.f32.mrf.mxu0
      %v9900 = vadd.f32 0.0, %v9899
      %v9901 = vpop.f32.mrf.mxu0
      %9902 = vmatprep.mubr.f32.mxu0 0.0
      %9903 = vmatmul.mubr.f32.gmra.mxu0 %v9253
      %v9904 = vpop.f32.mrf.mxu0
      %v9905 = vadd.f32 0.0, %v9904
      %v9906 = vpop.f32.mrf.mxu0
      %9907 = vmatprep.mubr.f32.mxu0 0.0
      %9908 = vmatmul.mubr.f32.gmra.mxu0 %v9256
      %v9909 = vpop.f32.mrf.mxu0
      %v9910 = vadd.f32 0.0, %v9909
      %v9911 = vpop.f32.mrf.mxu0
      %9912 = vmatprep.mubr.f32.mxu0 0.0
      %9913 = vmatmul.mubr.f32.gmra.mxu0 %v9259
      %v9914 = vpop.f32.mrf.mxu0
      %v9915 = vadd.f32 0.0, %v9914
      %v9916 = vpop.f32.mrf.mxu0
      %9917 = vmatprep.mubr.f32.mxu0 0.0
      %9918 = vmatmul.mubr.f32.gmra.mxu0 %v9262
      %v9919 = vpop.f32.mrf.mxu0
      %v9920 = vadd.f32 0.0, %v9919
      %v9921 = vpop.f32.mrf.mxu0
      %9922 = vmatprep.mubr.f32.mxu0 0.0
      %9923 = vmatmul.mubr.f32.gmra.mxu0 %v9265
      %v9924 = vpop.f32.mrf.mxu0
      %v9925 = vadd.f32 0.0, %v9924
      %v9926 = vpop.f32.mrf.mxu0
      %9927 = vmatprep.mubr.f32.mxu0 0.0
      %9928 = vmatmul.mubr.f32.gmra.mxu0 %v9268
      %v9929 = vpop.f32.mrf.mxu0
      %v9930 = vadd.f32 0.0, %v9929
      %v9931 = vpop.f32.mrf.mxu0
      %9932 = vmatprep.mubr.f32.mxu0 0.0
      %9933 = vmatmul.mubr.f32.gmra.mxu0 %v9271
      %v9934 = vpop.f32.mrf.mxu0
      %v9935 = vadd.f32 0.0, %v9934
      %v9936 = vpop.f32.mrf.mxu0
      %9937 = vmatprep.mubr.f32.mxu0 0.0
      %9938 = vmatmul.mubr.f32.gmra.mxu0 %v9274
      %v9939 = vpop.f32.mrf.mxu0
      %v9940 = vadd.f32 0.0, %v9939
      %v9941 = vpop.f32.mrf.mxu0
      %9942 = vmatprep.mubr.f32.mxu0 0.0
      %9943 = vmatmul.mubr.f32.gmra.mxu0 %v9277
      %v9944 = vpop.f32.mrf.mxu0
      %v9945 = vadd.f32 0.0, %v9944
      %v9946 = vpop.f32.mrf.mxu0
      %9947 = vmatprep.mubr.f32.mxu0 0.0
      %9948 = vmatmul.mubr.f32.gmra.mxu0 %v9280
      %v9949 = vpop.f32.mrf.mxu0
      %v9950 = vadd.f32 0.0, %v9949
      %v9951 = vpop.f32.mrf.mxu0
      %9952 = vmatprep.mubr.f32.mxu0 0.0
      %9953 = vmatmul.mubr.f32.gmra.mxu0 %v9283
      %v9954 = vpop.f32.mrf.mxu0
      %v9955 = vadd.f32 0.0, %v9954
      %v9956 = vpop.f32.mrf.mxu0
      %9957 = vmatprep.mubr.f32.mxu0 0.0
      %9958 = vmatmul.mubr.f32.gmra.mxu0 %v9286
      %v9959 = vpop.f32.mrf.mxu0
      %v9960 = vadd.f32 0.0, %v9959
      %v9961 = vpop.f32.mrf.mxu0
      %9962 = vmatprep.mubr.f32.mxu0 0.0
      %9963 = vmatmul.mubr.f32.gmra.mxu0 %v9289
      %v9964 = vpop.f32.mrf.mxu0
      %v9965 = vadd.f32 0.0, %v9964
      %v9966 = vpop.f32.mrf.mxu0
      %9967 = vmatprep.mubr.f32.mxu0 0.0
      %9968 = vmatmul.mubr.f32.gmra.mxu0 %v9292
      %v9969 = vpop.f32.mrf.mxu0
      %v9970 = vadd.f32 0.0, %v9969
      %v9971 = vpop.f32.mrf.mxu0
      %9972 = vmatprep.mubr.f32.mxu0 0.0
      %9973 = vmatmul.mubr.f32.gmra.mxu0 %v9295
      %v9974 = vpop.f32.mrf.mxu0
      %v9975 = vadd.f32 0.0, %v9974
      %v9976 = vpop.f32.mrf.mxu0
      %9977 = vmatprep.mubr.f32.mxu0 0.0
      %9978 = vmatmul.mubr.f32.gmra.mxu0 %v9298
      %v9979 = vpop.f32.mrf.mxu0
      %v9980 = vadd.f32 0.0, %v9979
      %v9981 = vpop.f32.mrf.mxu0
      %9982 = vmatprep.mubr.f32.mxu0 0.0
      %9983 = vmatmul.mubr.f32.gmra.mxu0 %v9301
      %v9984 = vpop.f32.mrf.mxu0
      %v9985 = vadd.f32 0.0, %v9984
      %v9986 = vpop.f32.mrf.mxu0
      %9987 = vmatprep.mubr.f32.mxu0 0.0
      %9988 = vmatmul.mubr.f32.gmra.mxu0 %v9304
      %v9989 = vpop.f32.mrf.mxu0
      %v9990 = vadd.f32 0.0, %v9989
      %v9991 = vpop.f32.mrf.mxu0
      %9992 = vmatprep.mubr.f32.mxu0 0.0
      %9993 = vmatmul.mubr.f32.gmra.mxu0 %v9307
      %v9994 = vpop.f32.mrf.mxu0
      %v9995 = vadd.f32 0.0, %v9994
      %v9996 = vpop.f32.mrf.mxu0
      %9997 = vmatprep.mubr.f32.mxu0 0.0
      %9998 = vmatmul.mubr.f32.gmra.mxu0 %v9310
      %v9999 = vpop.f32.mrf.mxu0
      %v10000 = vadd.f32 0.0, %v9999
      %v10001 = vpop.f32.mrf.mxu0
      %10002 = vmatprep.mubr.f32.mxu0 0.0
      %10003 = vmatmul.mubr.f32.gmra.mxu0 %v9313
      %v10004 = vpop.f32.mrf.mxu0
      %v10005 = vadd.f32 0.0, %v10004
      %v10006 = vpop.f32.mrf.mxu0
      %10007 = vmatprep.mubr.f32.mxu0 0.0
      %10008 = vmatmul.mubr.f32.gmra.mxu0 %v9316
      %v10009 = vpop.f32.mrf.mxu0
      %v10010 = vadd.f32 0.0, %v10009
      %v10011 = vpop.f32.mrf.mxu0
      %10012 = vmatprep.mubr.f32.mxu0 0.0
      %10013 = vmatmul.mubr.f32.gmra.mxu0 %v9319
      %v10014 = vpop.f32.mrf.mxu0
      %v10015 = vadd.f32 0.0, %v10014
      %v10016 = vpop.f32.mrf.mxu0
      %10017 = vmatprep.mubr.f32.mxu0 0.0
      %10018 = vmatmul.mubr.f32.gmra.mxu0 %v9322
      %v10019 = vpop.f32.mrf.mxu0
      %v10020 = vadd.f32 0.0, %v10019
      %v10021 = vpop.f32.mrf.mxu0
      %10022 = vmatprep.mubr.f32.mxu0 0.0
      %10023 = vmatmul.mubr.f32.gmra.mxu0 %v9325
      %v10024 = vpop.f32.mrf.mxu0
      %v10025 = vadd.f32 0.0, %v10024
      %v10026 = vpop.f32.mrf.mxu0
      %10027 = vmatprep.mubr.f32.mxu0 0.0
      %10028 = vmatmul.mubr.f32.gmra.mxu0 %v9328
      %v10029 = vpop.f32.mrf.mxu0
      %v10030 = vadd.f32 0.0, %v10029
      %v10031 = vpop.f32.mrf.mxu0
      %10032 = vmatprep.mubr.f32.mxu0 0.0
      %10033 = vmatmul.mubr.f32.gmra.mxu0 %v9331
      %v10034 = vpop.f32.mrf.mxu0
      %v10035 = vadd.f32 0.0, %v10034
      %v10036 = vpop.f32.mrf.mxu0
      %10037 = vdwg.mxu0
      %v10039 = vsel %vm669, %v5709, 0
      %v10042 = vsel %vm669, %v5710, 0
      %v10045 = vsel %vm669, %v5711, 0
      %v10048 = vsel %vm669, %v5712, 0
      %v10051 = vsel %vm669, %v5713, 0
      %v10054 = vsel %vm669, %v5714, 0
      %v10057 = vsel %vm669, %v5715, 0
      %v10060 = vsel %vm669, %v5716, 0
      %v10063 = vsel %vm669, %v5717, 0
      %v10066 = vsel %vm669, %v5718, 0
      %v10069 = vsel %vm669, %v5719, 0
      %v10072 = vsel %vm669, %v5720, 0
      %v10075 = vsel %vm669, %v5721, 0
      %v10078 = vsel %vm669, %v5722, 0
      %v10081 = vsel %vm669, %v5723, 0
      %v10084 = vsel %vm669, %v5724, 0
      %v10087 = vsel %vm669, %v5725, 0
      %v10090 = vsel %vm669, %v5726, 0
      %v10093 = vsel %vm669, %v5727, 0
      %v10096 = vsel %vm669, %v5728, 0
      %v10099 = vsel %vm669, %v5729, 0
      %v10102 = vsel %vm669, %v5730, 0
      %v10105 = vsel %vm669, %v5731, 0
      %v10108 = vsel %vm669, %v5732, 0
      %v10111 = vsel %vm669, %v5733, 0
      %v10114 = vsel %vm669, %v5734, 0
      %v10117 = vsel %vm669, %v5735, 0
      %v10120 = vsel %vm669, %v5736, 0
      %v10123 = vsel %vm669, %v5737, 0
      %v10126 = vsel %vm669, %v5738, 0
      %v10129 = vsel %vm669, %v5739, 0
      %v10132 = vsel %vm669, %v5740, 0
      %v10135 = vsel %vm669, %v5741, 0
      %v10138 = vsel %vm669, %v5742, 0
      %v10141 = vsel %vm669, %v5743, 0
      %v10144 = vsel %vm669, %v5744, 0
      %v10147 = vsel %vm669, %v5745, 0
      %v10150 = vsel %vm669, %v5746, 0
      %v10153 = vsel %vm669, %v5747, 0
      %v10156 = vsel %vm669, %v5748, 0
      %v10159 = vsel %vm669, %v5749, 0
      %v10162 = vsel %vm669, %v5750, 0
      %v10165 = vsel %vm669, %v5751, 0
      %v10168 = vsel %vm669, %v5752, 0
      %v10171 = vsel %vm669, %v5753, 0
      %v10174 = vsel %vm669, %v5754, 0
      %v10177 = vsel %vm669, %v5755, 0
      %v10180 = vsel %vm669, %v5756, 0
      %v10183 = vsel %vm669, %v5757, 0
      %v10186 = vsel %vm669, %v5758, 0
      %v10189 = vsel %vm669, %v5759, 0
      %v10192 = vsel %vm669, %v5760, 0
      %v10195 = vsel %vm669, %v5761, 0
      %v10198 = vsel %vm669, %v5762, 0
      %v10201 = vsel %vm669, %v5763, 0
      %v10204 = vsel %vm669, %v5764, 0
      %v10207 = vsel %vm669, %v5765, 0
      %v10210 = vsel %vm669, %v5766, 0
      %v10213 = vsel %vm669, %v5767, 0
      %v10216 = vsel %vm669, %v5768, 0
      %v10219 = vsel %vm669, %v5769, 0
      %v10222 = vsel %vm669, %v5770, 0
      %v10225 = vsel %vm669, %v5771, 0
      %v10228 = vsel %vm669, %v5772, 0
      %v10231 = vsel %vm669, %v5773, 0
      %v10234 = vsel %vm669, %v5774, 0
      %v10237 = vsel %vm669, %v5775, 0
      %v10240 = vsel %vm669, %v5776, 0
      %v10243 = vsel %vm669, %v5777, 0
      %v10246 = vsel %vm669, %v5778, 0
      %v10249 = vsel %vm669, %v5779, 0
      %v10252 = vsel %vm669, %v5780, 0
      %v10255 = vsel %vm669, %v5781, 0
      %v10258 = vsel %vm669, %v5782, 0
      %v10261 = vsel %vm669, %v5783, 0
      %v10264 = vsel %vm669, %v5784, 0
      %v10267 = vsel %vm669, %v5785, 0
      %v10270 = vsel %vm669, %v5786, 0
      %v10273 = vsel %vm669, %v5787, 0
      %v10276 = vsel %vm669, %v5788, 0
      %v10279 = vsel %vm669, %v5789, 0
      %v10282 = vsel %vm669, %v5790, 0
      %v10285 = vsel %vm669, %v5791, 0
      %v10288 = vsel %vm669, %v5792, 0
      %v10291 = vsel %vm669, %v5793, 0
      %v10294 = vsel %vm669, %v5794, 0
      %v10297 = vsel %vm669, %v5795, 0
      %v10300 = vsel %vm669, %v5796, 0
      %v10303 = vsel %vm669, %v5797, 0
      %v10306 = vsel %vm669, %v5798, 0
      %v10309 = vsel %vm669, %v5799, 0
      %v10312 = vsel %vm669, %v5800, 0
      %v10315 = vsel %vm669, %v5801, 0
      %v10318 = vsel %vm669, %v5802, 0
      %v10321 = vsel %vm669, %v5803, 0
      %v10324 = vsel %vm669, %v5804, 0
      %v10327 = vsel %vm669, %v5805, 0
      %v10330 = vsel %vm669, %v5806, 0
      %v10333 = vsel %vm669, %v5807, 0
      %v10336 = vsel %vm669, %v5808, 0
      %v10339 = vsel %vm669, %v5809, 0
      %v10342 = vsel %vm669, %v5810, 0
      %v10345 = vsel %vm669, %v5811, 0
      %v10348 = vsel %vm669, %v5812, 0
      %v10351 = vsel %vm669, %v5813, 0
      %v10354 = vsel %vm669, %v5814, 0
      %v10357 = vsel %vm669, %v5815, 0
      %v10360 = vsel %vm669, %v5816, 0
      %v10363 = vsel %vm669, %v5817, 0
      %v10366 = vsel %vm669, %v5818, 0
      %v10369 = vsel %vm669, %v5819, 0
      %v10372 = vsel %vm669, %v5820, 0
      %v10375 = vsel %vm669, %v5821, 0
      %v10378 = vsel %vm669, %v5822, 0
      %v10381 = vsel %vm669, %v5823, 0
      %v10384 = vsel %vm669, %v5824, 0
      %v10387 = vsel %vm669, %v5825, 0
      %v10390 = vsel %vm669, %v5826, 0
      %v10393 = vsel %vm669, %v5827, 0
      %v10396 = vsel %vm669, %v5828, 0
      %v10399 = vsel %vm669, %v5829, 0
      %v10402 = vsel %vm669, %v5830, 0
      %v10405 = vsel %vm669, %v5831, 0
      %v10408 = vsel %vm669, %v5832, 0
      %v10411 = vsel %vm669, %v5833, 0
      %v10414 = vsel %vm669, %v5834, 0
      %v10417 = vsel %vm669, %v5835, 0
      %v10420 = vsel %vm669, %v5836, 0
      %10422 = vmatprep.subr.mxu0 0.0
      %10423 = vmatpush1.msra.mxu0 0.0
      %10424 = vmatprep.subr.mxu0 0.0
      %10425 = vmatpush1.msra.mxu0 0.0
      %10426 = vmatprep.subr.mxu0 0.0
      %10427 = vmatpush1.msra.mxu0 0.0
      %10428 = vmatprep.subr.mxu0 0.0
      %10429 = vmatpush1.msra.mxu0 0.0
      %10430 = vmatprep.subr.mxu0 0.0
      %10431 = vmatpush1.msra.mxu0 0.0
      %10432 = vmatprep.subr.mxu0 0.0
      %10433 = vmatpush1.msra.mxu0 0.0
      %10434 = vmatprep.subr.mxu0 0.0
      %10435 = vmatpush1.msra.mxu0 0.0
      %10436 = vmatprep.subr.mxu0 0.0
      %10437 = vmatpush1.msra.mxu0 0.0
      %10438 = vmatprep.subr.mxu0 0.0
      %10439 = vmatpush1.msra.mxu0 0.0
      %10440 = vmatprep.subr.mxu0 0.0
      %10441 = vmatpush1.msra.mxu0 0.0
      %10442 = vmatprep.subr.mxu0 0.0
      %10443 = vmatpush1.msra.mxu0 0.0
      %10444 = vmatprep.subr.mxu0 0.0
      %10445 = vmatpush1.msra.mxu0 0.0
      %10446 = vmatprep.subr.mxu0 0.0
      %10447 = vmatpush1.msra.mxu0 %v8944
      %10448 = vmatprep.subr.mxu0 0.0
      %10449 = vmatpush1.msra.mxu0 %v8943
      %10450 = vmatprep.subr.mxu0 0.0
      %10451 = vmatpush1.msra.mxu0 %v8942
      %10452 = vmatprep.subr.mxu0 0.0
      %10453 = vmatpush1.msra.mxu0 %v8941
      %10454 = vmatprep.subr.mxu0 0.0
      %10455 = vmatpush2.msra.mxu0 0.0
      %10456 = vmatprep.subr.mxu0 0.0
      %10457 = vmatpush2.msra.mxu0 0.0
      %10458 = vmatprep.subr.mxu0 0.0
      %10459 = vmatpush2.msra.mxu0 0.0
      %10460 = vmatprep.subr.mxu0 0.0
      %10461 = vmatpush2.msra.mxu0 0.0
      %10462 = vmatprep.subr.mxu0 0.0
      %10463 = vmatpush2.msra.mxu0 0.0
      %10464 = vmatprep.subr.mxu0 0.0
      %10465 = vmatpush2.msra.mxu0 0.0
      %10466 = vmatprep.subr.mxu0 0.0
      %10467 = vmatpush2.msra.mxu0 0.0
      %10468 = vmatprep.subr.mxu0 0.0
      %10469 = vmatpush2.msra.mxu0 0.0
      %10470 = vmatprep.subr.mxu0 0.0
      %10471 = vmatpush2.msra.mxu0 0.0
      %10472 = vmatprep.subr.mxu0 0.0
      %10473 = vmatpush2.msra.mxu0 0.0
      %10474 = vmatprep.subr.mxu0 0.0
      %10475 = vmatpush2.msra.mxu0 0.0
      %10476 = vmatprep.subr.mxu0 0.0
      %10477 = vmatpush2.msra.mxu0 0.0
      %10478 = vmatprep.subr.mxu0 0.0
      %10479 = vmatpush2.msra.mxu0 0.0
      %10480 = vmatprep.subr.mxu0 0.0
      %10481 = vmatpush2.msra.mxu0 0.0
      %10482 = vmatprep.subr.mxu0 0.0
      %10483 = vmatpush2.msra.mxu0 0.0
      %10484 = vmatprep.subr.mxu0 0.0
      %10485 = vmatpush2.msra.mxu0 0.0
      %10486 = vmatprep.mubr.f32.mxu0 0.0
      %10487 = vmatmul.mubr.f32.gmra.mxu0 %v10039
      %v10488 = vpop.f32.mrf.mxu0
      %v10489 = vadd.f32 %v9400, %v10488
      %v10490 = vpop.f32.mrf.mxu0
      %10491 = vmatprep.mubr.f32.mxu0 0.0
      %10492 = vmatmul.mubr.f32.gmra.mxu0 %v10042
      %v10493 = vpop.f32.mrf.mxu0
      %v10494 = vadd.f32 %v9405, %v10493
      %v10495 = vpop.f32.mrf.mxu0
      %10496 = vmatprep.mubr.f32.mxu0 0.0
      %10497 = vmatmul.mubr.f32.gmra.mxu0 %v10045
      %v10498 = vpop.f32.mrf.mxu0
      %v10499 = vadd.f32 %v9410, %v10498
      %v10500 = vpop.f32.mrf.mxu0
      %10501 = vmatprep.mubr.f32.mxu0 0.0
      %10502 = vmatmul.mubr.f32.gmra.mxu0 %v10048
      %v10503 = vpop.f32.mrf.mxu0
      %v10504 = vadd.f32 %v9415, %v10503
      %v10505 = vpop.f32.mrf.mxu0
      %10506 = vmatprep.mubr.f32.mxu0 0.0
      %10507 = vmatmul.mubr.f32.gmra.mxu0 %v10051
      %v10508 = vpop.f32.mrf.mxu0
      %v10509 = vadd.f32 %v9420, %v10508
      %v10510 = vpop.f32.mrf.mxu0
      %10511 = vmatprep.mubr.f32.mxu0 0.0
      %10512 = vmatmul.mubr.f32.gmra.mxu0 %v10054
      %v10513 = vpop.f32.mrf.mxu0
      %v10514 = vadd.f32 %v9425, %v10513
      %v10515 = vpop.f32.mrf.mxu0
      %10516 = vmatprep.mubr.f32.mxu0 0.0
      %10517 = vmatmul.mubr.f32.gmra.mxu0 %v10057
      %v10518 = vpop.f32.mrf.mxu0
      %v10519 = vadd.f32 %v9430, %v10518
      %v10520 = vpop.f32.mrf.mxu0
      %10521 = vmatprep.mubr.f32.mxu0 0.0
      %10522 = vmatmul.mubr.f32.gmra.mxu0 %v10060
      %v10523 = vpop.f32.mrf.mxu0
      %v10524 = vadd.f32 %v9435, %v10523
      %v10525 = vpop.f32.mrf.mxu0
      %10526 = vmatprep.mubr.f32.mxu0 0.0
      %10527 = vmatmul.mubr.f32.gmra.mxu0 %v10063
      %v10528 = vpop.f32.mrf.mxu0
      %v10529 = vadd.f32 %v9440, %v10528
      %v10530 = vpop.f32.mrf.mxu0
      %10531 = vmatprep.mubr.f32.mxu0 0.0
      %10532 = vmatmul.mubr.f32.gmra.mxu0 %v10066
      %v10533 = vpop.f32.mrf.mxu0
      %v10534 = vadd.f32 %v9445, %v10533
      %v10535 = vpop.f32.mrf.mxu0
      %10536 = vmatprep.mubr.f32.mxu0 0.0
      %10537 = vmatmul.mubr.f32.gmra.mxu0 %v10069
      %v10538 = vpop.f32.mrf.mxu0
      %v10539 = vadd.f32 %v9450, %v10538
      %v10540 = vpop.f32.mrf.mxu0
      %10541 = vmatprep.mubr.f32.mxu0 0.0
      %10542 = vmatmul.mubr.f32.gmra.mxu0 %v10072
      %v10543 = vpop.f32.mrf.mxu0
      %v10544 = vadd.f32 %v9455, %v10543
      %v10545 = vpop.f32.mrf.mxu0
      %10546 = vmatprep.mubr.f32.mxu0 0.0
      %10547 = vmatmul.mubr.f32.gmra.mxu0 %v10075
      %v10548 = vpop.f32.mrf.mxu0
      %v10549 = vadd.f32 %v9460, %v10548
      %v10550 = vpop.f32.mrf.mxu0
      %10551 = vmatprep.mubr.f32.mxu0 0.0
      %10552 = vmatmul.mubr.f32.gmra.mxu0 %v10078
      %v10553 = vpop.f32.mrf.mxu0
      %v10554 = vadd.f32 %v9465, %v10553
      %v10555 = vpop.f32.mrf.mxu0
      %10556 = vmatprep.mubr.f32.mxu0 0.0
      %10557 = vmatmul.mubr.f32.gmra.mxu0 %v10081
      %v10558 = vpop.f32.mrf.mxu0
      %v10559 = vadd.f32 %v9470, %v10558
      %v10560 = vpop.f32.mrf.mxu0
      %10561 = vmatprep.mubr.f32.mxu0 0.0
      %10562 = vmatmul.mubr.f32.gmra.mxu0 %v10084
      %v10563 = vpop.f32.mrf.mxu0
      %v10564 = vadd.f32 %v9475, %v10563
      %v10565 = vpop.f32.mrf.mxu0
      %10566 = vmatprep.mubr.f32.mxu0 0.0
      %10567 = vmatmul.mubr.f32.gmra.mxu0 %v10087
      %v10568 = vpop.f32.mrf.mxu0
      %v10569 = vadd.f32 %v9480, %v10568
      %v10570 = vpop.f32.mrf.mxu0
      %10571 = vmatprep.mubr.f32.mxu0 0.0
      %10572 = vmatmul.mubr.f32.gmra.mxu0 %v10090
      %v10573 = vpop.f32.mrf.mxu0
      %v10574 = vadd.f32 %v9485, %v10573
      %v10575 = vpop.f32.mrf.mxu0
      %10576 = vmatprep.mubr.f32.mxu0 0.0
      %10577 = vmatmul.mubr.f32.gmra.mxu0 %v10093
      %v10578 = vpop.f32.mrf.mxu0
      %v10579 = vadd.f32 %v9490, %v10578
      %v10580 = vpop.f32.mrf.mxu0
      %10581 = vmatprep.mubr.f32.mxu0 0.0
      %10582 = vmatmul.mubr.f32.gmra.mxu0 %v10096
      %v10583 = vpop.f32.mrf.mxu0
      %v10584 = vadd.f32 %v9495, %v10583
      %v10585 = vpop.f32.mrf.mxu0
      %10586 = vmatprep.mubr.f32.mxu0 0.0
      %10587 = vmatmul.mubr.f32.gmra.mxu0 %v10099
      %v10588 = vpop.f32.mrf.mxu0
      %v10589 = vadd.f32 %v9500, %v10588
      %v10590 = vpop.f32.mrf.mxu0
      %10591 = vmatprep.mubr.f32.mxu0 0.0
      %10592 = vmatmul.mubr.f32.gmra.mxu0 %v10102
      %v10593 = vpop.f32.mrf.mxu0
      %v10594 = vadd.f32 %v9505, %v10593
      %v10595 = vpop.f32.mrf.mxu0
      %10596 = vmatprep.mubr.f32.mxu0 0.0
      %10597 = vmatmul.mubr.f32.gmra.mxu0 %v10105
      %v10598 = vpop.f32.mrf.mxu0
      %v10599 = vadd.f32 %v9510, %v10598
      %v10600 = vpop.f32.mrf.mxu0
      %10601 = vmatprep.mubr.f32.mxu0 0.0
      %10602 = vmatmul.mubr.f32.gmra.mxu0 %v10108
      %v10603 = vpop.f32.mrf.mxu0
      %v10604 = vadd.f32 %v9515, %v10603
      %v10605 = vpop.f32.mrf.mxu0
      %10606 = vmatprep.mubr.f32.mxu0 0.0
      %10607 = vmatmul.mubr.f32.gmra.mxu0 %v10111
      %v10608 = vpop.f32.mrf.mxu0
      %v10609 = vadd.f32 %v9520, %v10608
      %v10610 = vpop.f32.mrf.mxu0
      %10611 = vmatprep.mubr.f32.mxu0 0.0
      %10612 = vmatmul.mubr.f32.gmra.mxu0 %v10114
      %v10613 = vpop.f32.mrf.mxu0
      %v10614 = vadd.f32 %v9525, %v10613
      %v10615 = vpop.f32.mrf.mxu0
      %10616 = vmatprep.mubr.f32.mxu0 0.0
      %10617 = vmatmul.mubr.f32.gmra.mxu0 %v10117
      %v10618 = vpop.f32.mrf.mxu0
      %v10619 = vadd.f32 %v9530, %v10618
      %v10620 = vpop.f32.mrf.mxu0
      %10621 = vmatprep.mubr.f32.mxu0 0.0
      %10622 = vmatmul.mubr.f32.gmra.mxu0 %v10120
      %v10623 = vpop.f32.mrf.mxu0
      %v10624 = vadd.f32 %v9535, %v10623
      %v10625 = vpop.f32.mrf.mxu0
      %10626 = vmatprep.mubr.f32.mxu0 0.0
      %10627 = vmatmul.mubr.f32.gmra.mxu0 %v10123
      %v10628 = vpop.f32.mrf.mxu0
      %v10629 = vadd.f32 %v9540, %v10628
      %v10630 = vpop.f32.mrf.mxu0
      %10631 = vmatprep.mubr.f32.mxu0 0.0
      %10632 = vmatmul.mubr.f32.gmra.mxu0 %v10126
      %v10633 = vpop.f32.mrf.mxu0
      %v10634 = vadd.f32 %v9545, %v10633
      %v10635 = vpop.f32.mrf.mxu0
      %10636 = vmatprep.mubr.f32.mxu0 0.0
      %10637 = vmatmul.mubr.f32.gmra.mxu0 %v10129
      %v10638 = vpop.f32.mrf.mxu0
      %v10639 = vadd.f32 %v9550, %v10638
      %v10640 = vpop.f32.mrf.mxu0
      %10641 = vmatprep.mubr.f32.mxu0 0.0
      %10642 = vmatmul.mubr.f32.gmra.mxu0 %v10132
      %v10643 = vpop.f32.mrf.mxu0
      %v10644 = vadd.f32 %v9555, %v10643
      %v10645 = vpop.f32.mrf.mxu0
      %10646 = vmatprep.mubr.f32.mxu0 0.0
      %10647 = vmatmul.mubr.f32.gmra.mxu0 %v10135
      %v10648 = vpop.f32.mrf.mxu0
      %v10649 = vadd.f32 %v9560, %v10648
      %v10650 = vpop.f32.mrf.mxu0
      %10651 = vmatprep.mubr.f32.mxu0 0.0
      %10652 = vmatmul.mubr.f32.gmra.mxu0 %v10138
      %v10653 = vpop.f32.mrf.mxu0
      %v10654 = vadd.f32 %v9565, %v10653
      %v10655 = vpop.f32.mrf.mxu0
      %10656 = vmatprep.mubr.f32.mxu0 0.0
      %10657 = vmatmul.mubr.f32.gmra.mxu0 %v10141
      %v10658 = vpop.f32.mrf.mxu0
      %v10659 = vadd.f32 %v9570, %v10658
      %v10660 = vpop.f32.mrf.mxu0
      %10661 = vmatprep.mubr.f32.mxu0 0.0
      %10662 = vmatmul.mubr.f32.gmra.mxu0 %v10144
      %v10663 = vpop.f32.mrf.mxu0
      %v10664 = vadd.f32 %v9575, %v10663
      %v10665 = vpop.f32.mrf.mxu0
      %10666 = vmatprep.mubr.f32.mxu0 0.0
      %10667 = vmatmul.mubr.f32.gmra.mxu0 %v10147
      %v10668 = vpop.f32.mrf.mxu0
      %v10669 = vadd.f32 %v9580, %v10668
      %v10670 = vpop.f32.mrf.mxu0
      %10671 = vmatprep.mubr.f32.mxu0 0.0
      %10672 = vmatmul.mubr.f32.gmra.mxu0 %v10150
      %v10673 = vpop.f32.mrf.mxu0
      %v10674 = vadd.f32 %v9585, %v10673
      %v10675 = vpop.f32.mrf.mxu0
      %10676 = vmatprep.mubr.f32.mxu0 0.0
      %10677 = vmatmul.mubr.f32.gmra.mxu0 %v10153
      %v10678 = vpop.f32.mrf.mxu0
      %v10679 = vadd.f32 %v9590, %v10678
      %v10680 = vpop.f32.mrf.mxu0
      %10681 = vmatprep.mubr.f32.mxu0 0.0
      %10682 = vmatmul.mubr.f32.gmra.mxu0 %v10156
      %v10683 = vpop.f32.mrf.mxu0
      %v10684 = vadd.f32 %v9595, %v10683
      %v10685 = vpop.f32.mrf.mxu0
      %10686 = vmatprep.mubr.f32.mxu0 0.0
      %10687 = vmatmul.mubr.f32.gmra.mxu0 %v10159
      %v10688 = vpop.f32.mrf.mxu0
      %v10689 = vadd.f32 %v9600, %v10688
      %v10690 = vpop.f32.mrf.mxu0
      %10691 = vmatprep.mubr.f32.mxu0 0.0
      %10692 = vmatmul.mubr.f32.gmra.mxu0 %v10162
      %v10693 = vpop.f32.mrf.mxu0
      %v10694 = vadd.f32 %v9605, %v10693
      %v10695 = vpop.f32.mrf.mxu0
      %10696 = vmatprep.mubr.f32.mxu0 0.0
      %10697 = vmatmul.mubr.f32.gmra.mxu0 %v10165
      %v10698 = vpop.f32.mrf.mxu0
      %v10699 = vadd.f32 %v9610, %v10698
      %v10700 = vpop.f32.mrf.mxu0
      %10701 = vmatprep.mubr.f32.mxu0 0.0
      %10702 = vmatmul.mubr.f32.gmra.mxu0 %v10168
      %v10703 = vpop.f32.mrf.mxu0
      %v10704 = vadd.f32 %v9615, %v10703
      %v10705 = vpop.f32.mrf.mxu0
      %10706 = vmatprep.mubr.f32.mxu0 0.0
      %10707 = vmatmul.mubr.f32.gmra.mxu0 %v10171
      %v10708 = vpop.f32.mrf.mxu0
      %v10709 = vadd.f32 %v9620, %v10708
      %v10710 = vpop.f32.mrf.mxu0
      %10711 = vmatprep.mubr.f32.mxu0 0.0
      %10712 = vmatmul.mubr.f32.gmra.mxu0 %v10174
      %v10713 = vpop.f32.mrf.mxu0
      %v10714 = vadd.f32 %v9625, %v10713
      %v10715 = vpop.f32.mrf.mxu0
      %10716 = vmatprep.mubr.f32.mxu0 0.0
      %10717 = vmatmul.mubr.f32.gmra.mxu0 %v10177
      %v10718 = vpop.f32.mrf.mxu0
      %v10719 = vadd.f32 %v9630, %v10718
      %v10720 = vpop.f32.mrf.mxu0
      %10721 = vmatprep.mubr.f32.mxu0 0.0
      %10722 = vmatmul.mubr.f32.gmra.mxu0 %v10180
      %v10723 = vpop.f32.mrf.mxu0
      %v10724 = vadd.f32 %v9635, %v10723
      %v10725 = vpop.f32.mrf.mxu0
      %10726 = vmatprep.mubr.f32.mxu0 0.0
      %10727 = vmatmul.mubr.f32.gmra.mxu0 %v10183
      %v10728 = vpop.f32.mrf.mxu0
      %v10729 = vadd.f32 %v9640, %v10728
      %v10730 = vpop.f32.mrf.mxu0
      %10731 = vmatprep.mubr.f32.mxu0 0.0
      %10732 = vmatmul.mubr.f32.gmra.mxu0 %v10186
      %v10733 = vpop.f32.mrf.mxu0
      %v10734 = vadd.f32 %v9645, %v10733
      %v10735 = vpop.f32.mrf.mxu0
      %10736 = vmatprep.mubr.f32.mxu0 0.0
      %10737 = vmatmul.mubr.f32.gmra.mxu0 %v10189
      %v10738 = vpop.f32.mrf.mxu0
      %v10739 = vadd.f32 %v9650, %v10738
      %v10740 = vpop.f32.mrf.mxu0
      %10741 = vmatprep.mubr.f32.mxu0 0.0
      %10742 = vmatmul.mubr.f32.gmra.mxu0 %v10192
      %v10743 = vpop.f32.mrf.mxu0
      %v10744 = vadd.f32 %v9655, %v10743
      %v10745 = vpop.f32.mrf.mxu0
      %10746 = vmatprep.mubr.f32.mxu0 0.0
      %10747 = vmatmul.mubr.f32.gmra.mxu0 %v10195
      %v10748 = vpop.f32.mrf.mxu0
      %v10749 = vadd.f32 %v9660, %v10748
      %v10750 = vpop.f32.mrf.mxu0
      %10751 = vmatprep.mubr.f32.mxu0 0.0
      %10752 = vmatmul.mubr.f32.gmra.mxu0 %v10198
      %v10753 = vpop.f32.mrf.mxu0
      %v10754 = vadd.f32 %v9665, %v10753
      %v10755 = vpop.f32.mrf.mxu0
      %10756 = vmatprep.mubr.f32.mxu0 0.0
      %10757 = vmatmul.mubr.f32.gmra.mxu0 %v10201
      %v10758 = vpop.f32.mrf.mxu0
      %v10759 = vadd.f32 %v9670, %v10758
      %v10760 = vpop.f32.mrf.mxu0
      %10761 = vmatprep.mubr.f32.mxu0 0.0
      %10762 = vmatmul.mubr.f32.gmra.mxu0 %v10204
      %v10763 = vpop.f32.mrf.mxu0
      %v10764 = vadd.f32 %v9675, %v10763
      %v10765 = vpop.f32.mrf.mxu0
      %10766 = vmatprep.mubr.f32.mxu0 0.0
      %10767 = vmatmul.mubr.f32.gmra.mxu0 %v10207
      %v10768 = vpop.f32.mrf.mxu0
      %v10769 = vadd.f32 %v9680, %v10768
      %v10770 = vpop.f32.mrf.mxu0
      %10771 = vmatprep.mubr.f32.mxu0 0.0
      %10772 = vmatmul.mubr.f32.gmra.mxu0 %v10210
      %v10773 = vpop.f32.mrf.mxu0
      %v10774 = vadd.f32 %v9685, %v10773
      %v10775 = vpop.f32.mrf.mxu0
      %10776 = vmatprep.mubr.f32.mxu0 0.0
      %10777 = vmatmul.mubr.f32.gmra.mxu0 %v10213
      %v10778 = vpop.f32.mrf.mxu0
      %v10779 = vadd.f32 %v9690, %v10778
      %v10780 = vpop.f32.mrf.mxu0
      %10781 = vmatprep.mubr.f32.mxu0 0.0
      %10782 = vmatmul.mubr.f32.gmra.mxu0 %v10216
      %v10783 = vpop.f32.mrf.mxu0
      %v10784 = vadd.f32 %v9695, %v10783
      %v10785 = vpop.f32.mrf.mxu0
      %10786 = vmatprep.mubr.f32.mxu0 0.0
      %10787 = vmatmul.mubr.f32.gmra.mxu0 %v10219
      %v10788 = vpop.f32.mrf.mxu0
      %v10789 = vadd.f32 %v9700, %v10788
      %v10790 = vpop.f32.mrf.mxu0
      %10791 = vmatprep.mubr.f32.mxu0 0.0
      %10792 = vmatmul.mubr.f32.gmra.mxu0 %v10222
      %v10793 = vpop.f32.mrf.mxu0
      %v10794 = vadd.f32 %v9705, %v10793
      %v10795 = vpop.f32.mrf.mxu0
      %10796 = vmatprep.mubr.f32.mxu0 0.0
      %10797 = vmatmul.mubr.f32.gmra.mxu0 %v10225
      %v10798 = vpop.f32.mrf.mxu0
      %v10799 = vadd.f32 %v9710, %v10798
      %v10800 = vpop.f32.mrf.mxu0
      %10801 = vmatprep.mubr.f32.mxu0 0.0
      %10802 = vmatmul.mubr.f32.gmra.mxu0 %v10228
      %v10803 = vpop.f32.mrf.mxu0
      %v10804 = vadd.f32 %v9715, %v10803
      %v10805 = vpop.f32.mrf.mxu0
      %10806 = vmatprep.mubr.f32.mxu0 0.0
      %10807 = vmatmul.mubr.f32.gmra.mxu0 %v10231
      %v10808 = vpop.f32.mrf.mxu0
      %v10809 = vadd.f32 %v9720, %v10808
      %v10810 = vpop.f32.mrf.mxu0
      %10811 = vmatprep.mubr.f32.mxu0 0.0
      %10812 = vmatmul.mubr.f32.gmra.mxu0 %v10234
      %v10813 = vpop.f32.mrf.mxu0
      %v10814 = vadd.f32 %v9725, %v10813
      %v10815 = vpop.f32.mrf.mxu0
      %10816 = vmatprep.mubr.f32.mxu0 0.0
      %10817 = vmatmul.mubr.f32.gmra.mxu0 %v10237
      %v10818 = vpop.f32.mrf.mxu0
      %v10819 = vadd.f32 %v9730, %v10818
      %v10820 = vpop.f32.mrf.mxu0
      %10821 = vmatprep.mubr.f32.mxu0 0.0
      %10822 = vmatmul.mubr.f32.gmra.mxu0 %v10240
      %v10823 = vpop.f32.mrf.mxu0
      %v10824 = vadd.f32 %v9735, %v10823
      %v10825 = vpop.f32.mrf.mxu0
      %10826 = vmatprep.mubr.f32.mxu0 0.0
      %10827 = vmatmul.mubr.f32.gmra.mxu0 %v10243
      %v10828 = vpop.f32.mrf.mxu0
      %v10829 = vadd.f32 %v9740, %v10828
      %v10830 = vpop.f32.mrf.mxu0
      %10831 = vmatprep.mubr.f32.mxu0 0.0
      %10832 = vmatmul.mubr.f32.gmra.mxu0 %v10246
      %v10833 = vpop.f32.mrf.mxu0
      %v10834 = vadd.f32 %v9745, %v10833
      %v10835 = vpop.f32.mrf.mxu0
      %10836 = vmatprep.mubr.f32.mxu0 0.0
      %10837 = vmatmul.mubr.f32.gmra.mxu0 %v10249
      %v10838 = vpop.f32.mrf.mxu0
      %v10839 = vadd.f32 %v9750, %v10838
      %v10840 = vpop.f32.mrf.mxu0
      %10841 = vmatprep.mubr.f32.mxu0 0.0
      %10842 = vmatmul.mubr.f32.gmra.mxu0 %v10252
      %v10843 = vpop.f32.mrf.mxu0
      %v10844 = vadd.f32 %v9755, %v10843
      %v10845 = vpop.f32.mrf.mxu0
      %10846 = vmatprep.mubr.f32.mxu0 0.0
      %10847 = vmatmul.mubr.f32.gmra.mxu0 %v10255
      %v10848 = vpop.f32.mrf.mxu0
      %v10849 = vadd.f32 %v9760, %v10848
      %v10850 = vpop.f32.mrf.mxu0
      %10851 = vmatprep.mubr.f32.mxu0 0.0
      %10852 = vmatmul.mubr.f32.gmra.mxu0 %v10258
      %v10853 = vpop.f32.mrf.mxu0
      %v10854 = vadd.f32 %v9765, %v10853
      %v10855 = vpop.f32.mrf.mxu0
      %10856 = vmatprep.mubr.f32.mxu0 0.0
      %10857 = vmatmul.mubr.f32.gmra.mxu0 %v10261
      %v10858 = vpop.f32.mrf.mxu0
      %v10859 = vadd.f32 %v9770, %v10858
      %v10860 = vpop.f32.mrf.mxu0
      %10861 = vmatprep.mubr.f32.mxu0 0.0
      %10862 = vmatmul.mubr.f32.gmra.mxu0 %v10264
      %v10863 = vpop.f32.mrf.mxu0
      %v10864 = vadd.f32 %v9775, %v10863
      %v10865 = vpop.f32.mrf.mxu0
      %10866 = vmatprep.mubr.f32.mxu0 0.0
      %10867 = vmatmul.mubr.f32.gmra.mxu0 %v10267
      %v10868 = vpop.f32.mrf.mxu0
      %v10869 = vadd.f32 %v9780, %v10868
      %v10870 = vpop.f32.mrf.mxu0
      %10871 = vmatprep.mubr.f32.mxu0 0.0
      %10872 = vmatmul.mubr.f32.gmra.mxu0 %v10270
      %v10873 = vpop.f32.mrf.mxu0
      %v10874 = vadd.f32 %v9785, %v10873
      %v10875 = vpop.f32.mrf.mxu0
      %10876 = vmatprep.mubr.f32.mxu0 0.0
      %10877 = vmatmul.mubr.f32.gmra.mxu0 %v10273
      %v10878 = vpop.f32.mrf.mxu0
      %v10879 = vadd.f32 %v9790, %v10878
      %v10880 = vpop.f32.mrf.mxu0
      %10881 = vmatprep.mubr.f32.mxu0 0.0
      %10882 = vmatmul.mubr.f32.gmra.mxu0 %v10276
      %v10883 = vpop.f32.mrf.mxu0
      %v10884 = vadd.f32 %v9795, %v10883
      %v10885 = vpop.f32.mrf.mxu0
      %10886 = vmatprep.mubr.f32.mxu0 0.0
      %10887 = vmatmul.mubr.f32.gmra.mxu0 %v10279
      %v10888 = vpop.f32.mrf.mxu0
      %v10889 = vadd.f32 %v9800, %v10888
      %v10890 = vpop.f32.mrf.mxu0
      %10891 = vmatprep.mubr.f32.mxu0 0.0
      %10892 = vmatmul.mubr.f32.gmra.mxu0 %v10282
      %v10893 = vpop.f32.mrf.mxu0
      %v10894 = vadd.f32 %v9805, %v10893
      %v10895 = vpop.f32.mrf.mxu0
      %10896 = vmatprep.mubr.f32.mxu0 0.0
      %10897 = vmatmul.mubr.f32.gmra.mxu0 %v10285
      %v10898 = vpop.f32.mrf.mxu0
      %v10899 = vadd.f32 %v9810, %v10898
      %v10900 = vpop.f32.mrf.mxu0
      %10901 = vmatprep.mubr.f32.mxu0 0.0
      %10902 = vmatmul.mubr.f32.gmra.mxu0 %v10288
      %v10903 = vpop.f32.mrf.mxu0
      %v10904 = vadd.f32 %v9815, %v10903
      %v10905 = vpop.f32.mrf.mxu0
      %10906 = vmatprep.mubr.f32.mxu0 0.0
      %10907 = vmatmul.mubr.f32.gmra.mxu0 %v10291
      %v10908 = vpop.f32.mrf.mxu0
      %v10909 = vadd.f32 %v9820, %v10908
      %v10910 = vpop.f32.mrf.mxu0
      %10911 = vmatprep.mubr.f32.mxu0 0.0
      %10912 = vmatmul.mubr.f32.gmra.mxu0 %v10294
      %v10913 = vpop.f32.mrf.mxu0
      %v10914 = vadd.f32 %v9825, %v10913
      %v10915 = vpop.f32.mrf.mxu0
      %10916 = vmatprep.mubr.f32.mxu0 0.0
      %10917 = vmatmul.mubr.f32.gmra.mxu0 %v10297
      %v10918 = vpop.f32.mrf.mxu0
      %v10919 = vadd.f32 %v9830, %v10918
      %v10920 = vpop.f32.mrf.mxu0
      %10921 = vmatprep.mubr.f32.mxu0 0.0
      %10922 = vmatmul.mubr.f32.gmra.mxu0 %v10300
      %v10923 = vpop.f32.mrf.mxu0
      %v10924 = vadd.f32 %v9835, %v10923
      %v10925 = vpop.f32.mrf.mxu0
      %10926 = vmatprep.mubr.f32.mxu0 0.0
      %10927 = vmatmul.mubr.f32.gmra.mxu0 %v10303
      %v10928 = vpop.f32.mrf.mxu0
      %v10929 = vadd.f32 %v9840, %v10928
      %v10930 = vpop.f32.mrf.mxu0
      %10931 = vmatprep.mubr.f32.mxu0 0.0
      %10932 = vmatmul.mubr.f32.gmra.mxu0 %v10306
      %v10933 = vpop.f32.mrf.mxu0
      %v10934 = vadd.f32 %v9845, %v10933
      %v10935 = vpop.f32.mrf.mxu0
      %10936 = vmatprep.mubr.f32.mxu0 0.0
      %10937 = vmatmul.mubr.f32.gmra.mxu0 %v10309
      %v10938 = vpop.f32.mrf.mxu0
      %v10939 = vadd.f32 %v9850, %v10938
      %v10940 = vpop.f32.mrf.mxu0
      %10941 = vmatprep.mubr.f32.mxu0 0.0
      %10942 = vmatmul.mubr.f32.gmra.mxu0 %v10312
      %v10943 = vpop.f32.mrf.mxu0
      %v10944 = vadd.f32 %v9855, %v10943
      %v10945 = vpop.f32.mrf.mxu0
      %10946 = vmatprep.mubr.f32.mxu0 0.0
      %10947 = vmatmul.mubr.f32.gmra.mxu0 %v10315
      %v10948 = vpop.f32.mrf.mxu0
      %v10949 = vadd.f32 %v9860, %v10948
      %v10950 = vpop.f32.mrf.mxu0
      %10951 = vmatprep.mubr.f32.mxu0 0.0
      %10952 = vmatmul.mubr.f32.gmra.mxu0 %v10318
      %v10953 = vpop.f32.mrf.mxu0
      %v10954 = vadd.f32 %v9865, %v10953
      %v10955 = vpop.f32.mrf.mxu0
      %10956 = vmatprep.mubr.f32.mxu0 0.0
      %10957 = vmatmul.mubr.f32.gmra.mxu0 %v10321
      %v10958 = vpop.f32.mrf.mxu0
      %v10959 = vadd.f32 %v9870, %v10958
      %v10960 = vpop.f32.mrf.mxu0
      %10961 = vmatprep.mubr.f32.mxu0 0.0
      %10962 = vmatmul.mubr.f32.gmra.mxu0 %v10324
      %v10963 = vpop.f32.mrf.mxu0
      %v10964 = vadd.f32 %v9875, %v10963
      %v10965 = vpop.f32.mrf.mxu0
      %10966 = vmatprep.mubr.f32.mxu0 0.0
      %10967 = vmatmul.mubr.f32.gmra.mxu0 %v10327
      %v10968 = vpop.f32.mrf.mxu0
      %v10969 = vadd.f32 %v9880, %v10968
      %v10970 = vpop.f32.mrf.mxu0
      %10971 = vmatprep.mubr.f32.mxu0 0.0
      %10972 = vmatmul.mubr.f32.gmra.mxu0 %v10330
      %v10973 = vpop.f32.mrf.mxu0
      %v10974 = vadd.f32 %v9885, %v10973
      %v10975 = vpop.f32.mrf.mxu0
      %10976 = vmatprep.mubr.f32.mxu0 0.0
      %10977 = vmatmul.mubr.f32.gmra.mxu0 %v10333
      %v10978 = vpop.f32.mrf.mxu0
      %v10979 = vadd.f32 %v9890, %v10978
      %v10980 = vpop.f32.mrf.mxu0
      %10981 = vmatprep.mubr.f32.mxu0 0.0
      %10982 = vmatmul.mubr.f32.gmra.mxu0 %v10336
      %v10983 = vpop.f32.mrf.mxu0
      %v10984 = vadd.f32 %v9895, %v10983
      %v10985 = vpop.f32.mrf.mxu0
      %10986 = vmatprep.mubr.f32.mxu0 0.0
      %10987 = vmatmul.mubr.f32.gmra.mxu0 %v10339
      %v10988 = vpop.f32.mrf.mxu0
      %v10989 = vadd.f32 %v9900, %v10988
      %v10990 = vpop.f32.mrf.mxu0
      %10991 = vmatprep.mubr.f32.mxu0 0.0
      %10992 = vmatmul.mubr.f32.gmra.mxu0 %v10342
      %v10993 = vpop.f32.mrf.mxu0
      %v10994 = vadd.f32 %v9905, %v10993
      %v10995 = vpop.f32.mrf.mxu0
      %10996 = vmatprep.mubr.f32.mxu0 0.0
      %10997 = vmatmul.mubr.f32.gmra.mxu0 %v10345
      %v10998 = vpop.f32.mrf.mxu0
      %v10999 = vadd.f32 %v9910, %v10998
      %v11000 = vpop.f32.mrf.mxu0
      %11001 = vmatprep.mubr.f32.mxu0 0.0
      %11002 = vmatmul.mubr.f32.gmra.mxu0 %v10348
      %v11003 = vpop.f32.mrf.mxu0
      %v11004 = vadd.f32 %v9915, %v11003
      %v11005 = vpop.f32.mrf.mxu0
      %11006 = vmatprep.mubr.f32.mxu0 0.0
      %11007 = vmatmul.mubr.f32.gmra.mxu0 %v10351
      %v11008 = vpop.f32.mrf.mxu0
      %v11009 = vadd.f32 %v9920, %v11008
      %v11010 = vpop.f32.mrf.mxu0
      %11011 = vmatprep.mubr.f32.mxu0 0.0
      %11012 = vmatmul.mubr.f32.gmra.mxu0 %v10354
      %v11013 = vpop.f32.mrf.mxu0
      %v11014 = vadd.f32 %v9925, %v11013
      %v11015 = vpop.f32.mrf.mxu0
      %11016 = vmatprep.mubr.f32.mxu0 0.0
      %11017 = vmatmul.mubr.f32.gmra.mxu0 %v10357
      %v11018 = vpop.f32.mrf.mxu0
      %v11019 = vadd.f32 %v9930, %v11018
      %v11020 = vpop.f32.mrf.mxu0
      %11021 = vmatprep.mubr.f32.mxu0 0.0
      %11022 = vmatmul.mubr.f32.gmra.mxu0 %v10360
      %v11023 = vpop.f32.mrf.mxu0
      %v11024 = vadd.f32 %v9935, %v11023
      %v11025 = vpop.f32.mrf.mxu0
      %11026 = vmatprep.mubr.f32.mxu0 0.0
      %11027 = vmatmul.mubr.f32.gmra.mxu0 %v10363
      %v11028 = vpop.f32.mrf.mxu0
      %v11029 = vadd.f32 %v9940, %v11028
      %v11030 = vpop.f32.mrf.mxu0
      %11031 = vmatprep.mubr.f32.mxu0 0.0
      %11032 = vmatmul.mubr.f32.gmra.mxu0 %v10366
      %v11033 = vpop.f32.mrf.mxu0
      %v11034 = vadd.f32 %v9945, %v11033
      %v11035 = vpop.f32.mrf.mxu0
      %11036 = vmatprep.mubr.f32.mxu0 0.0
      %11037 = vmatmul.mubr.f32.gmra.mxu0 %v10369
      %v11038 = vpop.f32.mrf.mxu0
      %v11039 = vadd.f32 %v9950, %v11038
      %v11040 = vpop.f32.mrf.mxu0
      %11041 = vmatprep.mubr.f32.mxu0 0.0
      %11042 = vmatmul.mubr.f32.gmra.mxu0 %v10372
      %v11043 = vpop.f32.mrf.mxu0
      %v11044 = vadd.f32 %v9955, %v11043
      %v11045 = vpop.f32.mrf.mxu0
      %11046 = vmatprep.mubr.f32.mxu0 0.0
      %11047 = vmatmul.mubr.f32.gmra.mxu0 %v10375
      %v11048 = vpop.f32.mrf.mxu0
      %v11049 = vadd.f32 %v9960, %v11048
      %v11050 = vpop.f32.mrf.mxu0
      %11051 = vmatprep.mubr.f32.mxu0 0.0
      %11052 = vmatmul.mubr.f32.gmra.mxu0 %v10378
      %v11053 = vpop.f32.mrf.mxu0
      %v11054 = vadd.f32 %v9965, %v11053
      %v11055 = vpop.f32.mrf.mxu0
      %11056 = vmatprep.mubr.f32.mxu0 0.0
      %11057 = vmatmul.mubr.f32.gmra.mxu0 %v10381
      %v11058 = vpop.f32.mrf.mxu0
      %v11059 = vadd.f32 %v9970, %v11058
      %v11060 = vpop.f32.mrf.mxu0
      %11061 = vmatprep.mubr.f32.mxu0 0.0
      %11062 = vmatmul.mubr.f32.gmra.mxu0 %v10384
      %v11063 = vpop.f32.mrf.mxu0
      %v11064 = vadd.f32 %v9975, %v11063
      %v11065 = vpop.f32.mrf.mxu0
      %11066 = vmatprep.mubr.f32.mxu0 0.0
      %11067 = vmatmul.mubr.f32.gmra.mxu0 %v10387
      %v11068 = vpop.f32.mrf.mxu0
      %v11069 = vadd.f32 %v9980, %v11068
      %v11070 = vpop.f32.mrf.mxu0
      %11071 = vmatprep.mubr.f32.mxu0 0.0
      %11072 = vmatmul.mubr.f32.gmra.mxu0 %v10390
      %v11073 = vpop.f32.mrf.mxu0
      %v11074 = vadd.f32 %v9985, %v11073
      %v11075 = vpop.f32.mrf.mxu0
      %11076 = vmatprep.mubr.f32.mxu0 0.0
      %11077 = vmatmul.mubr.f32.gmra.mxu0 %v10393
      %v11078 = vpop.f32.mrf.mxu0
      %v11079 = vadd.f32 %v9990, %v11078
      %v11080 = vpop.f32.mrf.mxu0
      %11081 = vmatprep.mubr.f32.mxu0 0.0
      %11082 = vmatmul.mubr.f32.gmra.mxu0 %v10396
      %v11083 = vpop.f32.mrf.mxu0
      %v11084 = vadd.f32 %v9995, %v11083
      %v11085 = vpop.f32.mrf.mxu0
      %11086 = vmatprep.mubr.f32.mxu0 0.0
      %11087 = vmatmul.mubr.f32.gmra.mxu0 %v10399
      %v11088 = vpop.f32.mrf.mxu0
      %v11089 = vadd.f32 %v10000, %v11088
      %v11090 = vpop.f32.mrf.mxu0
      %11091 = vmatprep.mubr.f32.mxu0 0.0
      %11092 = vmatmul.mubr.f32.gmra.mxu0 %v10402
      %v11093 = vpop.f32.mrf.mxu0
      %v11094 = vadd.f32 %v10005, %v11093
      %v11095 = vpop.f32.mrf.mxu0
      %11096 = vmatprep.mubr.f32.mxu0 0.0
      %11097 = vmatmul.mubr.f32.gmra.mxu0 %v10405
      %v11098 = vpop.f32.mrf.mxu0
      %v11099 = vadd.f32 %v10010, %v11098
      %v11100 = vpop.f32.mrf.mxu0
      %11101 = vmatprep.mubr.f32.mxu0 0.0
      %11102 = vmatmul.mubr.f32.gmra.mxu0 %v10408
      %v11103 = vpop.f32.mrf.mxu0
      %v11104 = vadd.f32 %v10015, %v11103
      %v11105 = vpop.f32.mrf.mxu0
      %11106 = vmatprep.mubr.f32.mxu0 0.0
      %11107 = vmatmul.mubr.f32.gmra.mxu0 %v10411
      %v11108 = vpop.f32.mrf.mxu0
      %v11109 = vadd.f32 %v10020, %v11108
      %v11110 = vpop.f32.mrf.mxu0
      %11111 = vmatprep.mubr.f32.mxu0 0.0
      %11112 = vmatmul.mubr.f32.gmra.mxu0 %v10414
      %v11113 = vpop.f32.mrf.mxu0
      %v11114 = vadd.f32 %v10025, %v11113
      %v11115 = vpop.f32.mrf.mxu0
      %11116 = vmatprep.mubr.f32.mxu0 0.0
      %11117 = vmatmul.mubr.f32.gmra.mxu0 %v10417
      %v11118 = vpop.f32.mrf.mxu0
      %v11119 = vadd.f32 %v10030, %v11118
      %v11120 = vpop.f32.mrf.mxu0
      %11121 = vmatprep.mubr.f32.mxu0 0.0
      %11122 = vmatmul.mubr.f32.gmra.mxu0 %v10420
      %v11123 = vpop.f32.mrf.mxu0
      %v11124 = vadd.f32 %v10035, %v11123
      %v11125 = vpop.f32.mrf.mxu0
      %11126 = vdwg.mxu0
      %v11127 = vld [vmem:[%s9] sm:$0x1]
      %v11129 = vlaneseq
      %v11130 = vshrl.u32 %v11129, 7
      %v11131 = vsub.s32 0, %v11130
      %v11132 = vrot.slane %v11127, %v11131
      %v11134 = vadd.f32 %v10489, %v11132
      %v11135 = vadd.f32 %v10494, %v11132
      %v11136 = vadd.f32 %v10499, %v11132
      %v11137 = vadd.f32 %v10504, %v11132
      %v11138 = vadd.f32 %v10509, %v11132
      %v11139 = vadd.f32 %v10514, %v11132
      %v11140 = vadd.f32 %v10519, %v11132
      %v11141 = vadd.f32 %v10524, %v11132
      %v11142 = vadd.f32 %v10529, %v11132
      %v11143 = vadd.f32 %v10534, %v11132
      %v11144 = vadd.f32 %v10539, %v11132
      %v11145 = vadd.f32 %v10544, %v11132
      %v11146 = vadd.f32 %v10549, %v11132
      %v11147 = vadd.f32 %v10554, %v11132
      %v11148 = vadd.f32 %v10559, %v11132
      %v11149 = vadd.f32 %v10564, %v11132
      %v11150 = vadd.f32 %v10569, %v11132
      %v11151 = vadd.f32 %v10574, %v11132
      %v11152 = vadd.f32 %v10579, %v11132
      %v11153 = vadd.f32 %v10584, %v11132
      %v11154 = vadd.f32 %v10589, %v11132
      %v11155 = vadd.f32 %v10594, %v11132
      %v11156 = vadd.f32 %v10599, %v11132
      %v11157 = vadd.f32 %v10604, %v11132
      %v11158 = vadd.f32 %v10609, %v11132
      %v11159 = vadd.f32 %v10614, %v11132
      %v11160 = vadd.f32 %v10619, %v11132
      %v11161 = vadd.f32 %v10624, %v11132
      %v11162 = vadd.f32 %v10629, %v11132
      %v11163 = vadd.f32 %v10634, %v11132
      %v11164 = vadd.f32 %v10639, %v11132
      %v11165 = vadd.f32 %v10644, %v11132
      %v11166 = vadd.f32 %v10649, %v11132
      %v11167 = vadd.f32 %v10654, %v11132
      %v11168 = vadd.f32 %v10659, %v11132
      %v11169 = vadd.f32 %v10664, %v11132
      %v11170 = vadd.f32 %v10669, %v11132
      %v11171 = vadd.f32 %v10674, %v11132
      %v11172 = vadd.f32 %v10679, %v11132
      %v11173 = vadd.f32 %v10684, %v11132
      %v11174 = vadd.f32 %v10689, %v11132
      %v11175 = vadd.f32 %v10694, %v11132
      %v11176 = vadd.f32 %v10699, %v11132
      %v11177 = vadd.f32 %v10704, %v11132
      %v11178 = vadd.f32 %v10709, %v11132
      %v11179 = vadd.f32 %v10714, %v11132
      %v11180 = vadd.f32 %v10719, %v11132
      %v11181 = vadd.f32 %v10724, %v11132
      %v11182 = vadd.f32 %v10729, %v11132
      %v11183 = vadd.f32 %v10734, %v11132
      %v11184 = vadd.f32 %v10739, %v11132
      %v11185 = vadd.f32 %v10744, %v11132
      %v11186 = vadd.f32 %v10749, %v11132
      %v11187 = vadd.f32 %v10754, %v11132
      %v11188 = vadd.f32 %v10759, %v11132
      %v11189 = vadd.f32 %v10764, %v11132
      %v11190 = vadd.f32 %v10769, %v11132
      %v11191 = vadd.f32 %v10774, %v11132
      %v11192 = vadd.f32 %v10779, %v11132
      %v11193 = vadd.f32 %v10784, %v11132
      %v11194 = vadd.f32 %v10789, %v11132
      %v11195 = vadd.f32 %v10794, %v11132
      %v11196 = vadd.f32 %v10799, %v11132
      %v11197 = vadd.f32 %v10804, %v11132
      %v11198 = vadd.f32 %v10809, %v11132
      %v11199 = vadd.f32 %v10814, %v11132
      %v11200 = vadd.f32 %v10819, %v11132
      %v11201 = vadd.f32 %v10824, %v11132
      %v11202 = vadd.f32 %v10829, %v11132
      %v11203 = vadd.f32 %v10834, %v11132
      %v11204 = vadd.f32 %v10839, %v11132
      %v11205 = vadd.f32 %v10844, %v11132
      %v11206 = vadd.f32 %v10849, %v11132
      %v11207 = vadd.f32 %v10854, %v11132
      %v11208 = vadd.f32 %v10859, %v11132
      %v11209 = vadd.f32 %v10864, %v11132
      %v11210 = vadd.f32 %v10869, %v11132
      %v11211 = vadd.f32 %v10874, %v11132
      %v11212 = vadd.f32 %v10879, %v11132
      %v11213 = vadd.f32 %v10884, %v11132
      %v11214 = vadd.f32 %v10889, %v11132
      %v11215 = vadd.f32 %v10894, %v11132
      %v11216 = vadd.f32 %v10899, %v11132
      %v11217 = vadd.f32 %v10904, %v11132
      %v11218 = vadd.f32 %v10909, %v11132
      %v11219 = vadd.f32 %v10914, %v11132
      %v11220 = vadd.f32 %v10919, %v11132
      %v11221 = vadd.f32 %v10924, %v11132
      %v11222 = vadd.f32 %v10929, %v11132
      %v11223 = vadd.f32 %v10934, %v11132
      %v11224 = vadd.f32 %v10939, %v11132
      %v11225 = vadd.f32 %v10944, %v11132
      %v11226 = vadd.f32 %v10949, %v11132
      %v11227 = vadd.f32 %v10954, %v11132
      %v11228 = vadd.f32 %v10959, %v11132
      %v11229 = vadd.f32 %v10964, %v11132
      %v11230 = vadd.f32 %v10969, %v11132
      %v11231 = vadd.f32 %v10974, %v11132
      %v11232 = vadd.f32 %v10979, %v11132
      %v11233 = vadd.f32 %v10984, %v11132
      %v11234 = vadd.f32 %v10989, %v11132
      %v11235 = vadd.f32 %v10994, %v11132
      %v11236 = vadd.f32 %v10999, %v11132
      %v11237 = vadd.f32 %v11004, %v11132
      %v11238 = vadd.f32 %v11009, %v11132
      %v11239 = vadd.f32 %v11014, %v11132
      %v11240 = vadd.f32 %v11019, %v11132
      %v11241 = vadd.f32 %v11024, %v11132
      %v11242 = vadd.f32 %v11029, %v11132
      %v11243 = vadd.f32 %v11034, %v11132
      %v11244 = vadd.f32 %v11039, %v11132
      %v11245 = vadd.f32 %v11044, %v11132
      %v11246 = vadd.f32 %v11049, %v11132
      %v11247 = vadd.f32 %v11054, %v11132
      %v11248 = vadd.f32 %v11059, %v11132
      %v11249 = vadd.f32 %v11064, %v11132
      %v11250 = vadd.f32 %v11069, %v11132
      %v11251 = vadd.f32 %v11074, %v11132
      %v11252 = vadd.f32 %v11079, %v11132
      %v11253 = vadd.f32 %v11084, %v11132
      %v11254 = vadd.f32 %v11089, %v11132
      %v11255 = vadd.f32 %v11094, %v11132
      %v11256 = vadd.f32 %v11099, %v11132
      %v11257 = vadd.f32 %v11104, %v11132
      %v11258 = vadd.f32 %v11109, %v11132
      %v11259 = vadd.f32 %v11114, %v11132
      %v11260 = vadd.f32 %v11119, %v11132
      %v11261 = vadd.f32 %v11124, %v11132
      %v11262 = vmax.f32 %v11134, 0.0
      %v11263 = vmax.f32 %v11135, 0.0
      %v11264 = vmax.f32 %v11136, 0.0
      %v11265 = vmax.f32 %v11137, 0.0
      %v11266 = vmax.f32 %v11138, 0.0
      %v11267 = vmax.f32 %v11139, 0.0
      %v11268 = vmax.f32 %v11140, 0.0
      %v11269 = vmax.f32 %v11141, 0.0
      %v11270 = vmax.f32 %v11142, 0.0
      %v11271 = vmax.f32 %v11143, 0.0
      %v11272 = vmax.f32 %v11144, 0.0
      %v11273 = vmax.f32 %v11145, 0.0
      %v11274 = vmax.f32 %v11146, 0.0
      %v11275 = vmax.f32 %v11147, 0.0
      %v11276 = vmax.f32 %v11148, 0.0
      %v11277 = vmax.f32 %v11149, 0.0
      %v11278 = vmax.f32 %v11150, 0.0
      %v11279 = vmax.f32 %v11151, 0.0
      %v11280 = vmax.f32 %v11152, 0.0
      %v11281 = vmax.f32 %v11153, 0.0
      %v11282 = vmax.f32 %v11154, 0.0
      %v11283 = vmax.f32 %v11155, 0.0
      %v11284 = vmax.f32 %v11156, 0.0
      %v11285 = vmax.f32 %v11157, 0.0
      %v11286 = vmax.f32 %v11158, 0.0
      %v11287 = vmax.f32 %v11159, 0.0
      %v11288 = vmax.f32 %v11160, 0.0
      %v11289 = vmax.f32 %v11161, 0.0
      %v11290 = vmax.f32 %v11162, 0.0
      %v11291 = vmax.f32 %v11163, 0.0
      %v11292 = vmax.f32 %v11164, 0.0
      %v11293 = vmax.f32 %v11165, 0.0
      %v11294 = vmax.f32 %v11166, 0.0
      %v11295 = vmax.f32 %v11167, 0.0
      %v11296 = vmax.f32 %v11168, 0.0
      %v11297 = vmax.f32 %v11169, 0.0
      %v11298 = vmax.f32 %v11170, 0.0
      %v11299 = vmax.f32 %v11171, 0.0
      %v11300 = vmax.f32 %v11172, 0.0
      %v11301 = vmax.f32 %v11173, 0.0
      %v11302 = vmax.f32 %v11174, 0.0
      %v11303 = vmax.f32 %v11175, 0.0
      %v11304 = vmax.f32 %v11176, 0.0
      %v11305 = vmax.f32 %v11177, 0.0
      %v11306 = vmax.f32 %v11178, 0.0
      %v11307 = vmax.f32 %v11179, 0.0
      %v11308 = vmax.f32 %v11180, 0.0
      %v11309 = vmax.f32 %v11181, 0.0
      %v11310 = vmax.f32 %v11182, 0.0
      %v11311 = vmax.f32 %v11183, 0.0
      %v11312 = vmax.f32 %v11184, 0.0
      %v11313 = vmax.f32 %v11185, 0.0
      %v11314 = vmax.f32 %v11186, 0.0
      %v11315 = vmax.f32 %v11187, 0.0
      %v11316 = vmax.f32 %v11188, 0.0
      %v11317 = vmax.f32 %v11189, 0.0
      %v11318 = vmax.f32 %v11190, 0.0
      %v11319 = vmax.f32 %v11191, 0.0
      %v11320 = vmax.f32 %v11192, 0.0
      %v11321 = vmax.f32 %v11193, 0.0
      %v11322 = vmax.f32 %v11194, 0.0
      %v11323 = vmax.f32 %v11195, 0.0
      %v11324 = vmax.f32 %v11196, 0.0
      %v11325 = vmax.f32 %v11197, 0.0
      %v11326 = vmax.f32 %v11198, 0.0
      %v11327 = vmax.f32 %v11199, 0.0
      %v11328 = vmax.f32 %v11200, 0.0
      %v11329 = vmax.f32 %v11201, 0.0
      %v11330 = vmax.f32 %v11202, 0.0
      %v11331 = vmax.f32 %v11203, 0.0
      %v11332 = vmax.f32 %v11204, 0.0
      %v11333 = vmax.f32 %v11205, 0.0
      %v11334 = vmax.f32 %v11206, 0.0
      %v11335 = vmax.f32 %v11207, 0.0
      %v11336 = vmax.f32 %v11208, 0.0
      %v11337 = vmax.f32 %v11209, 0.0
      %v11338 = vmax.f32 %v11210, 0.0
      %v11339 = vmax.f32 %v11211, 0.0
      %v11340 = vmax.f32 %v11212, 0.0
      %v11341 = vmax.f32 %v11213, 0.0
      %v11342 = vmax.f32 %v11214, 0.0
      %v11343 = vmax.f32 %v11215, 0.0
      %v11344 = vmax.f32 %v11216, 0.0
      %v11345 = vmax.f32 %v11217, 0.0
      %v11346 = vmax.f32 %v11218, 0.0
      %v11347 = vmax.f32 %v11219, 0.0
      %v11348 = vmax.f32 %v11220, 0.0
      %v11349 = vmax.f32 %v11221, 0.0
      %v11350 = vmax.f32 %v11222, 0.0
      %v11351 = vmax.f32 %v11223, 0.0
      %v11352 = vmax.f32 %v11224, 0.0
      %v11353 = vmax.f32 %v11225, 0.0
      %v11354 = vmax.f32 %v11226, 0.0
      %v11355 = vmax.f32 %v11227, 0.0
      %v11356 = vmax.f32 %v11228, 0.0
      %v11357 = vmax.f32 %v11229, 0.0
      %v11358 = vmax.f32 %v11230, 0.0
      %v11359 = vmax.f32 %v11231, 0.0
      %v11360 = vmax.f32 %v11232, 0.0
      %v11361 = vmax.f32 %v11233, 0.0
      %v11362 = vmax.f32 %v11234, 0.0
      %v11363 = vmax.f32 %v11235, 0.0
      %v11364 = vmax.f32 %v11236, 0.0
      %v11365 = vmax.f32 %v11237, 0.0
      %v11366 = vmax.f32 %v11238, 0.0
      %v11367 = vmax.f32 %v11239, 0.0
      %v11368 = vmax.f32 %v11240, 0.0
      %v11369 = vmax.f32 %v11241, 0.0
      %v11370 = vmax.f32 %v11242, 0.0
      %v11371 = vmax.f32 %v11243, 0.0
      %v11372 = vmax.f32 %v11244, 0.0
      %v11373 = vmax.f32 %v11245, 0.0
      %v11374 = vmax.f32 %v11246, 0.0
      %v11375 = vmax.f32 %v11247, 0.0
      %v11376 = vmax.f32 %v11248, 0.0
      %v11377 = vmax.f32 %v11249, 0.0
      %v11378 = vmax.f32 %v11250, 0.0
      %v11379 = vmax.f32 %v11251, 0.0
      %v11380 = vmax.f32 %v11252, 0.0
      %v11381 = vmax.f32 %v11253, 0.0
      %v11382 = vmax.f32 %v11254, 0.0
      %v11383 = vmax.f32 %v11255, 0.0
      %v11384 = vmax.f32 %v11256, 0.0
      %v11385 = vmax.f32 %v11257, 0.0
      %v11386 = vmax.f32 %v11258, 0.0
      %v11387 = vmax.f32 %v11259, 0.0
      %v11388 = vmax.f32 %v11260, 0.0
      %v11389 = vmax.f32 %v11261, 0.0
      %vm11390 = vcmask 523264
      %11391 = vst.msk [vmem:[%s411] sm:$0xff] %vm11390, %v11262
      %11392 = vst.msk [vmem:[%s411 + $0x8] sm:$0xff] %vm11390, %v11263
      %11393 = vst.msk [vmem:[%s411 + $0x10] sm:$0xff] %vm11390, %v11264
      %11394 = vst.msk [vmem:[%s411 + $0x18] sm:$0xff] %vm11390, %v11265
      %11395 = vst.msk [vmem:[%s411 + $0x20] sm:$0xff] %vm11390, %v11266
      %11396 = vst.msk [vmem:[%s411 + $0x28] sm:$0xff] %vm11390, %v11267
      %11397 = vst.msk [vmem:[%s411 + $0x30] sm:$0xff] %vm11390, %v11268
      %11398 = vst.msk [vmem:[%s411 + $0x38] sm:$0xff] %vm11390, %v11269
      %11399 = vst.msk [vmem:[%s411 + $0x40] sm:$0xff] %vm11390, %v11270
      %11400 = vst.msk [vmem:[%s411 + $0x48] sm:$0xff] %vm11390, %v11271
      %11401 = vst.msk [vmem:[%s411 + $0x50] sm:$0xff] %vm11390, %v11272
      %11402 = vst.msk [vmem:[%s411 + $0x58] sm:$0xff] %vm11390, %v11273
      %11403 = vst.msk [vmem:[%s411 + $0x60] sm:$0xff] %vm11390, %v11274
      %11404 = vst.msk [vmem:[%s411 + $0x68] sm:$0xff] %vm11390, %v11275
      %11405 = vst.msk [vmem:[%s411 + $0x70] sm:$0xff] %vm11390, %v11276
      %11406 = vst.msk [vmem:[%s411 + $0x78] sm:$0xff] %vm11390, %v11277
      %11407 = vst.msk [vmem:[%s411 + $0x80] sm:$0xff] %vm11390, %v11278
      %11408 = vst.msk [vmem:[%s411 + $0x88] sm:$0xff] %vm11390, %v11279
      %11409 = vst.msk [vmem:[%s411 + $0x90] sm:$0xff] %vm11390, %v11280
      %11410 = vst.msk [vmem:[%s411 + $0x98] sm:$0xff] %vm11390, %v11281
      %11411 = vst.msk [vmem:[%s411 + $0xa0] sm:$0xff] %vm11390, %v11282
      %11412 = vst.msk [vmem:[%s411 + $0xa8] sm:$0xff] %vm11390, %v11283
      %11413 = vst.msk [vmem:[%s411 + $0xb0] sm:$0xff] %vm11390, %v11284
      %11414 = vst.msk [vmem:[%s411 + $0xb8] sm:$0xff] %vm11390, %v11285
      %11415 = vst.msk [vmem:[%s411 + $0xc0] sm:$0xff] %vm11390, %v11286
      %11416 = vst.msk [vmem:[%s411 + $0xc8] sm:$0xff] %vm11390, %v11287
      %11417 = vst.msk [vmem:[%s411 + $0xd0] sm:$0xff] %vm11390, %v11288
      %11418 = vst.msk [vmem:[%s411 + $0xd8] sm:$0xff] %vm11390, %v11289
      %11419 = vst.msk [vmem:[%s411 + $0xe0] sm:$0xff] %vm11390, %v11290
      %11420 = vst.msk [vmem:[%s411 + $0xe8] sm:$0xff] %vm11390, %v11291
      %11421 = vst.msk [vmem:[%s411 + $0xf0] sm:$0xff] %vm11390, %v11292
      %11422 = vst.msk [vmem:[%s411 + $0xf8] sm:$0xff] %vm11390, %v11293
      %11423 = vst.msk [vmem:[%s411 + $0x100] sm:$0xff] %vm11390, %v11294
      %11424 = vst.msk [vmem:[%s411 + $0x108] sm:$0xff] %vm11390, %v11295
      %11425 = vst.msk [vmem:[%s411 + $0x110] sm:$0xff] %vm11390, %v11296
      %11426 = vst.msk [vmem:[%s411 + $0x118] sm:$0xff] %vm11390, %v11297
      %11427 = vst.msk [vmem:[%s411 + $0x120] sm:$0xff] %vm11390, %v11298
      %11428 = vst.msk [vmem:[%s411 + $0x128] sm:$0xff] %vm11390, %v11299
      %11429 = vst.msk [vmem:[%s411 + $0x130] sm:$0xff] %vm11390, %v11300
      %11430 = vst.msk [vmem:[%s411 + $0x138] sm:$0xff] %vm11390, %v11301
      %11431 = vst.msk [vmem:[%s411 + $0x140] sm:$0xff] %vm11390, %v11302
      %11432 = vst.msk [vmem:[%s411 + $0x148] sm:$0xff] %vm11390, %v11303
      %11433 = vst.msk [vmem:[%s411 + $0x150] sm:$0xff] %vm11390, %v11304
      %11434 = vst.msk [vmem:[%s411 + $0x158] sm:$0xff] %vm11390, %v11305
      %11435 = vst.msk [vmem:[%s411 + $0x160] sm:$0xff] %vm11390, %v11306
      %11436 = vst.msk [vmem:[%s411 + $0x168] sm:$0xff] %vm11390, %v11307
      %11437 = vst.msk [vmem:[%s411 + $0x170] sm:$0xff] %vm11390, %v11308
      %11438 = vst.msk [vmem:[%s411 + $0x178] sm:$0xff] %vm11390, %v11309
      %11439 = vst.msk [vmem:[%s411 + $0x180] sm:$0xff] %vm11390, %v11310
      %11440 = vst.msk [vmem:[%s411 + $0x188] sm:$0xff] %vm11390, %v11311
      %11441 = vst.msk [vmem:[%s411 + $0x190] sm:$0xff] %vm11390, %v11312
      %11442 = vst.msk [vmem:[%s411 + $0x198] sm:$0xff] %vm11390, %v11313
      %11443 = vst.msk [vmem:[%s411 + $0x1a0] sm:$0xff] %vm11390, %v11314
      %11444 = vst.msk [vmem:[%s411 + $0x1a8] sm:$0xff] %vm11390, %v11315
      %11445 = vst.msk [vmem:[%s411 + $0x1b0] sm:$0xff] %vm11390, %v11316
      %11446 = vst.msk [vmem:[%s411 + $0x1b8] sm:$0xff] %vm11390, %v11317
      %11447 = vst.msk [vmem:[%s411 + $0x1c0] sm:$0xff] %vm11390, %v11318
      %11448 = vst.msk [vmem:[%s411 + $0x1c8] sm:$0xff] %vm11390, %v11319
      %11449 = vst.msk [vmem:[%s411 + $0x1d0] sm:$0xff] %vm11390, %v11320
      %11450 = vst.msk [vmem:[%s411 + $0x1d8] sm:$0xff] %vm11390, %v11321
      %11451 = vst.msk [vmem:[%s411 + $0x1e0] sm:$0xff] %vm11390, %v11322
      %11452 = vst.msk [vmem:[%s411 + $0x1e8] sm:$0xff] %vm11390, %v11323
      %11453 = vst.msk [vmem:[%s411 + $0x1f0] sm:$0xff] %vm11390, %v11324
      %11454 = vst.msk [vmem:[%s411 + $0x1f8] sm:$0xff] %vm11390, %v11325
      %11455 = vst.msk [vmem:[%s411 + $0x200] sm:$0xff] %vm11390, %v11326
      %11456 = vst.msk [vmem:[%s411 + $0x208] sm:$0xff] %vm11390, %v11327
      %11457 = vst.msk [vmem:[%s411 + $0x210] sm:$0xff] %vm11390, %v11328
      %11458 = vst.msk [vmem:[%s411 + $0x218] sm:$0xff] %vm11390, %v11329
      %11459 = vst.msk [vmem:[%s411 + $0x220] sm:$0xff] %vm11390, %v11330
      %11460 = vst.msk [vmem:[%s411 + $0x228] sm:$0xff] %vm11390, %v11331
      %11461 = vst.msk [vmem:[%s411 + $0x230] sm:$0xff] %vm11390, %v11332
      %11462 = vst.msk [vmem:[%s411 + $0x238] sm:$0xff] %vm11390, %v11333
      %11463 = vst.msk [vmem:[%s411 + $0x240] sm:$0xff] %vm11390, %v11334
      %11464 = vst.msk [vmem:[%s411 + $0x248] sm:$0xff] %vm11390, %v11335
      %11465 = vst.msk [vmem:[%s411 + $0x250] sm:$0xff] %vm11390, %v11336
      %11466 = vst.msk [vmem:[%s411 + $0x258] sm:$0xff] %vm11390, %v11337
      %11467 = vst.msk [vmem:[%s411 + $0x260] sm:$0xff] %vm11390, %v11338
      %11468 = vst.msk [vmem:[%s411 + $0x268] sm:$0xff] %vm11390, %v11339
      %11469 = vst.msk [vmem:[%s411 + $0x270] sm:$0xff] %vm11390, %v11340
      %11470 = vst.msk [vmem:[%s411 + $0x278] sm:$0xff] %vm11390, %v11341
      %11471 = vst.msk [vmem:[%s411 + $0x280] sm:$0xff] %vm11390, %v11342
      %11472 = vst.msk [vmem:[%s411 + $0x288] sm:$0xff] %vm11390, %v11343
      %11473 = vst.msk [vmem:[%s411 + $0x290] sm:$0xff] %vm11390, %v11344
      %11474 = vst.msk [vmem:[%s411 + $0x298] sm:$0xff] %vm11390, %v11345
      %11475 = vst.msk [vmem:[%s411 + $0x2a0] sm:$0xff] %vm11390, %v11346
      %11476 = vst.msk [vmem:[%s411 + $0x2a8] sm:$0xff] %vm11390, %v11347
      %11477 = vst.msk [vmem:[%s411 + $0x2b0] sm:$0xff] %vm11390, %v11348
      %11478 = vst.msk [vmem:[%s411 + $0x2b8] sm:$0xff] %vm11390, %v11349
      %11479 = vst.msk [vmem:[%s411 + $0x2c0] sm:$0xff] %vm11390, %v11350
      %11480 = vst.msk [vmem:[%s411 + $0x2c8] sm:$0xff] %vm11390, %v11351
      %11481 = vst.msk [vmem:[%s411 + $0x2d0] sm:$0xff] %vm11390, %v11352
      %11482 = vst.msk [vmem:[%s411 + $0x2d8] sm:$0xff] %vm11390, %v11353
      %11483 = vst.msk [vmem:[%s411 + $0x2e0] sm:$0xff] %vm11390, %v11354
      %11484 = vst.msk [vmem:[%s411 + $0x2e8] sm:$0xff] %vm11390, %v11355
      %11485 = vst.msk [vmem:[%s411 + $0x2f0] sm:$0xff] %vm11390, %v11356
      %11486 = vst.msk [vmem:[%s411 + $0x2f8] sm:$0xff] %vm11390, %v11357
      %11487 = vst.msk [vmem:[%s411 + $0x300] sm:$0xff] %vm11390, %v11358
      %11488 = vst.msk [vmem:[%s411 + $0x308] sm:$0xff] %vm11390, %v11359
      %11489 = vst.msk [vmem:[%s411 + $0x310] sm:$0xff] %vm11390, %v11360
      %11490 = vst.msk [vmem:[%s411 + $0x318] sm:$0xff] %vm11390, %v11361
      %11491 = vst.msk [vmem:[%s411 + $0x320] sm:$0xff] %vm11390, %v11362
      %11492 = vst.msk [vmem:[%s411 + $0x328] sm:$0xff] %vm11390, %v11363
      %11493 = vst.msk [vmem:[%s411 + $0x330] sm:$0xff] %vm11390, %v11364
      %11494 = vst.msk [vmem:[%s411 + $0x338] sm:$0xff] %vm11390, %v11365
      %11495 = vst.msk [vmem:[%s411 + $0x340] sm:$0xff] %vm11390, %v11366
      %11496 = vst.msk [vmem:[%s411 + $0x348] sm:$0xff] %vm11390, %v11367
      %11497 = vst.msk [vmem:[%s411 + $0x350] sm:$0xff] %vm11390, %v11368
      %11498 = vst.msk [vmem:[%s411 + $0x358] sm:$0xff] %vm11390, %v11369
      %11499 = vst.msk [vmem:[%s411 + $0x360] sm:$0xff] %vm11390, %v11370
      %11500 = vst.msk [vmem:[%s411 + $0x368] sm:$0xff] %vm11390, %v11371
      %11501 = vst.msk [vmem:[%s411 + $0x370] sm:$0xff] %vm11390, %v11372
      %11502 = vst.msk [vmem:[%s411 + $0x378] sm:$0xff] %vm11390, %v11373
      %11503 = vst.msk [vmem:[%s411 + $0x380] sm:$0xff] %vm11390, %v11374
      %11504 = vst.msk [vmem:[%s411 + $0x388] sm:$0xff] %vm11390, %v11375
      %11505 = vst.msk [vmem:[%s411 + $0x390] sm:$0xff] %vm11390, %v11376
      %11506 = vst.msk [vmem:[%s411 + $0x398] sm:$0xff] %vm11390, %v11377
      %11507 = vst.msk [vmem:[%s411 + $0x3a0] sm:$0xff] %vm11390, %v11378
      %11508 = vst.msk [vmem:[%s411 + $0x3a8] sm:$0xff] %vm11390, %v11379
      %11509 = vst.msk [vmem:[%s411 + $0x3b0] sm:$0xff] %vm11390, %v11380
      %11510 = vst.msk [vmem:[%s411 + $0x3b8] sm:$0xff] %vm11390, %v11381
      %11511 = vst.msk [vmem:[%s411 + $0x3c0] sm:$0xff] %vm11390, %v11382
      %11512 = vst.msk [vmem:[%s411 + $0x3c8] sm:$0xff] %vm11390, %v11383
      %11513 = vst.msk [vmem:[%s411 + $0x3d0] sm:$0xff] %vm11390, %v11384
      %11514 = vst.msk [vmem:[%s411 + $0x3d8] sm:$0xff] %vm11390, %v11385
      %11515 = vst.msk [vmem:[%s411 + $0x3e0] sm:$0xff] %vm11390, %v11386
      %11516 = vst.msk [vmem:[%s411 + $0x3e8] sm:$0xff] %vm11390, %v11387
      %11517 = vst.msk [vmem:[%s411 + $0x3f0] sm:$0xff] %vm11390, %v11388
      %11518 = vst.msk [vmem:[%s411 + $0x3f8] sm:$0xff] %vm11390, %v11389
      %s11519 = smul.u32 128, %s21
      %p11520 = scmp.lt.s32.totalorder %s11519, 511
      %s11521 = scalar_select %p11520, %s11519, 511
      %s11522 = smul.addr %s11521, 8
      %s11523 = scalar_lea.vmem %s10, %s11522
      // Predicated region
      $region61: #{tpu_custom_call.1} parent=59 // pred_check
        %p11524 = pneg %p264
      $region62: #{tpu_custom_call.1} parent=59 // pred_check_branch
        %11526 = sbr.rel (%p11524) target = $region64
      $region63: #{tpu_custom_call.1} parent=59 // pred_region
        %s11527 = smul.u32 128, %s21
      $region64: #{tpu_custom_call.1} parent=59 // pred_fallthru
        _
    $region60: #{tpu_custom_call.1} parent=5 // pred_fallthru
      _
    %p11528 = scmp.le.s32.totalorder 2, %s16
    // Predicated region
    $region65: #{tpu_custom_call.1} parent=5 // pred_check
      %p11529 = pneg %p11528
    $region66: #{tpu_custom_call.1} parent=5 // pred_check_branch
      %11531 = sbr.rel (%p11529) target = $region68
    $region67: #{tpu_custom_call.1} parent=5 // pred_region
      %s11532 = ssub.s32 %s16, 2
      // Predicated region
      $region69: #{tpu_custom_call.1} parent=67 // pred_check
        %p11533 = pneg %p270
      $region70: #{tpu_custom_call.1} parent=67 // pred_check_branch
        %11535 = sbr.rel (%p11533) target = $region72
      $region71: #{tpu_custom_call.1} parent=67 // pred_region
        %s11536 = smul.u32 128, %s22
        %p11537 = scmp.lt.s32.totalorder %s11536, 511
        %s11538 = scalar_select %p11537, %s11536, 511
        %s11539 = smul.addr %s11538, 8
        %s11540 = scalar_lea.vmem %s10, %s11539
      $region72: #{tpu_custom_call.1} parent=67 // pred_fallthru
        _
    $region68: #{tpu_custom_call.1} parent=5 // pred_fallthru
      _
  $region6: #{tpu_custom_call.1} parent=0 // loop_footer
    %s20 = sadd.s32 1, %s16
  $region7: #{tpu_custom_call.1} parent=0 // loop_footer_branch
    %15 = sbr.rel target = $region3
  $region8: #{tpu_custom_call.1} parent=0 // loop_exit
    _

</llo_original>
